<compile_context>
chip_gen: v6e
topology: v6e:2x2x1
jax: 0.10.0
libtpu: 0.0.40
codegen_flags: <defaults>
</compile_context>

<pallas_src>
import functools
import math

import jax
import jax.numpy as jnp
from jax import lax
from jax.experimental import pallas as pl
from jax.experimental.pallas import tpu as pltpu


_EPS = 1e-5


# ----------------------------------------------------------------------------
# In-kernel helpers
# ----------------------------------------------------------------------------
def _ln(x, g, b):
    """LayerNorm over the last axis (eps=1e-5, biased variance), f32 VPU math."""
    x = x.astype(jnp.float32)
    mu = jnp.mean(x, axis=-1, keepdims=True)
    xc = x - mu
    var = jnp.mean(xc * xc, axis=-1, keepdims=True)
    return xc * lax.rsqrt(var + _EPS) * g + b


def _mxu_dot(a, b):
    """2-D matmul with bf16 operands (MXU-friendly on v6e/v7x), f32 accumulation."""
    return jnp.dot(a.astype(jnp.bfloat16), b.astype(jnp.bfloat16),
                   preferred_element_type=jnp.float32)


def _full_spec(a):
    """Full-array BlockSpec (weights shared across the batch grid)."""
    zeros = (0,) * a.ndim
    return pl.BlockSpec(a.shape, lambda b: zeros)


def _parallel():
    return pltpu.CompilerParams(dimension_semantics=("parallel",))


# ----------------------------------------------------------------------------
# Kernel 1: LN(msa) -> proj_1D -> LN -> seq-weight softmax -> weighting + sums
# ----------------------------------------------------------------------------
def _msa_seq_kernel(x_ref, g0_ref, b0_ref, w1_ref, b1_ref, g1_ref, be1_ref, swa_ref,
                    feat_ref, xlw_ref, xls_ref, *, n_seq, seq_len):
    xf = x_ref[0]                                            # (N*L, E)
    xn = _ln(xf, g0_ref[...], b0_ref[...])                   # layer_norm_MSA
    f = _mxu_dot(xn, w1_ref[...]) + b1_ref[...]              # proj_1D Linear
    f = _ln(f, g1_ref[...], be1_ref[...])                    # proj_1D LayerNorm
    f3 = f.reshape(n_seq, seq_len, f.shape[-1])              # (N, L, D1): leading split only

    # SeqWeightAttention: Dout=1 score head as a VPU multiply + lane reduce, softmax
    # over the sequence axis fused here (no HBM round trip of the logits).
    # TODO(synk): SeqWeightAttention reference not provided; per-residue softmax over N,
    # seq_mask not supported in this fused path.
    lg = jnp.sum(f3 * swa_ref[...], axis=-1, keepdims=True)  # (N, L, 1)
    m = jnp.max(lg, axis=0, keepdims=True)
    p = jnp.exp(lg - m)
    s = jnp.sum(p, axis=0, keepdims=True)
    w = p * pl.reciprocal(s, approx=True)                    # (N, L, 1) seq weights

    xlw = f3 * w                                             # weighted left features
    feat_ref[0] = f3
    xlw_ref[0] = xlw
    xls_ref[0] = jnp.sum(xlw, axis=0)                        # (L, D1) for pair_feat_1D


def msa_seq_call(x2, p, n_seq, seq_len):
    B, NL, E = x2.shape
    D1 = p["proj1d_w"].shape[1]
    args = (
        x2,
        p["ln_msa_g"].reshape(1, E), p["ln_msa_b"].reshape(1, E),
        p["proj1d_w"], p["proj1d_b"].reshape(1, D1),
        p["proj1d_ln_g"].reshape(1, D1), p["proj1d_ln_b"].reshape(1, D1),
        p["swa_w"].reshape(1, D1),
    )
    in_specs = [pl.BlockSpec((1, NL, E), lambda b: (b, 0, 0))]
    in_specs += [_full_spec(a) for a in args[1:]]
    kern = functools.partial(_msa_seq_kernel, n_seq=n_seq, seq_len=seq_len)
    return pl.pallas_call(
        kern,
        out_shape=(jax.ShapeDtypeStruct((B, n_seq, seq_len, D1), jnp.float32),
                   jax.ShapeDtypeStruct((B, n_seq, seq_len, D1), jnp.float32),
                   jax.ShapeDtypeStruct((B, seq_len, D1), jnp.float32)),
        grid=(B,),
        in_specs=in_specs,
        out_specs=(pl.BlockSpec((1, n_seq, seq_len, D1), lambda b: (b, 0, 0, 0)),
                   pl.BlockSpec((1, n_seq, seq_len, D1), lambda b: (b, 0, 0, 0)),
                   pl.BlockSpec((1, seq_len, D1), lambda b: (b, 0, 0))),
        compiler_params=_parallel(),
    )(*args)


# ----------------------------------------------------------------------------
# Kernel 2: CovLayer outer product  op[(i,l),(j,r)] = sum_n xl_w[n,i,l] * feat[n,j,r]
# ----------------------------------------------------------------------------
def _cov_outer_kernel(xlw_ref, feat_ref, o_ref):
    a = xlw_ref[0].astype(jnp.bfloat16)      # (N, L*D1) weighted left features
    f = feat_ref[0].astype(jnp.bfloat16)     # (N, L*D1) unweighted right features
    # Contract the leading (sequence) axis directly on the MXU: no XLA-side transpose
    # of the activations is needed.  Output block is lane-dense (L*D1 lanes).
    o_ref[0] = lax.dot_general(a, f, (((0,), (0,)), ((), ())),
                               preferred_element_type=jnp.float32)


def cov_outer_call(xlw2, feat2):
    B, N, LD1 = xlw2.shape
    return pl.pallas_call(
        _cov_outer_kernel,
        out_shape=jax.ShapeDtypeStruct((B, LD1, LD1), jnp.float32),
        grid=(B,),
        in_specs=[pl.BlockSpec((1, N, LD1), lambda b: (b, 0, 0)),
                  pl.BlockSpec((1, N, LD1), lambda b: (b, 0, 0))],
        out_specs=pl.BlockSpec((1, LD1, LD1), lambda b: (b, 0, 0)),
        compiler_params=_parallel(),
    )(xlw2, feat2)


# ----------------------------------------------------------------------------
# Kernel 3: cov proj + norm_pair1/2 + pair_feat_1D + proj_2D + InstanceNorm2d
# ----------------------------------------------------------------------------
def _pair_assembly_kernel(op_ref, prev_ref, xls_ref,
                          covw_ref, covb_ref, g1_ref, b1_ref, g2_ref, b2_ref,
                          wl_ref, wr_ref, wc_ref, wp_ref, b2d_ref, o_ref, *, seq_len):
    L = seq_len
    opf = op_ref[0]                  # (L*L, D1*D1)  rows (i,j), cols (l,r)
    prevf = prev_ref[0]              # (L*L, C2)
    xls = xls_ref[0]                 # (L, D1)  weighted-summed 1D features

    cov = _mxu_dot(opf, covw_ref[...]) + covb_ref[...]       # CovLayer proj (bias=True)
    cov = _ln(cov, g1_ref[...], b1_ref[...])                 # norm_pair1
    prevn = _ln(prevf, g2_ref[...], b2_ref[...])             # norm_pair2

    # proj_2D (1x1 conv, bias=True): channel concat [left, right, cov, prev] folded
    # into 4 weight slices; left/right terms collapse to rank-1 adds.  All matmuls are
    # flat (M = L*L) 2-D matmuls instead of per-row batched dots.
    ls = _mxu_dot(xls, wl_ref[...])                          # (L, C2), varies with j
    rs = _mxu_dot(xls, wr_ref[...])                          # (L, C2), varies with i
    z = _mxu_dot(cov, wc_ref[...]) + _mxu_dot(prevn, wp_ref[...])    # (L*L, C2)
    c2 = z.shape[-1]
    z3 = z.reshape(L, L, c2)                                 # leading split only
    z3 = z3 + ls[None, :, :] + rs[:, None, :] + b2d_ref[...]

    # InstanceNorm2d (affine=False): per-channel stats over the (L, L) spatial dims.
    # TODO(synk): for an (i,j)-tiled production K3 this becomes a two-pass reduction.
    mu = jnp.mean(jnp.mean(z3, axis=0, keepdims=True), axis=1, keepdims=True)
    zc = z3 - mu
    var = jnp.mean(jnp.mean(zc * zc, axis=0, keepdims=True), axis=1, keepdims=True)
    o_ref[0] = zc * lax.rsqrt(var + _EPS)


def pair_assembly_call(op_r, prev2, xl_sum, p, seq_len):
    B, LL, DD = op_r.shape
    C2 = prev2.shape[-1]
    D1 = xl_sum.shape[-1]
    w2 = p["proj2d_w"]
    w2_left, w2_right = w2[:D1], w2[D1:2 * D1]
    w2_cov, w2_prev = w2[2 * D1:2 * D1 + C2], w2[2 * D1 + C2:]
    args = (
        op_r, prev2, xl_sum,
        p["cov_w"], p["cov_b"].reshape(1, C2),
        p["np1_g"].reshape(1, C2), p["np1_b"].reshape(1, C2),
        p["np2_g"].reshape(1, C2), p["np2_b"].reshape(1, C2),
        w2_left, w2_right, w2_cov, w2_prev,
        p["proj2d_b"].reshape(1, C2),
    )
    in_specs = [pl.BlockSpec((1, LL, DD), lambda b: (b, 0, 0)),
                pl.BlockSpec((1, LL, C2), lambda b: (b, 0, 0)),
                pl.BlockSpec((1, seq_len, D1), lambda b: (b, 0, 0))]
    in_specs += [_full_spec(a) for a in args[3:]]
    kern = functools.partial(_pair_assembly_kernel, seq_len=seq_len)
    return pl.pallas_call(
        kern,
        out_shape=jax.ShapeDtypeStruct((B, seq_len, seq_len, C2), jnp.float32),
        grid=(B,),
        in_specs=in_specs,
        out_specs=pl.BlockSpec((1, seq_len, seq_len, C2), lambda b: (b, 0, 0, 0)),
        compiler_params=_parallel(),
    )(*args)


# ----------------------------------------------------------------------------
# Kernel 4: MHPair_to_MSA (logits/softmax/PV/out-proj/residual) + FF residual
# ----------------------------------------------------------------------------
def _msa_update_kernel(x_ref, ps_ref, mask_ref,
                       lm_g_ref, lm_b_ref, lp_g_ref, lp_b_ref,
                       wlT_ref, wv_ref, wo_ref,
                       ffg_ref, ffb_ref, w1_ref, w2_ref,
                       o_ref, acc_ref, *, n_seq, seq_len, n_head, scale):
    N, L, H = n_seq, seq_len, n_head
    xf = x_ref[0]                     # (N*L, E)
    psf = ps_ref[0]                   # (L*L, C2) pre-symmetrized pair features
    mask = mask_ref[0]                # (L, L)
    E = xf.shape[-1]
    Dh = E // H
    neg = jnp.finfo(jnp.float32).min

    msa = _ln(xf, lm_g_ref[...], lm_b_ref[...])              # layer_norm_msa
    v = _mxu_dot(msa, wv_ref[...])                           # to_v, all heads: (N*L, E)
    v3 = v.reshape(N, L, E)                                  # leading split only
    pln = _ln(psf, lp_g_ref[...], lp_b_ref[...]) * scale     # layer_norm_pair + scaling
    pln3 = pln.reshape(L, L, pln.shape[-1])

    wlT = wlT_ref[...]                                       # (H, C2)
    for h in range(H):
        # Per-head logit projection (Dout=1) as a VPU multiply + lane reduce.
        lg = jnp.sum(pln3 * wlT[h:h + 1], axis=-1)           # (L, L)
        lg = jnp.where(mask > 0, lg, neg)                    # masked_fill semantics
        m = jnp.max(lg, axis=-1, keepdims=True)
        pw = jnp.exp(lg - m)
        attn = pw * pl.reciprocal(jnp.sum(pw, axis=-1, keepdims=True), approx=True)
        attn = attn.astype(jnp.bfloat16)
        # PV as plain 2-D (L,L)@(L,Dh) matmuls into a VMEM scratch (no broadcast_to of
        # attn over N, no materialized (N,L,L) copy).
        # TODO(synk): at production N this (h, n) unroll becomes a fori_loop over an
        # L-tiled grid; at toy sizes it is H*N = 16 tiny matmuls.
        for n in range(N):
            v_nh = v3[n][:, h * Dh:(h + 1) * Dh].astype(jnp.bfloat16)   # (L, Dh)
            acc_ref[n * L:(n + 1) * L, h * Dh:(h + 1) * Dh] = jnp.dot(
                attn, v_nh, preferred_element_type=jnp.float32)

    # Single (N*L, E) @ (E, E) output projection (instead of H matmuls with K=Dh).
    attn_out = _mxu_dot(acc_ref[...], wo_ref[...])
    x1 = xf + attn_out                                       # MHPair_to_MSA residual

    # TODO(synk): FeedForward/Residual reference not provided; pre-LayerNorm
    # Linear -> ELU -> Linear (no bias) residual, matching constructor args.
    hdn = _ln(x1, ffg_ref[...], ffb_ref[...])
    hdn = _mxu_dot(hdn, w1_ref[...])
    hdn = jnp.where(hdn > 0, hdn, jnp.exp(jnp.minimum(hdn, 0.0)) - 1.0)
    hdn = _mxu_dot(hdn, w2_ref[...])
    o_ref[0] = x1 + hdn


def msa_update_call(x2, pair_sym2, mask2d, pmh, pff, n_seq, seq_len, n_head):
    B, NL, E = x2.shape
    C2 = pair_sym2.shape[-1]
    Dh = E // n_head
    scale = (Dh ** -0.5) / math.sqrt(seq_len)   # Pair_to_MSA scaling, seqlen_scaling=True
    args = (
        x2, pair_sym2, mask2d,
        pmh["ln_msa_g"].reshape(1, E), pmh["ln_msa_b"].reshape(1, E),
        pmh["ln_pair_g"].reshape(1, C2), pmh["ln_pair_b"].reshape(1, C2),
        jnp.transpose(pmh["w_logit"]),           # (H, C2)
        pmh["w_v"], pmh["w_out"],
        pff["ln_g"].reshape(1, E), pff["ln_b"].reshape(1, E),
        pff["w1"], pff["w2"],
    )
    in_specs = [pl.BlockSpec((1, NL, E), lambda b: (b, 0, 0)),
                pl.BlockSpec((1, seq_len * seq_len, C2), lambda b: (b, 0, 0)),
                pl.BlockSpec((1, seq_len, seq_len), lambda b: (b, 0, 0))]
    in_specs += [_full_spec(a) for a in args[3:]]
    kern = functools.partial(_msa_update_kernel, n_seq=n_seq, seq_len=seq_len,
                             n_head=n_head, scale=scale)
    return pl.pallas_call(
        kern,
        out_shape=jax.ShapeDtypeStruct((B, NL, E), jnp.float32),
        grid=(B,),
        in_specs=in_specs,
        out_specs=pl.BlockSpec((1, NL, E), lambda b: (b, 0, 0)),
        scratch_shapes=[pltpu.VMEM((NL, E), jnp.float32)],
        compiler_params=_parallel(),
    )(*args)


# ----------------------------------------------------------------------------
# Module forward (thin XLA glue around the 4 fused kernels)
# ----------------------------------------------------------------------------
def msa_pair_attention_layer(params, x, pair_feat_prev, n_head=4,
                             seq_weight=None, res_mask=None, seq_mask=None):
    B, N, L, E = x.shape
    p1, p2, p3 = params["m2p"], params["mh"], params["ff"]
    D1 = p1["proj1d_w"].shape[1]
    C2 = pair_feat_prev.shape[-1]

    x2 = x.reshape(B, N * L, E)

    # K1: LN -> proj_1D -> LN -> seq-weight softmax -> weighting + N-sum (fused).
    feat, xl_w, xl_sum = msa_seq_call(x2, p1, N, L)

    # K2: covariance outer product; the sequence axis is contracted in-kernel, so no
    # XLA transpose of the activations.  The free (B,N,L,D1)->(B,N,L*D1) view below is
    # the lane-dense layout K2 consumes.
    op = cov_outer_call(xl_w.reshape(B, N, L * D1), feat.reshape(B, N, L * D1))

    # [(i,l),(j,r)] -> ((i,j),(l,r)) relayout kept in XLA glue.
    # TODO(synk): at production L this costs ~3 extra HBM passes over the op
    # intermediate; fusing it into an (i,j)-tiled K3 needs an in-kernel minor-dim
    # relayout that Mosaic does not reliably lower, so it stays in XLA for robustness.
    op_r = (op.reshape(B, L, D1, L, D1)
              .transpose(0, 1, 3, 2, 4)
              .reshape(B, L * L, D1 * D1))

    # K3: fused cov proj + norm_pair1/2 + pair_feat_1D + proj_2D + InstanceNorm2d.
    pair = pair_assembly_call(op_r, pair_feat_prev.reshape(B, L * L, C2), xl_sum, p1, L)
    # TODO(synk): ResNet2DBlock / AxialTransformerLayer definitions not provided; identity.

    # K4: MHPair_to_MSA + FeedForward residual, fused per batch.
    pair_sym = 0.5 * (pair + jnp.swapaxes(pair, 1, 2))
    if res_mask is not None:
        mask2d = (res_mask[:, :, None] * res_mask[:, None, :]).astype(jnp.float32)
    else:
        mask2d = jnp.ones((B, L, L), jnp.float32)
    x_out = msa_update_call(x2, pair_sym.reshape(B, L * L, C2), mask2d,
                            p2, p3, N, L, n_head)

    return x_out.reshape(B, N, L, E), pair


# ----------------------------------------------------------------------------
# Deterministic parameter init
# ----------------------------------------------------------------------------
def init_params(key, emb_dim=32, n_emb_1D=8, n_emb_2D=16, n_head=4):
    keys = jax.random.split(key, 9)

    def w(k, shape, scale=0.05):
        return (scale * jax.random.normal(k, shape)).astype(jnp.float32)

    n_in_2D = 2 * n_emb_2D + 2 * n_emb_1D
    head_dim = emb_dim // n_head
    m2p = dict(
        ln_msa_g=jnp.ones((emb_dim,), jnp.float32), ln_msa_b=jnp.zeros((emb_dim,), jnp.float32),
        proj1d_w=w(keys[0], (emb_dim, n_emb_1D)), proj1d_b=jnp.zeros((n_emb_1D,), jnp.float32),
        proj1d_ln_g=jnp.ones((n_emb_1D,), jnp.float32), proj1d_ln_b=jnp.zeros((n_emb_1D,), jnp.float32),
        swa_w=w(keys[1], (n_emb_1D, 1)),
        cov_w=w(keys[2], (n_emb_1D * n_emb_1D, n_emb_2D)), cov_b=jnp.zeros((n_emb_2D,), jnp.float32),
        np1_g=jnp.ones((n_emb_2D,), jnp.float32), np1_b=jnp.zeros((n_emb_2D,), jnp.float32),
        np2_g=jnp.ones((n_emb_2D,), jnp.float32), np2_b=jnp.zeros((n_emb_2D,), jnp.float32),
        proj2d_w=w(keys[3], (n_in_2D, n_emb_2D)), proj2d_b=jnp.zeros((n_emb_2D,), jnp.float32),
    )
    mh = dict(
        ln_msa_g=jnp.ones((emb_dim,), jnp.float32), ln_msa_b=jnp.zeros((emb_dim,), jnp.float32),
        ln_pair_g=jnp.ones((n_emb_2D,), jnp.float32), ln_pair_b=jnp.zeros((n_emb_2D,), jnp.float32),
        w_logit=w(keys[4], (n_emb_2D, n_head)),
        w_v=w(keys[5], (emb_dim, n_head * head_dim)),
        w_out=w(keys[6], (emb_dim, emb_dim)),
    )
    ff = dict(
        ln_g=jnp.ones((emb_dim,), jnp.float32), ln_b=jnp.zeros((emb_dim,), jnp.float32),
        w1=w(keys[7], (emb_dim, emb_dim)),
        w2=w(keys[8], (emb_dim, emb_dim)),
    )
    return dict(m2p=m2p, mh=mh, ff=ff)


if __name__ == "__main__":
    B, N, L, E = 2, 4, 16, 32       # batch, seq_num, seq_len, emb_dim
    n_emb_1D, n_emb_2D, n_head = 8, 16, 4

    key = jax.random.PRNGKey(0)
    k1, k2, k3 = jax.random.split(key, 3)
    x = jax.random.normal(k1, (B, N, L, E), dtype=jnp.float32)
    pair_prev = jax.random.normal(k2, (B, L, L, n_emb_2D), dtype=jnp.float32)
    params = init_params(k3, emb_dim=E, n_emb_1D=n_emb_1D, n_emb_2D=n_emb_2D, n_head=n_head)

    fwd = jax.jit(functools.partial(msa_pair_attention_layer, n_head=n_head))
    x_out, pair_out = fwd(params, x, pair_prev)
    (x_out, pair_out) = jax.block_until_ready((x_out, pair_out))

    assert x_out.shape == (B, N, L, E)
    assert pair_out.shape == (B, L, L, n_emb_2D)
    assert bool(jnp.all(jnp.isfinite(x_out))) and bool(jnp.all(jnp.isfinite(pair_out)))
    print("KERNEL_OK")
</pallas_src>

<mosaic_0001>
module attributes {stable_mosaic.version = 11 : i64} {
  func.func @_cov_outer_kernel(%arg0: i32, %arg1: memref<1x4x128xf32, #tpu.memory_space<vmem>>, %arg2: memref<1x4x128xf32, #tpu.memory_space<vmem>>, %arg3: memref<1x128x128xf32, #tpu.memory_space<vmem>>) attributes {dimension_semantics = [#tpu.dimension_semantics<parallel>], iteration_bounds = array<i64: 2>, scalar_prefetch = 0 : i64, scratch_operands = 0 : i64, tpu.core_type = #tpu.core_type<tc>, window_params = [{transform_indices = @transform_0, window_bounds = array<i64: 1, 4, 128>}, {transform_indices = @transform_1, window_bounds = array<i64: 1, 4, 128>}, {transform_indices = @transform_2, window_bounds = array<i64: 1, 128, 128>}]} {
    %c0 = arith.constant 0 : index
    %c0_0 = arith.constant 0 : index
    %c0_1 = arith.constant 0 : index
    %0 = vector.load %arg1[%c0, %c0_0, %c0_1] : memref<1x4x128xf32, #tpu.memory_space<vmem>>, vector<1x4x128xf32>
    %1 = vector.shape_cast %0 : vector<1x4x128xf32> to vector<4x128xf32>
    %2 = arith.truncf %1 : vector<4x128xf32> to vector<4x128xbf16>
    %c0_2 = arith.constant 0 : index
    %c0_3 = arith.constant 0 : index
    %c0_4 = arith.constant 0 : index
    %3 = vector.load %arg2[%c0_2, %c0_3, %c0_4] : memref<1x4x128xf32, #tpu.memory_space<vmem>>, vector<1x4x128xf32>
    %4 = vector.shape_cast %3 : vector<1x4x128xf32> to vector<4x128xf32>
    %5 = arith.truncf %4 : vector<4x128xf32> to vector<4x128xbf16>
    %cst = arith.constant dense<0.000000e+00> : vector<128x128xf32>
    %6 = tpu.matmul %2, %5, %cst {dimension_numbers = #tpu.dot_dimension_numbers<[0], [0], [1], [1], [0, 1, 1, 1], [], []>} : vector<4x128xbf16>, vector<4x128xbf16>, vector<128x128xf32> -> vector<128x128xf32>
    %c0_5 = arith.constant 0 : index
    %c0_6 = arith.constant 0 : index
    %c0_7 = arith.constant 0 : index
    %7 = vector.load %arg3[%c0_5, %c0_6, %c0_7] : memref<1x128x128xf32, #tpu.memory_space<vmem>>, vector<1x128x128xf32>
    %8 = vector.shape_cast %7 : vector<1x128x128xf32> to vector<128x128xf32>
    %9 = vector.shape_cast %6 : vector<128x128xf32> to vector<1x128x128xf32>
    tpu.vector_store %arg3[%c0_5, %c0_6, %c0_7], %9 {strides = array<i32>} : memref<1x128x128xf32, #tpu.memory_space<vmem>>, vector<1x128x128xf32>,
    return
  }
  func.func @transform_0(%arg0: i32) -> (i32, i32, i32) {
    %c0_i32 = arith.constant 0 : i32
    %c0_i32_0 = arith.constant 0 : i32
    %c0_i32_1 = arith.constant 0 : i32
    return %arg0, %c0_i32, %c0_i32_0 : i32, i32, i32
  }
  func.func @transform_1(%arg0: i32) -> (i32, i32, i32) {
    %c0_i32 = arith.constant 0 : i32
    %c0_i32_0 = arith.constant 0 : i32
    %c0_i32_1 = arith.constant 0 : i32
    return %arg0, %c0_i32, %c0_i32_0 : i32, i32, i32
  }
  func.func @transform_2(%arg0: i32) -> (i32, i32, i32) {
    %c0_i32 = arith.constant 0 : i32
    %c0_i32_0 = arith.constant 0 : i32
    %c0_i32_1 = arith.constant 0 : i32
    return %arg0, %c0_i32, %c0_i32_0 : i32, i32, i32
  }
}

module attributes {stable_mosaic.version = 11 : i64} {
  func.func @_msa_seq_kernel(%arg0: i32, %arg1: memref<1x64x32xf32, #tpu.memory_space<vmem>>, %arg2: memref<1x32xf32, #tpu.memory_space<vmem>>, %arg3: memref<1x32xf32, #tpu.memory_space<vmem>>, %arg4: memref<32x8xf32, #tpu.memory_space<vmem>>, %arg5: memref<1x8xf32, #tpu.memory_space<vmem>>, %arg6: memref<1x8xf32, #tpu.memory_space<vmem>>, %arg7: memref<1x8xf32, #tpu.memory_space<vmem>>, %arg8: memref<1x8xf32, #tpu.memory_space<vmem>>, %arg9: memref<1x4x16x8xf32, #tpu.memory_space<vmem>>, %arg10: memref<1x4x16x8xf32, #tpu.memory_space<vmem>>, %arg11: memref<1x16x8xf32, #tpu.memory_space<vmem>>) attributes {dimension_semantics = [#tpu.dimension_semantics<parallel>], iteration_bounds = array<i64: 2>, scalar_prefetch = 0 : i64, scratch_operands = 0 : i64, tpu.core_type = #tpu.core_type<tc>, window_params = [{transform_indices = @transform_0, window_bounds = array<i64: 1, 64, 32>}, {pipeline_mode = #tpu.pipeline_mode<synchronous>, transform_indices = @transform_1, window_bounds = array<i64: 1, 32>}, {pipeline_mode = #tpu.pipeline_mode<synchronous>, transform_indices = @transform_2, window_bounds = array<i64: 1, 32>}, {pipeline_mode = #tpu.pipeline_mode<synchronous>, transform_indices = @transform_3, window_bounds = array<i64: 32, 8>}, {pipeline_mode = #tpu.pipeline_mode<synchronous>, transform_indices = @transform_4, window_bounds = array<i64: 1, 8>}, {pipeline_mode = #tpu.pipeline_mode<synchronous>, transform_indices = @transform_5, window_bounds = array<i64: 1, 8>}, {pipeline_mode = #tpu.pipeline_mode<synchronous>, transform_indices = @transform_6, window_bounds = array<i64: 1, 8>}, {pipeline_mode = #tpu.pipeline_mode<synchronous>, transform_indices = @transform_7, window_bounds = array<i64: 1, 8>}, {transform_indices = @transform_8, window_bounds = array<i64: 1, 4, 16, 8>}, {transform_indices = @transform_9, window_bounds = array<i64: 1, 4, 16, 8>}, {transform_indices = @transform_10, window_bounds = array<i64: 1, 16, 8>}]} {
    %c0 = arith.constant 0 : index
    %c0_0 = arith.constant 0 : index
    %c0_1 = arith.constant 0 : index
    %0 = vector.load %arg1[%c0, %c0_0, %c0_1] : memref<1x64x32xf32, #tpu.memory_space<vmem>>, vector<1x64x32xf32>
    %1 = vector.shape_cast %0 : vector<1x64x32xf32> to vector<64x32xf32>
    %c0_2 = arith.constant 0 : index
    %c0_3 = arith.constant 0 : index
    %2 = vector.load %arg2[%c0_2, %c0_3] : memref<1x32xf32, #tpu.memory_space<vmem>>, vector<1x32xf32>
    %c0_4 = arith.constant 0 : index
    %c0_5 = arith.constant 0 : index
    %3 = vector.load %arg3[%c0_4, %c0_5] : memref<1x32xf32, #tpu.memory_space<vmem>>, vector<1x32xf32>
    %cst = arith.constant dense<0.000000e+00> : vector<64xf32>
    %4 = vector.multi_reduction <add>, %1, %cst [1] : vector<64x32xf32> to vector<64xf32>
    %5 = vector.shape_cast %4 : vector<64xf32> to vector<64x1xf32>
    %cst_6 = arith.constant 3.200000e+01 : f32
    %6 = vector.broadcast %cst_6 : f32 to vector<64x1xf32>
    %7 = arith.divf %5, %6 : vector<64x1xf32>
    %8 = vector.broadcast %7 : vector<64x1xf32> to vector<64x32xf32>
    %9 = arith.subf %1, %8 : vector<64x32xf32>
    %10 = arith.mulf %9, %9 : vector<64x32xf32>
    %cst_7 = arith.constant dense<0.000000e+00> : vector<64xf32>
    %11 = vector.multi_reduction <add>, %10, %cst_7 [1] : vector<64x32xf32> to vector<64xf32>
    %12 = vector.shape_cast %11 : vector<64xf32> to vector<64x1xf32>
    %cst_8 = arith.constant 3.200000e+01 : f32
    %13 = vector.broadcast %cst_8 : f32 to vector<64x1xf32>
    %14 = arith.divf %12, %13 : vector<64x1xf32>
    %cst_9 = arith.constant 9.99999974E-6 : f32
    %15 = vector.broadcast %cst_9 : f32 to vector<64x1xf32>
    %16 = arith.addf %14, %15 : vector<64x1xf32>
    %17 = math.rsqrt %16 : vector<64x1xf32>
    %18 = vector.broadcast %17 : vector<64x1xf32> to vector<64x32xf32>
    %19 = arith.mulf %9, %18 : vector<64x32xf32>
    %20 = vector.broadcast %2 : vector<1x32xf32> to vector<64x32xf32>
    %21 = arith.mulf %19, %20 : vector<64x32xf32>
    %22 = vector.broadcast %3 : vector<1x32xf32> to vector<64x32xf32>
    %23 = arith.addf %21, %22 : vector<64x32xf32>
    %c0_10 = arith.constant 0 : index
    %c0_11 = arith.constant 0 : index
    %24 = vector.load %arg4[%c0_10, %c0_11] : memref<32x8xf32, #tpu.memory_space<vmem>>, vector<32x8xf32>
    %25 = arith.truncf %23 : vector<64x32xf32> to vector<64x32xbf16>
    %26 = arith.truncf %24 : vector<32x8xf32> to vector<32x8xbf16>
    %cst_12 = arith.constant dense<0.000000e+00> : vector<64x8xf32>
    %27 = tpu.matmul %25, %26, %cst_12 {dimension_numbers = #tpu.dot_dimension_numbers<[1], [0], [0], [1], [0, 0, 1, 1], [], []>} : vector<64x32xbf16>, vector<32x8xbf16>, vector<64x8xf32> -> vector<64x8xf32>
    %c0_13 = arith.constant 0 : index
    %c0_14 = arith.constant 0 : index
    %28 = vector.load %arg5[%c0_13, %c0_14] : memref<1x8xf32, #tpu.memory_space<vmem>>, vector<1x8xf32>
    %29 = vector.broadcast %28 : vector<1x8xf32> to vector<64x8xf32>
    %30 = arith.addf %27, %29 : vector<64x8xf32>
    %c0_15 = arith.constant 0 : index
    %c0_16 = arith.constant 0 : index
    %31 = vector.load %arg6[%c0_15, %c0_16] : memref<1x8xf32, #tpu.memory_space<vmem>>, vector<1x8xf32>
    %c0_17 = arith.constant 0 : index
    %c0_18 = arith.constant 0 : index
    %32 = vector.load %arg7[%c0_17, %c0_18] : memref<1x8xf32, #tpu.memory_space<vmem>>, vector<1x8xf32>
    %cst_19 = arith.constant dense<0.000000e+00> : vector<64xf32>
    %33 = vector.multi_reduction <add>, %30, %cst_19 [1] : vector<64x8xf32> to vector<64xf32>
    %34 = vector.shape_cast %33 : vector<64xf32> to vector<64x1xf32>
    %cst_20 = arith.constant 8.000000e+00 : f32
    %35 = vector.broadcast %cst_20 : f32 to vector<64x1xf32>
    %36 = arith.divf %34, %35 : vector<64x1xf32>
    %37 = vector.broadcast %36 : vector<64x1xf32> to vector<64x8xf32>
    %38 = arith.subf %30, %37 : vector<64x8xf32>
    %39 = arith.mulf %38, %38 : vector<64x8xf32>
    %cst_21 = arith.constant dense<0.000000e+00> : vector<64xf32>
    %40 = vector.multi_reduction <add>, %39, %cst_21 [1] : vector<64x8xf32> to vector<64xf32>
    %41 = vector.shape_cast %40 : vector<64xf32> to vector<64x1xf32>
    %cst_22 = arith.constant 8.000000e+00 : f32
    %42 = vector.broadcast %cst_22 : f32 to vector<64x1xf32>
    %43 = arith.divf %41, %42 : vector<64x1xf32>
    %cst_23 = arith.constant 9.99999974E-6 : f32
    %44 = vector.broadcast %cst_23 : f32 to vector<64x1xf32>
    %45 = arith.addf %43, %44 : vector<64x1xf32>
    %46 = math.rsqrt %45 : vector<64x1xf32>
    %47 = vector.broadcast %46 : vector<64x1xf32> to vector<64x8xf32>
    %48 = arith.mulf %38, %47 : vector<64x8xf32>
    %49 = vector.broadcast %31 : vector<1x8xf32> to vector<64x8xf32>
    %50 = arith.mulf %48, %49 : vector<64x8xf32>
    %51 = vector.broadcast %32 : vector<1x8xf32> to vector<64x8xf32>
    %52 = arith.addf %50, %51 : vector<64x8xf32>
    %53 = vector.shape_cast %52 : vector<64x8xf32> to vector<4x16x8xf32>
    %c0_24 = arith.constant 0 : index
    %c0_25 = arith.constant 0 : index
    %54 = vector.load %arg8[%c0_24, %c0_25] : memref<1x8xf32, #tpu.memory_space<vmem>>, vector<1x8xf32>
    %55 = vector.shape_cast %54 : vector<1x8xf32> to vector<1x1x8xf32>
    %56 = vector.broadcast %55 : vector<1x1x8xf32> to vector<4x16x8xf32>
    %57 = arith.mulf %53, %56 : vector<4x16x8xf32>
    %cst_26 = arith.constant dense<0.000000e+00> : vector<4x16xf32>
    %58 = vector.multi_reduction <add>, %57, %cst_26 [2] : vector<4x16x8xf32> to vector<4x16xf32>
    %59 = vector.shape_cast %58 : vector<4x16xf32> to vector<4x16x1xf32>
    %cst_27 = arith.constant dense<0xFF800000> : vector<16x1xf32>
    %60 = vector.multi_reduction <maximumf>, %59, %cst_27 [0] : vector<4x16x1xf32> to vector<16x1xf32>
    %61 = vector.shape_cast %60 : vector<16x1xf32> to vector<1x16x1xf32>
    %62 = vector.broadcast %61 : vector<1x16x1xf32> to vector<4x16x1xf32>
    %63 = arith.subf %59, %62 : vector<4x16x1xf32>
    %64 = math.exp %63 : vector<4x16x1xf32>
    %cst_28 = arith.constant dense<0.000000e+00> : vector<16x1xf32>
    %65 = vector.multi_reduction <add>, %64, %cst_28 [0] : vector<4x16x1xf32> to vector<16x1xf32>
    %66 = vector.shape_cast %65 : vector<16x1xf32> to vector<1x16x1xf32>
    %67 = tpu.reciprocal %66 {approx = true} : vector<1x16x1xf32> -> vector<1x16x1xf32>
    %68 = vector.broadcast %67 : vector<1x16x1xf32> to vector<4x16x1xf32>
    %69 = arith.mulf %64, %68 : vector<4x16x1xf32>
    %70 = vector.broadcast %69 : vector<4x16x1xf32> to vector<4x16x8xf32>
    %71 = arith.mulf %53, %70 : vector<4x16x8xf32>
    %c0_29 = arith.constant 0 : index
    %c0_30 = arith.constant 0 : index
    %c0_31 = arith.constant 0 : index
    %c0_32 = arith.constant 0 : index
    %72 = vector.load %arg9[%c0_29, %c0_30, %c0_31, %c0_32] : memref<1x4x16x8xf32, #tpu.memory_space<vmem>>, vector<1x4x16x8xf32>
    %73 = vector.shape_cast %72 : vector<1x4x16x8xf32> to vector<4x16x8xf32>
    %74 = vector.shape_cast %53 : vector<4x16x8xf32> to vector<1x4x16x8xf32>
    tpu.vector_store %arg9[%c0_29, %c0_30, %c0_31, %c0_32], %74 {strides = array<i32>} : memref<1x4x16x8xf32, #tpu.memory_space<vmem>>, vector<1x4x16x8xf32>,
    %c0_33 = arith.constant 0 : index
    %c0_34 = arith.constant 0 : index
    %c0_35 = arith.constant 0 : index
    %c0_36 = arith.constant 0 : index
    %75 = vector.load %arg10[%c0_33, %c0_34, %c0_35, %c0_36] : memref<1x4x16x8xf32, #tpu.memory_space<vmem>>, vector<1x4x16x8xf32>
    %76 = vector.shape_cast %75 : vector<1x4x16x8xf32> to vector<4x16x8xf32>
    %77 = vector.shape_cast %71 : vector<4x16x8xf32> to vector<1x4x16x8xf32>
    tpu.vector_store %arg10[%c0_33, %c0_34, %c0_35, %c0_36], %77 {strides = array<i32>} : memref<1x4x16x8xf32, #tpu.memory_space<vmem>>, vector<1x4x16x8xf32>,
    %cst_37 = arith.constant dense<0.000000e+00> : vector<16x8xf32>
    %78 = vector.multi_reduction <add>, %71, %cst_37 [0] : vector<4x16x8xf32> to vector<16x8xf32>
    %c0_38 = arith.constant 0 : index
    %c0_39 = arith.constant 0 : index
    %c0_40 = arith.constant 0 : index
    %79 = vector.load %arg11[%c0_38, %c0_39, %c0_40] : memref<1x16x8xf32, #tpu.memory_space<vmem>>, vector<1x16x8xf32>
    %80 = vector.shape_cast %79 : vector<1x16x8xf32> to vector<16x8xf32>
    %81 = vector.shape_cast %78 : vector<16x8xf32> to vector<1x16x8xf32>
    tpu.vector_store %arg11[%c0_38, %c0_39, %c0_40], %81 {strides = array<i32>} : memref<1x16x8xf32, #tpu.memory_space<vmem>>, vector<1x16x8xf32>,
    return
  }
  func.func @transform_0(%arg0: i32) -> (i32, i32, i32) {
    %c0_i32 = arith.constant 0 : i32
    %c0_i32_0 = arith.constant 0 : i32
    %c0_i32_1 = arith.constant 0 : i32
    return %arg0, %c0_i32, %c0_i32_0 : i32, i32, i32
  }
  func.func @transform_1(%arg0: i32) -> (i32, i32) {
    %c0_i32 = arith.constant 0 : i32
    %c0_i32_0 = arith.constant 0 : i32
    %c0_i32_1 = arith.constant 0 : i32
    return %c0_i32, %c0_i32_0 : i32, i32
  }
  func.func @transform_2(%arg0: i32) -> (i32, i32) {
    %c0_i32 = arith.constant 0 : i32
    %c0_i32_0 = arith.constant 0 : i32
    %c0_i32_1 = arith.constant 0 : i32
    return %c0_i32, %c0_i32_0 : i32, i32
  }
  func.func @transform_3(%arg0: i32) -> (i32, i32) {
    %c0_i32 = arith.constant 0 : i32
    %c0_i32_0 = arith.constant 0 : i32
    %c0_i32_1 = arith.constant 0 : i32
    return %c0_i32, %c0_i32_0 : i32, i32
  }
  func.func @transform_4(%arg0: i32) -> (i32, i32) {
    %c0_i32 = arith.constant 0 : i32
    %c0_i32_0 = arith.constant 0 : i32
    %c0_i32_1 = arith.constant 0 : i32
    return %c0_i32, %c0_i32_0 : i32, i32
  }
  func.func @transform_5(%arg0: i32) -> (i32, i32) {
    %c0_i32 = arith.constant 0 : i32
    %c0_i32_0 = arith.constant 0 : i32
    %c0_i32_1 = arith.constant 0 : i32
    return %c0_i32, %c0_i32_0 : i32, i32
  }
  func.func @transform_6(%arg0: i32) -> (i32, i32) {
    %c0_i32 = arith.constant 0 : i32
    %c0_i32_0 = arith.constant 0 : i32
    %c0_i32_1 = arith.constant 0 : i32
    return %c0_i32, %c0_i32_0 : i32, i32
  }
  func.func @transform_7(%arg0: i32) -> (i32, i32) {
    %c0_i32 = arith.constant 0 : i32
    %c0_i32_0 = arith.constant 0 : i32
    %c0_i32_1 = arith.constant 0 : i32
    return %c0_i32, %c0_i32_0 : i32, i32
  }
  func.func @transform_8(%arg0: i32) -> (i32, i32, i32, i32) {
    %c0_i32 = arith.constant 0 : i32
    %c0_i32_0 = arith.constant 0 : i32
    %c0_i32_1 = arith.constant 0 : i32
    %c0_i32_2 = arith.constant 0 : i32
    return %arg0, %c0_i32, %c0_i32_0, %c0_i32_1 : i32, i32, i32, i32
  }
  func.func @transform_9(%arg0: i32) -> (i32, i32, i32, i32) {
    %c0_i32 = arith.constant 0 : i32
    %c0_i32_0 = arith.constant 0 : i32
    %c0_i32_1 = arith.constant 0 : i32
    %c0_i32_2 = arith.constant 0 : i32
    return %arg0, %c0_i32, %c0_i32_0, %c0_i32_1 : i32, i32, i32, i32
  }
  func.func @transform_10(%arg0: i32) -> (i32, i32, i32) {
    %c0_i32 = arith.constant 0 : i32
    %c0_i32_0 = arith.constant 0 : i32
    %c0_i32_1 = arith.constant 0 : i32
    return %arg0, %c0_i32, %c0_i32_0 : i32, i32, i32
  }
}

module attributes {stable_mosaic.version = 11 : i64} {
  func.func @_pair_assembly_kernel(%arg0: i32, %arg1: memref<1x256x64xf32, #tpu.memory_space<vmem>>, %arg2: memref<1x256x16xf32, #tpu.memory_space<vmem>>, %arg3: memref<1x16x8xf32, #tpu.memory_space<vmem>>, %arg4: memref<64x16xf32, #tpu.memory_space<vmem>>, %arg5: memref<1x16xf32, #tpu.memory_space<vmem>>, %arg6: memref<1x16xf32, #tpu.memory_space<vmem>>, %arg7: memref<1x16xf32, #tpu.memory_space<vmem>>, %arg8: memref<1x16xf32, #tpu.memory_space<vmem>>, %arg9: memref<1x16xf32, #tpu.memory_space<vmem>>, %arg10: memref<8x16xf32, #tpu.memory_space<vmem>>, %arg11: memref<8x16xf32, #tpu.memory_space<vmem>>, %arg12: memref<16x16xf32, #tpu.memory_space<vmem>>, %arg13: memref<16x16xf32, #tpu.memory_space<vmem>>, %arg14: memref<1x16xf32, #tpu.memory_space<vmem>>, %arg15: memref<1x16x16x16xf32, #tpu.memory_space<vmem>>) attributes {dimension_semantics = [#tpu.dimension_semantics<parallel>], iteration_bounds = array<i64: 2>, scalar_prefetch = 0 : i64, scratch_operands = 0 : i64, tpu.core_type = #tpu.core_type<tc>, window_params = [{transform_indices = @transform_0, window_bounds = array<i64: 1, 256, 64>}, {transform_indices = @transform_1, window_bounds = array<i64: 1, 256, 16>}, {transform_indices = @transform_2, window_bounds = array<i64: 1, 16, 8>}, {pipeline_mode = #tpu.pipeline_mode<synchronous>, transform_indices = @transform_3, window_bounds = array<i64: 64, 16>}, {pipeline_mode = #tpu.pipeline_mode<synchronous>, transform_indices = @transform_4, window_bounds = array<i64: 1, 16>}, {pipeline_mode = #tpu.pipeline_mode<synchronous>, transform_indices = @transform_5, window_bounds = array<i64: 1, 16>}, {pipeline_mode = #tpu.pipeline_mode<synchronous>, transform_indices = @transform_6, window_bounds = array<i64: 1, 16>}, {pipeline_mode = #tpu.pipeline_mode<synchronous>, transform_indices = @transform_7, window_bounds = array<i64: 1, 16>}, {pipeline_mode = #tpu.pipeline_mode<synchronous>, transform_indices = @transform_8, window_bounds = array<i64: 1, 16>}, {pipeline_mode = #tpu.pipeline_mode<synchronous>, transform_indices = @transform_9, window_bounds = array<i64: 8, 16>}, {pipeline_mode = #tpu.pipeline_mode<synchronous>, transform_indices = @transform_10, window_bounds = array<i64: 8, 16>}, {pipeline_mode = #tpu.pipeline_mode<synchronous>, transform_indices = @transform_11, window_bounds = array<i64: 16, 16>}, {pipeline_mode = #tpu.pipeline_mode<synchronous>, transform_indices = @transform_12, window_bounds = array<i64: 16, 16>}, {pipeline_mode = #tpu.pipeline_mode<synchronous>, transform_indices = @transform_13, window_bounds = array<i64: 1, 16>}, {transform_indices = @transform_14, window_bounds = array<i64: 1, 16, 16, 16>}]} {
    %c0 = arith.constant 0 : index
    %c0_0 = arith.constant 0 : index
    %c0_1 = arith.constant 0 : index
    %0 = vector.load %arg1[%c0, %c0_0, %c0_1] : memref<1x256x64xf32, #tpu.memory_space<vmem>>, vector<1x256x64xf32>
    %1 = vector.shape_cast %0 : vector<1x256x64xf32> to vector<256x64xf32>
    %c0_2 = arith.constant 0 : index
    %c0_3 = arith.constant 0 : index
    %c0_4 = arith.constant 0 : index
    %2 = vector.load %arg2[%c0_2, %c0_3, %c0_4] : memref<1x256x16xf32, #tpu.memory_space<vmem>>, vector<1x256x16xf32>
    %3 = vector.shape_cast %2 : vector<1x256x16xf32> to vector<256x16xf32>
    %c0_5 = arith.constant 0 : index
    %c0_6 = arith.constant 0 : index
    %c0_7 = arith.constant 0 : index
    %4 = vector.load %arg3[%c0_5, %c0_6, %c0_7] : memref<1x16x8xf32, #tpu.memory_space<vmem>>, vector<1x16x8xf32>
    %5 = vector.shape_cast %4 : vector<1x16x8xf32> to vector<16x8xf32>
    %c0_8 = arith.constant 0 : index
    %c0_9 = arith.constant 0 : index
    %6 = vector.load %arg4[%c0_8, %c0_9] : memref<64x16xf32, #tpu.memory_space<vmem>>, vector<64x16xf32>
    %7 = arith.truncf %1 : vector<256x64xf32> to vector<256x64xbf16>
    %8 = arith.truncf %6 : vector<64x16xf32> to vector<64x16xbf16>
    %cst = arith.constant dense<0.000000e+00> : vector<256x16xf32>
    %9 = tpu.matmul %7, %8, %cst {dimension_numbers = #tpu.dot_dimension_numbers<[1], [0], [0], [1], [0, 0, 1, 1], [], []>} : vector<256x64xbf16>, vector<64x16xbf16>, vector<256x16xf32> -> vector<256x16xf32>
    %c0_10 = arith.constant 0 : index
    %c0_11 = arith.constant 0 : index
    %10 = vector.load %arg5[%c0_10, %c0_11] : memref<1x16xf32, #tpu.memory_space<vmem>>, vector<1x16xf32>
    %11 = vector.broadcast %10 : vector<1x16xf32> to vector<256x16xf32>
    %12 = arith.addf %9, %11 : vector<256x16xf32>
    %c0_12 = arith.constant 0 : index
    %c0_13 = arith.constant 0 : index
    %13 = vector.load %arg6[%c0_12, %c0_13] : memref<1x16xf32, #tpu.memory_space<vmem>>, vector<1x16xf32>
    %c0_14 = arith.constant 0 : index
    %c0_15 = arith.constant 0 : index
    %14 = vector.load %arg7[%c0_14, %c0_15] : memref<1x16xf32, #tpu.memory_space<vmem>>, vector<1x16xf32>
    %cst_16 = arith.constant dense<0.000000e+00> : vector<256xf32>
    %15 = vector.multi_reduction <add>, %12, %cst_16 [1] : vector<256x16xf32> to vector<256xf32>
    %16 = vector.shape_cast %15 : vector<256xf32> to vector<256x1xf32>
    %cst_17 = arith.constant 1.600000e+01 : f32
    %17 = vector.broadcast %cst_17 : f32 to vector<256x1xf32>
    %18 = arith.divf %16, %17 : vector<256x1xf32>
    %19 = vector.broadcast %18 : vector<256x1xf32> to vector<256x16xf32>
    %20 = arith.subf %12, %19 : vector<256x16xf32>
    %21 = arith.mulf %20, %20 : vector<256x16xf32>
    %cst_18 = arith.constant dense<0.000000e+00> : vector<256xf32>
    %22 = vector.multi_reduction <add>, %21, %cst_18 [1] : vector<256x16xf32> to vector<256xf32>
    %23 = vector.shape_cast %22 : vector<256xf32> to vector<256x1xf32>
    %cst_19 = arith.constant 1.600000e+01 : f32
    %24 = vector.broadcast %cst_19 : f32 to vector<256x1xf32>
    %25 = arith.divf %23, %24 : vector<256x1xf32>
    %cst_20 = arith.constant 9.99999974E-6 : f32
    %26 = vector.broadcast %cst_20 : f32 to vector<256x1xf32>
    %27 = arith.addf %25, %26 : vector<256x1xf32>
    %28 = math.rsqrt %27 : vector<256x1xf32>
    %29 = vector.broadcast %28 : vector<256x1xf32> to vector<256x16xf32>
    %30 = arith.mulf %20, %29 : vector<256x16xf32>
    %31 = vector.broadcast %13 : vector<1x16xf32> to vector<256x16xf32>
    %32 = arith.mulf %30, %31 : vector<256x16xf32>
    %33 = vector.broadcast %14 : vector<1x16xf32> to vector<256x16xf32>
    %34 = arith.addf %32, %33 : vector<256x16xf32>
    %c0_21 = arith.constant 0 : index
    %c0_22 = arith.constant 0 : index
    %35 = vector.load %arg8[%c0_21, %c0_22] : memref<1x16xf32, #tpu.memory_space<vmem>>, vector<1x16xf32>
    %c0_23 = arith.constant 0 : index
    %c0_24 = arith.constant 0 : index
    %36 = vector.load %arg9[%c0_23, %c0_24] : memref<1x16xf32, #tpu.memory_space<vmem>>, vector<1x16xf32>
    %cst_25 = arith.constant dense<0.000000e+00> : vector<256xf32>
    %37 = vector.multi_reduction <add>, %3, %cst_25 [1] : vector<256x16xf32> to vector<256xf32>
    %38 = vector.shape_cast %37 : vector<256xf32> to vector<256x1xf32>
    %cst_26 = arith.constant 1.600000e+01 : f32
    %39 = vector.broadcast %cst_26 : f32 to vector<256x1xf32>
    %40 = arith.divf %38, %39 : vector<256x1xf32>
    %41 = vector.broadcast %40 : vector<256x1xf32> to vector<256x16xf32>
    %42 = arith.subf %3, %41 : vector<256x16xf32>
    %43 = arith.mulf %42, %42 : vector<256x16xf32>
    %cst_27 = arith.constant dense<0.000000e+00> : vector<256xf32>
    %44 = vector.multi_reduction <add>, %43, %cst_27 [1] : vector<256x16xf32> to vector<256xf32>
    %45 = vector.shape_cast %44 : vector<256xf32> to vector<256x1xf32>
    %cst_28 = arith.constant 1.600000e+01 : f32
    %46 = vector.broadcast %cst_28 : f32 to vector<256x1xf32>
    %47 = arith.divf %45, %46 : vector<256x1xf32>
    %cst_29 = arith.constant 9.99999974E-6 : f32
    %48 = vector.broadcast %cst_29 : f32 to vector<256x1xf32>
    %49 = arith.addf %47, %48 : vector<256x1xf32>
    %50 = math.rsqrt %49 : vector<256x1xf32>
    %51 = vector.broadcast %50 : vector<256x1xf32> to vector<256x16xf32>
    %52 = arith.mulf %42, %51 : vector<256x16xf32>
    %53 = vector.broadcast %35 : vector<1x16xf32> to vector<256x16xf32>
    %54 = arith.mulf %52, %53 : vector<256x16xf32>
    %55 = vector.broadcast %36 : vector<1x16xf32> to vector<256x16xf32>
    %56 = arith.addf %54, %55 : vector<256x16xf32>
    %c0_30 = arith.constant 0 : index
    %c0_31 = arith.constant 0 : index
    %57 = vector.load %arg10[%c0_30, %c0_31] : memref<8x16xf32, #tpu.memory_space<vmem>>, vector<8x16xf32>
    %58 = arith.truncf %5 : vector<16x8xf32> to vector<16x8xbf16>
    %59 = arith.truncf %57 : vector<8x16xf32> to vector<8x16xbf16>
    %cst_32 = arith.constant dense<0.000000e+00> : vector<16x16xf32>
    %60 = tpu.matmul %58, %59, %cst_32 {dimension_numbers = #tpu.dot_dimension_numbers<[1], [0], [0], [1], [0, 0, 1, 1], [], []>} : vector<16x8xbf16>, vector<8x16xbf16>, vector<16x16xf32> -> vector<16x16xf32>
    %c0_33 = arith.constant 0 : index
    %c0_34 = arith.constant 0 : index
    %61 = vector.load %arg11[%c0_33, %c0_34] : memref<8x16xf32, #tpu.memory_space<vmem>>, vector<8x16xf32>
    %62 = arith.truncf %5 : vector<16x8xf32> to vector<16x8xbf16>
    %63 = arith.truncf %61 : vector<8x16xf32> to vector<8x16xbf16>
    %cst_35 = arith.constant dense<0.000000e+00> : vector<16x16xf32>
    %64 = tpu.matmul %62, %63, %cst_35 {dimension_numbers = #tpu.dot_dimension_numbers<[1], [0], [0], [1], [0, 0, 1, 1], [], []>} : vector<16x8xbf16>, vector<8x16xbf16>, vector<16x16xf32> -> vector<16x16xf32>
    %c0_36 = arith.constant 0 : index
    %c0_37 = arith.constant 0 : index
    %65 = vector.load %arg12[%c0_36, %c0_37] : memref<16x16xf32, #tpu.memory_space<vmem>>, vector<16x16xf32>
    %66 = arith.truncf %34 : vector<256x16xf32> to vector<256x16xbf16>
    %67 = arith.truncf %65 : vector<16x16xf32> to vector<16x16xbf16>
    %cst_38 = arith.constant dense<0.000000e+00> : vector<256x16xf32>
    %68 = tpu.matmul %66, %67, %cst_38 {dimension_numbers = #tpu.dot_dimension_numbers<[1], [0], [0], [1], [0, 0, 1, 1], [], []>} : vector<256x16xbf16>, vector<16x16xbf16>, vector<256x16xf32> -> vector<256x16xf32>
    %c0_39 = arith.constant 0 : index
    %c0_40 = arith.constant 0 : index
    %69 = vector.load %arg13[%c0_39, %c0_40] : memref<16x16xf32, #tpu.memory_space<vmem>>, vector<16x16xf32>
    %70 = arith.truncf %56 : vector<256x16xf32> to vector<256x16xbf16>
    %71 = arith.truncf %69 : vector<16x16xf32> to vector<16x16xbf16>
    %cst_41 = arith.constant dense<0.000000e+00> : vector<256x16xf32>
    %72 = tpu.matmul %70, %71, %cst_41 {dimension_numbers = #tpu.dot_dimension_numbers<[1], [0], [0], [1], [0, 0, 1, 1], [], []>} : vector<256x16xbf16>, vector<16x16xbf16>, vector<256x16xf32> -> vector<256x16xf32>
    %73 = arith.addf %68, %72 : vector<256x16xf32>
    %74 = vector.shape_cast %73 : vector<256x16xf32> to vector<16x16x16xf32>
    %75 = vector.shape_cast %60 : vector<16x16xf32> to vector<1x16x16xf32>
    %76 = vector.broadcast %75 : vector<1x16x16xf32> to vector<16x16x16xf32>
    %77 = arith.addf %74, %76 : vector<16x16x16xf32>
    %78 = vector.shape_cast %64 : vector<16x16xf32> to vector<16x1x16xf32>
    %79 = vector.broadcast %78 : vector<16x1x16xf32> to vector<16x16x16xf32>
    %80 = arith.addf %77, %79 : vector<16x16x16xf32>
    %c0_42 = arith.constant 0 : index
    %c0_43 = arith.constant 0 : index
    %81 = vector.load %arg14[%c0_42, %c0_43] : memref<1x16xf32, #tpu.memory_space<vmem>>, vector<1x16xf32>
    %82 = vector.shape_cast %81 : vector<1x16xf32> to vector<1x1x16xf32>
    %83 = vector.broadcast %82 : vector<1x1x16xf32> to vector<16x16x16xf32>
    %84 = arith.addf %80, %83 : vector<16x16x16xf32>
    %cst_44 = arith.constant dense<0.000000e+00> : vector<16x16xf32>
    %85 = vector.multi_reduction <add>, %84, %cst_44 [0] : vector<16x16x16xf32> to vector<16x16xf32>
    %86 = vector.shape_cast %85 : vector<16x16xf32> to vector<1x16x16xf32>
    %cst_45 = arith.constant 1.600000e+01 : f32
    %87 = vector.broadcast %cst_45 : f32 to vector<1x16x16xf32>
    %88 = arith.divf %86, %87 : vector<1x16x16xf32>
    %cst_46 = arith.constant dense<0.000000e+00> : vector<1x16xf32>
    %89 = vector.multi_reduction <add>, %88, %cst_46 [1] : vector<1x16x16xf32> to vector<1x16xf32>
    %90 = vector.shape_cast %89 : vector<1x16xf32> to vector<1x1x16xf32>
    %cst_47 = arith.constant 1.600000e+01 : f32
    %91 = vector.broadcast %cst_47 : f32 to vector<1x1x16xf32>
    %92 = arith.divf %90, %91 : vector<1x1x16xf32>
    %93 = vector.broadcast %92 : vector<1x1x16xf32> to vector<16x16x16xf32>
    %94 = arith.subf %84, %93 : vector<16x16x16xf32>
    %95 = arith.mulf %94, %94 : vector<16x16x16xf32>
    %cst_48 = arith.constant dense<0.000000e+00> : vector<16x16xf32>
    %96 = vector.multi_reduction <add>, %95, %cst_48 [0] : vector<16x16x16xf32> to vector<16x16xf32>
    %97 = vector.shape_cast %96 : vector<16x16xf32> to vector<1x16x16xf32>
    %cst_49 = arith.constant 1.600000e+01 : f32
    %98 = vector.broadcast %cst_49 : f32 to vector<1x16x16xf32>
    %99 = arith.divf %97, %98 : vector<1x16x16xf32>
    %cst_50 = arith.constant dense<0.000000e+00> : vector<1x16xf32>
    %100 = vector.multi_reduction <add>, %99, %cst_50 [1] : vector<1x16x16xf32> to vector<1x16xf32>
    %101 = vector.shape_cast %100 : vector<1x16xf32> to vector<1x1x16xf32>
    %cst_51 = arith.constant 1.600000e+01 : f32
    %102 = vector.broadcast %cst_51 : f32 to vector<1x1x16xf32>
    %103 = arith.divf %101, %102 : vector<1x1x16xf32>
    %cst_52 = arith.constant 9.99999974E-6 : f32
    %104 = vector.broadcast %cst_52 : f32 to vector<1x1x16xf32>
    %105 = arith.addf %103, %104 : vector<1x1x16xf32>
    %106 = math.rsqrt %105 : vector<1x1x16xf32>
    %107 = vector.broadcast %106 : vector<1x1x16xf32> to vector<16x16x16xf32>
    %108 = arith.mulf %94, %107 : vector<16x16x16xf32>
    %c0_53 = arith.constant 0 : index
    %c0_54 = arith.constant 0 : index
    %c0_55 = arith.constant 0 : index
    %c0_56 = arith.constant 0 : index
    %109 = vector.load %arg15[%c0_53, %c0_54, %c0_55, %c0_56] : memref<1x16x16x16xf32, #tpu.memory_space<vmem>>, vector<1x16x16x16xf32>
    %110 = vector.shape_cast %109 : vector<1x16x16x16xf32> to vector<16x16x16xf32>
    %111 = vector.shape_cast %108 : vector<16x16x16xf32> to vector<1x16x16x16xf32>
    tpu.vector_store %arg15[%c0_53, %c0_54, %c0_55, %c0_56], %111 {strides = array<i32>} : memref<1x16x16x16xf32, #tpu.memory_space<vmem>>, vector<1x16x16x16xf32>,
    return
  }
  func.func @transform_0(%arg0: i32) -> (i32, i32, i32) {
    %c0_i32 = arith.constant 0 : i32
    %c0_i32_0 = arith.constant 0 : i32
    %c0_i32_1 = arith.constant 0 : i32
    return %arg0, %c0_i32, %c0_i32_0 : i32, i32, i32
  }
  func.func @transform_1(%arg0: i32) -> (i32, i32, i32) {
    %c0_i32 = arith.constant 0 : i32
    %c0_i32_0 = arith.constant 0 : i32
    %c0_i32_1 = arith.constant 0 : i32
    return %arg0, %c0_i32, %c0_i32_0 : i32, i32, i32
  }
  func.func @transform_2(%arg0: i32) -> (i32, i32, i32) {
    %c0_i32 = arith.constant 0 : i32
    %c0_i32_0 = arith.constant 0 : i32
    %c0_i32_1 = arith.constant 0 : i32
    return %arg0, %c0_i32, %c0_i32_0 : i32, i32, i32
  }
  func.func @transform_3(%arg0: i32) -> (i32, i32) {
    %c0_i32 = arith.constant 0 : i32
    %c0_i32_0 = arith.constant 0 : i32
    %c0_i32_1 = arith.constant 0 : i32
    return %c0_i32, %c0_i32_0 : i32, i32
  }
  func.func @transform_4(%arg0: i32) -> (i32, i32) {
    %c0_i32 = arith.constant 0 : i32
    %c0_i32_0 = arith.constant 0 : i32
    %c0_i32_1 = arith.constant 0 : i32
    return %c0_i32, %c0_i32_0 : i32, i32
  }
  func.func @transform_5(%arg0: i32) -> (i32, i32) {
    %c0_i32 = arith.constant 0 : i32
    %c0_i32_0 = arith.constant 0 : i32
    %c0_i32_1 = arith.constant 0 : i32
    return %c0_i32, %c0_i32_0 : i32, i32
  }
  func.func @transform_6(%arg0: i32) -> (i32, i32) {
    %c0_i32 = arith.constant 0 : i32
    %c0_i32_0 = arith.constant 0 : i32
    %c0_i32_1 = arith.constant 0 : i32
    return %c0_i32, %c0_i32_0 : i32, i32
  }
  func.func @transform_7(%arg0: i32) -> (i32, i32) {
    %c0_i32 = arith.constant 0 : i32
    %c0_i32_0 = arith.constant 0 : i32
    %c0_i32_1 = arith.constant 0 : i32
    return %c0_i32, %c0_i32_0 : i32, i32
  }
  func.func @transform_8(%arg0: i32) -> (i32, i32) {
    %c0_i32 = arith.constant 0 : i32
    %c0_i32_0 = arith.constant 0 : i32
    %c0_i32_1 = arith.constant 0 : i32
    return %c0_i32, %c0_i32_0 : i32, i32
  }
  func.func @transform_9(%arg0: i32) -> (i32, i32) {
    %c0_i32 = arith.constant 0 : i32
    %c0_i32_0 = arith.constant 0 : i32
    %c0_i32_1 = arith.constant 0 : i32
    return %c0_i32, %c0_i32_0 : i32, i32
  }
  func.func @transform_10(%arg0: i32) -> (i32, i32) {
    %c0_i32 = arith.constant 0 : i32
    %c0_i32_0 = arith.constant 0 : i32
    %c0_i32_1 = arith.constant 0 : i32
    return %c0_i32, %c0_i32_0 : i32, i32
  }
  func.func @transform_11(%arg0: i32) -> (i32, i32) {
    %c0_i32 = arith.constant 0 : i32
    %c0_i32_0 = arith.constant 0 : i32
    %c0_i32_1 = arith.constant 0 : i32
    return %c0_i32, %c0_i32_0 : i32, i32
  }
  func.func @transform_12(%arg0: i32) -> (i32, i32) {
    %c0_i32 = arith.constant 0 : i32
    %c0_i32_0 = arith.constant 0 : i32
    %c0_i32_1 = arith.constant 0 : i32
    return %c0_i32, %c0_i32_0 : i32, i32
  }
  func.func @transform_13(%arg0: i32) -> (i32, i32) {
    %c0_i32 = arith.constant 0 : i32
    %c0_i32_0 = arith.constant 0 : i32
    %c0_i32_1 = arith.constant 0 : i32
    return %c0_i32, %c0_i32_0 : i32, i32
  }
  func.func @transform_14(%arg0: i32) -> (i32, i32, i32, i32) {
    %c0_i32 = arith.constant 0 : i32
    %c0_i32_0 = arith.constant 0 : i32
    %c0_i32_1 = arith.constant 0 : i32
    %c0_i32_2 = arith.constant 0 : i32
    return %arg0, %c0_i32, %c0_i32_0, %c0_i32_1 : i32, i32, i32, i32
  }
}

module attributes {stable_mosaic.version = 11 : i64} {
  func.func @_msa_update_kernel(%arg0: i32, %arg1: memref<1x64x32xf32, #tpu.memory_space<vmem>>, %arg2: memref<1x256x16xf32, #tpu.memory_space<vmem>>, %arg3: memref<1x16x16xf32, #tpu.memory_space<vmem>>, %arg4: memref<1x32xf32, #tpu.memory_space<vmem>>, %arg5: memref<1x32xf32, #tpu.memory_space<vmem>>, %arg6: memref<1x16xf32, #tpu.memory_space<vmem>>, %arg7: memref<1x16xf32, #tpu.memory_space<vmem>>, %arg8: memref<4x16xf32, #tpu.memory_space<vmem>>, %arg9: memref<32x32xf32, #tpu.memory_space<vmem>>, %arg10: memref<32x32xf32, #tpu.memory_space<vmem>>, %arg11: memref<1x32xf32, #tpu.memory_space<vmem>>, %arg12: memref<1x32xf32, #tpu.memory_space<vmem>>, %arg13: memref<32x32xf32, #tpu.memory_space<vmem>>, %arg14: memref<32x32xf32, #tpu.memory_space<vmem>>, %arg15: memref<1x64x32xf32, #tpu.memory_space<vmem>>, %arg16: memref<64x32xf32, #tpu.memory_space<vmem>>) attributes {dimension_semantics = [#tpu.dimension_semantics<parallel>], iteration_bounds = array<i64: 2>, scalar_prefetch = 0 : i64, scratch_operands = 1 : i64, tpu.core_type = #tpu.core_type<tc>, window_params = [{transform_indices = @transform_0, window_bounds = array<i64: 1, 64, 32>}, {transform_indices = @transform_1, window_bounds = array<i64: 1, 256, 16>}, {transform_indices = @transform_2, window_bounds = array<i64: 1, 16, 16>}, {pipeline_mode = #tpu.pipeline_mode<synchronous>, transform_indices = @transform_3, window_bounds = array<i64: 1, 32>}, {pipeline_mode = #tpu.pipeline_mode<synchronous>, transform_indices = @transform_4, window_bounds = array<i64: 1, 32>}, {pipeline_mode = #tpu.pipeline_mode<synchronous>, transform_indices = @transform_5, window_bounds = array<i64: 1, 16>}, {pipeline_mode = #tpu.pipeline_mode<synchronous>, transform_indices = @transform_6, window_bounds = array<i64: 1, 16>}, {pipeline_mode = #tpu.pipeline_mode<synchronous>, transform_indices = @transform_7, window_bounds = array<i64: 4, 16>}, {pipeline_mode = #tpu.pipeline_mode<synchronous>, transform_indices = @transform_8, window_bounds = array<i64: 32, 32>}, {pipeline_mode = #tpu.pipeline_mode<synchronous>, transform_indices = @transform_9, window_bounds = array<i64: 32, 32>}, {pipeline_mode = #tpu.pipeline_mode<synchronous>, transform_indices = @transform_10, window_bounds = array<i64: 1, 32>}, {pipeline_mode = #tpu.pipeline_mode<synchronous>, transform_indices = @transform_11, window_bounds = array<i64: 1, 32>}, {pipeline_mode = #tpu.pipeline_mode<synchronous>, transform_indices = @transform_12, window_bounds = array<i64: 32, 32>}, {pipeline_mode = #tpu.pipeline_mode<synchronous>, transform_indices = @transform_13, window_bounds = array<i64: 32, 32>}, {transform_indices = @transform_14, window_bounds = array<i64: 1, 64, 32>}]} {
    %c0 = arith.constant 0 : index
    %c0_0 = arith.constant 0 : index
    %c0_1 = arith.constant 0 : index
    %0 = vector.load %arg1[%c0, %c0_0, %c0_1] : memref<1x64x32xf32, #tpu.memory_space<vmem>>, vector<1x64x32xf32>
    %1 = vector.shape_cast %0 : vector<1x64x32xf32> to vector<64x32xf32>
    %c0_2 = arith.constant 0 : index
    %c0_3 = arith.constant 0 : index
    %c0_4 = arith.constant 0 : index
    %2 = vector.load %arg2[%c0_2, %c0_3, %c0_4] : memref<1x256x16xf32, #tpu.memory_space<vmem>>, vector<1x256x16xf32>
    %3 = vector.shape_cast %2 : vector<1x256x16xf32> to vector<256x16xf32>
    %c0_5 = arith.constant 0 : index
    %c0_6 = arith.constant 0 : index
    %c0_7 = arith.constant 0 : index
    %4 = vector.load %arg3[%c0_5, %c0_6, %c0_7] : memref<1x16x16xf32, #tpu.memory_space<vmem>>, vector<1x16x16xf32>
    %5 = vector.shape_cast %4 : vector<1x16x16xf32> to vector<16x16xf32>
    %c0_8 = arith.constant 0 : index
    %c0_9 = arith.constant 0 : index
    %6 = vector.load %arg4[%c0_8, %c0_9] : memref<1x32xf32, #tpu.memory_space<vmem>>, vector<1x32xf32>
    %c0_10 = arith.constant 0 : index
    %c0_11 = arith.constant 0 : index
    %7 = vector.load %arg5[%c0_10, %c0_11] : memref<1x32xf32, #tpu.memory_space<vmem>>, vector<1x32xf32>
    %cst = arith.constant dense<0.000000e+00> : vector<64xf32>
    %8 = vector.multi_reduction <add>, %1, %cst [1] : vector<64x32xf32> to vector<64xf32>
    %9 = vector.shape_cast %8 : vector<64xf32> to vector<64x1xf32>
    %cst_12 = arith.constant 3.200000e+01 : f32
    %10 = vector.broadcast %cst_12 : f32 to vector<64x1xf32>
    %11 = arith.divf %9, %10 : vector<64x1xf32>
    %12 = vector.broadcast %11 : vector<64x1xf32> to vector<64x32xf32>
    %13 = arith.subf %1, %12 : vector<64x32xf32>
    %14 = arith.mulf %13, %13 : vector<64x32xf32>
    %cst_13 = arith.constant dense<0.000000e+00> : vector<64xf32>
    %15 = vector.multi_reduction <add>, %14, %cst_13 [1] : vector<64x32xf32> to vector<64xf32>
    %16 = vector.shape_cast %15 : vector<64xf32> to vector<64x1xf32>
    %cst_14 = arith.constant 3.200000e+01 : f32
    %17 = vector.broadcast %cst_14 : f32 to vector<64x1xf32>
    %18 = arith.divf %16, %17 : vector<64x1xf32>
    %cst_15 = arith.constant 9.99999974E-6 : f32
    %19 = vector.broadcast %cst_15 : f32 to vector<64x1xf32>
    %20 = arith.addf %18, %19 : vector<64x1xf32>
    %21 = math.rsqrt %20 : vector<64x1xf32>
    %22 = vector.broadcast %21 : vector<64x1xf32> to vector<64x32xf32>
    %23 = arith.mulf %13, %22 : vector<64x32xf32>
    %24 = vector.broadcast %6 : vector<1x32xf32> to vector<64x32xf32>
    %25 = arith.mulf %23, %24 : vector<64x32xf32>
    %26 = vector.broadcast %7 : vector<1x32xf32> to vector<64x32xf32>
    %27 = arith.addf %25, %26 : vector<64x32xf32>
    %c0_16 = arith.constant 0 : index
    %c0_17 = arith.constant 0 : index
    %28 = vector.load %arg9[%c0_16, %c0_17] : memref<32x32xf32, #tpu.memory_space<vmem>>, vector<32x32xf32>
    %29 = arith.truncf %27 : vector<64x32xf32> to vector<64x32xbf16>
    %30 = arith.truncf %28 : vector<32x32xf32> to vector<32x32xbf16>
    %cst_18 = arith.constant dense<0.000000e+00> : vector<64x32xf32>
    %31 = tpu.matmul %29, %30, %cst_18 {dimension_numbers = #tpu.dot_dimension_numbers<[1], [0], [0], [1], [0, 0, 1, 1], [], []>} : vector<64x32xbf16>, vector<32x32xbf16>, vector<64x32xf32> -> vector<64x32xf32>
    %32 = vector.shape_cast %31 : vector<64x32xf32> to vector<4x16x32xf32>
    %c0_19 = arith.constant 0 : index
    %c0_20 = arith.constant 0 : index
    %33 = vector.load %arg6[%c0_19, %c0_20] : memref<1x16xf32, #tpu.memory_space<vmem>>, vector<1x16xf32>
    %c0_21 = arith.constant 0 : index
    %c0_22 = arith.constant 0 : index
    %34 = vector.load %arg7[%c0_21, %c0_22] : memref<1x16xf32, #tpu.memory_space<vmem>>, vector<1x16xf32>
    %cst_23 = arith.constant dense<0.000000e+00> : vector<256xf32>
    %35 = vector.multi_reduction <add>, %3, %cst_23 [1] : vector<256x16xf32> to vector<256xf32>
    %36 = vector.shape_cast %35 : vector<256xf32> to vector<256x1xf32>
    %cst_24 = arith.constant 1.600000e+01 : f32
    %37 = vector.broadcast %cst_24 : f32 to vector<256x1xf32>
    %38 = arith.divf %36, %37 : vector<256x1xf32>
    %39 = vector.broadcast %38 : vector<256x1xf32> to vector<256x16xf32>
    %40 = arith.subf %3, %39 : vector<256x16xf32>
    %41 = arith.mulf %40, %40 : vector<256x16xf32>
    %cst_25 = arith.constant dense<0.000000e+00> : vector<256xf32>
    %42 = vector.multi_reduction <add>, %41, %cst_25 [1] : vector<256x16xf32> to vector<256xf32>
    %43 = vector.shape_cast %42 : vector<256xf32> to vector<256x1xf32>
    %cst_26 = arith.constant 1.600000e+01 : f32
    %44 = vector.broadcast %cst_26 : f32 to vector<256x1xf32>
    %45 = arith.divf %43, %44 : vector<256x1xf32>
    %cst_27 = arith.constant 9.99999974E-6 : f32
    %46 = vector.broadcast %cst_27 : f32 to vector<256x1xf32>
    %47 = arith.addf %45, %46 : vector<256x1xf32>
    %48 = math.rsqrt %47 : vector<256x1xf32>
    %49 = vector.broadcast %48 : vector<256x1xf32> to vector<256x16xf32>
    %50 = arith.mulf %40, %49 : vector<256x16xf32>
    %51 = vector.broadcast %33 : vector<1x16xf32> to vector<256x16xf32>
    %52 = arith.mulf %50, %51 : vector<256x16xf32>
    %53 = vector.broadcast %34 : vector<1x16xf32> to vector<256x16xf32>
    %54 = arith.addf %52, %53 : vector<256x16xf32>
    %cst_28 = arith.constant 0.0883883461 : f32
    %55 = vector.broadcast %cst_28 : f32 to vector<256x16xf32>
    %56 = arith.mulf %54, %55 : vector<256x16xf32>
    %57 = vector.shape_cast %56 : vector<256x16xf32> to vector<16x16x16xf32>
    %c0_29 = arith.constant 0 : index
    %c0_30 = arith.constant 0 : index
    %58 = vector.load %arg8[%c0_29, %c0_30] : memref<4x16xf32, #tpu.memory_space<vmem>>, vector<4x16xf32>
    %59 = vector.extract_strided_slice %58 {offsets = [0, 0], sizes = [1, 16], strides = [1, 1]} : vector<4x16xf32> to vector<1x16xf32>
    %60 = vector.shape_cast %59 : vector<1x16xf32> to vector<1x1x16xf32>
    %61 = vector.broadcast %60 : vector<1x1x16xf32> to vector<16x16x16xf32>
    %62 = arith.mulf %57, %61 : vector<16x16x16xf32>
    %cst_31 = arith.constant dense<0.000000e+00> : vector<16x16xf32>
    %63 = vector.multi_reduction <add>, %62, %cst_31 [2] : vector<16x16x16xf32> to vector<16x16xf32>
    %cst_32 = arith.constant 0.000000e+00 : f32
    %64 = vector.broadcast %cst_32 : f32 to vector<16x16xf32>
    %65 = arith.cmpf ogt, %5, %64 : vector<16x16xf32>
    %cst_33 = arith.constant -3.40282347E+38 : f32
    %66 = vector.broadcast %cst_33 : f32 to vector<16x16xf32>
    %67 = arith.select %65, %63, %66 : vector<16x16xi1>, vector<16x16xf32>
    %cst_34 = arith.constant dense<0xFF800000> : vector<16xf32>
    %68 = vector.multi_reduction <maximumf>, %67, %cst_34 [1] : vector<16x16xf32> to vector<16xf32>
    %69 = vector.shape_cast %68 : vector<16xf32> to vector<16x1xf32>
    %70 = vector.broadcast %69 : vector<16x1xf32> to vector<16x16xf32>
    %71 = arith.subf %67, %70 : vector<16x16xf32>
    %72 = math.exp %71 : vector<16x16xf32>
    %cst_35 = arith.constant dense<0.000000e+00> : vector<16xf32>
    %73 = vector.multi_reduction <add>, %72, %cst_35 [1] : vector<16x16xf32> to vector<16xf32>
    %74 = vector.shape_cast %73 : vector<16xf32> to vector<16x1xf32>
    %75 = tpu.reciprocal %74 {approx = true} : vector<16x1xf32> -> vector<16x1xf32>
    %76 = vector.broadcast %75 : vector<16x1xf32> to vector<16x16xf32>
    %77 = arith.mulf %72, %76 : vector<16x16xf32>
    %78 = arith.truncf %77 : vector<16x16xf32> to vector<16x16xbf16>
    %79 = vector.extract_strided_slice %32 {offsets = [0, 0, 0], sizes = [1, 16, 32], strides = [1, 1, 1]} : vector<4x16x32xf32> to vector<1x16x32xf32>
    %80 = vector.shape_cast %79 : vector<1x16x32xf32> to vector<16x32xf32>
    %81 = vector.extract_strided_slice %80 {offsets = [0, 0], sizes = [16, 8], strides = [1, 1]} : vector<16x32xf32> to vector<16x8xf32>
    %82 = arith.truncf %81 : vector<16x8xf32> to vector<16x8xbf16>
    %cst_36 = arith.constant dense<0.000000e+00> : vector<16x8xf32>
    %83 = tpu.matmul %78, %82, %cst_36 {dimension_numbers = #tpu.dot_dimension_numbers<[1], [0], [0], [1], [0, 0, 1, 1], [], []>} : vector<16x16xbf16>, vector<16x8xbf16>, vector<16x8xf32> -> vector<16x8xf32>
    %c0_37 = arith.constant 0 : index
    %c0_38 = arith.constant 0 : index
    %84 = vector.load %arg16[%c0_37, %c0_38] : memref<64x32xf32, #tpu.memory_space<vmem>>, vector<16x8xf32>
    tpu.vector_store %arg16[%c0_37, %c0_38], %83 {strides = array<i32>} : memref<64x32xf32, #tpu.memory_space<vmem>>, vector<16x8xf32>,
    %85 = vector.extract_strided_slice %32 {offsets = [1, 0, 0], sizes = [1, 16, 32], strides = [1, 1, 1]} : vector<4x16x32xf32> to vector<1x16x32xf32>
    %86 = vector.shape_cast %85 : vector<1x16x32xf32> to vector<16x32xf32>
    %87 = vector.extract_strided_slice %86 {offsets = [0, 0], sizes = [16, 8], strides = [1, 1]} : vector<16x32xf32> to vector<16x8xf32>
    %88 = arith.truncf %87 : vector<16x8xf32> to vector<16x8xbf16>
    %cst_39 = arith.constant dense<0.000000e+00> : vector<16x8xf32>
    %89 = tpu.matmul %78, %88, %cst_39 {dimension_numbers = #tpu.dot_dimension_numbers<[1], [0], [0], [1], [0, 0, 1, 1], [], []>} : vector<16x16xbf16>, vector<16x8xbf16>, vector<16x8xf32> -> vector<16x8xf32>
    %c16 = arith.constant 16 : index
    %c0_40 = arith.constant 0 : index
    %90 = vector.load %arg16[%c16, %c0_40] : memref<64x32xf32, #tpu.memory_space<vmem>>, vector<16x8xf32>
    tpu.vector_store %arg16[%c16, %c0_40], %89 {strides = array<i32>} : memref<64x32xf32, #tpu.memory_space<vmem>>, vector<16x8xf32>,
    %91 = vector.extract_strided_slice %32 {offsets = [2, 0, 0], sizes = [1, 16, 32], strides = [1, 1, 1]} : vector<4x16x32xf32> to vector<1x16x32xf32>
    %92 = vector.shape_cast %91 : vector<1x16x32xf32> to vector<16x32xf32>
    %93 = vector.extract_strided_slice %92 {offsets = [0, 0], sizes = [16, 8], strides = [1, 1]} : vector<16x32xf32> to vector<16x8xf32>
    %94 = arith.truncf %93 : vector<16x8xf32> to vector<16x8xbf16>
    %cst_41 = arith.constant dense<0.000000e+00> : vector<16x8xf32>
    %95 = tpu.matmul %78, %94, %cst_41 {dimension_numbers = #tpu.dot_dimension_numbers<[1], [0], [0], [1], [0, 0, 1, 1], [], []>} : vector<16x16xbf16>, vector<16x8xbf16>, vector<16x8xf32> -> vector<16x8xf32>
    %c32 = arith.constant 32 : index
    %c0_42 = arith.constant 0 : index
    %96 = vector.load %arg16[%c32, %c0_42] : memref<64x32xf32, #tpu.memory_space<vmem>>, vector<16x8xf32>
    tpu.vector_store %arg16[%c32, %c0_42], %95 {strides = array<i32>} : memref<64x32xf32, #tpu.memory_space<vmem>>, vector<16x8xf32>,
    %97 = vector.extract_strided_slice %32 {offsets = [3, 0, 0], sizes = [1, 16, 32], strides = [1, 1, 1]} : vector<4x16x32xf32> to vector<1x16x32xf32>
    %98 = vector.shape_cast %97 : vector<1x16x32xf32> to vector<16x32xf32>
    %99 = vector.extract_strided_slice %98 {offsets = [0, 0], sizes = [16, 8], strides = [1, 1]} : vector<16x32xf32> to vector<16x8xf32>
    %100 = arith.truncf %99 : vector<16x8xf32> to vector<16x8xbf16>
    %cst_43 = arith.constant dense<0.000000e+00> : vector<16x8xf32>
    %101 = tpu.matmul %78, %100, %cst_43 {dimension_numbers = #tpu.dot_dimension_numbers<[1], [0], [0], [1], [0, 0, 1, 1], [], []>} : vector<16x16xbf16>, vector<16x8xbf16>, vector<16x8xf32> -> vector<16x8xf32>
    %c48 = arith.constant 48 : index
    %c0_44 = arith.constant 0 : index
    %102 = vector.load %arg16[%c48, %c0_44] : memref<64x32xf32, #tpu.memory_space<vmem>>, vector<16x8xf32>
    tpu.vector_store %arg16[%c48, %c0_44], %101 {strides = array<i32>} : memref<64x32xf32, #tpu.memory_space<vmem>>, vector<16x8xf32>,
    %103 = vector.extract_strided_slice %58 {offsets = [1, 0], sizes = [1, 16], strides = [1, 1]} : vector<4x16xf32> to vector<1x16xf32>
    %104 = vector.shape_cast %103 : vector<1x16xf32> to vector<1x1x16xf32>
    %105 = vector.broadcast %104 : vector<1x1x16xf32> to vector<16x16x16xf32>
    %106 = arith.mulf %57, %105 : vector<16x16x16xf32>
    %cst_45 = arith.constant dense<0.000000e+00> : vector<16x16xf32>
    %107 = vector.multi_reduction <add>, %106, %cst_45 [2] : vector<16x16x16xf32> to vector<16x16xf32>
    %cst_46 = arith.constant 0.000000e+00 : f32
    %108 = vector.broadcast %cst_46 : f32 to vector<16x16xf32>
    %109 = arith.cmpf ogt, %5, %108 : vector<16x16xf32>
    %cst_47 = arith.constant -3.40282347E+38 : f32
    %110 = vector.broadcast %cst_47 : f32 to vector<16x16xf32>
    %111 = arith.select %109, %107, %110 : vector<16x16xi1>, vector<16x16xf32>
    %cst_48 = arith.constant dense<0xFF800000> : vector<16xf32>
    %112 = vector.multi_reduction <maximumf>, %111, %cst_48 [1] : vector<16x16xf32> to vector<16xf32>
    %113 = vector.shape_cast %112 : vector<16xf32> to vector<16x1xf32>
    %114 = vector.broadcast %113 : vector<16x1xf32> to vector<16x16xf32>
    %115 = arith.subf %111, %114 : vector<16x16xf32>
    %116 = math.exp %115 : vector<16x16xf32>
    %cst_49 = arith.constant dense<0.000000e+00> : vector<16xf32>
    %117 = vector.multi_reduction <add>, %116, %cst_49 [1] : vector<16x16xf32> to vector<16xf32>
    %118 = vector.shape_cast %117 : vector<16xf32> to vector<16x1xf32>
    %119 = tpu.reciprocal %118 {approx = true} : vector<16x1xf32> -> vector<16x1xf32>
    %120 = vector.broadcast %119 : vector<16x1xf32> to vector<16x16xf32>
    %121 = arith.mulf %116, %120 : vector<16x16xf32>
    %122 = arith.truncf %121 : vector<16x16xf32> to vector<16x16xbf16>
    %123 = vector.extract_strided_slice %32 {offsets = [0, 0, 0], sizes = [1, 16, 32], strides = [1, 1, 1]} : vector<4x16x32xf32> to vector<1x16x32xf32>
    %124 = vector.shape_cast %123 : vector<1x16x32xf32> to vector<16x32xf32>
    %125 = vector.extract_strided_slice %124 {offsets = [0, 8], sizes = [16, 8], strides = [1, 1]} : vector<16x32xf32> to vector<16x8xf32>
    %126 = arith.truncf %125 : vector<16x8xf32> to vector<16x8xbf16>
    %cst_50 = arith.constant dense<0.000000e+00> : vector<16x8xf32>
    %127 = tpu.matmul %122, %126, %cst_50 {dimension_numbers = #tpu.dot_dimension_numbers<[1], [0], [0], [1], [0, 0, 1, 1], [], []>} : vector<16x16xbf16>, vector<16x8xbf16>, vector<16x8xf32> -> vector<16x8xf32>
    %c0_51 = arith.constant 0 : index
    %c8 = arith.constant 8 : index
    %128 = vector.load %arg16[%c0_51, %c8] : memref<64x32xf32, #tpu.memory_space<vmem>>, vector<16x8xf32>
    tpu.vector_store %arg16[%c0_51, %c8], %127 {strides = array<i32>} : memref<64x32xf32, #tpu.memory_space<vmem>>, vector<16x8xf32>,
    %129 = vector.extract_strided_slice %32 {offsets = [1, 0, 0], sizes = [1, 16, 32], strides = [1, 1, 1]} : vector<4x16x32xf32> to vector<1x16x32xf32>
    %130 = vector.shape_cast %129 : vector<1x16x32xf32> to vector<16x32xf32>
    %131 = vector.extract_strided_slice %130 {offsets = [0, 8], sizes = [16, 8], strides = [1, 1]} : vector<16x32xf32> to vector<16x8xf32>
    %132 = arith.truncf %131 : vector<16x8xf32> to vector<16x8xbf16>
    %cst_52 = arith.constant dense<0.000000e+00> : vector<16x8xf32>
    %133 = tpu.matmul %122, %132, %cst_52 {dimension_numbers = #tpu.dot_dimension_numbers<[1], [0], [0], [1], [0, 0, 1, 1], [], []>} : vector<16x16xbf16>, vector<16x8xbf16>, vector<16x8xf32> -> vector<16x8xf32>
    %c16_53 = arith.constant 16 : index
    %c8_54 = arith.constant 8 : index
    %134 = vector.load %arg16[%c16_53, %c8_54] : memref<64x32xf32, #tpu.memory_space<vmem>>, vector<16x8xf32>
    tpu.vector_store %arg16[%c16_53, %c8_54], %133 {strides = array<i32>} : memref<64x32xf32, #tpu.memory_space<vmem>>, vector<16x8xf32>,
    %135 = vector.extract_strided_slice %32 {offsets = [2, 0, 0], sizes = [1, 16, 32], strides = [1, 1, 1]} : vector<4x16x32xf32> to vector<1x16x32xf32>
    %136 = vector.shape_cast %135 : vector<1x16x32xf32> to vector<16x32xf32>
    %137 = vector.extract_strided_slice %136 {offsets = [0, 8], sizes = [16, 8], strides = [1, 1]} : vector<16x32xf32> to vector<16x8xf32>
    %138 = arith.truncf %137 : vector<16x8xf32> to vector<16x8xbf16>
    %cst_55 = arith.constant dense<0.000000e+00> : vector<16x8xf32>
    %139 = tpu.matmul %122, %138, %cst_55 {dimension_numbers = #tpu.dot_dimension_numbers<[1], [0], [0], [1], [0, 0, 1, 1], [], []>} : vector<16x16xbf16>, vector<16x8xbf16>, vector<16x8xf32> -> vector<16x8xf32>
    %c32_56 = arith.constant 32 : index
    %c8_57 = arith.constant 8 : index
    %140 = vector.load %arg16[%c32_56, %c8_57] : memref<64x32xf32, #tpu.memory_space<vmem>>, vector<16x8xf32>
    tpu.vector_store %arg16[%c32_56, %c8_57], %139 {strides = array<i32>} : memref<64x32xf32, #tpu.memory_space<vmem>>, vector<16x8xf32>,
    %141 = vector.extract_strided_slice %32 {offsets = [3, 0, 0], sizes = [1, 16, 32], strides = [1, 1, 1]} : vector<4x16x32xf32> to vector<1x16x32xf32>
    %142 = vector.shape_cast %141 : vector<1x16x32xf32> to vector<16x32xf32>
    %143 = vector.extract_strided_slice %142 {offsets = [0, 8], sizes = [16, 8], strides = [1, 1]} : vector<16x32xf32> to vector<16x8xf32>
    %144 = arith.truncf %143 : vector<16x8xf32> to vector<16x8xbf16>
    %cst_58 = arith.constant dense<0.000000e+00> : vector<16x8xf32>
    %145 = tpu.matmul %122, %144, %cst_58 {dimension_numbers = #tpu.dot_dimension_numbers<[1], [0], [0], [1], [0, 0, 1, 1], [], []>} : vector<16x16xbf16>, vector<16x8xbf16>, vector<16x8xf32> -> vector<16x8xf32>
    %c48_59 = arith.constant 48 : index
    %c8_60 = arith.constant 8 : index
    %146 = vector.load %arg16[%c48_59, %c8_60] : memref<64x32xf32, #tpu.memory_space<vmem>>, vector<16x8xf32>
    tpu.vector_store %arg16[%c48_59, %c8_60], %145 {strides = array<i32>} : memref<64x32xf32, #tpu.memory_space<vmem>>, vector<16x8xf32>,
    %147 = vector.extract_strided_slice %58 {offsets = [2, 0], sizes = [1, 16], strides = [1, 1]} : vector<4x16xf32> to vector<1x16xf32>
    %148 = vector.shape_cast %147 : vector<1x16xf32> to vector<1x1x16xf32>
    %149 = vector.broadcast %148 : vector<1x1x16xf32> to vector<16x16x16xf32>
    %150 = arith.mulf %57, %149 : vector<16x16x16xf32>
    %cst_61 = arith.constant dense<0.000000e+00> : vector<16x16xf32>
    %151 = vector.multi_reduction <add>, %150, %cst_61 [2] : vector<16x16x16xf32> to vector<16x16xf32>
    %cst_62 = arith.constant 0.000000e+00 : f32
    %152 = vector.broadcast %cst_62 : f32 to vector<16x16xf32>
    %153 = arith.cmpf ogt, %5, %152 : vector<16x16xf32>
    %cst_63 = arith.constant -3.40282347E+38 : f32
    %154 = vector.broadcast %cst_63 : f32 to vector<16x16xf32>
    %155 = arith.select %153, %151, %154 : vector<16x16xi1>, vector<16x16xf32>
    %cst_64 = arith.constant dense<0xFF800000> : vector<16xf32>
    %156 = vector.multi_reduction <maximumf>, %155, %cst_64 [1] : vector<16x16xf32> to vector<16xf32>
    %157 = vector.shape_cast %156 : vector<16xf32> to vector<16x1xf32>
    %158 = vector.broadcast %157 : vector<16x1xf32> to vector<16x16xf32>
    %159 = arith.subf %155, %158 : vector<16x16xf32>
    %160 = math.exp %159 : vector<16x16xf32>
    %cst_65 = arith.constant dense<0.000000e+00> : vector<16xf32>
    %161 = vector.multi_reduction <add>, %160, %cst_65 [1] : vector<16x16xf32> to vector<16xf32>
    %162 = vector.shape_cast %161 : vector<16xf32> to vector<16x1xf32>
    %163 = tpu.reciprocal %162 {approx = true} : vector<16x1xf32> -> vector<16x1xf32>
    %164 = vector.broadcast %163 : vector<16x1xf32> to vector<16x16xf32>
    %165 = arith.mulf %160, %164 : vector<16x16xf32>
    %166 = arith.truncf %165 : vector<16x16xf32> to vector<16x16xbf16>
    %167 = vector.extract_strided_slice %32 {offsets = [0, 0, 0], sizes = [1, 16, 32], strides = [1, 1, 1]} : vector<4x16x32xf32> to vector<1x16x32xf32>
    %168 = vector.shape_cast %167 : vector<1x16x32xf32> to vector<16x32xf32>
    %169 = vector.extract_strided_slice %168 {offsets = [0, 16], sizes = [16, 8], strides = [1, 1]} : vector<16x32xf32> to vector<16x8xf32>
    %170 = arith.truncf %169 : vector<16x8xf32> to vector<16x8xbf16>
    %cst_66 = arith.constant dense<0.000000e+00> : vector<16x8xf32>
    %171 = tpu.matmul %166, %170, %cst_66 {dimension_numbers = #tpu.dot_dimension_numbers<[1], [0], [0], [1], [0, 0, 1, 1], [], []>} : vector<16x16xbf16>, vector<16x8xbf16>, vector<16x8xf32> -> vector<16x8xf32>
    %c0_67 = arith.constant 0 : index
    %c16_68 = arith.constant 16 : index
    %172 = vector.load %arg16[%c0_67, %c16_68] : memref<64x32xf32, #tpu.memory_space<vmem>>, vector<16x8xf32>
    tpu.vector_store %arg16[%c0_67, %c16_68], %171 {strides = array<i32>} : memref<64x32xf32, #tpu.memory_space<vmem>>, vector<16x8xf32>,
    %173 = vector.extract_strided_slice %32 {offsets = [1, 0, 0], sizes = [1, 16, 32], strides = [1, 1, 1]} : vector<4x16x32xf32> to vector<1x16x32xf32>
    %174 = vector.shape_cast %173 : vector<1x16x32xf32> to vector<16x32xf32>
    %175 = vector.extract_strided_slice %174 {offsets = [0, 16], sizes = [16, 8], strides = [1, 1]} : vector<16x32xf32> to vector<16x8xf32>
    %176 = arith.truncf %175 : vector<16x8xf32> to vector<16x8xbf16>
    %cst_69 = arith.constant dense<0.000000e+00> : vector<16x8xf32>
    %177 = tpu.matmul %166, %176, %cst_69 {dimension_numbers = #tpu.dot_dimension_numbers<[1], [0], [0], [1], [0, 0, 1, 1], [], []>} : vector<16x16xbf16>, vector<16x8xbf16>, vector<16x8xf32> -> vector<16x8xf32>
    %c16_70 = arith.constant 16 : index
    %c16_71 = arith.constant 16 : index
    %178 = vector.load %arg16[%c16_70, %c16_71] : memref<64x32xf32, #tpu.memory_space<vmem>>, vector<16x8xf32>
    tpu.vector_store %arg16[%c16_70, %c16_71], %177 {strides = array<i32>} : memref<64x32xf32, #tpu.memory_space<vmem>>, vector<16x8xf32>,
    %179 = vector.extract_strided_slice %32 {offsets = [2, 0, 0], sizes = [1, 16, 32], strides = [1, 1, 1]} : vector<4x16x32xf32> to vector<1x16x32xf32>
    %180 = vector.shape_cast %179 : vector<1x16x32xf32> to vector<16x32xf32>
    %181 = vector.extract_strided_slice %180 {offsets = [0, 16], sizes = [16, 8], strides = [1, 1]} : vector<16x32xf32> to vector<16x8xf32>
    %182 = arith.truncf %181 : vector<16x8xf32> to vector<16x8xbf16>
    %cst_72 = arith.constant dense<0.000000e+00> : vector<16x8xf32>
    %183 = tpu.matmul %166, %182, %cst_72 {dimension_numbers = #tpu.dot_dimension_numbers<[1], [0], [0], [1], [0, 0, 1, 1], [], []>} : vector<16x16xbf16>, vector<16x8xbf16>, vector<16x8xf32> -> vector<16x8xf32>
    %c32_73 = arith.constant 32 : index
    %c16_74 = arith.constant 16 : index
    %184 = vector.load %arg16[%c32_73, %c16_74] : memref<64x32xf32, #tpu.memory_space<vmem>>, vector<16x8xf32>
    tpu.vector_store %arg16[%c32_73, %c16_74], %183 {strides = array<i32>} : memref<64x32xf32, #tpu.memory_space<vmem>>, vector<16x8xf32>,
    %185 = vector.extract_strided_slice %32 {offsets = [3, 0, 0], sizes = [1, 16, 32], strides = [1, 1, 1]} : vector<4x16x32xf32> to vector<1x16x32xf32>
    %186 = vector.shape_cast %185 : vector<1x16x32xf32> to vector<16x32xf32>
    %187 = vector.extract_strided_slice %186 {offsets = [0, 16], sizes = [16, 8], strides = [1, 1]} : vector<16x32xf32> to vector<16x8xf32>
    %188 = arith.truncf %187 : vector<16x8xf32> to vector<16x8xbf16>
    %cst_75 = arith.constant dense<0.000000e+00> : vector<16x8xf32>
    %189 = tpu.matmul %166, %188, %cst_75 {dimension_numbers = #tpu.dot_dimension_numbers<[1], [0], [0], [1], [0, 0, 1, 1], [], []>} : vector<16x16xbf16>, vector<16x8xbf16>, vector<16x8xf32> -> vector<16x8xf32>
    %c48_76 = arith.constant 48 : index
    %c16_77 = arith.constant 16 : index
    %190 = vector.load %arg16[%c48_76, %c16_77] : memref<64x32xf32, #tpu.memory_space<vmem>>, vector<16x8xf32>
    tpu.vector_store %arg16[%c48_76, %c16_77], %189 {strides = array<i32>} : memref<64x32xf32, #tpu.memory_space<vmem>>, vector<16x8xf32>,
    %191 = vector.extract_strided_slice %58 {offsets = [3, 0], sizes = [1, 16], strides = [1, 1]} : vector<4x16xf32> to vector<1x16xf32>
    %192 = vector.shape_cast %191 : vector<1x16xf32> to vector<1x1x16xf32>
    %193 = vector.broadcast %192 : vector<1x1x16xf32> to vector<16x16x16xf32>
    %194 = arith.mulf %57, %193 : vector<16x16x16xf32>
    %cst_78 = arith.constant dense<0.000000e+00> : vector<16x16xf32>
    %195 = vector.multi_reduction <add>, %194, %cst_78 [2] : vector<16x16x16xf32> to vector<16x16xf32>
    %cst_79 = arith.constant 0.000000e+00 : f32
    %196 = vector.broadcast %cst_79 : f32 to vector<16x16xf32>
    %197 = arith.cmpf ogt, %5, %196 : vector<16x16xf32>
    %cst_80 = arith.constant -3.40282347E+38 : f32
    %198 = vector.broadcast %cst_80 : f32 to vector<16x16xf32>
    %199 = arith.select %197, %195, %198 : vector<16x16xi1>, vector<16x16xf32>
    %cst_81 = arith.constant dense<0xFF800000> : vector<16xf32>
    %200 = vector.multi_reduction <maximumf>, %199, %cst_81 [1] : vector<16x16xf32> to vector<16xf32>
    %201 = vector.shape_cast %200 : vector<16xf32> to vector<16x1xf32>
    %202 = vector.broadcast %201 : vector<16x1xf32> to vector<16x16xf32>
    %203 = arith.subf %199, %202 : vector<16x16xf32>
    %204 = math.exp %203 : vector<16x16xf32>
    %cst_82 = arith.constant dense<0.000000e+00> : vector<16xf32>
    %205 = vector.multi_reduction <add>, %204, %cst_82 [1] : vector<16x16xf32> to vector<16xf32>
    %206 = vector.shape_cast %205 : vector<16xf32> to vector<16x1xf32>
    %207 = tpu.reciprocal %206 {approx = true} : vector<16x1xf32> -> vector<16x1xf32>
    %208 = vector.broadcast %207 : vector<16x1xf32> to vector<16x16xf32>
    %209 = arith.mulf %204, %208 : vector<16x16xf32>
    %210 = arith.truncf %209 : vector<16x16xf32> to vector<16x16xbf16>
    %211 = vector.extract_strided_slice %32 {offsets = [0, 0, 0], sizes = [1, 16, 32], strides = [1, 1, 1]} : vector<4x16x32xf32> to vector<1x16x32xf32>
    %212 = vector.shape_cast %211 : vector<1x16x32xf32> to vector<16x32xf32>
    %213 = vector.extract_strided_slice %212 {offsets = [0, 24], sizes = [16, 8], strides = [1, 1]} : vector<16x32xf32> to vector<16x8xf32>
    %214 = arith.truncf %213 : vector<16x8xf32> to vector<16x8xbf16>
    %cst_83 = arith.constant dense<0.000000e+00> : vector<16x8xf32>
    %215 = tpu.matmul %210, %214, %cst_83 {dimension_numbers = #tpu.dot_dimension_numbers<[1], [0], [0], [1], [0, 0, 1, 1], [], []>} : vector<16x16xbf16>, vector<16x8xbf16>, vector<16x8xf32> -> vector<16x8xf32>
    %c0_84 = arith.constant 0 : index
    %c24 = arith.constant 24 : index
    %216 = vector.load %arg16[%c0_84, %c24] : memref<64x32xf32, #tpu.memory_space<vmem>>, vector<16x8xf32>
    tpu.vector_store %arg16[%c0_84, %c24], %215 {strides = array<i32>} : memref<64x32xf32, #tpu.memory_space<vmem>>, vector<16x8xf32>,
    %217 = vector.extract_strided_slice %32 {offsets = [1, 0, 0], sizes = [1, 16, 32], strides = [1, 1, 1]} : vector<4x16x32xf32> to vector<1x16x32xf32>
    %218 = vector.shape_cast %217 : vector<1x16x32xf32> to vector<16x32xf32>
    %219 = vector.extract_strided_slice %218 {offsets = [0, 24], sizes = [16, 8], strides = [1, 1]} : vector<16x32xf32> to vector<16x8xf32>
    %220 = arith.truncf %219 : vector<16x8xf32> to vector<16x8xbf16>
    %cst_85 = arith.constant dense<0.000000e+00> : vector<16x8xf32>
    %221 = tpu.matmul %210, %220, %cst_85 {dimension_numbers = #tpu.dot_dimension_numbers<[1], [0], [0], [1], [0, 0, 1, 1], [], []>} : vector<16x16xbf16>, vector<16x8xbf16>, vector<16x8xf32> -> vector<16x8xf32>
    %c16_86 = arith.constant 16 : index
    %c24_87 = arith.constant 24 : index
    %222 = vector.load %arg16[%c16_86, %c24_87] : memref<64x32xf32, #tpu.memory_space<vmem>>, vector<16x8xf32>
    tpu.vector_store %arg16[%c16_86, %c24_87], %221 {strides = array<i32>} : memref<64x32xf32, #tpu.memory_space<vmem>>, vector<16x8xf32>,
    %223 = vector.extract_strided_slice %32 {offsets = [2, 0, 0], sizes = [1, 16, 32], strides = [1, 1, 1]} : vector<4x16x32xf32> to vector<1x16x32xf32>
    %224 = vector.shape_cast %223 : vector<1x16x32xf32> to vector<16x32xf32>
    %225 = vector.extract_strided_slice %224 {offsets = [0, 24], sizes = [16, 8], strides = [1, 1]} : vector<16x32xf32> to vector<16x8xf32>
    %226 = arith.truncf %225 : vector<16x8xf32> to vector<16x8xbf16>
    %cst_88 = arith.constant dense<0.000000e+00> : vector<16x8xf32>
    %227 = tpu.matmul %210, %226, %cst_88 {dimension_numbers = #tpu.dot_dimension_numbers<[1], [0], [0], [1], [0, 0, 1, 1], [], []>} : vector<16x16xbf16>, vector<16x8xbf16>, vector<16x8xf32> -> vector<16x8xf32>
    %c32_89 = arith.constant 32 : index
    %c24_90 = arith.constant 24 : index
    %228 = vector.load %arg16[%c32_89, %c24_90] : memref<64x32xf32, #tpu.memory_space<vmem>>, vector<16x8xf32>
    tpu.vector_store %arg16[%c32_89, %c24_90], %227 {strides = array<i32>} : memref<64x32xf32, #tpu.memory_space<vmem>>, vector<16x8xf32>,
    %229 = vector.extract_strided_slice %32 {offsets = [3, 0, 0], sizes = [1, 16, 32], strides = [1, 1, 1]} : vector<4x16x32xf32> to vector<1x16x32xf32>
    %230 = vector.shape_cast %229 : vector<1x16x32xf32> to vector<16x32xf32>
    %231 = vector.extract_strided_slice %230 {offsets = [0, 24], sizes = [16, 8], strides = [1, 1]} : vector<16x32xf32> to vector<16x8xf32>
    %232 = arith.truncf %231 : vector<16x8xf32> to vector<16x8xbf16>
    %cst_91 = arith.constant dense<0.000000e+00> : vector<16x8xf32>
    %233 = tpu.matmul %210, %232, %cst_91 {dimension_numbers = #tpu.dot_dimension_numbers<[1], [0], [0], [1], [0, 0, 1, 1], [], []>} : vector<16x16xbf16>, vector<16x8xbf16>, vector<16x8xf32> -> vector<16x8xf32>
    %c48_92 = arith.constant 48 : index
    %c24_93 = arith.constant 24 : index
    %234 = vector.load %arg16[%c48_92, %c24_93] : memref<64x32xf32, #tpu.memory_space<vmem>>, vector<16x8xf32>
    tpu.vector_store %arg16[%c48_92, %c24_93], %233 {strides = array<i32>} : memref<64x32xf32, #tpu.memory_space<vmem>>, vector<16x8xf32>,
    %c0_94 = arith.constant 0 : index
    %c0_95 = arith.constant 0 : index
    %235 = vector.load %arg16[%c0_94, %c0_95] : memref<64x32xf32, #tpu.memory_space<vmem>>, vector<64x32xf32>
    %c0_96 = arith.constant 0 : index
    %c0_97 = arith.constant 0 : index
    %236 = vector.load %arg10[%c0_96, %c0_97] : memref<32x32xf32, #tpu.memory_space<vmem>>, vector<32x32xf32>
    %237 = arith.truncf %235 : vector<64x32xf32> to vector<64x32xbf16>
    %238 = arith.truncf %236 : vector<32x32xf32> to vector<32x32xbf16>
    %cst_98 = arith.constant dense<0.000000e+00> : vector<64x32xf32>
    %239 = tpu.matmul %237, %238, %cst_98 {dimension_numbers = #tpu.dot_dimension_numbers<[1], [0], [0], [1], [0, 0, 1, 1], [], []>} : vector<64x32xbf16>, vector<32x32xbf16>, vector<64x32xf32> -> vector<64x32xf32>
    %240 = arith.addf %1, %239 : vector<64x32xf32>
    %c0_99 = arith.constant 0 : index
    %c0_100 = arith.constant 0 : index
    %241 = vector.load %arg11[%c0_99, %c0_100] : memref<1x32xf32, #tpu.memory_space<vmem>>, vector<1x32xf32>
    %c0_101 = arith.constant 0 : index
    %c0_102 = arith.constant 0 : index
    %242 = vector.load %arg12[%c0_101, %c0_102] : memref<1x32xf32, #tpu.memory_space<vmem>>, vector<1x32xf32>
    %cst_103 = arith.constant dense<0.000000e+00> : vector<64xf32>
    %243 = vector.multi_reduction <add>, %240, %cst_103 [1] : vector<64x32xf32> to vector<64xf32>
    %244 = vector.shape_cast %243 : vector<64xf32> to vector<64x1xf32>
    %cst_104 = arith.constant 3.200000e+01 : f32
    %245 = vector.broadcast %cst_104 : f32 to vector<64x1xf32>
    %246 = arith.divf %244, %245 : vector<64x1xf32>
    %247 = vector.broadcast %246 : vector<64x1xf32> to vector<64x32xf32>
    %248 = arith.subf %240, %247 : vector<64x32xf32>
    %249 = arith.mulf %248, %248 : vector<64x32xf32>
    %cst_105 = arith.constant dense<0.000000e+00> : vector<64xf32>
    %250 = vector.multi_reduction <add>, %249, %cst_105 [1] : vector<64x32xf32> to vector<64xf32>
    %251 = vector.shape_cast %250 : vector<64xf32> to vector<64x1xf32>
    %cst_106 = arith.constant 3.200000e+01 : f32
    %252 = vector.broadcast %cst_106 : f32 to vector<64x1xf32>
    %253 = arith.divf %251, %252 : vector<64x1xf32>
    %cst_107 = arith.constant 9.99999974E-6 : f32
    %254 = vector.broadcast %cst_107 : f32 to vector<64x1xf32>
    %255 = arith.addf %253, %254 : vector<64x1xf32>
    %256 = math.rsqrt %255 : vector<64x1xf32>
    %257 = vector.broadcast %256 : vector<64x1xf32> to vector<64x32xf32>
    %258 = arith.mulf %248, %257 : vector<64x32xf32>
    %259 = vector.broadcast %241 : vector<1x32xf32> to vector<64x32xf32>
    %260 = arith.mulf %258, %259 : vector<64x32xf32>
    %261 = vector.broadcast %242 : vector<1x32xf32> to vector<64x32xf32>
    %262 = arith.addf %260, %261 : vector<64x32xf32>
    %c0_108 = arith.constant 0 : index
    %c0_109 = arith.constant 0 : index
    %263 = vector.load %arg13[%c0_108, %c0_109] : memref<32x32xf32, #tpu.memory_space<vmem>>, vector<32x32xf32>
    %264 = arith.truncf %262 : vector<64x32xf32> to vector<64x32xbf16>
    %265 = arith.truncf %263 : vector<32x32xf32> to vector<32x32xbf16>
    %cst_110 = arith.constant dense<0.000000e+00> : vector<64x32xf32>
    %266 = tpu.matmul %264, %265, %cst_110 {dimension_numbers = #tpu.dot_dimension_numbers<[1], [0], [0], [1], [0, 0, 1, 1], [], []>} : vector<64x32xbf16>, vector<32x32xbf16>, vector<64x32xf32> -> vector<64x32xf32>
    %cst_111 = arith.constant 0.000000e+00 : f32
    %267 = vector.broadcast %cst_111 : f32 to vector<64x32xf32>
    %268 = arith.cmpf ogt, %266, %267 : vector<64x32xf32>
    %cst_112 = arith.constant 0.000000e+00 : f32
    %269 = vector.broadcast %cst_112 : f32 to vector<64x32xf32>
    %270 = arith.minimumf %266, %269 : vector<64x32xf32>
    %271 = math.exp %270 : vector<64x32xf32>
    %cst_113 = arith.constant 1.000000e+00 : f32
    %272 = vector.broadcast %cst_113 : f32 to vector<64x32xf32>
    %273 = arith.subf %271, %272 : vector<64x32xf32>
    %274 = arith.select %268, %266, %273 : vector<64x32xi1>, vector<64x32xf32>
    %c0_114 = arith.constant 0 : index
    %c0_115 = arith.constant 0 : index
    %275 = vector.load %arg14[%c0_114, %c0_115] : memref<32x32xf32, #tpu.memory_space<vmem>>, vector<32x32xf32>
    %276 = arith.truncf %274 : vector<64x32xf32> to vector<64x32xbf16>
    %277 = arith.truncf %275 : vector<32x32xf32> to vector<32x32xbf16>
    %cst_116 = arith.constant dense<0.000000e+00> : vector<64x32xf32>
    %278 = tpu.matmul %276, %277, %cst_116 {dimension_numbers = #tpu.dot_dimension_numbers<[1], [0], [0], [1], [0, 0, 1, 1], [], []>} : vector<64x32xbf16>, vector<32x32xbf16>, vector<64x32xf32> -> vector<64x32xf32>
    %279 = arith.addf %240, %278 : vector<64x32xf32>
    %c0_117 = arith.constant 0 : index
    %c0_118 = arith.constant 0 : index
    %c0_119 = arith.constant 0 : index
    %280 = vector.load %arg15[%c0_117, %c0_118, %c0_119] : memref<1x64x32xf32, #tpu.memory_space<vmem>>, vector<1x64x32xf32>
    %281 = vector.shape_cast %280 : vector<1x64x32xf32> to vector<64x32xf32>
    %282 = vector.shape_cast %279 : vector<64x32xf32> to vector<1x64x32xf32>
    tpu.vector_store %arg15[%c0_117, %c0_118, %c0_119], %282 {strides = array<i32>} : memref<1x64x32xf32, #tpu.memory_space<vmem>>, vector<1x64x32xf32>,
    return
  }
  func.func @transform_0(%arg0: i32) -> (i32, i32, i32) {
    %c0_i32 = arith.constant 0 : i32
    %c0_i32_0 = arith.constant 0 : i32
    %c0_i32_1 = arith.constant 0 : i32
    return %arg0, %c0_i32, %c0_i32_0 : i32, i32, i32
  }
  func.func @transform_1(%arg0: i32) -> (i32, i32, i32) {
    %c0_i32 = arith.constant 0 : i32
    %c0_i32_0 = arith.constant 0 : i32
    %c0_i32_1 = arith.constant 0 : i32
    return %arg0, %c0_i32, %c0_i32_0 : i32, i32, i32
  }
  func.func @transform_2(%arg0: i32) -> (i32, i32, i32) {
    %c0_i32 = arith.constant 0 : i32
    %c0_i32_0 = arith.constant 0 : i32
    %c0_i32_1 = arith.constant 0 : i32
    return %arg0, %c0_i32, %c0_i32_0 : i32, i32, i32
  }
  func.func @transform_3(%arg0: i32) -> (i32, i32) {
    %c0_i32 = arith.constant 0 : i32
    %c0_i32_0 = arith.constant 0 : i32
    %c0_i32_1 = arith.constant 0 : i32
    return %c0_i32, %c0_i32_0 : i32, i32
  }
  func.func @transform_4(%arg0: i32) -> (i32, i32) {
    %c0_i32 = arith.constant 0 : i32
    %c0_i32_0 = arith.constant 0 : i32
    %c0_i32_1 = arith.constant 0 : i32
    return %c0_i32, %c0_i32_0 : i32, i32
  }
  func.func @transform_5(%arg0: i32) -> (i32, i32) {
    %c0_i32 = arith.constant 0 : i32
    %c0_i32_0 = arith.constant 0 : i32
    %c0_i32_1 = arith.constant 0 : i32
    return %c0_i32, %c0_i32_0 : i32, i32
  }
  func.func @transform_6(%arg0: i32) -> (i32, i32) {
    %c0_i32 = arith.constant 0 : i32
    %c0_i32_0 = arith.constant 0 : i32
    %c0_i32_1 = arith.constant 0 : i32
    return %c0_i32, %c0_i32_0 : i32, i32
  }
  func.func @transform_7(%arg0: i32) -> (i32, i32) {
    %c0_i32 = arith.constant 0 : i32
    %c0_i32_0 = arith.constant 0 : i32
    %c0_i32_1 = arith.constant 0 : i32
    return %c0_i32, %c0_i32_0 : i32, i32
  }
  func.func @transform_8(%arg0: i32) -> (i32, i32) {
    %c0_i32 = arith.constant 0 : i32
    %c0_i32_0 = arith.constant 0 : i32
    %c0_i32_1 = arith.constant 0 : i32
    return %c0_i32, %c0_i32_0 : i32, i32
  }
  func.func @transform_9(%arg0: i32) -> (i32, i32) {
    %c0_i32 = arith.constant 0 : i32
    %c0_i32_0 = arith.constant 0 : i32
    %c0_i32_1 = arith.constant 0 : i32
    return %c0_i32, %c0_i32_0 : i32, i32
  }
  func.func @transform_10(%arg0: i32) -> (i32, i32) {
    %c0_i32 = arith.constant 0 : i32
    %c0_i32_0 = arith.constant 0 : i32
    %c0_i32_1 = arith.constant 0 : i32
    return %c0_i32, %c0_i32_0 : i32, i32
  }
  func.func @transform_11(%arg0: i32) -> (i32, i32) {
    %c0_i32 = arith.constant 0 : i32
    %c0_i32_0 = arith.constant 0 : i32
    %c0_i32_1 = arith.constant 0 : i32
    return %c0_i32, %c0_i32_0 : i32, i32
  }
  func.func @transform_12(%arg0: i32) -> (i32, i32) {
    %c0_i32 = arith.constant 0 : i32
    %c0_i32_0 = arith.constant 0 : i32
    %c0_i32_1 = arith.constant 0 : i32
    return %c0_i32, %c0_i32_0 : i32, i32
  }
  func.func @transform_13(%arg0: i32) -> (i32, i32) {
    %c0_i32 = arith.constant 0 : i32
    %c0_i32_0 = arith.constant 0 : i32
    %c0_i32_1 = arith.constant 0 : i32
    return %c0_i32, %c0_i32_0 : i32, i32
  }
  func.func @transform_14(%arg0: i32) -> (i32, i32, i32) {
    %c0_i32 = arith.constant 0 : i32
    %c0_i32_0 = arith.constant 0 : i32
    %c0_i32_1 = arith.constant 0 : i32
    return %arg0, %c0_i32, %c0_i32_0 : i32, i32, i32
  }
}

</mosaic_0001>

<llo_original>
// kernel: msa_pair_attention_layer.5
$region0: #{msa_pair_attention_layer.5}
  #allocation0 [shape = 'u32[]', space=smem, size = 0x4, offset = 0x4, fixed_abs, tag = 'smem constant byte address 0x4 - core index']
  #allocation1 [shape = 'u32[144,128]{1,0:T(1,128)}', space=vmem, size = 0x12000, scoped, tag = 'internal scratch']
  %s0 = inlined_call_operand.vmem [shape: f32[2,4,128], index: 0, kind: input, shape index: {}]
  %s1 = inlined_call_operand.vmem [shape: f32[2,4,128], index: 1, kind: input, shape index: {}]
  %s2 = inlined_call_operand.vmem [shape: f32[2,128,128], index: 2, kind: output, shape index: {}]
  %s3 = sld [smem:[#allocation0]]
  $region41: #{msa_pair_attention_layer.5} parent=0
    _
  %s5 = ssub.s32 1, %s3
  %s6 = scalar_select 0, %s5, %s3
  loop: start=0, step=1, limit=4
  $region2: #{msa_pair_attention_layer.5} parent=0 // loop_pre_header
    _
  $region3: #{msa_pair_attention_layer.5} parent=0 // loop_header
    %s8 = sphi 0, %s12
    %p9 = scmp.ge.s32.totalorder %s8, 4
    %s18 = sphi 0, %s20
    %s21 = sphi 0, %s18
    %s22 = sphi 0, %s21
    %s38 = sphi 0, %s22
    %s44 = sphi 0, %s46
    %s47 = sphi 0, %s44
    %s48 = sphi 0, %s47
    %s64 = sphi 0, %s48
    %s70 = sphi 0, %s72
    %s73 = sphi 0, %s70
    %s74 = sphi 0, %s73
    %s90 = sphi 0, %s74
  $region4: #{msa_pair_attention_layer.5} parent=0 // loop_header_branch
    %11 = sbr.rel (%p9) target = $region8
  $region5: #{msa_pair_attention_layer.5} parent=0 // loop_body
    %s13 = ssub.s32 %s8, 1
    %s14 = ssub.s32 %s8, 2
    %s15 = sadd.s32 %s8, 1
    %s16 = ssub.s32 %s8, %s15
    %p17 = scmp.eq.s32.totalorder %s16, 0
    %s19 = sadd.s32 %s18, 1
    %s20 = scalar_select %p17, %s18, %s19
    %p23 = pneg %p17
    %p24 = scmp.eq.s32.totalorder %s8, 1
    %p25 = por %p23, %p24
    %p26 = scmp.ne.s32.totalorder %s18, %s21
    %p27 = scmp.eq.s32.totalorder %s8, 0
    %p28 = por %p26, %p27
    %p29 = scmp.ne.s32.totalorder %s18, %s21
    %p30 = scmp.eq.s32.totalorder %s13, 1
    %p31 = por %p29, %p30
    %p32 = scmp.ne.s32.totalorder %s21, %s22
    %p33 = scmp.eq.s32.totalorder %s13, 0
    %p34 = por %p32, %p33
    %p35 = scmp.ne.s32.totalorder %s21, %s22
    %p36 = scmp.eq.s32.totalorder %s14, 1
    %p37 = por %p35, %p36
    %p39 = scmp.ne.s32.totalorder %s22, %s38
    %p40 = scmp.eq.s32.totalorder %s14, 0
    %p41 = por %p39, %p40
    %s42 = ssub.s32 %s8, %s15
    %p43 = scmp.eq.s32.totalorder %s42, 0
    %s45 = sadd.s32 %s44, 1
    %s46 = scalar_select %p43, %s44, %s45
    %p49 = pneg %p43
    %p50 = scmp.eq.s32.totalorder %s8, 1
    %p51 = por %p49, %p50
    %p52 = scmp.ne.s32.totalorder %s44, %s47
    %p53 = scmp.eq.s32.totalorder %s8, 0
    %p54 = por %p52, %p53
    %p55 = scmp.ne.s32.totalorder %s44, %s47
    %p56 = scmp.eq.s32.totalorder %s13, 1
    %p57 = por %p55, %p56
    %p58 = scmp.ne.s32.totalorder %s47, %s48
    %p59 = scmp.eq.s32.totalorder %s13, 0
    %p60 = por %p58, %p59
    %p61 = scmp.ne.s32.totalorder %s47, %s48
    %p62 = scmp.eq.s32.totalorder %s14, 1
    %p63 = por %p61, %p62
    %p65 = scmp.ne.s32.totalorder %s48, %s64
    %p66 = scmp.eq.s32.totalorder %s14, 0
    %p67 = por %p65, %p66
    %s68 = ssub.s32 %s8, %s15
    %p69 = scmp.eq.s32.totalorder %s68, 0
    %s71 = sadd.s32 %s70, 1
    %s72 = scalar_select %p69, %s70, %s71
    %p75 = pneg %p69
    %p76 = scmp.eq.s32.totalorder %s8, 1
    %p77 = por %p75, %p76
    %p78 = scmp.ne.s32.totalorder %s70, %s73
    %p79 = scmp.eq.s32.totalorder %s8, 0
    %p80 = por %p78, %p79
    %p81 = scmp.ne.s32.totalorder %s70, %s73
    %p82 = scmp.eq.s32.totalorder %s13, 1
    %p83 = por %p81, %p82
    %p84 = scmp.ne.s32.totalorder %s73, %s74
    %p85 = scmp.eq.s32.totalorder %s13, 0
    %p86 = por %p84, %p85
    %p87 = scmp.ne.s32.totalorder %s73, %s74
    %p88 = scmp.eq.s32.totalorder %s14, 1
    %p89 = por %p87, %p88
    %p91 = scmp.ne.s32.totalorder %s74, %s90
    %p92 = scmp.eq.s32.totalorder %s14, 0
    %p93 = por %p91, %p92
    %p94 = scmp.le.s32.totalorder 1, %s8
    %p95 = scmp.lt.s32.totalorder %s8, 3
    %p96 = pnand %p94, %p95
    %p97 = pneg %p96
    // Predicated region
    $region9: #{msa_pair_attention_layer.5} parent=5 // pred_check
      _
    $region10: #{msa_pair_attention_layer.5} parent=5 // pred_check_branch
      %99 = sbr.rel (%p96) target = $region12
    $region11: #{msa_pair_attention_layer.5} parent=5 // pred_region
      %s100 = ssub.s32 %s8, 1
    $region12: #{msa_pair_attention_layer.5} parent=5 // pred_fallthru
      _
    %p101 = scmp.lt.s32.totalorder %s8, 2
    // Predicated region
    $region13: #{msa_pair_attention_layer.5} parent=5 // pred_check
      %p102 = pneg %p101
    $region14: #{msa_pair_attention_layer.5} parent=5 // pred_check_branch
      %104 = sbr.rel (%p102) target = $region16
    $region15: #{msa_pair_attention_layer.5} parent=5 // pred_region
      // Predicated region
      $region17: #{msa_pair_attention_layer.5} parent=15 // pred_check
        %p105 = pneg %p28
      $region18: #{msa_pair_attention_layer.5} parent=15 // pred_check_branch
        %107 = sbr.rel (%p105) target = $region20
      $region19: #{msa_pair_attention_layer.5} parent=15 // pred_region
        %p108 = scmp.lt.s32.totalorder %s8, 1
        %s109 = scalar_select %p108, %s8, 1
        %s110 = smul.addr %s109, 4
        %s111 = scalar_lea.vmem %s0, %s110
      $region20: #{msa_pair_attention_layer.5} parent=15 // pred_fallthru
        _
      // Predicated region
      $region21: #{msa_pair_attention_layer.5} parent=15 // pred_check
        %p112 = pneg %p54
      $region22: #{msa_pair_attention_layer.5} parent=15 // pred_check_branch
        %114 = sbr.rel (%p112) target = $region24
      $region23: #{msa_pair_attention_layer.5} parent=15 // pred_region
        %p115 = scmp.lt.s32.totalorder %s8, 1
        %s116 = scalar_select %p115, %s8, 1
        %s117 = smul.addr %s116, 4
        %s118 = scalar_lea.vmem %s1, %s117
      $region24: #{msa_pair_attention_layer.5} parent=15 // pred_fallthru
        _
    $region16: #{msa_pair_attention_layer.5} parent=5 // pred_fallthru
      _
    %p119 = scmp.le.s32.totalorder 1, %s8
    %p120 = scmp.lt.s32.totalorder %s8, 3
    %p121 = pnand %p119, %p120
    %p122 = pneg %p121
    // Predicated region
    $region25: #{msa_pair_attention_layer.5} parent=5 // pred_check
      _
    $region26: #{msa_pair_attention_layer.5} parent=5 // pred_check_branch
      %124 = sbr.rel (%p121) target = $region28
    $region27: #{msa_pair_attention_layer.5} parent=5 // pred_region
      %s125 = ssub.s32 %s8, 1
      %p126 = scmp.lt.s32.totalorder %s13, 1
      %s127 = scalar_select %p126, %s13, 1
      %s128 = smul.addr %s127, 4
      %s129 = scalar_lea.vmem %s0, %s128
      %p130 = pneg %p34
      %p131 = pneg %p31
      %p132 = scmp.lt.s32.totalorder %s13, 1
      %s133 = scalar_select %p132, %s13, 1
      %s134 = smul.addr %s133, 4
      %s135 = scalar_lea.vmem %s1, %s134
      %p136 = pneg %p60
      %p137 = pneg %p57
      %p138 = pneg %p86
      %p139 = pneg %p83
      %p140 = scmp.lt.s32.totalorder %s13, 1
      %s141 = scalar_select %p140, %s13, 1
      %s142 = smul.addr %s141, 16
      %s143 = smul.addr %s142, 8
      %s144 = scalar_lea.vmem %s2, %s143
      %p145 = scmp.lt.s32.totalorder %s13, 1
      %s146 = scalar_select %p145, %s13, 1
      %s147 = smul.addr %s146, 4
      %s148 = scalar_lea.vmem %s0, %s147
      %p149 = scmp.lt.s32.totalorder %s13, 1
      %s150 = scalar_select %p149, %s13, 1
      %s151 = smul.addr %s150, 4
      %s152 = scalar_lea.vmem %s1, %s151
      %p153 = scmp.lt.s32.totalorder %s13, 1
      %s154 = scalar_select %p153, %s13, 1
      %s155 = smul.addr %s154, 16
      %s156 = smul.addr %s155, 8
      %s157 = scalar_lea.vmem %s2, %s156
      %v159 = vld [vmem:[%s148] sm:$0xf]
      %v160 = vpack.c.bf16 %v159, %v159
      %v161 = vld [vmem:[%s152] sm:$0xf]
      %v162 = vpack.c.bf16 %v161, %v161
      %163 = vxpose.xlu0.c.b16.start [1/8] %v160, 128
      %164 = vxpose.xlu0.c.b16.cont [2/8] 0, 128
      %165 = vxpose.xlu0.c.b16.cont [3/8] 0, 128
      %166 = vxpose.xlu0.c.b16.cont [4/8] 0, 128
      %167 = vxpose.xlu0.c.b16.cont [5/8] 0, 128
      %168 = vxpose.xlu0.c.b16.cont [6/8] 0, 128
      %169 = vxpose.xlu0.c.b16.cont [7/8] 0, 128
      %170 = vxpose.xlu0.c.b16.end [8/8] 0, 128
      %v171 = vpop.trf.xlu0
      %v172 = vpop.trf.xlu0
      %v173 = vpop.trf.xlu0
      %v174 = vpop.trf.xlu0
      %v175 = vpop.trf.xlu0
      %v176 = vpop.trf.xlu0
      %v177 = vpop.trf.xlu0
      %v178 = vpop.trf.xlu0
      %vm179 = vcmask 31744
      %v181 = vsel %vm179, %v171, 0
      %v184 = vsel %vm179, %v172, 0
      %v187 = vsel %vm179, %v173, 0
      %v190 = vsel %vm179, %v174, 0
      %v193 = vsel %vm179, %v175, 0
      %v196 = vsel %vm179, %v176, 0
      %v199 = vsel %vm179, %v177, 0
      %v202 = vsel %vm179, %v178, 0
      %vm204 = vcmask 1041408
      %v206 = vsel %vm204, %v162, 0
      %208 = vmatprep.subr.bf16.mxu0 0
      %209 = vmatpush1.bf16.msra.mxu0 0
      %210 = vmatprep.subr.bf16.mxu0 0
      %211 = vmatpush1.bf16.msra.mxu0 0
      %212 = vmatprep.subr.bf16.mxu0 0
      %213 = vmatpush1.bf16.msra.mxu0 0
      %214 = vmatprep.subr.bf16.mxu0 0
      %215 = vmatpush1.bf16.msra.mxu0 0
      %216 = vmatprep.subr.bf16.mxu0 0
      %217 = vmatpush1.bf16.msra.mxu0 0
      %218 = vmatprep.subr.bf16.mxu0 0
      %219 = vmatpush1.bf16.msra.mxu0 0
      %220 = vmatprep.subr.bf16.mxu0 0
      %221 = vmatpush1.bf16.msra.mxu0 0
      %222 = vmatprep.subr.bf16.mxu0 0
      %223 = vmatpush1.bf16.msra.mxu0 %v206
      %224 = vmatprep.subr.bf16.mxu0 0
      %225 = vmatpush2.bf16.msra.mxu0 0
      %226 = vmatprep.subr.bf16.mxu0 0
      %227 = vmatpush2.bf16.msra.mxu0 0
      %228 = vmatprep.subr.bf16.mxu0 0
      %229 = vmatpush2.bf16.msra.mxu0 0
      %230 = vmatprep.subr.bf16.mxu0 0
      %231 = vmatpush2.bf16.msra.mxu0 0
      %232 = vmatprep.subr.bf16.mxu0 0
      %233 = vmatpush2.bf16.msra.mxu0 0
      %234 = vmatprep.subr.bf16.mxu0 0
      %235 = vmatpush2.bf16.msra.mxu0 0
      %236 = vmatprep.subr.bf16.mxu0 0
      %237 = vmatpush2.bf16.msra.mxu0 0
      %238 = vmatprep.subr.bf16.mxu0 0
      %239 = vmatpush2.bf16.msra.mxu0 0
      %240 = vmatprep.mubr.bf16.mxu0 0
      %241 = vmatmul.mubr.bf16.gmra.mxu0 %v181
      %v242 = vpop.f32.mrf.mxu0
      %v243 = vadd.f32 0.0, %v242
      %v244 = vpop.f32.mrf.mxu0
      %v245 = vpop.f32.mrf.mxu0
      %v246 = vadd.f32 0.0, %v245
      %v247 = vpop.f32.mrf.mxu0
      %248 = vmatprep.mubr.bf16.mxu0 0
      %249 = vmatmul.mubr.bf16.gmra.mxu0 %v184
      %v250 = vpop.f32.mrf.mxu0
      %v251 = vadd.f32 0.0, %v250
      %v252 = vpop.f32.mrf.mxu0
      %v253 = vpop.f32.mrf.mxu0
      %v254 = vadd.f32 0.0, %v253
      %v255 = vpop.f32.mrf.mxu0
      %256 = vmatprep.mubr.bf16.mxu0 0
      %257 = vmatmul.mubr.bf16.gmra.mxu0 %v187
      %v258 = vpop.f32.mrf.mxu0
      %v259 = vadd.f32 0.0, %v258
      %v260 = vpop.f32.mrf.mxu0
      %v261 = vpop.f32.mrf.mxu0
      %v262 = vadd.f32 0.0, %v261
      %v263 = vpop.f32.mrf.mxu0
      %264 = vmatprep.mubr.bf16.mxu0 0
      %265 = vmatmul.mubr.bf16.gmra.mxu0 %v190
      %v266 = vpop.f32.mrf.mxu0
      %v267 = vadd.f32 0.0, %v266
      %v268 = vpop.f32.mrf.mxu0
      %v269 = vpop.f32.mrf.mxu0
      %v270 = vadd.f32 0.0, %v269
      %v271 = vpop.f32.mrf.mxu0
      %272 = vmatprep.mubr.bf16.mxu0 0
      %273 = vmatmul.mubr.bf16.gmra.mxu0 %v193
      %v274 = vpop.f32.mrf.mxu0
      %v275 = vadd.f32 0.0, %v274
      %v276 = vpop.f32.mrf.mxu0
      %v277 = vpop.f32.mrf.mxu0
      %v278 = vadd.f32 0.0, %v277
      %v279 = vpop.f32.mrf.mxu0
      %280 = vmatprep.mubr.bf16.mxu0 0
      %281 = vmatmul.mubr.bf16.gmra.mxu0 %v196
      %v282 = vpop.f32.mrf.mxu0
      %v283 = vadd.f32 0.0, %v282
      %v284 = vpop.f32.mrf.mxu0
      %v285 = vpop.f32.mrf.mxu0
      %v286 = vadd.f32 0.0, %v285
      %v287 = vpop.f32.mrf.mxu0
      %288 = vmatprep.mubr.bf16.mxu0 0
      %289 = vmatmul.mubr.bf16.gmra.mxu0 %v199
      %v290 = vpop.f32.mrf.mxu0
      %v291 = vadd.f32 0.0, %v290
      %v292 = vpop.f32.mrf.mxu0
      %v293 = vpop.f32.mrf.mxu0
      %v294 = vadd.f32 0.0, %v293
      %v295 = vpop.f32.mrf.mxu0
      %296 = vmatprep.mubr.bf16.mxu0 0
      %297 = vmatmul.mubr.bf16.gmra.mxu0 %v202
      %v298 = vpop.f32.mrf.mxu0
      %v299 = vadd.f32 0.0, %v298
      %v300 = vpop.f32.mrf.mxu0
      %v301 = vpop.f32.mrf.mxu0
      %v302 = vadd.f32 0.0, %v301
      %v303 = vpop.f32.mrf.mxu0
      %304 = vdwg.mxu0
      %305 = vst [vmem:[%s157] sm:$0xff] %v243
      %306 = vst [vmem:[%s157 + $0x8] sm:$0xff] %v246
      %307 = vst [vmem:[%s157 + $0x10] sm:$0xff] %v251
      %308 = vst [vmem:[%s157 + $0x18] sm:$0xff] %v254
      %309 = vst [vmem:[%s157 + $0x20] sm:$0xff] %v259
      %310 = vst [vmem:[%s157 + $0x28] sm:$0xff] %v262
      %311 = vst [vmem:[%s157 + $0x30] sm:$0xff] %v267
      %312 = vst [vmem:[%s157 + $0x38] sm:$0xff] %v270
      %313 = vst [vmem:[%s157 + $0x40] sm:$0xff] %v275
      %314 = vst [vmem:[%s157 + $0x48] sm:$0xff] %v278
      %315 = vst [vmem:[%s157 + $0x50] sm:$0xff] %v283
      %316 = vst [vmem:[%s157 + $0x58] sm:$0xff] %v286
      %317 = vst [vmem:[%s157 + $0x60] sm:$0xff] %v291
      %318 = vst [vmem:[%s157 + $0x68] sm:$0xff] %v294
      %319 = vst [vmem:[%s157 + $0x70] sm:$0xff] %v299
      %320 = vst [vmem:[%s157 + $0x78] sm:$0xff] %v302
      %p321 = scmp.lt.s32.totalorder %s13, 1
      %s322 = scalar_select %p321, %s13, 1
      %s323 = smul.addr %s322, 16
      %s324 = smul.addr %s323, 8
      %s325 = scalar_lea.vmem %s2, %s324
      // Predicated region
      $region29: #{msa_pair_attention_layer.5} parent=27 // pred_check
        %p326 = pneg %p83
      $region30: #{msa_pair_attention_layer.5} parent=27 // pred_check_branch
        %328 = sbr.rel (%p326) target = $region32
      $region31: #{msa_pair_attention_layer.5} parent=27 // pred_region
        _
      $region32: #{msa_pair_attention_layer.5} parent=27 // pred_fallthru
        _
    $region28: #{msa_pair_attention_layer.5} parent=5 // pred_fallthru
      _
    %p329 = scmp.le.s32.totalorder 2, %s8
    // Predicated region
    $region33: #{msa_pair_attention_layer.5} parent=5 // pred_check
      %p330 = pneg %p329
    $region34: #{msa_pair_attention_layer.5} parent=5 // pred_check_branch
      %332 = sbr.rel (%p330) target = $region36
    $region35: #{msa_pair_attention_layer.5} parent=5 // pred_region
      %s333 = ssub.s32 %s8, 2
      // Predicated region
      $region37: #{msa_pair_attention_layer.5} parent=35 // pred_check
        %p334 = pneg %p89
      $region38: #{msa_pair_attention_layer.5} parent=35 // pred_check_branch
        %336 = sbr.rel (%p334) target = $region40
      $region39: #{msa_pair_attention_layer.5} parent=35 // pred_region
        %p337 = scmp.lt.s32.totalorder %s14, 1
        %s338 = scalar_select %p337, %s14, 1
        %s339 = smul.addr %s338, 16
        %s340 = smul.addr %s339, 8
        %s341 = scalar_lea.vmem %s2, %s340
      $region40: #{msa_pair_attention_layer.5} parent=35 // pred_fallthru
        _
    $region36: #{msa_pair_attention_layer.5} parent=5 // pred_fallthru
      _
  $region6: #{msa_pair_attention_layer.5} parent=0 // loop_footer
    %s12 = sadd.s32 1, %s8
  $region7: #{msa_pair_attention_layer.5} parent=0 // loop_footer_branch
    %7 = sbr.rel target = $region3
  $region8: #{msa_pair_attention_layer.5} parent=0 // loop_exit
    _

// kernel: msa_pair_attention_layer.4
$region0: #{msa_pair_attention_layer.4}
  #allocation0 [shape = 'u32[]', space=smem, size = 0x4, offset = 0x4, fixed_abs, tag = 'smem constant byte address 0x4 - core index']
  #allocation1 [shape = 'u32[144,128]{1,0:T(1,128)}', space=vmem, size = 0x12000, scoped, tag = 'internal scratch']
  %s0 = inlined_call_operand.hbm [shape: f32[2,64,32], index: 0, kind: input, shape index: {}]
  %s1 = inlined_call_operand.hbm [shape: f32[1,32], index: 1, kind: input, shape index: {}]
  %s2 = inlined_call_operand.hbm [shape: f32[1,32], index: 2, kind: input, shape index: {}]
  %s3 = inlined_call_operand.vmem [shape: f32[32,8], index: 3, kind: input, shape index: {}]
  %s4 = inlined_call_operand.hbm [shape: f32[1,8], index: 4, kind: input, shape index: {}]
  %s5 = inlined_call_operand.hbm [shape: f32[1,8], index: 5, kind: input, shape index: {}]
  %s6 = inlined_call_operand.hbm [shape: f32[1,8], index: 6, kind: input, shape index: {}]
  %s7 = inlined_call_operand.hbm [shape: f32[1,8], index: 7, kind: input, shape index: {}]
  %s8 = inlined_call_operand.vmem [shape: f32[2,4,16,8], index: 8, kind: output, shape index: {0}]
  %s9 = inlined_call_operand.vmem [shape: f32[2,4,16,8], index: 9, kind: output, shape index: {1}]
  %s10 = inlined_call_operand.vmem [shape: f32[2,16,8], index: 10, kind: output, shape index: {2}]
  %11 = xla_tuple %s8, %s9, %s10
  %s12 = sld [smem:[#allocation0]]
  $region109: #{msa_pair_attention_layer.4} parent=0
    _
  %s14 = ssub.s32 1, %s12
  %s15 = scalar_select 0, %s14, %s12
  $region1: #{msa_pair_attention_layer.4} parent=0
    #allocation2 [shape = 'u8[65536]{0}', space=vmem, size = 0x10000, scoped, tag = 'input window, operand 0']
    #allocation3 [shape = 's32[2]{0}', space=sflag, size = 0x8, scoped, tag = 'scoped memory for msa_pair_attention_layer.4']
    #allocation4 [shape = 'u8[512]{0}', space=vmem, size = 0x400, scoped, tag = 'input window, operand 1, single buffered']
    #allocation5 [shape = 's32[1]{0}', space=sflag, size = 0x4, scoped, tag = 'scoped memory for msa_pair_attention_layer.4']
    #allocation6 [shape = 'u8[512]{0}', space=vmem, size = 0x400, scoped, tag = 'input window, operand 2, single buffered']
    #allocation7 [shape = 'u8[512]{0}', space=vmem, size = 0x400, scoped, tag = 'input window, operand 4, single buffered']
    #allocation8 [shape = 's32[1]{0}', space=sflag, size = 0x4, scoped, tag = 'scoped memory for msa_pair_attention_layer.4']
    #allocation9 [shape = 'u8[512]{0}', space=vmem, size = 0x400, scoped, tag = 'input window, operand 5, single buffered']
    #allocation10 [shape = 'u8[512]{0}', space=vmem, size = 0x400, scoped, tag = 'input window, operand 6, single buffered']
    #allocation11 [shape = 's32[1]{0}', space=sflag, size = 0x4, scoped, tag = 'scoped memory for msa_pair_attention_layer.4']
    #allocation12 [shape = 'u8[512]{0}', space=vmem, size = 0x400, scoped, tag = 'input window, operand 7, single buffered']
    %16 = vsyncpa [#allocation3], 0
    %s17 = scalar_lea.sflag [#allocation3], 1
    %18 = vsyncpa %s17, 0
    %19 = vsyncpa [#allocation5], 0
    %20 = vsyncpa [#allocation8], 0
    %21 = vsyncpa [#allocation11], 0
    loop: start=0, step=1, limit=4
    $region2: #{msa_pair_attention_layer.4} parent=1 // loop_pre_header
      _
    $region3: #{msa_pair_attention_layer.4} parent=1 // loop_header
      %s23 = sphi 0, %s27
      %p24 = scmp.ge.s32.totalorder %s23, 4
      %s33 = sphi 0, %s35
      %s36 = sphi 0, %s33
      %s37 = sphi 0, %s36
      %s53 = sphi 0, %s37
      %s57 = sphi 0, %s57
      %s59 = sphi 0, %s57
      %s60 = sphi 0, %s59
      %s74 = sphi 0, %s60
      %s78 = sphi 0, %s78
      %s80 = sphi 0, %s78
      %s81 = sphi 0, %s80
      %s95 = sphi 0, %s81
      %s99 = sphi 0, %s99
      %s101 = sphi 0, %s99
      %s102 = sphi 0, %s101
      %s116 = sphi 0, %s102
      %s120 = sphi 0, %s120
      %s122 = sphi 0, %s120
      %s123 = sphi 0, %s122
      %s137 = sphi 0, %s123
      %s141 = sphi 0, %s141
      %s143 = sphi 0, %s141
      %s144 = sphi 0, %s143
      %s158 = sphi 0, %s144
      %s162 = sphi 0, %s162
      %s164 = sphi 0, %s162
      %s165 = sphi 0, %s164
      %s179 = sphi 0, %s165
      %s183 = sphi 0, %s183
      %s185 = sphi 0, %s183
      %s186 = sphi 0, %s185
      %s200 = sphi 0, %s186
      %s206 = sphi 0, %s208
      %s209 = sphi 0, %s206
      %s210 = sphi 0, %s209
      %s226 = sphi 0, %s210
      %s232 = sphi 0, %s234
      %s235 = sphi 0, %s232
      %s236 = sphi 0, %s235
      %s252 = sphi 0, %s236
      %s258 = sphi 0, %s260
      %s261 = sphi 0, %s258
      %s262 = sphi 0, %s261
      %s278 = sphi 0, %s262
    $region4: #{msa_pair_attention_layer.4} parent=1 // loop_header_branch
      %26 = sbr.rel (%p24) target = $region8
    $region5: #{msa_pair_attention_layer.4} parent=1 // loop_body
      %s28 = ssub.s32 %s23, 1
      %s29 = ssub.s32 %s23, 2
      %s30 = sadd.s32 %s23, 1
      %s31 = ssub.s32 %s23, %s30
      %p32 = scmp.eq.s32.totalorder %s31, 0
      %s34 = sadd.s32 %s33, 1
      %s35 = scalar_select %p32, %s33, %s34
      %p38 = pneg %p32
      %p39 = scmp.eq.s32.totalorder %s23, 1
      %p40 = por %p38, %p39
      %p41 = scmp.ne.s32.totalorder %s33, %s36
      %p42 = scmp.eq.s32.totalorder %s23, 0
      %p43 = por %p41, %p42
      %p44 = scmp.ne.s32.totalorder %s33, %s36
      %p45 = scmp.eq.s32.totalorder %s28, 1
      %p46 = por %p44, %p45
      %p47 = scmp.ne.s32.totalorder %s36, %s37
      %p48 = scmp.eq.s32.totalorder %s28, 0
      %p49 = por %p47, %p48
      %p50 = scmp.ne.s32.totalorder %s36, %s37
      %p51 = scmp.eq.s32.totalorder %s29, 1
      %p52 = por %p50, %p51
      %p54 = scmp.ne.s32.totalorder %s37, %s53
      %p55 = scmp.eq.s32.totalorder %s29, 0
      %p56 = por %p54, %p55
      %s58 = sadd.s32 %s57, 1
      %p61 = scmp.eq.s32.totalorder %s23, 1
      %p62 = scmp.ne.s32.totalorder %s57, %s59
      %p63 = scmp.eq.s32.totalorder %s23, 0
      %p64 = por %p62, %p63
      %p65 = scmp.ne.s32.totalorder %s57, %s59
      %p66 = scmp.eq.s32.totalorder %s28, 1
      %p67 = por %p65, %p66
      %p68 = scmp.ne.s32.totalorder %s59, %s60
      %p69 = scmp.eq.s32.totalorder %s28, 0
      %p70 = por %p68, %p69
      %p71 = scmp.ne.s32.totalorder %s59, %s60
      %p72 = scmp.eq.s32.totalorder %s29, 1
      %p73 = por %p71, %p72
      %p75 = scmp.ne.s32.totalorder %s60, %s74
      %p76 = scmp.eq.s32.totalorder %s29, 0
      %p77 = por %p75, %p76
      %s79 = sadd.s32 %s78, 1
      %p82 = scmp.eq.s32.totalorder %s23, 1
      %p83 = scmp.ne.s32.totalorder %s78, %s80
      %p84 = scmp.eq.s32.totalorder %s23, 0
      %p85 = por %p83, %p84
      %p86 = scmp.ne.s32.totalorder %s78, %s80
      %p87 = scmp.eq.s32.totalorder %s28, 1
      %p88 = por %p86, %p87
      %p89 = scmp.ne.s32.totalorder %s80, %s81
      %p90 = scmp.eq.s32.totalorder %s28, 0
      %p91 = por %p89, %p90
      %p92 = scmp.ne.s32.totalorder %s80, %s81
      %p93 = scmp.eq.s32.totalorder %s29, 1
      %p94 = por %p92, %p93
      %p96 = scmp.ne.s32.totalorder %s81, %s95
      %p97 = scmp.eq.s32.totalorder %s29, 0
      %p98 = por %p96, %p97
      %s100 = sadd.s32 %s99, 1
      %p103 = scmp.eq.s32.totalorder %s23, 1
      %p104 = scmp.ne.s32.totalorder %s99, %s101
      %p105 = scmp.eq.s32.totalorder %s23, 0
      %p106 = por %p104, %p105
      %p107 = scmp.ne.s32.totalorder %s99, %s101
      %p108 = scmp.eq.s32.totalorder %s28, 1
      %p109 = por %p107, %p108
      %p110 = scmp.ne.s32.totalorder %s101, %s102
      %p111 = scmp.eq.s32.totalorder %s28, 0
      %p112 = por %p110, %p111
      %p113 = scmp.ne.s32.totalorder %s101, %s102
      %p114 = scmp.eq.s32.totalorder %s29, 1
      %p115 = por %p113, %p114
      %p117 = scmp.ne.s32.totalorder %s102, %s116
      %p118 = scmp.eq.s32.totalorder %s29, 0
      %p119 = por %p117, %p118
      %s121 = sadd.s32 %s120, 1
      %p124 = scmp.eq.s32.totalorder %s23, 1
      %p125 = scmp.ne.s32.totalorder %s120, %s122
      %p126 = scmp.eq.s32.totalorder %s23, 0
      %p127 = por %p125, %p126
      %p128 = scmp.ne.s32.totalorder %s120, %s122
      %p129 = scmp.eq.s32.totalorder %s28, 1
      %p130 = por %p128, %p129
      %p131 = scmp.ne.s32.totalorder %s122, %s123
      %p132 = scmp.eq.s32.totalorder %s28, 0
      %p133 = por %p131, %p132
      %p134 = scmp.ne.s32.totalorder %s122, %s123
      %p135 = scmp.eq.s32.totalorder %s29, 1
      %p136 = por %p134, %p135
      %p138 = scmp.ne.s32.totalorder %s123, %s137
      %p139 = scmp.eq.s32.totalorder %s29, 0
      %p140 = por %p138, %p139
      %s142 = sadd.s32 %s141, 1
      %p145 = scmp.eq.s32.totalorder %s23, 1
      %p146 = scmp.ne.s32.totalorder %s141, %s143
      %p147 = scmp.eq.s32.totalorder %s23, 0
      %p148 = por %p146, %p147
      %p149 = scmp.ne.s32.totalorder %s141, %s143
      %p150 = scmp.eq.s32.totalorder %s28, 1
      %p151 = por %p149, %p150
      %p152 = scmp.ne.s32.totalorder %s143, %s144
      %p153 = scmp.eq.s32.totalorder %s28, 0
      %p154 = por %p152, %p153
      %p155 = scmp.ne.s32.totalorder %s143, %s144
      %p156 = scmp.eq.s32.totalorder %s29, 1
      %p157 = por %p155, %p156
      %p159 = scmp.ne.s32.totalorder %s144, %s158
      %p160 = scmp.eq.s32.totalorder %s29, 0
      %p161 = por %p159, %p160
      %s163 = sadd.s32 %s162, 1
      %p166 = scmp.eq.s32.totalorder %s23, 1
      %p167 = scmp.ne.s32.totalorder %s162, %s164
      %p168 = scmp.eq.s32.totalorder %s23, 0
      %p169 = por %p167, %p168
      %p170 = scmp.ne.s32.totalorder %s162, %s164
      %p171 = scmp.eq.s32.totalorder %s28, 1
      %p172 = por %p170, %p171
      %p173 = scmp.ne.s32.totalorder %s164, %s165
      %p174 = scmp.eq.s32.totalorder %s28, 0
      %p175 = por %p173, %p174
      %p176 = scmp.ne.s32.totalorder %s164, %s165
      %p177 = scmp.eq.s32.totalorder %s29, 1
      %p178 = por %p176, %p177
      %p180 = scmp.ne.s32.totalorder %s165, %s179
      %p181 = scmp.eq.s32.totalorder %s29, 0
      %p182 = por %p180, %p181
      %s184 = sadd.s32 %s183, 1
      %p187 = scmp.eq.s32.totalorder %s23, 1
      %p188 = scmp.ne.s32.totalorder %s183, %s185
      %p189 = scmp.eq.s32.totalorder %s23, 0
      %p190 = por %p188, %p189
      %p191 = scmp.ne.s32.totalorder %s183, %s185
      %p192 = scmp.eq.s32.totalorder %s28, 1
      %p193 = por %p191, %p192
      %p194 = scmp.ne.s32.totalorder %s185, %s186
      %p195 = scmp.eq.s32.totalorder %s28, 0
      %p196 = por %p194, %p195
      %p197 = scmp.ne.s32.totalorder %s185, %s186
      %p198 = scmp.eq.s32.totalorder %s29, 1
      %p199 = por %p197, %p198
      %p201 = scmp.ne.s32.totalorder %s186, %s200
      %p202 = scmp.eq.s32.totalorder %s29, 0
      %p203 = por %p201, %p202
      %s204 = ssub.s32 %s23, %s30
      %p205 = scmp.eq.s32.totalorder %s204, 0
      %s207 = sadd.s32 %s206, 1
      %s208 = scalar_select %p205, %s206, %s207
      %p211 = pneg %p205
      %p212 = scmp.eq.s32.totalorder %s23, 1
      %p213 = por %p211, %p212
      %p214 = scmp.ne.s32.totalorder %s206, %s209
      %p215 = scmp.eq.s32.totalorder %s23, 0
      %p216 = por %p214, %p215
      %p217 = scmp.ne.s32.totalorder %s206, %s209
      %p218 = scmp.eq.s32.totalorder %s28, 1
      %p219 = por %p217, %p218
      %p220 = scmp.ne.s32.totalorder %s209, %s210
      %p221 = scmp.eq.s32.totalorder %s28, 0
      %p222 = por %p220, %p221
      %p223 = scmp.ne.s32.totalorder %s209, %s210
      %p224 = scmp.eq.s32.totalorder %s29, 1
      %p225 = por %p223, %p224
      %p227 = scmp.ne.s32.totalorder %s210, %s226
      %p228 = scmp.eq.s32.totalorder %s29, 0
      %p229 = por %p227, %p228
      %s230 = ssub.s32 %s23, %s30
      %p231 = scmp.eq.s32.totalorder %s230, 0
      %s233 = sadd.s32 %s232, 1
      %s234 = scalar_select %p231, %s232, %s233
      %p237 = pneg %p231
      %p238 = scmp.eq.s32.totalorder %s23, 1
      %p239 = por %p237, %p238
      %p240 = scmp.ne.s32.totalorder %s232, %s235
      %p241 = scmp.eq.s32.totalorder %s23, 0
      %p242 = por %p240, %p241
      %p243 = scmp.ne.s32.totalorder %s232, %s235
      %p244 = scmp.eq.s32.totalorder %s28, 1
      %p245 = por %p243, %p244
      %p246 = scmp.ne.s32.totalorder %s235, %s236
      %p247 = scmp.eq.s32.totalorder %s28, 0
      %p248 = por %p246, %p247
      %p249 = scmp.ne.s32.totalorder %s235, %s236
      %p250 = scmp.eq.s32.totalorder %s29, 1
      %p251 = por %p249, %p250
      %p253 = scmp.ne.s32.totalorder %s236, %s252
      %p254 = scmp.eq.s32.totalorder %s29, 0
      %p255 = por %p253, %p254
      %s256 = ssub.s32 %s23, %s30
      %p257 = scmp.eq.s32.totalorder %s256, 0
      %s259 = sadd.s32 %s258, 1
      %s260 = scalar_select %p257, %s258, %s259
      %p263 = pneg %p257
      %p264 = scmp.eq.s32.totalorder %s23, 1
      %p265 = por %p263, %p264
      %p266 = scmp.ne.s32.totalorder %s258, %s261
      %p267 = scmp.eq.s32.totalorder %s23, 0
      %p268 = por %p266, %p267
      %p269 = scmp.ne.s32.totalorder %s258, %s261
      %p270 = scmp.eq.s32.totalorder %s28, 1
      %p271 = por %p269, %p270
      %p272 = scmp.ne.s32.totalorder %s261, %s262
      %p273 = scmp.eq.s32.totalorder %s28, 0
      %p274 = por %p272, %p273
      %p275 = scmp.ne.s32.totalorder %s261, %s262
      %p276 = scmp.eq.s32.totalorder %s29, 1
      %p277 = por %p275, %p276
      %p279 = scmp.ne.s32.totalorder %s262, %s278
      %p280 = scmp.eq.s32.totalorder %s29, 0
      %p281 = por %p279, %p280
      %p282 = scmp.le.s32.totalorder 1, %s23
      %p283 = scmp.lt.s32.totalorder %s23, 3
      %p284 = pnand %p282, %p283
      %p285 = pneg %p284
      // Predicated region
      $region9: #{msa_pair_attention_layer.4} parent=5 // pred_check
        _
      $region10: #{msa_pair_attention_layer.4} parent=5 // pred_check_branch
        %287 = sbr.rel (%p284) target = $region12
      $region11: #{msa_pair_attention_layer.4} parent=5 // pred_region
        %s288 = ssub.s32 %s23, 1
        // Predicated region
        $region13: #{msa_pair_attention_layer.4} parent=11 // pred_check
          %p289 = pneg %p70
        $region14: #{msa_pair_attention_layer.4} parent=11 // pred_check_branch
          %291 = sbr.rel (%p289) target = $region16
        $region15: #{msa_pair_attention_layer.4} parent=11 // pred_region
          %s293 = ssub.s32 16, 16
          %294 = vsyncadd [#allocation5], %s293
          %s296 = sshll.u32 [#allocation4], 4
          %s297 = int_to_ptr.vmem [resolvable:$true] %s296
          %299 = dma.hbm_to_vmem [thread:$0]  %s1, 16, %s297, [#allocation5]
        $region16: #{msa_pair_attention_layer.4} parent=11 // pred_fallthru
          _
        // Predicated region
        $region17: #{msa_pair_attention_layer.4} parent=11 // pred_check
          %p300 = pneg %p91
        $region18: #{msa_pair_attention_layer.4} parent=11 // pred_check_branch
          %302 = sbr.rel (%p300) target = $region20
        $region19: #{msa_pair_attention_layer.4} parent=11 // pred_region
          %s304 = ssub.s32 16, 16
          %305 = vsyncadd [#allocation5], %s304
          %s307 = sshll.u32 [#allocation6], 4
          %s308 = int_to_ptr.vmem [resolvable:$true] %s307
          %310 = dma.hbm_to_vmem [thread:$0]  %s2, 16, %s308, [#allocation5]
        $region20: #{msa_pair_attention_layer.4} parent=11 // pred_fallthru
          _
        // Predicated region
        $region21: #{msa_pair_attention_layer.4} parent=11 // pred_check
          %p311 = pneg %p112
        $region22: #{msa_pair_attention_layer.4} parent=11 // pred_check_branch
          %313 = sbr.rel (%p311) target = $region24
        $region23: #{msa_pair_attention_layer.4} parent=11 // pred_region
          _
        $region24: #{msa_pair_attention_layer.4} parent=11 // pred_fallthru
          _
        // Predicated region
        $region25: #{msa_pair_attention_layer.4} parent=11 // pred_check
          %p314 = pneg %p133
        $region26: #{msa_pair_attention_layer.4} parent=11 // pred_check_branch
          %316 = sbr.rel (%p314) target = $region28
        $region27: #{msa_pair_attention_layer.4} parent=11 // pred_region
          %s318 = ssub.s32 16, 16
          %319 = vsyncadd [#allocation8], %s318
          %s321 = sshll.u32 [#allocation7], 4
          %s322 = int_to_ptr.vmem [resolvable:$true] %s321
          %324 = dma.hbm_to_vmem [thread:$0]  %s4, 16, %s322, [#allocation8]
        $region28: #{msa_pair_attention_layer.4} parent=11 // pred_fallthru
          _
        // Predicated region
        $region29: #{msa_pair_attention_layer.4} parent=11 // pred_check
          %p325 = pneg %p154
        $region30: #{msa_pair_attention_layer.4} parent=11 // pred_check_branch
          %327 = sbr.rel (%p325) target = $region32
        $region31: #{msa_pair_attention_layer.4} parent=11 // pred_region
          %s329 = ssub.s32 16, 16
          %330 = vsyncadd [#allocation8], %s329
          %s332 = sshll.u32 [#allocation9], 4
          %s333 = int_to_ptr.vmem [resolvable:$true] %s332
          %335 = dma.hbm_to_vmem [thread:$0]  %s5, 16, %s333, [#allocation8]
        $region32: #{msa_pair_attention_layer.4} parent=11 // pred_fallthru
          _
        // Predicated region
        $region33: #{msa_pair_attention_layer.4} parent=11 // pred_check
          %p336 = pneg %p175
        $region34: #{msa_pair_attention_layer.4} parent=11 // pred_check_branch
          %338 = sbr.rel (%p336) target = $region36
        $region35: #{msa_pair_attention_layer.4} parent=11 // pred_region
          %s340 = ssub.s32 16, 16
          %341 = vsyncadd [#allocation11], %s340
          %s343 = sshll.u32 [#allocation10], 4
          %s344 = int_to_ptr.vmem [resolvable:$true] %s343
          %346 = dma.hbm_to_vmem [thread:$0]  %s6, 16, %s344, [#allocation11]
        $region36: #{msa_pair_attention_layer.4} parent=11 // pred_fallthru
          _
        // Predicated region
        $region37: #{msa_pair_attention_layer.4} parent=11 // pred_check
          %p347 = pneg %p196
        $region38: #{msa_pair_attention_layer.4} parent=11 // pred_check_branch
          %349 = sbr.rel (%p347) target = $region40
        $region39: #{msa_pair_attention_layer.4} parent=11 // pred_region
          %s351 = ssub.s32 16, 16
          %352 = vsyncadd [#allocation11], %s351
          %s354 = sshll.u32 [#allocation12], 4
          %s355 = int_to_ptr.vmem [resolvable:$true] %s354
          %357 = dma.hbm_to_vmem [thread:$0]  %s7, 16, %s355, [#allocation11]
        $region40: #{msa_pair_attention_layer.4} parent=11 // pred_fallthru
          _
      $region12: #{msa_pair_attention_layer.4} parent=5 // pred_fallthru
        _
      %p358 = scmp.lt.s32.totalorder %s23, 2
      // Predicated region
      $region41: #{msa_pair_attention_layer.4} parent=5 // pred_check
        %p359 = pneg %p358
      $region42: #{msa_pair_attention_layer.4} parent=5 // pred_check_branch
        %361 = sbr.rel (%p359) target = $region44
      $region43: #{msa_pair_attention_layer.4} parent=5 // pred_region
        // Predicated region
        $region45: #{msa_pair_attention_layer.4} parent=43 // pred_check
          %p362 = pneg %p43
        $region46: #{msa_pair_attention_layer.4} parent=43 // pred_check_branch
          %364 = sbr.rel (%p362) target = $region48
        $region47: #{msa_pair_attention_layer.4} parent=43 // pred_region
          %s365 = sand.u32 %s33, 1
          %s366 = scalar_lea.sflag [#allocation3], %s365
          %s367 = sand.u32 %s33, 1
          %s368 = smul.addr %s367, 64
          %s369 = scalar_lea.vmem [#allocation2], %s368
          %s371 = ssub.s32 1024, 1024
          %372 = vsyncadd %s366, %s371
          %s373 = smul.addr %s23, 8
          %s374 = smul.addr %s373, 128
          %s375 = scalar_lea.hbm %s0, %s374
          %s376 = sshll.u32 %s369, 4
          %s377 = int_to_ptr.vmem [resolvable:$true] %s376
          %382 = dma.hbm_to_vmem [thread:$0]  %s375, 1024, %s377, %s366, 128, 128, 8
        $region48: #{msa_pair_attention_layer.4} parent=43 // pred_fallthru
          _
      $region44: #{msa_pair_attention_layer.4} parent=5 // pred_fallthru
        _
      %p383 = scmp.le.s32.totalorder 1, %s23
      %p384 = scmp.lt.s32.totalorder %s23, 3
      %p385 = pnand %p383, %p384
      %p386 = pneg %p385
      // Predicated region
      $region49: #{msa_pair_attention_layer.4} parent=5 // pred_check
        _
      $region50: #{msa_pair_attention_layer.4} parent=5 // pred_check_branch
        %388 = sbr.rel (%p385) target = $region52
      $region51: #{msa_pair_attention_layer.4} parent=5 // pred_region
        %s389 = ssub.s32 %s23, 1
        %s390 = sand.u32 %s36, 1
        %s391 = scalar_lea.sflag [#allocation3], %s390
        %s392 = sand.u32 %s36, 1
        %s393 = smul.addr %s392, 64
        %s394 = scalar_lea.vmem [#allocation2], %s393
        // Predicated region
        $region53: #{msa_pair_attention_layer.4} parent=51 // pred_check
          %p395 = pneg %p49
        $region54: #{msa_pair_attention_layer.4} parent=51 // pred_check_branch
          %397 = sbr.rel (%p395) target = $region56
        $region55: #{msa_pair_attention_layer.4} parent=51 // pred_region
          %398 = dma.done %s391, 1024
        $region56: #{msa_pair_attention_layer.4} parent=51 // pred_fallthru
          _
        // Predicated region
        $region57: #{msa_pair_attention_layer.4} parent=51 // pred_check
          %p399 = pneg %p70
        $region58: #{msa_pair_attention_layer.4} parent=51 // pred_check_branch
          %401 = sbr.rel (%p399) target = $region60
        $region59: #{msa_pair_attention_layer.4} parent=51 // pred_region
          %402 = dma.done [#allocation5], 16
        $region60: #{msa_pair_attention_layer.4} parent=51 // pred_fallthru
          _
        // Predicated region
        $region61: #{msa_pair_attention_layer.4} parent=51 // pred_check
          %p403 = pneg %p91
        $region62: #{msa_pair_attention_layer.4} parent=51 // pred_check_branch
          %405 = sbr.rel (%p403) target = $region64
        $region63: #{msa_pair_attention_layer.4} parent=51 // pred_region
          %406 = dma.done [#allocation5], 16
        $region64: #{msa_pair_attention_layer.4} parent=51 // pred_fallthru
          _
        // Predicated region
        $region65: #{msa_pair_attention_layer.4} parent=51 // pred_check
          %p407 = pneg %p133
        $region66: #{msa_pair_attention_layer.4} parent=51 // pred_check_branch
          %409 = sbr.rel (%p407) target = $region68
        $region67: #{msa_pair_attention_layer.4} parent=51 // pred_region
          %410 = dma.done [#allocation8], 16
        $region68: #{msa_pair_attention_layer.4} parent=51 // pred_fallthru
          _
        // Predicated region
        $region69: #{msa_pair_attention_layer.4} parent=51 // pred_check
          %p411 = pneg %p154
        $region70: #{msa_pair_attention_layer.4} parent=51 // pred_check_branch
          %413 = sbr.rel (%p411) target = $region72
        $region71: #{msa_pair_attention_layer.4} parent=51 // pred_region
          %414 = dma.done [#allocation8], 16
        $region72: #{msa_pair_attention_layer.4} parent=51 // pred_fallthru
          _
        // Predicated region
        $region73: #{msa_pair_attention_layer.4} parent=51 // pred_check
          %p415 = pneg %p175
        $region74: #{msa_pair_attention_layer.4} parent=51 // pred_check_branch
          %417 = sbr.rel (%p415) target = $region76
        $region75: #{msa_pair_attention_layer.4} parent=51 // pred_region
          %418 = dma.done [#allocation11], 16
        $region76: #{msa_pair_attention_layer.4} parent=51 // pred_fallthru
          _
        // Predicated region
        $region77: #{msa_pair_attention_layer.4} parent=51 // pred_check
          %p419 = pneg %p196
        $region78: #{msa_pair_attention_layer.4} parent=51 // pred_check_branch
          %421 = sbr.rel (%p419) target = $region80
        $region79: #{msa_pair_attention_layer.4} parent=51 // pred_region
          %422 = dma.done [#allocation11], 16
        $region80: #{msa_pair_attention_layer.4} parent=51 // pred_fallthru
          _
        %s423 = sand.u32 %s36, 1
        %s424 = scalar_lea.sflag [#allocation3], %s423
        %s425 = sand.u32 %s36, 1
        %s426 = smul.addr %s425, 64
        %s427 = scalar_lea.vmem [#allocation2], %s426
        %p428 = pneg %p49
        %p429 = pneg %p46
        %p430 = pneg %p70
        %p431 = pneg %p67
        %p432 = pneg %p91
        %p433 = pneg %p88
        %p434 = pneg %p112
        %p435 = pneg %p109
        %p436 = pneg %p133
        %p437 = pneg %p130
        %p438 = pneg %p154
        %p439 = pneg %p151
        %p440 = pneg %p175
        %p441 = pneg %p172
        %p442 = pneg %p196
        %p443 = pneg %p193
        %p444 = pneg %p222
        %p445 = pneg %p219
        %p446 = scmp.lt.s32.totalorder %s28, 1
        %s447 = scalar_select %p446, %s28, 1
        %s448 = smul.addr %s447, 8
        %s449 = smul.addr %s448, 8
        %s450 = scalar_lea.vmem %s8, %s449
        %p451 = pneg %p248
        %p452 = pneg %p245
        %p453 = scmp.lt.s32.totalorder %s28, 1
        %s454 = scalar_select %p453, %s28, 1
        %s455 = smul.addr %s454, 8
        %s456 = smul.addr %s455, 8
        %s457 = scalar_lea.vmem %s9, %s456
        %p458 = pneg %p274
        %p459 = pneg %p271
        %p460 = scmp.lt.s32.totalorder %s28, 1
        %s461 = scalar_select %p460, %s28, 1
        %s462 = smul.addr %s461, 2
        %s463 = smul.addr %s462, 8
        %s464 = scalar_lea.vmem %s10, %s463
        %p465 = scmp.lt.s32.totalorder %s28, 1
        %s466 = scalar_select %p465, %s28, 1
        %s467 = smul.addr %s466, 8
        %s468 = smul.addr %s467, 8
        %s469 = scalar_lea.vmem %s8, %s468
        %p470 = scmp.lt.s32.totalorder %s28, 1
        %s471 = scalar_select %p470, %s28, 1
        %s472 = smul.addr %s471, 8
        %s473 = smul.addr %s472, 8
        %s474 = scalar_lea.vmem %s9, %s473
        %p475 = scmp.lt.s32.totalorder %s28, 1
        %s476 = scalar_select %p475, %s28, 1
        %s477 = smul.addr %s476, 2
        %s478 = smul.addr %s477, 8
        %s479 = scalar_lea.vmem %s10, %s478
        %v481 = vld [vmem:[%s394] sm:$0xff]
        %v482 = vld [vmem:[%s394 + $0x8] sm:$0xff]
        %v483 = vld [vmem:[%s394 + $0x10] sm:$0xff]
        %v484 = vld [vmem:[%s394 + $0x18] sm:$0xff]
        %v485 = vld [vmem:[%s394 + $0x20] sm:$0xff]
        %v486 = vld [vmem:[%s394 + $0x28] sm:$0xff]
        %v487 = vld [vmem:[%s394 + $0x30] sm:$0xff]
        %v488 = vld [vmem:[%s394 + $0x38] sm:$0xff]
        %v489 = vld [vmem:[#allocation4] sm:$0x1]
        %v490 = vld [vmem:[#allocation6] sm:$0x1]
        %vm491 = vcmask 261120
        %v492 = vsel %vm491, %v481, 0.0
        %493 = vadd.xlane.f32.xlu0 %v492
        %v494 = vpop.xlane.xlu0 %493
        %v495 = vsel %vm491, %v482, 0.0
        %496 = vadd.xlane.f32.xlu0 %v495
        %v497 = vpop.xlane.xlu0 %496
        %v498 = vsel %vm491, %v483, 0.0
        %499 = vadd.xlane.f32.xlu0 %v498
        %v500 = vpop.xlane.xlu0 %499
        %v501 = vsel %vm491, %v484, 0.0
        %502 = vadd.xlane.f32.xlu0 %v501
        %v503 = vpop.xlane.xlu0 %502
        %v504 = vsel %vm491, %v485, 0.0
        %505 = vadd.xlane.f32.xlu0 %v504
        %v506 = vpop.xlane.xlu0 %505
        %v507 = vsel %vm491, %v486, 0.0
        %508 = vadd.xlane.f32.xlu0 %v507
        %v509 = vpop.xlane.xlu0 %508
        %v510 = vsel %vm491, %v487, 0.0
        %511 = vadd.xlane.f32.xlu0 %v510
        %v512 = vpop.xlane.xlu0 %511
        %v513 = vsel %vm491, %v488, 0.0
        %514 = vadd.xlane.f32.xlu0 %v513
        %v515 = vpop.xlane.xlu0 %514
        %v516 = vrcp.pop 32.0
        %v517 = vmul.f32 %v494, %v516
        %v518 = vmul.f32 %v497, %v516
        %v519 = vmul.f32 %v500, %v516
        %v520 = vmul.f32 %v503, %v516
        %v521 = vmul.f32 %v506, %v516
        %v522 = vmul.f32 %v509, %v516
        %v523 = vmul.f32 %v512, %v516
        %v524 = vmul.f32 %v515, %v516
        %v525 = vsub.f32 %v481, %v517
        %v526 = vsub.f32 %v482, %v518
        %v527 = vsub.f32 %v483, %v519
        %v528 = vsub.f32 %v484, %v520
        %v529 = vsub.f32 %v485, %v521
        %v530 = vsub.f32 %v486, %v522
        %v531 = vsub.f32 %v487, %v523
        %v532 = vsub.f32 %v488, %v524
        %v533 = vmul.f32 %v525, %v525
        %v534 = vmul.f32 %v526, %v526
        %v535 = vmul.f32 %v527, %v527
        %v536 = vmul.f32 %v528, %v528
        %v537 = vmul.f32 %v529, %v529
        %v538 = vmul.f32 %v530, %v530
        %v539 = vmul.f32 %v531, %v531
        %v540 = vmul.f32 %v532, %v532
        %v541 = vsel %vm491, %v533, 0.0
        %542 = vadd.xlane.f32.xlu0 %v541
        %v543 = vpop.xlane.xlu0 %542
        %v544 = vsel %vm491, %v534, 0.0
        %545 = vadd.xlane.f32.xlu0 %v544
        %v546 = vpop.xlane.xlu0 %545
        %v547 = vsel %vm491, %v535, 0.0
        %548 = vadd.xlane.f32.xlu0 %v547
        %v549 = vpop.xlane.xlu0 %548
        %v550 = vsel %vm491, %v536, 0.0
        %551 = vadd.xlane.f32.xlu0 %v550
        %v552 = vpop.xlane.xlu0 %551
        %v553 = vsel %vm491, %v537, 0.0
        %554 = vadd.xlane.f32.xlu0 %v553
        %v555 = vpop.xlane.xlu0 %554
        %v556 = vsel %vm491, %v538, 0.0
        %557 = vadd.xlane.f32.xlu0 %v556
        %v558 = vpop.xlane.xlu0 %557
        %v559 = vsel %vm491, %v539, 0.0
        %560 = vadd.xlane.f32.xlu0 %v559
        %v561 = vpop.xlane.xlu0 %560
        %v562 = vsel %vm491, %v540, 0.0
        %563 = vadd.xlane.f32.xlu0 %v562
        %v564 = vpop.xlane.xlu0 %563
        %v565 = vmul.f32 %v543, %v516
        %v566 = vmul.f32 %v546, %v516
        %v567 = vmul.f32 %v549, %v516
        %v568 = vmul.f32 %v552, %v516
        %v569 = vmul.f32 %v555, %v516
        %v570 = vmul.f32 %v558, %v516
        %v571 = vmul.f32 %v561, %v516
        %v572 = vmul.f32 %v564, %v516
        %v573 = vadd.f32 %v565, 1e-05
        %v574 = vadd.f32 %v566, 1e-05
        %v575 = vadd.f32 %v567, 1e-05
        %v576 = vadd.f32 %v568, 1e-05
        %v577 = vadd.f32 %v569, 1e-05
        %v578 = vadd.f32 %v570, 1e-05
        %v579 = vadd.f32 %v571, 1e-05
        %v580 = vadd.f32 %v572, 1e-05
        %v581 = vrsqrt.pop %v573
        %v582 = vrsqrt.pop %v574
        %v583 = vrsqrt.pop %v575
        %v584 = vrsqrt.pop %v576
        %v585 = vrsqrt.pop %v577
        %v586 = vrsqrt.pop %v578
        %v587 = vrsqrt.pop %v579
        %v588 = vrsqrt.pop %v580
        %v589 = vmul.f32 %v525, %v581
        %v590 = vmul.f32 %v526, %v582
        %v591 = vmul.f32 %v527, %v583
        %v592 = vmul.f32 %v528, %v584
        %v593 = vmul.f32 %v529, %v585
        %v594 = vmul.f32 %v530, %v586
        %v595 = vmul.f32 %v531, %v587
        %v596 = vmul.f32 %v532, %v588
        %v598 = vlaneseq
        %v599 = vshrl.u32 %v598, 7
        %v600 = vsub.s32 0, %v599
        %v601 = vrot.slane %v489, %v600
        %v603 = vmul.f32 %v589, %v601
        %v604 = vmul.f32 %v590, %v601
        %v605 = vmul.f32 %v591, %v601
        %v606 = vmul.f32 %v592, %v601
        %v607 = vmul.f32 %v593, %v601
        %v608 = vmul.f32 %v594, %v601
        %v609 = vmul.f32 %v595, %v601
        %v610 = vmul.f32 %v596, %v601
        %v612 = vlaneseq
        %v613 = vshrl.u32 %v612, 7
        %v614 = vsub.s32 0, %v613
        %v615 = vrot.slane %v490, %v614
        %v617 = vadd.f32 %v603, %v615
        %v618 = vadd.f32 %v604, %v615
        %v619 = vadd.f32 %v605, %v615
        %v620 = vadd.f32 %v606, %v615
        %v621 = vadd.f32 %v607, %v615
        %v622 = vadd.f32 %v608, %v615
        %v623 = vadd.f32 %v609, %v615
        %v624 = vadd.f32 %v610, %v615
        %v625 = vld [vmem:[%s3] sm:$0xff]
        %v626 = vld [vmem:[%s3 + $0x8] sm:$0xff]
        %v627 = vld [vmem:[%s3 + $0x10] sm:$0xff]
        %v628 = vld [vmem:[%s3 + $0x18] sm:$0xff]
        %v629 = vpack.c.bf16 %v618, %v617
        %v630 = vpack.c.bf16 %v620, %v619
        %v631 = vpack.c.bf16 %v622, %v621
        %v632 = vpack.c.bf16 %v624, %v623
        %v633 = vpack.c.bf16 %v626, %v625
        %v634 = vpack.c.bf16 %v628, %v627
        %v635 = vld [vmem:[#allocation7] sm:$0x1]
        %v637 = vlaneseq
        %v638 = vshrl.u32 %v637, 7
        %v639 = vsub.s32 0, %v638
        %v640 = vrot.slane %v635, %v639
        %v643 = vsel %vm491, %v629, 0
        %v646 = vsel %vm491, %v630, 0
        %v649 = vsel %vm491, %v631, 0
        %v652 = vsel %vm491, %v632, 0
        %654 = vmatprep.subr.bf16.mxu0 0
        %655 = vmatpush1.bf16.msra.mxu0 0
        %656 = vmatprep.subr.bf16.mxu0 0
        %657 = vmatpush1.bf16.msra.mxu0 0
        %658 = vmatprep.subr.bf16.mxu0 0
        %659 = vmatpush1.bf16.msra.mxu0 0
        %660 = vmatprep.subr.bf16.mxu0 0
        %661 = vmatpush1.bf16.msra.mxu0 0
        %662 = vmatprep.subr.bf16.mxu0 0
        %663 = vmatpush1.bf16.msra.mxu0 0
        %664 = vmatprep.subr.bf16.mxu0 0
        %665 = vmatpush1.bf16.msra.mxu0 0
        %666 = vmatprep.subr.bf16.mxu0 0
        %667 = vmatpush1.bf16.msra.mxu0 %v634
        %668 = vmatprep.subr.bf16.mxu0 0
        %669 = vmatpush1.bf16.msra.mxu0 %v633
        %670 = vmatprep.subr.bf16.mxu0 0
        %671 = vmatpush2.bf16.msra.mxu0 0
        %672 = vmatprep.subr.bf16.mxu0 0
        %673 = vmatpush2.bf16.msra.mxu0 0
        %674 = vmatprep.subr.bf16.mxu0 0
        %675 = vmatpush2.bf16.msra.mxu0 0
        %676 = vmatprep.subr.bf16.mxu0 0
        %677 = vmatpush2.bf16.msra.mxu0 0
        %678 = vmatprep.subr.bf16.mxu0 0
        %679 = vmatpush2.bf16.msra.mxu0 0
        %680 = vmatprep.subr.bf16.mxu0 0
        %681 = vmatpush2.bf16.msra.mxu0 0
        %682 = vmatprep.subr.bf16.mxu0 0
        %683 = vmatpush2.bf16.msra.mxu0 0
        %684 = vmatprep.subr.bf16.mxu0 0
        %685 = vmatpush2.bf16.msra.mxu0 0
        %686 = vmatprep.mubr.bf16.mxu0 0
        %687 = vmatmul.mubr.bf16.gmra.mxu0 %v643
        %v688 = vpop.f32.mrf.mxu0
        %v689 = vadd.f32 %v640, %v688
        %v690 = vpop.f32.mrf.mxu0
        %v691 = vpop.f32.mrf.mxu0
        %v692 = vadd.f32 %v640, %v691
        %v693 = vpop.f32.mrf.mxu0
        %694 = vmatprep.mubr.bf16.mxu0 0
        %695 = vmatmul.mubr.bf16.gmra.mxu0 %v646
        %v696 = vpop.f32.mrf.mxu0
        %v697 = vadd.f32 %v640, %v696
        %v698 = vpop.f32.mrf.mxu0
        %v699 = vpop.f32.mrf.mxu0
        %v700 = vadd.f32 %v640, %v699
        %v701 = vpop.f32.mrf.mxu0
        %702 = vmatprep.mubr.bf16.mxu0 0
        %703 = vmatmul.mubr.bf16.gmra.mxu0 %v649
        %v704 = vpop.f32.mrf.mxu0
        %v705 = vadd.f32 %v640, %v704
        %v706 = vpop.f32.mrf.mxu0
        %v707 = vpop.f32.mrf.mxu0
        %v708 = vadd.f32 %v640, %v707
        %v709 = vpop.f32.mrf.mxu0
        %710 = vmatprep.mubr.bf16.mxu0 0
        %711 = vmatmul.mubr.bf16.gmra.mxu0 %v652
        %v712 = vpop.f32.mrf.mxu0
        %v713 = vadd.f32 %v640, %v712
        %v714 = vpop.f32.mrf.mxu0
        %v715 = vpop.f32.mrf.mxu0
        %v716 = vadd.f32 %v640, %v715
        %v717 = vpop.f32.mrf.mxu0
        %718 = vdwg.mxu0
        %v719 = vld [vmem:[#allocation9] sm:$0x1]
        %v720 = vld [vmem:[#allocation10] sm:$0x1]
        %vm721 = vcmask 64512
        %v722 = vsel %vm721, %v689, 0.0
        %723 = vadd.xlane.f32.xlu0 %v722
        %v724 = vpop.xlane.xlu0 %723
        %v725 = vsel %vm721, %v692, 0.0
        %726 = vadd.xlane.f32.xlu0 %v725
        %v727 = vpop.xlane.xlu0 %726
        %v728 = vsel %vm721, %v697, 0.0
        %729 = vadd.xlane.f32.xlu0 %v728
        %v730 = vpop.xlane.xlu0 %729
        %v731 = vsel %vm721, %v700, 0.0
        %732 = vadd.xlane.f32.xlu0 %v731
        %v733 = vpop.xlane.xlu0 %732
        %v734 = vsel %vm721, %v705, 0.0
        %735 = vadd.xlane.f32.xlu0 %v734
        %v736 = vpop.xlane.xlu0 %735
        %v737 = vsel %vm721, %v708, 0.0
        %738 = vadd.xlane.f32.xlu0 %v737
        %v739 = vpop.xlane.xlu0 %738
        %v740 = vsel %vm721, %v713, 0.0
        %741 = vadd.xlane.f32.xlu0 %v740
        %v742 = vpop.xlane.xlu0 %741
        %v743 = vsel %vm721, %v716, 0.0
        %744 = vadd.xlane.f32.xlu0 %v743
        %v745 = vpop.xlane.xlu0 %744
        %v746 = vrcp.pop 8.0
        %v747 = vmul.f32 %v724, %v746
        %v748 = vmul.f32 %v727, %v746
        %v749 = vmul.f32 %v730, %v746
        %v750 = vmul.f32 %v733, %v746
        %v751 = vmul.f32 %v736, %v746
        %v752 = vmul.f32 %v739, %v746
        %v753 = vmul.f32 %v742, %v746
        %v754 = vmul.f32 %v745, %v746
        %v755 = vsub.f32 %v689, %v747
        %v756 = vsub.f32 %v692, %v748
        %v757 = vsub.f32 %v697, %v749
        %v758 = vsub.f32 %v700, %v750
        %v759 = vsub.f32 %v705, %v751
        %v760 = vsub.f32 %v708, %v752
        %v761 = vsub.f32 %v713, %v753
        %v762 = vsub.f32 %v716, %v754
        %v763 = vmul.f32 %v755, %v755
        %v764 = vmul.f32 %v756, %v756
        %v765 = vmul.f32 %v757, %v757
        %v766 = vmul.f32 %v758, %v758
        %v767 = vmul.f32 %v759, %v759
        %v768 = vmul.f32 %v760, %v760
        %v769 = vmul.f32 %v761, %v761
        %v770 = vmul.f32 %v762, %v762
        %v771 = vsel %vm721, %v763, 0.0
        %772 = vadd.xlane.f32.xlu0 %v771
        %v773 = vpop.xlane.xlu0 %772
        %v774 = vsel %vm721, %v764, 0.0
        %775 = vadd.xlane.f32.xlu0 %v774
        %v776 = vpop.xlane.xlu0 %775
        %v777 = vsel %vm721, %v765, 0.0
        %778 = vadd.xlane.f32.xlu0 %v777
        %v779 = vpop.xlane.xlu0 %778
        %v780 = vsel %vm721, %v766, 0.0
        %781 = vadd.xlane.f32.xlu0 %v780
        %v782 = vpop.xlane.xlu0 %781
        %v783 = vsel %vm721, %v767, 0.0
        %784 = vadd.xlane.f32.xlu0 %v783
        %v785 = vpop.xlane.xlu0 %784
        %v786 = vsel %vm721, %v768, 0.0
        %787 = vadd.xlane.f32.xlu0 %v786
        %v788 = vpop.xlane.xlu0 %787
        %v789 = vsel %vm721, %v769, 0.0
        %790 = vadd.xlane.f32.xlu0 %v789
        %v791 = vpop.xlane.xlu0 %790
        %v792 = vsel %vm721, %v770, 0.0
        %793 = vadd.xlane.f32.xlu0 %v792
        %v794 = vpop.xlane.xlu0 %793
        %v795 = vmul.f32 %v773, %v746
        %v796 = vmul.f32 %v776, %v746
        %v797 = vmul.f32 %v779, %v746
        %v798 = vmul.f32 %v782, %v746
        %v799 = vmul.f32 %v785, %v746
        %v800 = vmul.f32 %v788, %v746
        %v801 = vmul.f32 %v791, %v746
        %v802 = vmul.f32 %v794, %v746
        %v803 = vadd.f32 %v795, 1e-05
        %v804 = vadd.f32 %v796, 1e-05
        %v805 = vadd.f32 %v797, 1e-05
        %v806 = vadd.f32 %v798, 1e-05
        %v807 = vadd.f32 %v799, 1e-05
        %v808 = vadd.f32 %v800, 1e-05
        %v809 = vadd.f32 %v801, 1e-05
        %v810 = vadd.f32 %v802, 1e-05
        %v811 = vrsqrt.pop %v803
        %v812 = vrsqrt.pop %v804
        %v813 = vrsqrt.pop %v805
        %v814 = vrsqrt.pop %v806
        %v815 = vrsqrt.pop %v807
        %v816 = vrsqrt.pop %v808
        %v817 = vrsqrt.pop %v809
        %v818 = vrsqrt.pop %v810
        %v819 = vmul.f32 %v755, %v811
        %v820 = vmul.f32 %v756, %v812
        %v821 = vmul.f32 %v757, %v813
        %v822 = vmul.f32 %v758, %v814
        %v823 = vmul.f32 %v759, %v815
        %v824 = vmul.f32 %v760, %v816
        %v825 = vmul.f32 %v761, %v817
        %v826 = vmul.f32 %v762, %v818
        %v828 = vlaneseq
        %v829 = vshrl.u32 %v828, 7
        %v830 = vsub.s32 0, %v829
        %v831 = vrot.slane %v719, %v830
        %v833 = vmul.f32 %v819, %v831
        %v834 = vmul.f32 %v820, %v831
        %v835 = vmul.f32 %v821, %v831
        %v836 = vmul.f32 %v822, %v831
        %v837 = vmul.f32 %v823, %v831
        %v838 = vmul.f32 %v824, %v831
        %v839 = vmul.f32 %v825, %v831
        %v840 = vmul.f32 %v826, %v831
        %v842 = vlaneseq
        %v843 = vshrl.u32 %v842, 7
        %v844 = vsub.s32 0, %v843
        %v845 = vrot.slane %v720, %v844
        %v847 = vadd.f32 %v833, %v845
        %v848 = vadd.f32 %v834, %v845
        %v849 = vadd.f32 %v835, %v845
        %v850 = vadd.f32 %v836, %v845
        %v851 = vadd.f32 %v837, %v845
        %v852 = vadd.f32 %v838, %v845
        %v853 = vadd.f32 %v839, %v845
        %v854 = vadd.f32 %v840, %v845
        %v855 = vld [vmem:[#allocation12] sm:$0x1]
        %v857 = vlaneseq
        %v858 = vshrl.u32 %v857, 7
        %v859 = vsub.s32 0, %v858
        %v860 = vrot.slane %v855, %v859
        %v862 = vmul.f32 %v847, %v860
        %v863 = vmul.f32 %v848, %v860
        %v864 = vmul.f32 %v849, %v860
        %v865 = vmul.f32 %v850, %v860
        %v866 = vmul.f32 %v851, %v860
        %v867 = vmul.f32 %v852, %v860
        %v868 = vmul.f32 %v853, %v860
        %v869 = vmul.f32 %v854, %v860
        %v870 = vsel %vm721, %v862, 0.0
        %871 = vadd.xlane.f32.xlu0 %v870
        %v872 = vpop.xlane.xlu0 %871
        %v873 = vsel %vm721, %v863, 0.0
        %874 = vadd.xlane.f32.xlu0 %v873
        %v875 = vpop.xlane.xlu0 %874
        %v876 = vsel %vm721, %v864, 0.0
        %877 = vadd.xlane.f32.xlu0 %v876
        %v878 = vpop.xlane.xlu0 %877
        %v879 = vsel %vm721, %v865, 0.0
        %880 = vadd.xlane.f32.xlu0 %v879
        %v881 = vpop.xlane.xlu0 %880
        %v882 = vsel %vm721, %v866, 0.0
        %883 = vadd.xlane.f32.xlu0 %v882
        %v884 = vpop.xlane.xlu0 %883
        %v885 = vsel %vm721, %v867, 0.0
        %886 = vadd.xlane.f32.xlu0 %v885
        %v887 = vpop.xlane.xlu0 %886
        %v888 = vsel %vm721, %v868, 0.0
        %889 = vadd.xlane.f32.xlu0 %v888
        %v890 = vpop.xlane.xlu0 %889
        %v891 = vsel %vm721, %v869, 0.0
        %892 = vadd.xlane.f32.xlu0 %v891
        %v893 = vpop.xlane.xlu0 %892
        %v894 = vmax.f32 %v872, %v884
        %v895 = vmax.f32 %v878, %v890
        %v896 = vmax.f32 %v894, %v895
        %v897 = vmax.f32 %v875, %v887
        %v898 = vmax.f32 %v881, %v893
        %v899 = vmax.f32 %v897, %v898
        %v900 = vsub.f32 %v872, %v896
        %v901 = vsub.f32 %v875, %v899
        %v902 = vsub.f32 %v878, %v896
        %v903 = vsub.f32 %v881, %v899
        %v904 = vsub.f32 %v884, %v896
        %v905 = vsub.f32 %v887, %v899
        %v906 = vsub.f32 %v890, %v896
        %v907 = vsub.f32 %v893, %v899
        %v908 = vmul.f32 %v900, 1.442695
        %v909 = vpow.pop %v908
        %v910 = vmul.f32 %v901, 1.442695
        %v911 = vpow.pop %v910
        %v912 = vmul.f32 %v902, 1.442695
        %v913 = vpow.pop %v912
        %v914 = vmul.f32 %v903, 1.442695
        %v915 = vpow.pop %v914
        %v916 = vmul.f32 %v904, 1.442695
        %v917 = vpow.pop %v916
        %v918 = vmul.f32 %v905, 1.442695
        %v919 = vpow.pop %v918
        %v920 = vmul.f32 %v906, 1.442695
        %v921 = vpow.pop %v920
        %v922 = vmul.f32 %v907, 1.442695
        %v923 = vpow.pop %v922
        %v924 = vadd.f32 %v909, %v913
        %v925 = vadd.f32 %v924, %v917
        %v926 = vadd.f32 %v925, %v921
        %v927 = vadd.f32 %v911, %v915
        %v928 = vadd.f32 %v927, %v919
        %v929 = vadd.f32 %v928, %v923
        %v930 = vrcp.pop %v926
        %v931 = vrcp.pop %v929
        %v932 = vmul.f32 %v909, %v930
        %v933 = vmul.f32 %v911, %v931
        %v934 = vmul.f32 %v913, %v930
        %v935 = vmul.f32 %v915, %v931
        %v936 = vmul.f32 %v917, %v930
        %v937 = vmul.f32 %v919, %v931
        %v938 = vmul.f32 %v921, %v930
        %v939 = vmul.f32 %v923, %v931
        %v940 = vmul.f32 %v847, %v932
        %v941 = vmul.f32 %v848, %v933
        %v942 = vmul.f32 %v849, %v934
        %v943 = vmul.f32 %v850, %v935
        %v944 = vmul.f32 %v851, %v936
        %v945 = vmul.f32 %v852, %v937
        %v946 = vmul.f32 %v853, %v938
        %v947 = vmul.f32 %v854, %v939
        %948 = vst.msk [vmem:[%s469] sm:$0xff] %vm721, %v847
        %949 = vst.msk [vmem:[%s469 + $0x8] sm:$0xff] %vm721, %v848
        %950 = vst.msk [vmem:[%s469 + $0x10] sm:$0xff] %vm721, %v849
        %951 = vst.msk [vmem:[%s469 + $0x18] sm:$0xff] %vm721, %v850
        %952 = vst.msk [vmem:[%s469 + $0x20] sm:$0xff] %vm721, %v851
        %953 = vst.msk [vmem:[%s469 + $0x28] sm:$0xff] %vm721, %v852
        %954 = vst.msk [vmem:[%s469 + $0x30] sm:$0xff] %vm721, %v853
        %955 = vst.msk [vmem:[%s469 + $0x38] sm:$0xff] %vm721, %v854
        %956 = vst.msk [vmem:[%s474] sm:$0xff] %vm721, %v940
        %957 = vst.msk [vmem:[%s474 + $0x8] sm:$0xff] %vm721, %v941
        %958 = vst.msk [vmem:[%s474 + $0x10] sm:$0xff] %vm721, %v942
        %959 = vst.msk [vmem:[%s474 + $0x18] sm:$0xff] %vm721, %v943
        %960 = vst.msk [vmem:[%s474 + $0x20] sm:$0xff] %vm721, %v944
        %961 = vst.msk [vmem:[%s474 + $0x28] sm:$0xff] %vm721, %v945
        %962 = vst.msk [vmem:[%s474 + $0x30] sm:$0xff] %vm721, %v946
        %963 = vst.msk [vmem:[%s474 + $0x38] sm:$0xff] %vm721, %v947
        %v964 = vsel %vm721, %v940, 0.0
        %v965 = vsel %vm721, %v942, 0.0
        %v966 = vadd.f32 %v964, %v965
        %v967 = vsel %vm721, %v944, 0.0
        %v968 = vadd.f32 %v966, %v967
        %v969 = vsel %vm721, %v946, 0.0
        %v970 = vadd.f32 %v968, %v969
        %v971 = vsel %vm721, %v941, 0.0
        %v972 = vsel %vm721, %v943, 0.0
        %v973 = vadd.f32 %v971, %v972
        %v974 = vsel %vm721, %v945, 0.0
        %v975 = vadd.f32 %v973, %v974
        %v976 = vsel %vm721, %v947, 0.0
        %v977 = vadd.f32 %v975, %v976
        %978 = vst.msk [vmem:[%s479] sm:$0xff] %vm721, %v970
        %979 = vst.msk [vmem:[%s479 + $0x8] sm:$0xff] %vm721, %v977
        %p980 = scmp.lt.s32.totalorder %s28, 1
        %s981 = scalar_select %p980, %s28, 1
        %s982 = smul.addr %s981, 8
        %s983 = smul.addr %s982, 8
        %s984 = scalar_lea.vmem %s8, %s983
        %p985 = scmp.lt.s32.totalorder %s28, 1
        %s986 = scalar_select %p985, %s28, 1
        %s987 = smul.addr %s986, 8
        %s988 = smul.addr %s987, 8
        %s989 = scalar_lea.vmem %s9, %s988
        %p990 = scmp.lt.s32.totalorder %s28, 1
        %s991 = scalar_select %p990, %s28, 1
        %s992 = smul.addr %s991, 2
        %s993 = smul.addr %s992, 8
        %s994 = scalar_lea.vmem %s10, %s993
        // Predicated region
        $region81: #{msa_pair_attention_layer.4} parent=51 // pred_check
          %p995 = pneg %p219
        $region82: #{msa_pair_attention_layer.4} parent=51 // pred_check_branch
          %997 = sbr.rel (%p995) target = $region84
        $region83: #{msa_pair_attention_layer.4} parent=51 // pred_region
          _
        $region84: #{msa_pair_attention_layer.4} parent=51 // pred_fallthru
          _
        // Predicated region
        $region85: #{msa_pair_attention_layer.4} parent=51 // pred_check
          %p998 = pneg %p245
        $region86: #{msa_pair_attention_layer.4} parent=51 // pred_check_branch
          %1000 = sbr.rel (%p998) target = $region88
        $region87: #{msa_pair_attention_layer.4} parent=51 // pred_region
          _
        $region88: #{msa_pair_attention_layer.4} parent=51 // pred_fallthru
          _
        // Predicated region
        $region89: #{msa_pair_attention_layer.4} parent=51 // pred_check
          %p1001 = pneg %p271
        $region90: #{msa_pair_attention_layer.4} parent=51 // pred_check_branch
          %1003 = sbr.rel (%p1001) target = $region92
        $region91: #{msa_pair_attention_layer.4} parent=51 // pred_region
          _
        $region92: #{msa_pair_attention_layer.4} parent=51 // pred_fallthru
          _
      $region52: #{msa_pair_attention_layer.4} parent=5 // pred_fallthru
        _
      %p1004 = scmp.le.s32.totalorder 2, %s23
      // Predicated region
      $region93: #{msa_pair_attention_layer.4} parent=5 // pred_check
        %p1005 = pneg %p1004
      $region94: #{msa_pair_attention_layer.4} parent=5 // pred_check_branch
        %1007 = sbr.rel (%p1005) target = $region96
      $region95: #{msa_pair_attention_layer.4} parent=5 // pred_region
        %s1008 = ssub.s32 %s23, 2
        // Predicated region
        $region97: #{msa_pair_attention_layer.4} parent=95 // pred_check
          %p1009 = pneg %p225
        $region98: #{msa_pair_attention_layer.4} parent=95 // pred_check_branch
          %1011 = sbr.rel (%p1009) target = $region100
        $region99: #{msa_pair_attention_layer.4} parent=95 // pred_region
          %p1012 = scmp.lt.s32.totalorder %s29, 1
          %s1013 = scalar_select %p1012, %s29, 1
          %s1014 = smul.addr %s1013, 8
          %s1015 = smul.addr %s1014, 8
          %s1016 = scalar_lea.vmem %s8, %s1015
        $region100: #{msa_pair_attention_layer.4} parent=95 // pred_fallthru
          _
        // Predicated region
        $region101: #{msa_pair_attention_layer.4} parent=95 // pred_check
          %p1017 = pneg %p251
        $region102: #{msa_pair_attention_layer.4} parent=95 // pred_check_branch
          %1019 = sbr.rel (%p1017) target = $region104
        $region103: #{msa_pair_attention_layer.4} parent=95 // pred_region
          %p1020 = scmp.lt.s32.totalorder %s29, 1
          %s1021 = scalar_select %p1020, %s29, 1
          %s1022 = smul.addr %s1021, 8
          %s1023 = smul.addr %s1022, 8
          %s1024 = scalar_lea.vmem %s9, %s1023
        $region104: #{msa_pair_attention_layer.4} parent=95 // pred_fallthru
          _
        // Predicated region
        $region105: #{msa_pair_attention_layer.4} parent=95 // pred_check
          %p1025 = pneg %p277
        $region106: #{msa_pair_attention_layer.4} parent=95 // pred_check_branch
          %1027 = sbr.rel (%p1025) target = $region108
        $region107: #{msa_pair_attention_layer.4} parent=95 // pred_region
          %p1028 = scmp.lt.s32.totalorder %s29, 1
          %s1029 = scalar_select %p1028, %s29, 1
          %s1030 = smul.addr %s1029, 2
          %s1031 = smul.addr %s1030, 8
          %s1032 = scalar_lea.vmem %s10, %s1031
        $region108: #{msa_pair_attention_layer.4} parent=95 // pred_fallthru
          _
      $region96: #{msa_pair_attention_layer.4} parent=5 // pred_fallthru
        _
    $region6: #{msa_pair_attention_layer.4} parent=1 // loop_footer
      %s27 = sadd.s32 1, %s23
    $region7: #{msa_pair_attention_layer.4} parent=1 // loop_footer_branch
      %22 = sbr.rel target = $region3
    $region8: #{msa_pair_attention_layer.4} parent=1 // loop_exit
      _
    %1033 = vsyncpa [#allocation3], 1
    %s1034 = scalar_lea.sflag [#allocation3], 1
    %1035 = vsyncpa %s1034, 1
    %1036 = vsyncpa [#allocation5], 1
    %1037 = vsyncpa [#allocation8], 1
    %1038 = vsyncpa [#allocation11], 1

// kernel: msa_pair_attention_layer.6
$region0: #{msa_pair_attention_layer.6}
  #allocation0 [shape = 'u32[]', space=smem, size = 0x4, offset = 0x4, fixed_abs, tag = 'smem constant byte address 0x4 - core index']
  #allocation1 [shape = 'u32[144,128]{1,0:T(1,128)}', space=vmem, size = 0x12000, scoped, tag = 'internal scratch']
  %s0 = inlined_call_operand.vmem [shape: f32[2,256,64], index: 0, kind: input, shape index: {}]
  %s1 = inlined_call_operand.vmem [shape: f32[2,256,16], index: 1, kind: input, shape index: {}]
  %s2 = inlined_call_operand.vmem [shape: f32[2,16,8], index: 2, kind: input, shape index: {}]
  %s3 = inlined_call_operand.vmem [shape: f32[64,16], index: 3, kind: input, shape index: {}]
  %s4 = inlined_call_operand.vmem [shape: f32[1,16], index: 4, kind: input, shape index: {}]
  %s5 = inlined_call_operand.vmem [shape: f32[1,16], index: 5, kind: input, shape index: {}]
  %s6 = inlined_call_operand.vmem [shape: f32[1,16], index: 6, kind: input, shape index: {}]
  %s7 = inlined_call_operand.vmem [shape: f32[1,16], index: 7, kind: input, shape index: {}]
  %s8 = inlined_call_operand.vmem [shape: f32[1,16], index: 8, kind: input, shape index: {}]
  %s9 = inlined_call_operand.vmem [shape: f32[8,16], index: 9, kind: input, shape index: {}]
  %s10 = inlined_call_operand.vmem [shape: f32[8,16], index: 10, kind: input, shape index: {}]
  %s11 = inlined_call_operand.vmem [shape: f32[16,16], index: 11, kind: input, shape index: {}]
  %s12 = inlined_call_operand.vmem [shape: f32[16,16], index: 12, kind: input, shape index: {}]
  %s13 = inlined_call_operand.vmem [shape: f32[1,16], index: 13, kind: input, shape index: {}]
  %s14 = inlined_call_operand.vmem [shape: f32[2,16,16,16], index: 14, kind: output, shape index: {}]
  %s15 = sld [smem:[#allocation0]]
  $region89: #{msa_pair_attention_layer.6} parent=0
    _
  %s17 = ssub.s32 1, %s15
  %s18 = scalar_select 0, %s17, %s15
  loop: start=0, step=1, limit=4
  $region2: #{msa_pair_attention_layer.6} parent=0 // loop_pre_header
    _
  $region3: #{msa_pair_attention_layer.6} parent=0 // loop_header
    %s20 = sphi 0, %s24
    %p21 = scmp.ge.s32.totalorder %s20, 4
    %s30 = sphi 0, %s32
    %s33 = sphi 0, %s30
    %s34 = sphi 0, %s33
    %s50 = sphi 0, %s34
    %s56 = sphi 0, %s58
    %s59 = sphi 0, %s56
    %s60 = sphi 0, %s59
    %s76 = sphi 0, %s60
    %s82 = sphi 0, %s84
    %s85 = sphi 0, %s82
    %s86 = sphi 0, %s85
    %s102 = sphi 0, %s86
    %s106 = sphi 0, %s106
    %s108 = sphi 0, %s106
    %s109 = sphi 0, %s108
    %s123 = sphi 0, %s109
    %s127 = sphi 0, %s127
    %s129 = sphi 0, %s127
    %s130 = sphi 0, %s129
    %s144 = sphi 0, %s130
    %s148 = sphi 0, %s148
    %s150 = sphi 0, %s148
    %s151 = sphi 0, %s150
    %s165 = sphi 0, %s151
    %s169 = sphi 0, %s169
    %s171 = sphi 0, %s169
    %s172 = sphi 0, %s171
    %s186 = sphi 0, %s172
    %s190 = sphi 0, %s190
    %s192 = sphi 0, %s190
    %s193 = sphi 0, %s192
    %s207 = sphi 0, %s193
    %s211 = sphi 0, %s211
    %s213 = sphi 0, %s211
    %s214 = sphi 0, %s213
    %s228 = sphi 0, %s214
    %s232 = sphi 0, %s232
    %s234 = sphi 0, %s232
    %s235 = sphi 0, %s234
    %s249 = sphi 0, %s235
    %s253 = sphi 0, %s253
    %s255 = sphi 0, %s253
    %s256 = sphi 0, %s255
    %s270 = sphi 0, %s256
    %s274 = sphi 0, %s274
    %s276 = sphi 0, %s274
    %s277 = sphi 0, %s276
    %s291 = sphi 0, %s277
    %s295 = sphi 0, %s295
    %s297 = sphi 0, %s295
    %s298 = sphi 0, %s297
    %s312 = sphi 0, %s298
    %s316 = sphi 0, %s316
    %s318 = sphi 0, %s316
    %s319 = sphi 0, %s318
    %s333 = sphi 0, %s319
    %s339 = sphi 0, %s341
    %s342 = sphi 0, %s339
    %s343 = sphi 0, %s342
    %s359 = sphi 0, %s343
  $region4: #{msa_pair_attention_layer.6} parent=0 // loop_header_branch
    %23 = sbr.rel (%p21) target = $region8
  $region5: #{msa_pair_attention_layer.6} parent=0 // loop_body
    %s25 = ssub.s32 %s20, 1
    %s26 = ssub.s32 %s20, 2
    %s27 = sadd.s32 %s20, 1
    %s28 = ssub.s32 %s20, %s27
    %p29 = scmp.eq.s32.totalorder %s28, 0
    %s31 = sadd.s32 %s30, 1
    %s32 = scalar_select %p29, %s30, %s31
    %p35 = pneg %p29
    %p36 = scmp.eq.s32.totalorder %s20, 1
    %p37 = por %p35, %p36
    %p38 = scmp.ne.s32.totalorder %s30, %s33
    %p39 = scmp.eq.s32.totalorder %s20, 0
    %p40 = por %p38, %p39
    %p41 = scmp.ne.s32.totalorder %s30, %s33
    %p42 = scmp.eq.s32.totalorder %s25, 1
    %p43 = por %p41, %p42
    %p44 = scmp.ne.s32.totalorder %s33, %s34
    %p45 = scmp.eq.s32.totalorder %s25, 0
    %p46 = por %p44, %p45
    %p47 = scmp.ne.s32.totalorder %s33, %s34
    %p48 = scmp.eq.s32.totalorder %s26, 1
    %p49 = por %p47, %p48
    %p51 = scmp.ne.s32.totalorder %s34, %s50
    %p52 = scmp.eq.s32.totalorder %s26, 0
    %p53 = por %p51, %p52
    %s54 = ssub.s32 %s20, %s27
    %p55 = scmp.eq.s32.totalorder %s54, 0
    %s57 = sadd.s32 %s56, 1
    %s58 = scalar_select %p55, %s56, %s57
    %p61 = pneg %p55
    %p62 = scmp.eq.s32.totalorder %s20, 1
    %p63 = por %p61, %p62
    %p64 = scmp.ne.s32.totalorder %s56, %s59
    %p65 = scmp.eq.s32.totalorder %s20, 0
    %p66 = por %p64, %p65
    %p67 = scmp.ne.s32.totalorder %s56, %s59
    %p68 = scmp.eq.s32.totalorder %s25, 1
    %p69 = por %p67, %p68
    %p70 = scmp.ne.s32.totalorder %s59, %s60
    %p71 = scmp.eq.s32.totalorder %s25, 0
    %p72 = por %p70, %p71
    %p73 = scmp.ne.s32.totalorder %s59, %s60
    %p74 = scmp.eq.s32.totalorder %s26, 1
    %p75 = por %p73, %p74
    %p77 = scmp.ne.s32.totalorder %s60, %s76
    %p78 = scmp.eq.s32.totalorder %s26, 0
    %p79 = por %p77, %p78
    %s80 = ssub.s32 %s20, %s27
    %p81 = scmp.eq.s32.totalorder %s80, 0
    %s83 = sadd.s32 %s82, 1
    %s84 = scalar_select %p81, %s82, %s83
    %p87 = pneg %p81
    %p88 = scmp.eq.s32.totalorder %s20, 1
    %p89 = por %p87, %p88
    %p90 = scmp.ne.s32.totalorder %s82, %s85
    %p91 = scmp.eq.s32.totalorder %s20, 0
    %p92 = por %p90, %p91
    %p93 = scmp.ne.s32.totalorder %s82, %s85
    %p94 = scmp.eq.s32.totalorder %s25, 1
    %p95 = por %p93, %p94
    %p96 = scmp.ne.s32.totalorder %s85, %s86
    %p97 = scmp.eq.s32.totalorder %s25, 0
    %p98 = por %p96, %p97
    %p99 = scmp.ne.s32.totalorder %s85, %s86
    %p100 = scmp.eq.s32.totalorder %s26, 1
    %p101 = por %p99, %p100
    %p103 = scmp.ne.s32.totalorder %s86, %s102
    %p104 = scmp.eq.s32.totalorder %s26, 0
    %p105 = por %p103, %p104
    %s107 = sadd.s32 %s106, 1
    %p110 = scmp.eq.s32.totalorder %s20, 1
    %p111 = scmp.ne.s32.totalorder %s106, %s108
    %p112 = scmp.eq.s32.totalorder %s20, 0
    %p113 = por %p111, %p112
    %p114 = scmp.ne.s32.totalorder %s106, %s108
    %p115 = scmp.eq.s32.totalorder %s25, 1
    %p116 = por %p114, %p115
    %p117 = scmp.ne.s32.totalorder %s108, %s109
    %p118 = scmp.eq.s32.totalorder %s25, 0
    %p119 = por %p117, %p118
    %p120 = scmp.ne.s32.totalorder %s108, %s109
    %p121 = scmp.eq.s32.totalorder %s26, 1
    %p122 = por %p120, %p121
    %p124 = scmp.ne.s32.totalorder %s109, %s123
    %p125 = scmp.eq.s32.totalorder %s26, 0
    %p126 = por %p124, %p125
    %s128 = sadd.s32 %s127, 1
    %p131 = scmp.eq.s32.totalorder %s20, 1
    %p132 = scmp.ne.s32.totalorder %s127, %s129
    %p133 = scmp.eq.s32.totalorder %s20, 0
    %p134 = por %p132, %p133
    %p135 = scmp.ne.s32.totalorder %s127, %s129
    %p136 = scmp.eq.s32.totalorder %s25, 1
    %p137 = por %p135, %p136
    %p138 = scmp.ne.s32.totalorder %s129, %s130
    %p139 = scmp.eq.s32.totalorder %s25, 0
    %p140 = por %p138, %p139
    %p141 = scmp.ne.s32.totalorder %s129, %s130
    %p142 = scmp.eq.s32.totalorder %s26, 1
    %p143 = por %p141, %p142
    %p145 = scmp.ne.s32.totalorder %s130, %s144
    %p146 = scmp.eq.s32.totalorder %s26, 0
    %p147 = por %p145, %p146
    %s149 = sadd.s32 %s148, 1
    %p152 = scmp.eq.s32.totalorder %s20, 1
    %p153 = scmp.ne.s32.totalorder %s148, %s150
    %p154 = scmp.eq.s32.totalorder %s20, 0
    %p155 = por %p153, %p154
    %p156 = scmp.ne.s32.totalorder %s148, %s150
    %p157 = scmp.eq.s32.totalorder %s25, 1
    %p158 = por %p156, %p157
    %p159 = scmp.ne.s32.totalorder %s150, %s151
    %p160 = scmp.eq.s32.totalorder %s25, 0
    %p161 = por %p159, %p160
    %p162 = scmp.ne.s32.totalorder %s150, %s151
    %p163 = scmp.eq.s32.totalorder %s26, 1
    %p164 = por %p162, %p163
    %p166 = scmp.ne.s32.totalorder %s151, %s165
    %p167 = scmp.eq.s32.totalorder %s26, 0
    %p168 = por %p166, %p167
    %s170 = sadd.s32 %s169, 1
    %p173 = scmp.eq.s32.totalorder %s20, 1
    %p174 = scmp.ne.s32.totalorder %s169, %s171
    %p175 = scmp.eq.s32.totalorder %s20, 0
    %p176 = por %p174, %p175
    %p177 = scmp.ne.s32.totalorder %s169, %s171
    %p178 = scmp.eq.s32.totalorder %s25, 1
    %p179 = por %p177, %p178
    %p180 = scmp.ne.s32.totalorder %s171, %s172
    %p181 = scmp.eq.s32.totalorder %s25, 0
    %p182 = por %p180, %p181
    %p183 = scmp.ne.s32.totalorder %s171, %s172
    %p184 = scmp.eq.s32.totalorder %s26, 1
    %p185 = por %p183, %p184
    %p187 = scmp.ne.s32.totalorder %s172, %s186
    %p188 = scmp.eq.s32.totalorder %s26, 0
    %p189 = por %p187, %p188
    %s191 = sadd.s32 %s190, 1
    %p194 = scmp.eq.s32.totalorder %s20, 1
    %p195 = scmp.ne.s32.totalorder %s190, %s192
    %p196 = scmp.eq.s32.totalorder %s20, 0
    %p197 = por %p195, %p196
    %p198 = scmp.ne.s32.totalorder %s190, %s192
    %p199 = scmp.eq.s32.totalorder %s25, 1
    %p200 = por %p198, %p199
    %p201 = scmp.ne.s32.totalorder %s192, %s193
    %p202 = scmp.eq.s32.totalorder %s25, 0
    %p203 = por %p201, %p202
    %p204 = scmp.ne.s32.totalorder %s192, %s193
    %p205 = scmp.eq.s32.totalorder %s26, 1
    %p206 = por %p204, %p205
    %p208 = scmp.ne.s32.totalorder %s193, %s207
    %p209 = scmp.eq.s32.totalorder %s26, 0
    %p210 = por %p208, %p209
    %s212 = sadd.s32 %s211, 1
    %p215 = scmp.eq.s32.totalorder %s20, 1
    %p216 = scmp.ne.s32.totalorder %s211, %s213
    %p217 = scmp.eq.s32.totalorder %s20, 0
    %p218 = por %p216, %p217
    %p219 = scmp.ne.s32.totalorder %s211, %s213
    %p220 = scmp.eq.s32.totalorder %s25, 1
    %p221 = por %p219, %p220
    %p222 = scmp.ne.s32.totalorder %s213, %s214
    %p223 = scmp.eq.s32.totalorder %s25, 0
    %p224 = por %p222, %p223
    %p225 = scmp.ne.s32.totalorder %s213, %s214
    %p226 = scmp.eq.s32.totalorder %s26, 1
    %p227 = por %p225, %p226
    %p229 = scmp.ne.s32.totalorder %s214, %s228
    %p230 = scmp.eq.s32.totalorder %s26, 0
    %p231 = por %p229, %p230
    %s233 = sadd.s32 %s232, 1
    %p236 = scmp.eq.s32.totalorder %s20, 1
    %p237 = scmp.ne.s32.totalorder %s232, %s234
    %p238 = scmp.eq.s32.totalorder %s20, 0
    %p239 = por %p237, %p238
    %p240 = scmp.ne.s32.totalorder %s232, %s234
    %p241 = scmp.eq.s32.totalorder %s25, 1
    %p242 = por %p240, %p241
    %p243 = scmp.ne.s32.totalorder %s234, %s235
    %p244 = scmp.eq.s32.totalorder %s25, 0
    %p245 = por %p243, %p244
    %p246 = scmp.ne.s32.totalorder %s234, %s235
    %p247 = scmp.eq.s32.totalorder %s26, 1
    %p248 = por %p246, %p247
    %p250 = scmp.ne.s32.totalorder %s235, %s249
    %p251 = scmp.eq.s32.totalorder %s26, 0
    %p252 = por %p250, %p251
    %s254 = sadd.s32 %s253, 1
    %p257 = scmp.eq.s32.totalorder %s20, 1
    %p258 = scmp.ne.s32.totalorder %s253, %s255
    %p259 = scmp.eq.s32.totalorder %s20, 0
    %p260 = por %p258, %p259
    %p261 = scmp.ne.s32.totalorder %s253, %s255
    %p262 = scmp.eq.s32.totalorder %s25, 1
    %p263 = por %p261, %p262
    %p264 = scmp.ne.s32.totalorder %s255, %s256
    %p265 = scmp.eq.s32.totalorder %s25, 0
    %p266 = por %p264, %p265
    %p267 = scmp.ne.s32.totalorder %s255, %s256
    %p268 = scmp.eq.s32.totalorder %s26, 1
    %p269 = por %p267, %p268
    %p271 = scmp.ne.s32.totalorder %s256, %s270
    %p272 = scmp.eq.s32.totalorder %s26, 0
    %p273 = por %p271, %p272
    %s275 = sadd.s32 %s274, 1
    %p278 = scmp.eq.s32.totalorder %s20, 1
    %p279 = scmp.ne.s32.totalorder %s274, %s276
    %p280 = scmp.eq.s32.totalorder %s20, 0
    %p281 = por %p279, %p280
    %p282 = scmp.ne.s32.totalorder %s274, %s276
    %p283 = scmp.eq.s32.totalorder %s25, 1
    %p284 = por %p282, %p283
    %p285 = scmp.ne.s32.totalorder %s276, %s277
    %p286 = scmp.eq.s32.totalorder %s25, 0
    %p287 = por %p285, %p286
    %p288 = scmp.ne.s32.totalorder %s276, %s277
    %p289 = scmp.eq.s32.totalorder %s26, 1
    %p290 = por %p288, %p289
    %p292 = scmp.ne.s32.totalorder %s277, %s291
    %p293 = scmp.eq.s32.totalorder %s26, 0
    %p294 = por %p292, %p293
    %s296 = sadd.s32 %s295, 1
    %p299 = scmp.eq.s32.totalorder %s20, 1
    %p300 = scmp.ne.s32.totalorder %s295, %s297
    %p301 = scmp.eq.s32.totalorder %s20, 0
    %p302 = por %p300, %p301
    %p303 = scmp.ne.s32.totalorder %s295, %s297
    %p304 = scmp.eq.s32.totalorder %s25, 1
    %p305 = por %p303, %p304
    %p306 = scmp.ne.s32.totalorder %s297, %s298
    %p307 = scmp.eq.s32.totalorder %s25, 0
    %p308 = por %p306, %p307
    %p309 = scmp.ne.s32.totalorder %s297, %s298
    %p310 = scmp.eq.s32.totalorder %s26, 1
    %p311 = por %p309, %p310
    %p313 = scmp.ne.s32.totalorder %s298, %s312
    %p314 = scmp.eq.s32.totalorder %s26, 0
    %p315 = por %p313, %p314
    %s317 = sadd.s32 %s316, 1
    %p320 = scmp.eq.s32.totalorder %s20, 1
    %p321 = scmp.ne.s32.totalorder %s316, %s318
    %p322 = scmp.eq.s32.totalorder %s20, 0
    %p323 = por %p321, %p322
    %p324 = scmp.ne.s32.totalorder %s316, %s318
    %p325 = scmp.eq.s32.totalorder %s25, 1
    %p326 = por %p324, %p325
    %p327 = scmp.ne.s32.totalorder %s318, %s319
    %p328 = scmp.eq.s32.totalorder %s25, 0
    %p329 = por %p327, %p328
    %p330 = scmp.ne.s32.totalorder %s318, %s319
    %p331 = scmp.eq.s32.totalorder %s26, 1
    %p332 = por %p330, %p331
    %p334 = scmp.ne.s32.totalorder %s319, %s333
    %p335 = scmp.eq.s32.totalorder %s26, 0
    %p336 = por %p334, %p335
    %s337 = ssub.s32 %s20, %s27
    %p338 = scmp.eq.s32.totalorder %s337, 0
    %s340 = sadd.s32 %s339, 1
    %s341 = scalar_select %p338, %s339, %s340
    %p344 = pneg %p338
    %p345 = scmp.eq.s32.totalorder %s20, 1
    %p346 = por %p344, %p345
    %p347 = scmp.ne.s32.totalorder %s339, %s342
    %p348 = scmp.eq.s32.totalorder %s20, 0
    %p349 = por %p347, %p348
    %p350 = scmp.ne.s32.totalorder %s339, %s342
    %p351 = scmp.eq.s32.totalorder %s25, 1
    %p352 = por %p350, %p351
    %p353 = scmp.ne.s32.totalorder %s342, %s343
    %p354 = scmp.eq.s32.totalorder %s25, 0
    %p355 = por %p353, %p354
    %p356 = scmp.ne.s32.totalorder %s342, %s343
    %p357 = scmp.eq.s32.totalorder %s26, 1
    %p358 = por %p356, %p357
    %p360 = scmp.ne.s32.totalorder %s343, %s359
    %p361 = scmp.eq.s32.totalorder %s26, 0
    %p362 = por %p360, %p361
    %p363 = scmp.le.s32.totalorder 1, %s20
    %p364 = scmp.lt.s32.totalorder %s20, 3
    %p365 = pnand %p363, %p364
    %p366 = pneg %p365
    // Predicated region
    $region9: #{msa_pair_attention_layer.6} parent=5 // pred_check
      _
    $region10: #{msa_pair_attention_layer.6} parent=5 // pred_check_branch
      %368 = sbr.rel (%p365) target = $region12
    $region11: #{msa_pair_attention_layer.6} parent=5 // pred_region
      %s369 = ssub.s32 %s20, 1
      // Predicated region
      $region13: #{msa_pair_attention_layer.6} parent=11 // pred_check
        %p370 = pneg %p119
      $region14: #{msa_pair_attention_layer.6} parent=11 // pred_check_branch
        %372 = sbr.rel (%p370) target = $region16
      $region15: #{msa_pair_attention_layer.6} parent=11 // pred_region
        _
      $region16: #{msa_pair_attention_layer.6} parent=11 // pred_fallthru
        _
      // Predicated region
      $region17: #{msa_pair_attention_layer.6} parent=11 // pred_check
        %p373 = pneg %p140
      $region18: #{msa_pair_attention_layer.6} parent=11 // pred_check_branch
        %375 = sbr.rel (%p373) target = $region20
      $region19: #{msa_pair_attention_layer.6} parent=11 // pred_region
        _
      $region20: #{msa_pair_attention_layer.6} parent=11 // pred_fallthru
        _
      // Predicated region
      $region21: #{msa_pair_attention_layer.6} parent=11 // pred_check
        %p376 = pneg %p161
      $region22: #{msa_pair_attention_layer.6} parent=11 // pred_check_branch
        %378 = sbr.rel (%p376) target = $region24
      $region23: #{msa_pair_attention_layer.6} parent=11 // pred_region
        _
      $region24: #{msa_pair_attention_layer.6} parent=11 // pred_fallthru
        _
      // Predicated region
      $region25: #{msa_pair_attention_layer.6} parent=11 // pred_check
        %p379 = pneg %p182
      $region26: #{msa_pair_attention_layer.6} parent=11 // pred_check_branch
        %381 = sbr.rel (%p379) target = $region28
      $region27: #{msa_pair_attention_layer.6} parent=11 // pred_region
        _
      $region28: #{msa_pair_attention_layer.6} parent=11 // pred_fallthru
        _
      // Predicated region
      $region29: #{msa_pair_attention_layer.6} parent=11 // pred_check
        %p382 = pneg %p203
      $region30: #{msa_pair_attention_layer.6} parent=11 // pred_check_branch
        %384 = sbr.rel (%p382) target = $region32
      $region31: #{msa_pair_attention_layer.6} parent=11 // pred_region
        _
      $region32: #{msa_pair_attention_layer.6} parent=11 // pred_fallthru
        _
      // Predicated region
      $region33: #{msa_pair_attention_layer.6} parent=11 // pred_check
        %p385 = pneg %p224
      $region34: #{msa_pair_attention_layer.6} parent=11 // pred_check_branch
        %387 = sbr.rel (%p385) target = $region36
      $region35: #{msa_pair_attention_layer.6} parent=11 // pred_region
        _
      $region36: #{msa_pair_attention_layer.6} parent=11 // pred_fallthru
        _
      // Predicated region
      $region37: #{msa_pair_attention_layer.6} parent=11 // pred_check
        %p388 = pneg %p245
      $region38: #{msa_pair_attention_layer.6} parent=11 // pred_check_branch
        %390 = sbr.rel (%p388) target = $region40
      $region39: #{msa_pair_attention_layer.6} parent=11 // pred_region
        _
      $region40: #{msa_pair_attention_layer.6} parent=11 // pred_fallthru
        _
      // Predicated region
      $region41: #{msa_pair_attention_layer.6} parent=11 // pred_check
        %p391 = pneg %p266
      $region42: #{msa_pair_attention_layer.6} parent=11 // pred_check_branch
        %393 = sbr.rel (%p391) target = $region44
      $region43: #{msa_pair_attention_layer.6} parent=11 // pred_region
        _
      $region44: #{msa_pair_attention_layer.6} parent=11 // pred_fallthru
        _
      // Predicated region
      $region45: #{msa_pair_attention_layer.6} parent=11 // pred_check
        %p394 = pneg %p287
      $region46: #{msa_pair_attention_layer.6} parent=11 // pred_check_branch
        %396 = sbr.rel (%p394) target = $region48
      $region47: #{msa_pair_attention_layer.6} parent=11 // pred_region
        _
      $region48: #{msa_pair_attention_layer.6} parent=11 // pred_fallthru
        _
      // Predicated region
      $region49: #{msa_pair_attention_layer.6} parent=11 // pred_check
        %p397 = pneg %p308
      $region50: #{msa_pair_attention_layer.6} parent=11 // pred_check_branch
        %399 = sbr.rel (%p397) target = $region52
      $region51: #{msa_pair_attention_layer.6} parent=11 // pred_region
        _
      $region52: #{msa_pair_attention_layer.6} parent=11 // pred_fallthru
        _
      // Predicated region
      $region53: #{msa_pair_attention_layer.6} parent=11 // pred_check
        %p400 = pneg %p329
      $region54: #{msa_pair_attention_layer.6} parent=11 // pred_check_branch
        %402 = sbr.rel (%p400) target = $region56
      $region55: #{msa_pair_attention_layer.6} parent=11 // pred_region
        _
      $region56: #{msa_pair_attention_layer.6} parent=11 // pred_fallthru
        _
    $region12: #{msa_pair_attention_layer.6} parent=5 // pred_fallthru
      _
    %p403 = scmp.lt.s32.totalorder %s20, 2
    // Predicated region
    $region57: #{msa_pair_attention_layer.6} parent=5 // pred_check
      %p404 = pneg %p403
    $region58: #{msa_pair_attention_layer.6} parent=5 // pred_check_branch
      %406 = sbr.rel (%p404) target = $region60
    $region59: #{msa_pair_attention_layer.6} parent=5 // pred_region
      // Predicated region
      $region61: #{msa_pair_attention_layer.6} parent=59 // pred_check
        %p407 = pneg %p40
      $region62: #{msa_pair_attention_layer.6} parent=59 // pred_check_branch
        %409 = sbr.rel (%p407) target = $region64
      $region63: #{msa_pair_attention_layer.6} parent=59 // pred_region
        %p410 = scmp.lt.s32.totalorder %s20, 1
        %s411 = scalar_select %p410, %s20, 1
        %s412 = smul.addr %s411, 32
        %s413 = smul.addr %s412, 8
        %s414 = scalar_lea.vmem %s0, %s413
      $region64: #{msa_pair_attention_layer.6} parent=59 // pred_fallthru
        _
      // Predicated region
      $region65: #{msa_pair_attention_layer.6} parent=59 // pred_check
        %p415 = pneg %p66
      $region66: #{msa_pair_attention_layer.6} parent=59 // pred_check_branch
        %417 = sbr.rel (%p415) target = $region68
      $region67: #{msa_pair_attention_layer.6} parent=59 // pred_region
        %p418 = scmp.lt.s32.totalorder %s20, 1
        %s419 = scalar_select %p418, %s20, 1
        %s420 = smul.addr %s419, 32
        %s421 = smul.addr %s420, 8
        %s422 = scalar_lea.vmem %s1, %s421
      $region68: #{msa_pair_attention_layer.6} parent=59 // pred_fallthru
        _
      // Predicated region
      $region69: #{msa_pair_attention_layer.6} parent=59 // pred_check
        %p423 = pneg %p92
      $region70: #{msa_pair_attention_layer.6} parent=59 // pred_check_branch
        %425 = sbr.rel (%p423) target = $region72
      $region71: #{msa_pair_attention_layer.6} parent=59 // pred_region
        %p426 = scmp.lt.s32.totalorder %s20, 1
        %s427 = scalar_select %p426, %s20, 1
        %s428 = smul.addr %s427, 2
        %s429 = smul.addr %s428, 8
        %s430 = scalar_lea.vmem %s2, %s429
      $region72: #{msa_pair_attention_layer.6} parent=59 // pred_fallthru
        _
    $region60: #{msa_pair_attention_layer.6} parent=5 // pred_fallthru
      _
    %p431 = scmp.le.s32.totalorder 1, %s20
    %p432 = scmp.lt.s32.totalorder %s20, 3
    %p433 = pnand %p431, %p432
    %p434 = pneg %p433
    // Predicated region
    $region73: #{msa_pair_attention_layer.6} parent=5 // pred_check
      _
    $region74: #{msa_pair_attention_layer.6} parent=5 // pred_check_branch
      %436 = sbr.rel (%p433) target = $region76
    $region75: #{msa_pair_attention_layer.6} parent=5 // pred_region
      %s437 = ssub.s32 %s20, 1
      %p438 = scmp.lt.s32.totalorder %s25, 1
      %s439 = scalar_select %p438, %s25, 1
      %s440 = smul.addr %s439, 32
      %s441 = smul.addr %s440, 8
      %s442 = scalar_lea.vmem %s0, %s441
      %p443 = pneg %p46
      %p444 = pneg %p43
      %p445 = scmp.lt.s32.totalorder %s25, 1
      %s446 = scalar_select %p445, %s25, 1
      %s447 = smul.addr %s446, 32
      %s448 = smul.addr %s447, 8
      %s449 = scalar_lea.vmem %s1, %s448
      %p450 = pneg %p72
      %p451 = pneg %p69
      %p452 = scmp.lt.s32.totalorder %s25, 1
      %s453 = scalar_select %p452, %s25, 1
      %s454 = smul.addr %s453, 2
      %s455 = smul.addr %s454, 8
      %s456 = scalar_lea.vmem %s2, %s455
      %p457 = pneg %p98
      %p458 = pneg %p95
      %p459 = pneg %p119
      %p460 = pneg %p116
      %p461 = pneg %p140
      %p462 = pneg %p137
      %p463 = pneg %p161
      %p464 = pneg %p158
      %p465 = pneg %p182
      %p466 = pneg %p179
      %p467 = pneg %p203
      %p468 = pneg %p200
      %p469 = pneg %p224
      %p470 = pneg %p221
      %p471 = pneg %p245
      %p472 = pneg %p242
      %p473 = pneg %p266
      %p474 = pneg %p263
      %p475 = pneg %p287
      %p476 = pneg %p284
      %p477 = pneg %p308
      %p478 = pneg %p305
      %p479 = pneg %p329
      %p480 = pneg %p326
      %p481 = pneg %p355
      %p482 = pneg %p352
      %p483 = scmp.lt.s32.totalorder %s25, 1
      %s484 = scalar_select %p483, %s25, 1
      %s485 = smul.addr %s484, 32
      %s486 = smul.addr %s485, 8
      %s487 = scalar_lea.vmem %s14, %s486
      %p488 = scmp.lt.s32.totalorder %s25, 1
      %s489 = scalar_select %p488, %s25, 1
      %s490 = smul.addr %s489, 32
      %s491 = smul.addr %s490, 8
      %s492 = scalar_lea.vmem %s0, %s491
      %p493 = scmp.lt.s32.totalorder %s25, 1
      %s494 = scalar_select %p493, %s25, 1
      %s495 = smul.addr %s494, 32
      %s496 = smul.addr %s495, 8
      %s497 = scalar_lea.vmem %s1, %s496
      %p498 = scmp.lt.s32.totalorder %s25, 1
      %s499 = scalar_select %p498, %s25, 1
      %s500 = smul.addr %s499, 2
      %s501 = smul.addr %s500, 8
      %s502 = scalar_lea.vmem %s2, %s501
      %p503 = scmp.lt.s32.totalorder %s25, 1
      %s504 = scalar_select %p503, %s25, 1
      %s505 = smul.addr %s504, 32
      %s506 = smul.addr %s505, 8
      %s507 = scalar_lea.vmem %s14, %s506
      %v509 = vld [vmem:[%s492] sm:$0xff]
      %v510 = vld [vmem:[%s492 + $0x8] sm:$0xff]
      %v511 = vld [vmem:[%s492 + $0x10] sm:$0xff]
      %v512 = vld [vmem:[%s492 + $0x18] sm:$0xff]
      %v513 = vld [vmem:[%s492 + $0x20] sm:$0xff]
      %v514 = vld [vmem:[%s492 + $0x28] sm:$0xff]
      %v515 = vld [vmem:[%s492 + $0x30] sm:$0xff]
      %v516 = vld [vmem:[%s492 + $0x38] sm:$0xff]
      %v517 = vld [vmem:[%s492 + $0x40] sm:$0xff]
      %v518 = vld [vmem:[%s492 + $0x48] sm:$0xff]
      %v519 = vld [vmem:[%s492 + $0x50] sm:$0xff]
      %v520 = vld [vmem:[%s492 + $0x58] sm:$0xff]
      %v521 = vld [vmem:[%s492 + $0x60] sm:$0xff]
      %v522 = vld [vmem:[%s492 + $0x68] sm:$0xff]
      %v523 = vld [vmem:[%s492 + $0x70] sm:$0xff]
      %v524 = vld [vmem:[%s492 + $0x78] sm:$0xff]
      %v525 = vld [vmem:[%s492 + $0x80] sm:$0xff]
      %v526 = vld [vmem:[%s492 + $0x88] sm:$0xff]
      %v527 = vld [vmem:[%s492 + $0x90] sm:$0xff]
      %v528 = vld [vmem:[%s492 + $0x98] sm:$0xff]
      %v529 = vld [vmem:[%s492 + $0xa0] sm:$0xff]
      %v530 = vld [vmem:[%s492 + $0xa8] sm:$0xff]
      %v531 = vld [vmem:[%s492 + $0xb0] sm:$0xff]
      %v532 = vld [vmem:[%s492 + $0xb8] sm:$0xff]
      %v533 = vld [vmem:[%s492 + $0xc0] sm:$0xff]
      %v534 = vld [vmem:[%s492 + $0xc8] sm:$0xff]
      %v535 = vld [vmem:[%s492 + $0xd0] sm:$0xff]
      %v536 = vld [vmem:[%s492 + $0xd8] sm:$0xff]
      %v537 = vld [vmem:[%s492 + $0xe0] sm:$0xff]
      %v538 = vld [vmem:[%s492 + $0xe8] sm:$0xff]
      %v539 = vld [vmem:[%s492 + $0xf0] sm:$0xff]
      %v540 = vld [vmem:[%s492 + $0xf8] sm:$0xff]
      %v541 = vld [vmem:[%s497] sm:$0xff]
      %v542 = vld [vmem:[%s497 + $0x8] sm:$0xff]
      %v543 = vld [vmem:[%s497 + $0x10] sm:$0xff]
      %v544 = vld [vmem:[%s497 + $0x18] sm:$0xff]
      %v545 = vld [vmem:[%s497 + $0x20] sm:$0xff]
      %v546 = vld [vmem:[%s497 + $0x28] sm:$0xff]
      %v547 = vld [vmem:[%s497 + $0x30] sm:$0xff]
      %v548 = vld [vmem:[%s497 + $0x38] sm:$0xff]
      %v549 = vld [vmem:[%s497 + $0x40] sm:$0xff]
      %v550 = vld [vmem:[%s497 + $0x48] sm:$0xff]
      %v551 = vld [vmem:[%s497 + $0x50] sm:$0xff]
      %v552 = vld [vmem:[%s497 + $0x58] sm:$0xff]
      %v553 = vld [vmem:[%s497 + $0x60] sm:$0xff]
      %v554 = vld [vmem:[%s497 + $0x68] sm:$0xff]
      %v555 = vld [vmem:[%s497 + $0x70] sm:$0xff]
      %v556 = vld [vmem:[%s497 + $0x78] sm:$0xff]
      %v557 = vld [vmem:[%s497 + $0x80] sm:$0xff]
      %v558 = vld [vmem:[%s497 + $0x88] sm:$0xff]
      %v559 = vld [vmem:[%s497 + $0x90] sm:$0xff]
      %v560 = vld [vmem:[%s497 + $0x98] sm:$0xff]
      %v561 = vld [vmem:[%s497 + $0xa0] sm:$0xff]
      %v562 = vld [vmem:[%s497 + $0xa8] sm:$0xff]
      %v563 = vld [vmem:[%s497 + $0xb0] sm:$0xff]
      %v564 = vld [vmem:[%s497 + $0xb8] sm:$0xff]
      %v565 = vld [vmem:[%s497 + $0xc0] sm:$0xff]
      %v566 = vld [vmem:[%s497 + $0xc8] sm:$0xff]
      %v567 = vld [vmem:[%s497 + $0xd0] sm:$0xff]
      %v568 = vld [vmem:[%s497 + $0xd8] sm:$0xff]
      %v569 = vld [vmem:[%s497 + $0xe0] sm:$0xff]
      %v570 = vld [vmem:[%s497 + $0xe8] sm:$0xff]
      %v571 = vld [vmem:[%s497 + $0xf0] sm:$0xff]
      %v572 = vld [vmem:[%s497 + $0xf8] sm:$0xff]
      %v573 = vld [vmem:[%s502] sm:$0xff]
      %v574 = vld [vmem:[%s502 + $0x8] sm:$0xff]
      %v575 = vld [vmem:[%s3] sm:$0xff]
      %v576 = vld [vmem:[%s3 + $0x8] sm:$0xff]
      %v577 = vld [vmem:[%s3 + $0x10] sm:$0xff]
      %v578 = vld [vmem:[%s3 + $0x18] sm:$0xff]
      %v579 = vld [vmem:[%s3 + $0x20] sm:$0xff]
      %v580 = vld [vmem:[%s3 + $0x28] sm:$0xff]
      %v581 = vld [vmem:[%s3 + $0x30] sm:$0xff]
      %v582 = vld [vmem:[%s3 + $0x38] sm:$0xff]
      %v583 = vpack.c.bf16 %v510, %v509
      %v584 = vpack.c.bf16 %v512, %v511
      %v585 = vpack.c.bf16 %v514, %v513
      %v586 = vpack.c.bf16 %v516, %v515
      %v587 = vpack.c.bf16 %v518, %v517
      %v588 = vpack.c.bf16 %v520, %v519
      %v589 = vpack.c.bf16 %v522, %v521
      %v590 = vpack.c.bf16 %v524, %v523
      %v591 = vpack.c.bf16 %v526, %v525
      %v592 = vpack.c.bf16 %v528, %v527
      %v593 = vpack.c.bf16 %v530, %v529
      %v594 = vpack.c.bf16 %v532, %v531
      %v595 = vpack.c.bf16 %v534, %v533
      %v596 = vpack.c.bf16 %v536, %v535
      %v597 = vpack.c.bf16 %v538, %v537
      %v598 = vpack.c.bf16 %v540, %v539
      %v599 = vpack.c.bf16 %v576, %v575
      %v600 = vpack.c.bf16 %v578, %v577
      %v601 = vpack.c.bf16 %v580, %v579
      %v602 = vpack.c.bf16 %v582, %v581
      %v603 = vld [vmem:[%s4] sm:$0x1]
      %v605 = vlaneseq
      %v606 = vshrl.u32 %v605, 7
      %v607 = vsub.s32 0, %v606
      %v608 = vrot.slane %v603, %v607
      %vm610 = vcmask 523264
      %v612 = vsel %vm610, %v583, 0
      %v615 = vsel %vm610, %v584, 0
      %v618 = vsel %vm610, %v585, 0
      %v621 = vsel %vm610, %v586, 0
      %v624 = vsel %vm610, %v587, 0
      %v627 = vsel %vm610, %v588, 0
      %v630 = vsel %vm610, %v589, 0
      %v633 = vsel %vm610, %v590, 0
      %v636 = vsel %vm610, %v591, 0
      %v639 = vsel %vm610, %v592, 0
      %v642 = vsel %vm610, %v593, 0
      %v645 = vsel %vm610, %v594, 0
      %v648 = vsel %vm610, %v595, 0
      %v651 = vsel %vm610, %v596, 0
      %v654 = vsel %vm610, %v597, 0
      %v657 = vsel %vm610, %v598, 0
      %659 = vmatprep.subr.bf16.mxu0 0
      %660 = vmatpush1.bf16.msra.mxu0 0
      %661 = vmatprep.subr.bf16.mxu0 0
      %662 = vmatpush1.bf16.msra.mxu0 0
      %663 = vmatprep.subr.bf16.mxu0 0
      %664 = vmatpush1.bf16.msra.mxu0 0
      %665 = vmatprep.subr.bf16.mxu0 0
      %666 = vmatpush1.bf16.msra.mxu0 0
      %667 = vmatprep.subr.bf16.mxu0 0
      %668 = vmatpush1.bf16.msra.mxu0 %v602
      %669 = vmatprep.subr.bf16.mxu0 0
      %670 = vmatpush1.bf16.msra.mxu0 %v601
      %671 = vmatprep.subr.bf16.mxu0 0
      %672 = vmatpush1.bf16.msra.mxu0 %v600
      %673 = vmatprep.subr.bf16.mxu0 0
      %674 = vmatpush1.bf16.msra.mxu0 %v599
      %675 = vmatprep.subr.bf16.mxu0 0
      %676 = vmatpush2.bf16.msra.mxu0 0
      %677 = vmatprep.subr.bf16.mxu0 0
      %678 = vmatpush2.bf16.msra.mxu0 0
      %679 = vmatprep.subr.bf16.mxu0 0
      %680 = vmatpush2.bf16.msra.mxu0 0
      %681 = vmatprep.subr.bf16.mxu0 0
      %682 = vmatpush2.bf16.msra.mxu0 0
      %683 = vmatprep.subr.bf16.mxu0 0
      %684 = vmatpush2.bf16.msra.mxu0 0
      %685 = vmatprep.subr.bf16.mxu0 0
      %686 = vmatpush2.bf16.msra.mxu0 0
      %687 = vmatprep.subr.bf16.mxu0 0
      %688 = vmatpush2.bf16.msra.mxu0 0
      %689 = vmatprep.subr.bf16.mxu0 0
      %690 = vmatpush2.bf16.msra.mxu0 0
      %691 = vmatprep.mubr.bf16.mxu0 0
      %692 = vmatmul.mubr.bf16.gmra.mxu0 %v612
      %v693 = vpop.f32.mrf.mxu0
      %v694 = vadd.f32 %v608, %v693
      %v695 = vpop.f32.mrf.mxu0
      %v696 = vpop.f32.mrf.mxu0
      %v697 = vadd.f32 %v608, %v696
      %v698 = vpop.f32.mrf.mxu0
      %699 = vmatprep.mubr.bf16.mxu0 0
      %700 = vmatmul.mubr.bf16.gmra.mxu0 %v615
      %v701 = vpop.f32.mrf.mxu0
      %v702 = vadd.f32 %v608, %v701
      %v703 = vpop.f32.mrf.mxu0
      %v704 = vpop.f32.mrf.mxu0
      %v705 = vadd.f32 %v608, %v704
      %v706 = vpop.f32.mrf.mxu0
      %707 = vmatprep.mubr.bf16.mxu0 0
      %708 = vmatmul.mubr.bf16.gmra.mxu0 %v618
      %v709 = vpop.f32.mrf.mxu0
      %v710 = vadd.f32 %v608, %v709
      %v711 = vpop.f32.mrf.mxu0
      %v712 = vpop.f32.mrf.mxu0
      %v713 = vadd.f32 %v608, %v712
      %v714 = vpop.f32.mrf.mxu0
      %715 = vmatprep.mubr.bf16.mxu0 0
      %716 = vmatmul.mubr.bf16.gmra.mxu0 %v621
      %v717 = vpop.f32.mrf.mxu0
      %v718 = vadd.f32 %v608, %v717
      %v719 = vpop.f32.mrf.mxu0
      %v720 = vpop.f32.mrf.mxu0
      %v721 = vadd.f32 %v608, %v720
      %v722 = vpop.f32.mrf.mxu0
      %723 = vmatprep.mubr.bf16.mxu0 0
      %724 = vmatmul.mubr.bf16.gmra.mxu0 %v624
      %v725 = vpop.f32.mrf.mxu0
      %v726 = vadd.f32 %v608, %v725
      %v727 = vpop.f32.mrf.mxu0
      %v728 = vpop.f32.mrf.mxu0
      %v729 = vadd.f32 %v608, %v728
      %v730 = vpop.f32.mrf.mxu0
      %731 = vmatprep.mubr.bf16.mxu0 0
      %732 = vmatmul.mubr.bf16.gmra.mxu0 %v627
      %v733 = vpop.f32.mrf.mxu0
      %v734 = vadd.f32 %v608, %v733
      %v735 = vpop.f32.mrf.mxu0
      %v736 = vpop.f32.mrf.mxu0
      %v737 = vadd.f32 %v608, %v736
      %v738 = vpop.f32.mrf.mxu0
      %739 = vmatprep.mubr.bf16.mxu0 0
      %740 = vmatmul.mubr.bf16.gmra.mxu0 %v630
      %v741 = vpop.f32.mrf.mxu0
      %v742 = vadd.f32 %v608, %v741
      %v743 = vpop.f32.mrf.mxu0
      %v744 = vpop.f32.mrf.mxu0
      %v745 = vadd.f32 %v608, %v744
      %v746 = vpop.f32.mrf.mxu0
      %747 = vmatprep.mubr.bf16.mxu0 0
      %748 = vmatmul.mubr.bf16.gmra.mxu0 %v633
      %v749 = vpop.f32.mrf.mxu0
      %v750 = vadd.f32 %v608, %v749
      %v751 = vpop.f32.mrf.mxu0
      %v752 = vpop.f32.mrf.mxu0
      %v753 = vadd.f32 %v608, %v752
      %v754 = vpop.f32.mrf.mxu0
      %755 = vmatprep.mubr.bf16.mxu0 0
      %756 = vmatmul.mubr.bf16.gmra.mxu0 %v636
      %v757 = vpop.f32.mrf.mxu0
      %v758 = vadd.f32 %v608, %v757
      %v759 = vpop.f32.mrf.mxu0
      %v760 = vpop.f32.mrf.mxu0
      %v761 = vadd.f32 %v608, %v760
      %v762 = vpop.f32.mrf.mxu0
      %763 = vmatprep.mubr.bf16.mxu0 0
      %764 = vmatmul.mubr.bf16.gmra.mxu0 %v639
      %v765 = vpop.f32.mrf.mxu0
      %v766 = vadd.f32 %v608, %v765
      %v767 = vpop.f32.mrf.mxu0
      %v768 = vpop.f32.mrf.mxu0
      %v769 = vadd.f32 %v608, %v768
      %v770 = vpop.f32.mrf.mxu0
      %771 = vmatprep.mubr.bf16.mxu0 0
      %772 = vmatmul.mubr.bf16.gmra.mxu0 %v642
      %v773 = vpop.f32.mrf.mxu0
      %v774 = vadd.f32 %v608, %v773
      %v775 = vpop.f32.mrf.mxu0
      %v776 = vpop.f32.mrf.mxu0
      %v777 = vadd.f32 %v608, %v776
      %v778 = vpop.f32.mrf.mxu0
      %779 = vmatprep.mubr.bf16.mxu0 0
      %780 = vmatmul.mubr.bf16.gmra.mxu0 %v645
      %v781 = vpop.f32.mrf.mxu0
      %v782 = vadd.f32 %v608, %v781
      %v783 = vpop.f32.mrf.mxu0
      %v784 = vpop.f32.mrf.mxu0
      %v785 = vadd.f32 %v608, %v784
      %v786 = vpop.f32.mrf.mxu0
      %787 = vmatprep.mubr.bf16.mxu0 0
      %788 = vmatmul.mubr.bf16.gmra.mxu0 %v648
      %v789 = vpop.f32.mrf.mxu0
      %v790 = vadd.f32 %v608, %v789
      %v791 = vpop.f32.mrf.mxu0
      %v792 = vpop.f32.mrf.mxu0
      %v793 = vadd.f32 %v608, %v792
      %v794 = vpop.f32.mrf.mxu0
      %795 = vmatprep.mubr.bf16.mxu0 0
      %796 = vmatmul.mubr.bf16.gmra.mxu0 %v651
      %v797 = vpop.f32.mrf.mxu0
      %v798 = vadd.f32 %v608, %v797
      %v799 = vpop.f32.mrf.mxu0
      %v800 = vpop.f32.mrf.mxu0
      %v801 = vadd.f32 %v608, %v800
      %v802 = vpop.f32.mrf.mxu0
      %803 = vmatprep.mubr.bf16.mxu0 0
      %804 = vmatmul.mubr.bf16.gmra.mxu0 %v654
      %v805 = vpop.f32.mrf.mxu0
      %v806 = vadd.f32 %v608, %v805
      %v807 = vpop.f32.mrf.mxu0
      %v808 = vpop.f32.mrf.mxu0
      %v809 = vadd.f32 %v608, %v808
      %v810 = vpop.f32.mrf.mxu0
      %811 = vmatprep.mubr.bf16.mxu0 0
      %812 = vmatmul.mubr.bf16.gmra.mxu0 %v657
      %v813 = vpop.f32.mrf.mxu0
      %v814 = vadd.f32 %v608, %v813
      %v815 = vpop.f32.mrf.mxu0
      %v816 = vpop.f32.mrf.mxu0
      %v817 = vadd.f32 %v608, %v816
      %v818 = vpop.f32.mrf.mxu0
      %819 = vdwg.mxu0
      %v820 = vld [vmem:[%s5] sm:$0x1]
      %v821 = vld [vmem:[%s6] sm:$0x1]
      %vm822 = vcmask 130048
      %v823 = vsel %vm822, %v694, 0.0
      %824 = vadd.xlane.f32.xlu0 %v823
      %v825 = vpop.xlane.xlu0 %824
      %v826 = vsel %vm822, %v697, 0.0
      %827 = vadd.xlane.f32.xlu0 %v826
      %v828 = vpop.xlane.xlu0 %827
      %v829 = vsel %vm822, %v702, 0.0
      %830 = vadd.xlane.f32.xlu0 %v829
      %v831 = vpop.xlane.xlu0 %830
      %v832 = vsel %vm822, %v705, 0.0
      %833 = vadd.xlane.f32.xlu0 %v832
      %v834 = vpop.xlane.xlu0 %833
      %v835 = vsel %vm822, %v710, 0.0
      %836 = vadd.xlane.f32.xlu0 %v835
      %v837 = vpop.xlane.xlu0 %836
      %v838 = vsel %vm822, %v713, 0.0
      %839 = vadd.xlane.f32.xlu0 %v838
      %v840 = vpop.xlane.xlu0 %839
      %v841 = vsel %vm822, %v718, 0.0
      %842 = vadd.xlane.f32.xlu0 %v841
      %v843 = vpop.xlane.xlu0 %842
      %v844 = vsel %vm822, %v721, 0.0
      %845 = vadd.xlane.f32.xlu0 %v844
      %v846 = vpop.xlane.xlu0 %845
      %v847 = vsel %vm822, %v726, 0.0
      %848 = vadd.xlane.f32.xlu0 %v847
      %v849 = vpop.xlane.xlu0 %848
      %v850 = vsel %vm822, %v729, 0.0
      %851 = vadd.xlane.f32.xlu0 %v850
      %v852 = vpop.xlane.xlu0 %851
      %v853 = vsel %vm822, %v734, 0.0
      %854 = vadd.xlane.f32.xlu0 %v853
      %v855 = vpop.xlane.xlu0 %854
      %v856 = vsel %vm822, %v737, 0.0
      %857 = vadd.xlane.f32.xlu0 %v856
      %v858 = vpop.xlane.xlu0 %857
      %v859 = vsel %vm822, %v742, 0.0
      %860 = vadd.xlane.f32.xlu0 %v859
      %v861 = vpop.xlane.xlu0 %860
      %v862 = vsel %vm822, %v745, 0.0
      %863 = vadd.xlane.f32.xlu0 %v862
      %v864 = vpop.xlane.xlu0 %863
      %v865 = vsel %vm822, %v750, 0.0
      %866 = vadd.xlane.f32.xlu0 %v865
      %v867 = vpop.xlane.xlu0 %866
      %v868 = vsel %vm822, %v753, 0.0
      %869 = vadd.xlane.f32.xlu0 %v868
      %v870 = vpop.xlane.xlu0 %869
      %v871 = vsel %vm822, %v758, 0.0
      %872 = vadd.xlane.f32.xlu0 %v871
      %v873 = vpop.xlane.xlu0 %872
      %v874 = vsel %vm822, %v761, 0.0
      %875 = vadd.xlane.f32.xlu0 %v874
      %v876 = vpop.xlane.xlu0 %875
      %v877 = vsel %vm822, %v766, 0.0
      %878 = vadd.xlane.f32.xlu0 %v877
      %v879 = vpop.xlane.xlu0 %878
      %v880 = vsel %vm822, %v769, 0.0
      %881 = vadd.xlane.f32.xlu0 %v880
      %v882 = vpop.xlane.xlu0 %881
      %v883 = vsel %vm822, %v774, 0.0
      %884 = vadd.xlane.f32.xlu0 %v883
      %v885 = vpop.xlane.xlu0 %884
      %v886 = vsel %vm822, %v777, 0.0
      %887 = vadd.xlane.f32.xlu0 %v886
      %v888 = vpop.xlane.xlu0 %887
      %v889 = vsel %vm822, %v782, 0.0
      %890 = vadd.xlane.f32.xlu0 %v889
      %v891 = vpop.xlane.xlu0 %890
      %v892 = vsel %vm822, %v785, 0.0
      %893 = vadd.xlane.f32.xlu0 %v892
      %v894 = vpop.xlane.xlu0 %893
      %v895 = vsel %vm822, %v790, 0.0
      %896 = vadd.xlane.f32.xlu0 %v895
      %v897 = vpop.xlane.xlu0 %896
      %v898 = vsel %vm822, %v793, 0.0
      %899 = vadd.xlane.f32.xlu0 %v898
      %v900 = vpop.xlane.xlu0 %899
      %v901 = vsel %vm822, %v798, 0.0
      %902 = vadd.xlane.f32.xlu0 %v901
      %v903 = vpop.xlane.xlu0 %902
      %v904 = vsel %vm822, %v801, 0.0
      %905 = vadd.xlane.f32.xlu0 %v904
      %v906 = vpop.xlane.xlu0 %905
      %v907 = vsel %vm822, %v806, 0.0
      %908 = vadd.xlane.f32.xlu0 %v907
      %v909 = vpop.xlane.xlu0 %908
      %v910 = vsel %vm822, %v809, 0.0
      %911 = vadd.xlane.f32.xlu0 %v910
      %v912 = vpop.xlane.xlu0 %911
      %v913 = vsel %vm822, %v814, 0.0
      %914 = vadd.xlane.f32.xlu0 %v913
      %v915 = vpop.xlane.xlu0 %914
      %v916 = vsel %vm822, %v817, 0.0
      %917 = vadd.xlane.f32.xlu0 %v916
      %v918 = vpop.xlane.xlu0 %917
      %v919 = vrcp.pop 16.0
      %v920 = vmul.f32 %v825, %v919
      %v921 = vmul.f32 %v828, %v919
      %v922 = vmul.f32 %v831, %v919
      %v923 = vmul.f32 %v834, %v919
      %v924 = vmul.f32 %v837, %v919
      %v925 = vmul.f32 %v840, %v919
      %v926 = vmul.f32 %v843, %v919
      %v927 = vmul.f32 %v846, %v919
      %v928 = vmul.f32 %v849, %v919
      %v929 = vmul.f32 %v852, %v919
      %v930 = vmul.f32 %v855, %v919
      %v931 = vmul.f32 %v858, %v919
      %v932 = vmul.f32 %v861, %v919
      %v933 = vmul.f32 %v864, %v919
      %v934 = vmul.f32 %v867, %v919
      %v935 = vmul.f32 %v870, %v919
      %v936 = vmul.f32 %v873, %v919
      %v937 = vmul.f32 %v876, %v919
      %v938 = vmul.f32 %v879, %v919
      %v939 = vmul.f32 %v882, %v919
      %v940 = vmul.f32 %v885, %v919
      %v941 = vmul.f32 %v888, %v919
      %v942 = vmul.f32 %v891, %v919
      %v943 = vmul.f32 %v894, %v919
      %v944 = vmul.f32 %v897, %v919
      %v945 = vmul.f32 %v900, %v919
      %v946 = vmul.f32 %v903, %v919
      %v947 = vmul.f32 %v906, %v919
      %v948 = vmul.f32 %v909, %v919
      %v949 = vmul.f32 %v912, %v919
      %v950 = vmul.f32 %v915, %v919
      %v951 = vmul.f32 %v918, %v919
      %v952 = vsub.f32 %v694, %v920
      %v953 = vsub.f32 %v697, %v921
      %v954 = vsub.f32 %v702, %v922
      %v955 = vsub.f32 %v705, %v923
      %v956 = vsub.f32 %v710, %v924
      %v957 = vsub.f32 %v713, %v925
      %v958 = vsub.f32 %v718, %v926
      %v959 = vsub.f32 %v721, %v927
      %v960 = vsub.f32 %v726, %v928
      %v961 = vsub.f32 %v729, %v929
      %v962 = vsub.f32 %v734, %v930
      %v963 = vsub.f32 %v737, %v931
      %v964 = vsub.f32 %v742, %v932
      %v965 = vsub.f32 %v745, %v933
      %v966 = vsub.f32 %v750, %v934
      %v967 = vsub.f32 %v753, %v935
      %v968 = vsub.f32 %v758, %v936
      %v969 = vsub.f32 %v761, %v937
      %v970 = vsub.f32 %v766, %v938
      %v971 = vsub.f32 %v769, %v939
      %v972 = vsub.f32 %v774, %v940
      %v973 = vsub.f32 %v777, %v941
      %v974 = vsub.f32 %v782, %v942
      %v975 = vsub.f32 %v785, %v943
      %v976 = vsub.f32 %v790, %v944
      %v977 = vsub.f32 %v793, %v945
      %v978 = vsub.f32 %v798, %v946
      %v979 = vsub.f32 %v801, %v947
      %v980 = vsub.f32 %v806, %v948
      %v981 = vsub.f32 %v809, %v949
      %v982 = vsub.f32 %v814, %v950
      %v983 = vsub.f32 %v817, %v951
      %v984 = vmul.f32 %v952, %v952
      %v985 = vmul.f32 %v953, %v953
      %v986 = vmul.f32 %v954, %v954
      %v987 = vmul.f32 %v955, %v955
      %v988 = vmul.f32 %v956, %v956
      %v989 = vmul.f32 %v957, %v957
      %v990 = vmul.f32 %v958, %v958
      %v991 = vmul.f32 %v959, %v959
      %v992 = vmul.f32 %v960, %v960
      %v993 = vmul.f32 %v961, %v961
      %v994 = vmul.f32 %v962, %v962
      %v995 = vmul.f32 %v963, %v963
      %v996 = vmul.f32 %v964, %v964
      %v997 = vmul.f32 %v965, %v965
      %v998 = vmul.f32 %v966, %v966
      %v999 = vmul.f32 %v967, %v967
      %v1000 = vmul.f32 %v968, %v968
      %v1001 = vmul.f32 %v969, %v969
      %v1002 = vmul.f32 %v970, %v970
      %v1003 = vmul.f32 %v971, %v971
      %v1004 = vmul.f32 %v972, %v972
      %v1005 = vmul.f32 %v973, %v973
      %v1006 = vmul.f32 %v974, %v974
      %v1007 = vmul.f32 %v975, %v975
      %v1008 = vmul.f32 %v976, %v976
      %v1009 = vmul.f32 %v977, %v977
      %v1010 = vmul.f32 %v978, %v978
      %v1011 = vmul.f32 %v979, %v979
      %v1012 = vmul.f32 %v980, %v980
      %v1013 = vmul.f32 %v981, %v981
      %v1014 = vmul.f32 %v982, %v982
      %v1015 = vmul.f32 %v983, %v983
      %v1016 = vsel %vm822, %v984, 0.0
      %1017 = vadd.xlane.f32.xlu0 %v1016
      %v1018 = vpop.xlane.xlu0 %1017
      %v1019 = vsel %vm822, %v985, 0.0
      %1020 = vadd.xlane.f32.xlu0 %v1019
      %v1021 = vpop.xlane.xlu0 %1020
      %v1022 = vsel %vm822, %v986, 0.0
      %1023 = vadd.xlane.f32.xlu0 %v1022
      %v1024 = vpop.xlane.xlu0 %1023
      %v1025 = vsel %vm822, %v987, 0.0
      %1026 = vadd.xlane.f32.xlu0 %v1025
      %v1027 = vpop.xlane.xlu0 %1026
      %v1028 = vsel %vm822, %v988, 0.0
      %1029 = vadd.xlane.f32.xlu0 %v1028
      %v1030 = vpop.xlane.xlu0 %1029
      %v1031 = vsel %vm822, %v989, 0.0
      %1032 = vadd.xlane.f32.xlu0 %v1031
      %v1033 = vpop.xlane.xlu0 %1032
      %v1034 = vsel %vm822, %v990, 0.0
      %1035 = vadd.xlane.f32.xlu0 %v1034
      %v1036 = vpop.xlane.xlu0 %1035
      %v1037 = vsel %vm822, %v991, 0.0
      %1038 = vadd.xlane.f32.xlu0 %v1037
      %v1039 = vpop.xlane.xlu0 %1038
      %v1040 = vsel %vm822, %v992, 0.0
      %1041 = vadd.xlane.f32.xlu0 %v1040
      %v1042 = vpop.xlane.xlu0 %1041
      %v1043 = vsel %vm822, %v993, 0.0
      %1044 = vadd.xlane.f32.xlu0 %v1043
      %v1045 = vpop.xlane.xlu0 %1044
      %v1046 = vsel %vm822, %v994, 0.0
      %1047 = vadd.xlane.f32.xlu0 %v1046
      %v1048 = vpop.xlane.xlu0 %1047
      %v1049 = vsel %vm822, %v995, 0.0
      %1050 = vadd.xlane.f32.xlu0 %v1049
      %v1051 = vpop.xlane.xlu0 %1050
      %v1052 = vsel %vm822, %v996, 0.0
      %1053 = vadd.xlane.f32.xlu0 %v1052
      %v1054 = vpop.xlane.xlu0 %1053
      %v1055 = vsel %vm822, %v997, 0.0
      %1056 = vadd.xlane.f32.xlu0 %v1055
      %v1057 = vpop.xlane.xlu0 %1056
      %v1058 = vsel %vm822, %v998, 0.0
      %1059 = vadd.xlane.f32.xlu0 %v1058
      %v1060 = vpop.xlane.xlu0 %1059
      %v1061 = vsel %vm822, %v999, 0.0
      %1062 = vadd.xlane.f32.xlu0 %v1061
      %v1063 = vpop.xlane.xlu0 %1062
      %v1064 = vsel %vm822, %v1000, 0.0
      %1065 = vadd.xlane.f32.xlu0 %v1064
      %v1066 = vpop.xlane.xlu0 %1065
      %v1067 = vsel %vm822, %v1001, 0.0
      %1068 = vadd.xlane.f32.xlu0 %v1067
      %v1069 = vpop.xlane.xlu0 %1068
      %v1070 = vsel %vm822, %v1002, 0.0
      %1071 = vadd.xlane.f32.xlu0 %v1070
      %v1072 = vpop.xlane.xlu0 %1071
      %v1073 = vsel %vm822, %v1003, 0.0
      %1074 = vadd.xlane.f32.xlu0 %v1073
      %v1075 = vpop.xlane.xlu0 %1074
      %v1076 = vsel %vm822, %v1004, 0.0
      %1077 = vadd.xlane.f32.xlu0 %v1076
      %v1078 = vpop.xlane.xlu0 %1077
      %v1079 = vsel %vm822, %v1005, 0.0
      %1080 = vadd.xlane.f32.xlu0 %v1079
      %v1081 = vpop.xlane.xlu0 %1080
      %v1082 = vsel %vm822, %v1006, 0.0
      %1083 = vadd.xlane.f32.xlu0 %v1082
      %v1084 = vpop.xlane.xlu0 %1083
      %v1085 = vsel %vm822, %v1007, 0.0
      %1086 = vadd.xlane.f32.xlu0 %v1085
      %v1087 = vpop.xlane.xlu0 %1086
      %v1088 = vsel %vm822, %v1008, 0.0
      %1089 = vadd.xlane.f32.xlu0 %v1088
      %v1090 = vpop.xlane.xlu0 %1089
      %v1091 = vsel %vm822, %v1009, 0.0
      %1092 = vadd.xlane.f32.xlu0 %v1091
      %v1093 = vpop.xlane.xlu0 %1092
      %v1094 = vsel %vm822, %v1010, 0.0
      %1095 = vadd.xlane.f32.xlu0 %v1094
      %v1096 = vpop.xlane.xlu0 %1095
      %v1097 = vsel %vm822, %v1011, 0.0
      %1098 = vadd.xlane.f32.xlu0 %v1097
      %v1099 = vpop.xlane.xlu0 %1098
      %v1100 = vsel %vm822, %v1012, 0.0
      %1101 = vadd.xlane.f32.xlu0 %v1100
      %v1102 = vpop.xlane.xlu0 %1101
      %v1103 = vsel %vm822, %v1013, 0.0
      %1104 = vadd.xlane.f32.xlu0 %v1103
      %v1105 = vpop.xlane.xlu0 %1104
      %v1106 = vsel %vm822, %v1014, 0.0
      %1107 = vadd.xlane.f32.xlu0 %v1106
      %v1108 = vpop.xlane.xlu0 %1107
      %v1109 = vsel %vm822, %v1015, 0.0
      %1110 = vadd.xlane.f32.xlu0 %v1109
      %v1111 = vpop.xlane.xlu0 %1110
      %v1112 = vmul.f32 %v1018, %v919
      %v1113 = vmul.f32 %v1021, %v919
      %v1114 = vmul.f32 %v1024, %v919
      %v1115 = vmul.f32 %v1027, %v919
      %v1116 = vmul.f32 %v1030, %v919
      %v1117 = vmul.f32 %v1033, %v919
      %v1118 = vmul.f32 %v1036, %v919
      %v1119 = vmul.f32 %v1039, %v919
      %v1120 = vmul.f32 %v1042, %v919
      %v1121 = vmul.f32 %v1045, %v919
      %v1122 = vmul.f32 %v1048, %v919
      %v1123 = vmul.f32 %v1051, %v919
      %v1124 = vmul.f32 %v1054, %v919
      %v1125 = vmul.f32 %v1057, %v919
      %v1126 = vmul.f32 %v1060, %v919
      %v1127 = vmul.f32 %v1063, %v919
      %v1128 = vmul.f32 %v1066, %v919
      %v1129 = vmul.f32 %v1069, %v919
      %v1130 = vmul.f32 %v1072, %v919
      %v1131 = vmul.f32 %v1075, %v919
      %v1132 = vmul.f32 %v1078, %v919
      %v1133 = vmul.f32 %v1081, %v919
      %v1134 = vmul.f32 %v1084, %v919
      %v1135 = vmul.f32 %v1087, %v919
      %v1136 = vmul.f32 %v1090, %v919
      %v1137 = vmul.f32 %v1093, %v919
      %v1138 = vmul.f32 %v1096, %v919
      %v1139 = vmul.f32 %v1099, %v919
      %v1140 = vmul.f32 %v1102, %v919
      %v1141 = vmul.f32 %v1105, %v919
      %v1142 = vmul.f32 %v1108, %v919
      %v1143 = vmul.f32 %v1111, %v919
      %v1144 = vadd.f32 %v1112, 1e-05
      %v1145 = vadd.f32 %v1113, 1e-05
      %v1146 = vadd.f32 %v1114, 1e-05
      %v1147 = vadd.f32 %v1115, 1e-05
      %v1148 = vadd.f32 %v1116, 1e-05
      %v1149 = vadd.f32 %v1117, 1e-05
      %v1150 = vadd.f32 %v1118, 1e-05
      %v1151 = vadd.f32 %v1119, 1e-05
      %v1152 = vadd.f32 %v1120, 1e-05
      %v1153 = vadd.f32 %v1121, 1e-05
      %v1154 = vadd.f32 %v1122, 1e-05
      %v1155 = vadd.f32 %v1123, 1e-05
      %v1156 = vadd.f32 %v1124, 1e-05
      %v1157 = vadd.f32 %v1125, 1e-05
      %v1158 = vadd.f32 %v1126, 1e-05
      %v1159 = vadd.f32 %v1127, 1e-05
      %v1160 = vadd.f32 %v1128, 1e-05
      %v1161 = vadd.f32 %v1129, 1e-05
      %v1162 = vadd.f32 %v1130, 1e-05
      %v1163 = vadd.f32 %v1131, 1e-05
      %v1164 = vadd.f32 %v1132, 1e-05
      %v1165 = vadd.f32 %v1133, 1e-05
      %v1166 = vadd.f32 %v1134, 1e-05
      %v1167 = vadd.f32 %v1135, 1e-05
      %v1168 = vadd.f32 %v1136, 1e-05
      %v1169 = vadd.f32 %v1137, 1e-05
      %v1170 = vadd.f32 %v1138, 1e-05
      %v1171 = vadd.f32 %v1139, 1e-05
      %v1172 = vadd.f32 %v1140, 1e-05
      %v1173 = vadd.f32 %v1141, 1e-05
      %v1174 = vadd.f32 %v1142, 1e-05
      %v1175 = vadd.f32 %v1143, 1e-05
      %v1176 = vrsqrt.pop %v1144
      %v1177 = vrsqrt.pop %v1145
      %v1178 = vrsqrt.pop %v1146
      %v1179 = vrsqrt.pop %v1147
      %v1180 = vrsqrt.pop %v1148
      %v1181 = vrsqrt.pop %v1149
      %v1182 = vrsqrt.pop %v1150
      %v1183 = vrsqrt.pop %v1151
      %v1184 = vrsqrt.pop %v1152
      %v1185 = vrsqrt.pop %v1153
      %v1186 = vrsqrt.pop %v1154
      %v1187 = vrsqrt.pop %v1155
      %v1188 = vrsqrt.pop %v1156
      %v1189 = vrsqrt.pop %v1157
      %v1190 = vrsqrt.pop %v1158
      %v1191 = vrsqrt.pop %v1159
      %v1192 = vrsqrt.pop %v1160
      %v1193 = vrsqrt.pop %v1161
      %v1194 = vrsqrt.pop %v1162
      %v1195 = vrsqrt.pop %v1163
      %v1196 = vrsqrt.pop %v1164
      %v1197 = vrsqrt.pop %v1165
      %v1198 = vrsqrt.pop %v1166
      %v1199 = vrsqrt.pop %v1167
      %v1200 = vrsqrt.pop %v1168
      %v1201 = vrsqrt.pop %v1169
      %v1202 = vrsqrt.pop %v1170
      %v1203 = vrsqrt.pop %v1171
      %v1204 = vrsqrt.pop %v1172
      %v1205 = vrsqrt.pop %v1173
      %v1206 = vrsqrt.pop %v1174
      %v1207 = vrsqrt.pop %v1175
      %v1208 = vmul.f32 %v952, %v1176
      %v1209 = vmul.f32 %v953, %v1177
      %v1210 = vmul.f32 %v954, %v1178
      %v1211 = vmul.f32 %v955, %v1179
      %v1212 = vmul.f32 %v956, %v1180
      %v1213 = vmul.f32 %v957, %v1181
      %v1214 = vmul.f32 %v958, %v1182
      %v1215 = vmul.f32 %v959, %v1183
      %v1216 = vmul.f32 %v960, %v1184
      %v1217 = vmul.f32 %v961, %v1185
      %v1218 = vmul.f32 %v962, %v1186
      %v1219 = vmul.f32 %v963, %v1187
      %v1220 = vmul.f32 %v964, %v1188
      %v1221 = vmul.f32 %v965, %v1189
      %v1222 = vmul.f32 %v966, %v1190
      %v1223 = vmul.f32 %v967, %v1191
      %v1224 = vmul.f32 %v968, %v1192
      %v1225 = vmul.f32 %v969, %v1193
      %v1226 = vmul.f32 %v970, %v1194
      %v1227 = vmul.f32 %v971, %v1195
      %v1228 = vmul.f32 %v972, %v1196
      %v1229 = vmul.f32 %v973, %v1197
      %v1230 = vmul.f32 %v974, %v1198
      %v1231 = vmul.f32 %v975, %v1199
      %v1232 = vmul.f32 %v976, %v1200
      %v1233 = vmul.f32 %v977, %v1201
      %v1234 = vmul.f32 %v978, %v1202
      %v1235 = vmul.f32 %v979, %v1203
      %v1236 = vmul.f32 %v980, %v1204
      %v1237 = vmul.f32 %v981, %v1205
      %v1238 = vmul.f32 %v982, %v1206
      %v1239 = vmul.f32 %v983, %v1207
      %v1241 = vlaneseq
      %v1242 = vshrl.u32 %v1241, 7
      %v1243 = vsub.s32 0, %v1242
      %v1244 = vrot.slane %v820, %v1243
      %v1246 = vmul.f32 %v1208, %v1244
      %v1247 = vmul.f32 %v1209, %v1244
      %v1248 = vmul.f32 %v1210, %v1244
      %v1249 = vmul.f32 %v1211, %v1244
      %v1250 = vmul.f32 %v1212, %v1244
      %v1251 = vmul.f32 %v1213, %v1244
      %v1252 = vmul.f32 %v1214, %v1244
      %v1253 = vmul.f32 %v1215, %v1244
      %v1254 = vmul.f32 %v1216, %v1244
      %v1255 = vmul.f32 %v1217, %v1244
      %v1256 = vmul.f32 %v1218, %v1244
      %v1257 = vmul.f32 %v1219, %v1244
      %v1258 = vmul.f32 %v1220, %v1244
      %v1259 = vmul.f32 %v1221, %v1244
      %v1260 = vmul.f32 %v1222, %v1244
      %v1261 = vmul.f32 %v1223, %v1244
      %v1262 = vmul.f32 %v1224, %v1244
      %v1263 = vmul.f32 %v1225, %v1244
      %v1264 = vmul.f32 %v1226, %v1244
      %v1265 = vmul.f32 %v1227, %v1244
      %v1266 = vmul.f32 %v1228, %v1244
      %v1267 = vmul.f32 %v1229, %v1244
      %v1268 = vmul.f32 %v1230, %v1244
      %v1269 = vmul.f32 %v1231, %v1244
      %v1270 = vmul.f32 %v1232, %v1244
      %v1271 = vmul.f32 %v1233, %v1244
      %v1272 = vmul.f32 %v1234, %v1244
      %v1273 = vmul.f32 %v1235, %v1244
      %v1274 = vmul.f32 %v1236, %v1244
      %v1275 = vmul.f32 %v1237, %v1244
      %v1276 = vmul.f32 %v1238, %v1244
      %v1277 = vmul.f32 %v1239, %v1244
      %v1279 = vlaneseq
      %v1280 = vshrl.u32 %v1279, 7
      %v1281 = vsub.s32 0, %v1280
      %v1282 = vrot.slane %v821, %v1281
      %v1284 = vadd.f32 %v1246, %v1282
      %v1285 = vadd.f32 %v1247, %v1282
      %v1286 = vadd.f32 %v1248, %v1282
      %v1287 = vadd.f32 %v1249, %v1282
      %v1288 = vadd.f32 %v1250, %v1282
      %v1289 = vadd.f32 %v1251, %v1282
      %v1290 = vadd.f32 %v1252, %v1282
      %v1291 = vadd.f32 %v1253, %v1282
      %v1292 = vadd.f32 %v1254, %v1282
      %v1293 = vadd.f32 %v1255, %v1282
      %v1294 = vadd.f32 %v1256, %v1282
      %v1295 = vadd.f32 %v1257, %v1282
      %v1296 = vadd.f32 %v1258, %v1282
      %v1297 = vadd.f32 %v1259, %v1282
      %v1298 = vadd.f32 %v1260, %v1282
      %v1299 = vadd.f32 %v1261, %v1282
      %v1300 = vadd.f32 %v1262, %v1282
      %v1301 = vadd.f32 %v1263, %v1282
      %v1302 = vadd.f32 %v1264, %v1282
      %v1303 = vadd.f32 %v1265, %v1282
      %v1304 = vadd.f32 %v1266, %v1282
      %v1305 = vadd.f32 %v1267, %v1282
      %v1306 = vadd.f32 %v1268, %v1282
      %v1307 = vadd.f32 %v1269, %v1282
      %v1308 = vadd.f32 %v1270, %v1282
      %v1309 = vadd.f32 %v1271, %v1282
      %v1310 = vadd.f32 %v1272, %v1282
      %v1311 = vadd.f32 %v1273, %v1282
      %v1312 = vadd.f32 %v1274, %v1282
      %v1313 = vadd.f32 %v1275, %v1282
      %v1314 = vadd.f32 %v1276, %v1282
      %v1315 = vadd.f32 %v1277, %v1282
      %v1316 = vld [vmem:[%s7] sm:$0x1]
      %v1317 = vld [vmem:[%s8] sm:$0x1]
      %v1318 = vsel %vm822, %v541, 0.0
      %1319 = vadd.xlane.f32.xlu0 %v1318
      %v1320 = vpop.xlane.xlu0 %1319
      %v1321 = vsel %vm822, %v542, 0.0
      %1322 = vadd.xlane.f32.xlu0 %v1321
      %v1323 = vpop.xlane.xlu0 %1322
      %v1324 = vsel %vm822, %v543, 0.0
      %1325 = vadd.xlane.f32.xlu0 %v1324
      %v1326 = vpop.xlane.xlu0 %1325
      %v1327 = vsel %vm822, %v544, 0.0
      %1328 = vadd.xlane.f32.xlu0 %v1327
      %v1329 = vpop.xlane.xlu0 %1328
      %v1330 = vsel %vm822, %v545, 0.0
      %1331 = vadd.xlane.f32.xlu0 %v1330
      %v1332 = vpop.xlane.xlu0 %1331
      %v1333 = vsel %vm822, %v546, 0.0
      %1334 = vadd.xlane.f32.xlu0 %v1333
      %v1335 = vpop.xlane.xlu0 %1334
      %v1336 = vsel %vm822, %v547, 0.0
      %1337 = vadd.xlane.f32.xlu0 %v1336
      %v1338 = vpop.xlane.xlu0 %1337
      %v1339 = vsel %vm822, %v548, 0.0
      %1340 = vadd.xlane.f32.xlu0 %v1339
      %v1341 = vpop.xlane.xlu0 %1340
      %v1342 = vsel %vm822, %v549, 0.0
      %1343 = vadd.xlane.f32.xlu0 %v1342
      %v1344 = vpop.xlane.xlu0 %1343
      %v1345 = vsel %vm822, %v550, 0.0
      %1346 = vadd.xlane.f32.xlu0 %v1345
      %v1347 = vpop.xlane.xlu0 %1346
      %v1348 = vsel %vm822, %v551, 0.0
      %1349 = vadd.xlane.f32.xlu0 %v1348
      %v1350 = vpop.xlane.xlu0 %1349
      %v1351 = vsel %vm822, %v552, 0.0
      %1352 = vadd.xlane.f32.xlu0 %v1351
      %v1353 = vpop.xlane.xlu0 %1352
      %v1354 = vsel %vm822, %v553, 0.0
      %1355 = vadd.xlane.f32.xlu0 %v1354
      %v1356 = vpop.xlane.xlu0 %1355
      %v1357 = vsel %vm822, %v554, 0.0
      %1358 = vadd.xlane.f32.xlu0 %v1357
      %v1359 = vpop.xlane.xlu0 %1358
      %v1360 = vsel %vm822, %v555, 0.0
      %1361 = vadd.xlane.f32.xlu0 %v1360
      %v1362 = vpop.xlane.xlu0 %1361
      %v1363 = vsel %vm822, %v556, 0.0
      %1364 = vadd.xlane.f32.xlu0 %v1363
      %v1365 = vpop.xlane.xlu0 %1364
      %v1366 = vsel %vm822, %v557, 0.0
      %1367 = vadd.xlane.f32.xlu0 %v1366
      %v1368 = vpop.xlane.xlu0 %1367
      %v1369 = vsel %vm822, %v558, 0.0
      %1370 = vadd.xlane.f32.xlu0 %v1369
      %v1371 = vpop.xlane.xlu0 %1370
      %v1372 = vsel %vm822, %v559, 0.0
      %1373 = vadd.xlane.f32.xlu0 %v1372
      %v1374 = vpop.xlane.xlu0 %1373
      %v1375 = vsel %vm822, %v560, 0.0
      %1376 = vadd.xlane.f32.xlu0 %v1375
      %v1377 = vpop.xlane.xlu0 %1376
      %v1378 = vsel %vm822, %v561, 0.0
      %1379 = vadd.xlane.f32.xlu0 %v1378
      %v1380 = vpop.xlane.xlu0 %1379
      %v1381 = vsel %vm822, %v562, 0.0
      %1382 = vadd.xlane.f32.xlu0 %v1381
      %v1383 = vpop.xlane.xlu0 %1382
      %v1384 = vsel %vm822, %v563, 0.0
      %1385 = vadd.xlane.f32.xlu0 %v1384
      %v1386 = vpop.xlane.xlu0 %1385
      %v1387 = vsel %vm822, %v564, 0.0
      %1388 = vadd.xlane.f32.xlu0 %v1387
      %v1389 = vpop.xlane.xlu0 %1388
      %v1390 = vsel %vm822, %v565, 0.0
      %1391 = vadd.xlane.f32.xlu0 %v1390
      %v1392 = vpop.xlane.xlu0 %1391
      %v1393 = vsel %vm822, %v566, 0.0
      %1394 = vadd.xlane.f32.xlu0 %v1393
      %v1395 = vpop.xlane.xlu0 %1394
      %v1396 = vsel %vm822, %v567, 0.0
      %1397 = vadd.xlane.f32.xlu0 %v1396
      %v1398 = vpop.xlane.xlu0 %1397
      %v1399 = vsel %vm822, %v568, 0.0
      %1400 = vadd.xlane.f32.xlu0 %v1399
      %v1401 = vpop.xlane.xlu0 %1400
      %v1402 = vsel %vm822, %v569, 0.0
      %1403 = vadd.xlane.f32.xlu0 %v1402
      %v1404 = vpop.xlane.xlu0 %1403
      %v1405 = vsel %vm822, %v570, 0.0
      %1406 = vadd.xlane.f32.xlu0 %v1405
      %v1407 = vpop.xlane.xlu0 %1406
      %v1408 = vsel %vm822, %v571, 0.0
      %1409 = vadd.xlane.f32.xlu0 %v1408
      %v1410 = vpop.xlane.xlu0 %1409
      %v1411 = vsel %vm822, %v572, 0.0
      %1412 = vadd.xlane.f32.xlu0 %v1411
      %v1413 = vpop.xlane.xlu0 %1412
      %v1414 = vmul.f32 %v1320, %v919
      %v1415 = vmul.f32 %v1323, %v919
      %v1416 = vmul.f32 %v1326, %v919
      %v1417 = vmul.f32 %v1329, %v919
      %v1418 = vmul.f32 %v1332, %v919
      %v1419 = vmul.f32 %v1335, %v919
      %v1420 = vmul.f32 %v1338, %v919
      %v1421 = vmul.f32 %v1341, %v919
      %v1422 = vmul.f32 %v1344, %v919
      %v1423 = vmul.f32 %v1347, %v919
      %v1424 = vmul.f32 %v1350, %v919
      %v1425 = vmul.f32 %v1353, %v919
      %v1426 = vmul.f32 %v1356, %v919
      %v1427 = vmul.f32 %v1359, %v919
      %v1428 = vmul.f32 %v1362, %v919
      %v1429 = vmul.f32 %v1365, %v919
      %v1430 = vmul.f32 %v1368, %v919
      %v1431 = vmul.f32 %v1371, %v919
      %v1432 = vmul.f32 %v1374, %v919
      %v1433 = vmul.f32 %v1377, %v919
      %v1434 = vmul.f32 %v1380, %v919
      %v1435 = vmul.f32 %v1383, %v919
      %v1436 = vmul.f32 %v1386, %v919
      %v1437 = vmul.f32 %v1389, %v919
      %v1438 = vmul.f32 %v1392, %v919
      %v1439 = vmul.f32 %v1395, %v919
      %v1440 = vmul.f32 %v1398, %v919
      %v1441 = vmul.f32 %v1401, %v919
      %v1442 = vmul.f32 %v1404, %v919
      %v1443 = vmul.f32 %v1407, %v919
      %v1444 = vmul.f32 %v1410, %v919
      %v1445 = vmul.f32 %v1413, %v919
      %v1446 = vsub.f32 %v541, %v1414
      %v1447 = vsub.f32 %v542, %v1415
      %v1448 = vsub.f32 %v543, %v1416
      %v1449 = vsub.f32 %v544, %v1417
      %v1450 = vsub.f32 %v545, %v1418
      %v1451 = vsub.f32 %v546, %v1419
      %v1452 = vsub.f32 %v547, %v1420
      %v1453 = vsub.f32 %v548, %v1421
      %v1454 = vsub.f32 %v549, %v1422
      %v1455 = vsub.f32 %v550, %v1423
      %v1456 = vsub.f32 %v551, %v1424
      %v1457 = vsub.f32 %v552, %v1425
      %v1458 = vsub.f32 %v553, %v1426
      %v1459 = vsub.f32 %v554, %v1427
      %v1460 = vsub.f32 %v555, %v1428
      %v1461 = vsub.f32 %v556, %v1429
      %v1462 = vsub.f32 %v557, %v1430
      %v1463 = vsub.f32 %v558, %v1431
      %v1464 = vsub.f32 %v559, %v1432
      %v1465 = vsub.f32 %v560, %v1433
      %v1466 = vsub.f32 %v561, %v1434
      %v1467 = vsub.f32 %v562, %v1435
      %v1468 = vsub.f32 %v563, %v1436
      %v1469 = vsub.f32 %v564, %v1437
      %v1470 = vsub.f32 %v565, %v1438
      %v1471 = vsub.f32 %v566, %v1439
      %v1472 = vsub.f32 %v567, %v1440
      %v1473 = vsub.f32 %v568, %v1441
      %v1474 = vsub.f32 %v569, %v1442
      %v1475 = vsub.f32 %v570, %v1443
      %v1476 = vsub.f32 %v571, %v1444
      %v1477 = vsub.f32 %v572, %v1445
      %v1478 = vmul.f32 %v1446, %v1446
      %v1479 = vmul.f32 %v1447, %v1447
      %v1480 = vmul.f32 %v1448, %v1448
      %v1481 = vmul.f32 %v1449, %v1449
      %v1482 = vmul.f32 %v1450, %v1450
      %v1483 = vmul.f32 %v1451, %v1451
      %v1484 = vmul.f32 %v1452, %v1452
      %v1485 = vmul.f32 %v1453, %v1453
      %v1486 = vmul.f32 %v1454, %v1454
      %v1487 = vmul.f32 %v1455, %v1455
      %v1488 = vmul.f32 %v1456, %v1456
      %v1489 = vmul.f32 %v1457, %v1457
      %v1490 = vmul.f32 %v1458, %v1458
      %v1491 = vmul.f32 %v1459, %v1459
      %v1492 = vmul.f32 %v1460, %v1460
      %v1493 = vmul.f32 %v1461, %v1461
      %v1494 = vmul.f32 %v1462, %v1462
      %v1495 = vmul.f32 %v1463, %v1463
      %v1496 = vmul.f32 %v1464, %v1464
      %v1497 = vmul.f32 %v1465, %v1465
      %v1498 = vmul.f32 %v1466, %v1466
      %v1499 = vmul.f32 %v1467, %v1467
      %v1500 = vmul.f32 %v1468, %v1468
      %v1501 = vmul.f32 %v1469, %v1469
      %v1502 = vmul.f32 %v1470, %v1470
      %v1503 = vmul.f32 %v1471, %v1471
      %v1504 = vmul.f32 %v1472, %v1472
      %v1505 = vmul.f32 %v1473, %v1473
      %v1506 = vmul.f32 %v1474, %v1474
      %v1507 = vmul.f32 %v1475, %v1475
      %v1508 = vmul.f32 %v1476, %v1476
      %v1509 = vmul.f32 %v1477, %v1477
      %v1510 = vsel %vm822, %v1478, 0.0
      %1511 = vadd.xlane.f32.xlu0 %v1510
      %v1512 = vpop.xlane.xlu0 %1511
      %v1513 = vsel %vm822, %v1479, 0.0
      %1514 = vadd.xlane.f32.xlu0 %v1513
      %v1515 = vpop.xlane.xlu0 %1514
      %v1516 = vsel %vm822, %v1480, 0.0
      %1517 = vadd.xlane.f32.xlu0 %v1516
      %v1518 = vpop.xlane.xlu0 %1517
      %v1519 = vsel %vm822, %v1481, 0.0
      %1520 = vadd.xlane.f32.xlu0 %v1519
      %v1521 = vpop.xlane.xlu0 %1520
      %v1522 = vsel %vm822, %v1482, 0.0
      %1523 = vadd.xlane.f32.xlu0 %v1522
      %v1524 = vpop.xlane.xlu0 %1523
      %v1525 = vsel %vm822, %v1483, 0.0
      %1526 = vadd.xlane.f32.xlu0 %v1525
      %v1527 = vpop.xlane.xlu0 %1526
      %v1528 = vsel %vm822, %v1484, 0.0
      %1529 = vadd.xlane.f32.xlu0 %v1528
      %v1530 = vpop.xlane.xlu0 %1529
      %v1531 = vsel %vm822, %v1485, 0.0
      %1532 = vadd.xlane.f32.xlu0 %v1531
      %v1533 = vpop.xlane.xlu0 %1532
      %v1534 = vsel %vm822, %v1486, 0.0
      %1535 = vadd.xlane.f32.xlu0 %v1534
      %v1536 = vpop.xlane.xlu0 %1535
      %v1537 = vsel %vm822, %v1487, 0.0
      %1538 = vadd.xlane.f32.xlu0 %v1537
      %v1539 = vpop.xlane.xlu0 %1538
      %v1540 = vsel %vm822, %v1488, 0.0
      %1541 = vadd.xlane.f32.xlu0 %v1540
      %v1542 = vpop.xlane.xlu0 %1541
      %v1543 = vsel %vm822, %v1489, 0.0
      %1544 = vadd.xlane.f32.xlu0 %v1543
      %v1545 = vpop.xlane.xlu0 %1544
      %v1546 = vsel %vm822, %v1490, 0.0
      %1547 = vadd.xlane.f32.xlu0 %v1546
      %v1548 = vpop.xlane.xlu0 %1547
      %v1549 = vsel %vm822, %v1491, 0.0
      %1550 = vadd.xlane.f32.xlu0 %v1549
      %v1551 = vpop.xlane.xlu0 %1550
      %v1552 = vsel %vm822, %v1492, 0.0
      %1553 = vadd.xlane.f32.xlu0 %v1552
      %v1554 = vpop.xlane.xlu0 %1553
      %v1555 = vsel %vm822, %v1493, 0.0
      %1556 = vadd.xlane.f32.xlu0 %v1555
      %v1557 = vpop.xlane.xlu0 %1556
      %v1558 = vsel %vm822, %v1494, 0.0
      %1559 = vadd.xlane.f32.xlu0 %v1558
      %v1560 = vpop.xlane.xlu0 %1559
      %v1561 = vsel %vm822, %v1495, 0.0
      %1562 = vadd.xlane.f32.xlu0 %v1561
      %v1563 = vpop.xlane.xlu0 %1562
      %v1564 = vsel %vm822, %v1496, 0.0
      %1565 = vadd.xlane.f32.xlu0 %v1564
      %v1566 = vpop.xlane.xlu0 %1565
      %v1567 = vsel %vm822, %v1497, 0.0
      %1568 = vadd.xlane.f32.xlu0 %v1567
      %v1569 = vpop.xlane.xlu0 %1568
      %v1570 = vsel %vm822, %v1498, 0.0
      %1571 = vadd.xlane.f32.xlu0 %v1570
      %v1572 = vpop.xlane.xlu0 %1571
      %v1573 = vsel %vm822, %v1499, 0.0
      %1574 = vadd.xlane.f32.xlu0 %v1573
      %v1575 = vpop.xlane.xlu0 %1574
      %v1576 = vsel %vm822, %v1500, 0.0
      %1577 = vadd.xlane.f32.xlu0 %v1576
      %v1578 = vpop.xlane.xlu0 %1577
      %v1579 = vsel %vm822, %v1501, 0.0
      %1580 = vadd.xlane.f32.xlu0 %v1579
      %v1581 = vpop.xlane.xlu0 %1580
      %v1582 = vsel %vm822, %v1502, 0.0
      %1583 = vadd.xlane.f32.xlu0 %v1582
      %v1584 = vpop.xlane.xlu0 %1583
      %v1585 = vsel %vm822, %v1503, 0.0
      %1586 = vadd.xlane.f32.xlu0 %v1585
      %v1587 = vpop.xlane.xlu0 %1586
      %v1588 = vsel %vm822, %v1504, 0.0
      %1589 = vadd.xlane.f32.xlu0 %v1588
      %v1590 = vpop.xlane.xlu0 %1589
      %v1591 = vsel %vm822, %v1505, 0.0
      %1592 = vadd.xlane.f32.xlu0 %v1591
      %v1593 = vpop.xlane.xlu0 %1592
      %v1594 = vsel %vm822, %v1506, 0.0
      %1595 = vadd.xlane.f32.xlu0 %v1594
      %v1596 = vpop.xlane.xlu0 %1595
      %v1597 = vsel %vm822, %v1507, 0.0
      %1598 = vadd.xlane.f32.xlu0 %v1597
      %v1599 = vpop.xlane.xlu0 %1598
      %v1600 = vsel %vm822, %v1508, 0.0
      %1601 = vadd.xlane.f32.xlu0 %v1600
      %v1602 = vpop.xlane.xlu0 %1601
      %v1603 = vsel %vm822, %v1509, 0.0
      %1604 = vadd.xlane.f32.xlu0 %v1603
      %v1605 = vpop.xlane.xlu0 %1604
      %v1606 = vmul.f32 %v1512, %v919
      %v1607 = vmul.f32 %v1515, %v919
      %v1608 = vmul.f32 %v1518, %v919
      %v1609 = vmul.f32 %v1521, %v919
      %v1610 = vmul.f32 %v1524, %v919
      %v1611 = vmul.f32 %v1527, %v919
      %v1612 = vmul.f32 %v1530, %v919
      %v1613 = vmul.f32 %v1533, %v919
      %v1614 = vmul.f32 %v1536, %v919
      %v1615 = vmul.f32 %v1539, %v919
      %v1616 = vmul.f32 %v1542, %v919
      %v1617 = vmul.f32 %v1545, %v919
      %v1618 = vmul.f32 %v1548, %v919
      %v1619 = vmul.f32 %v1551, %v919
      %v1620 = vmul.f32 %v1554, %v919
      %v1621 = vmul.f32 %v1557, %v919
      %v1622 = vmul.f32 %v1560, %v919
      %v1623 = vmul.f32 %v1563, %v919
      %v1624 = vmul.f32 %v1566, %v919
      %v1625 = vmul.f32 %v1569, %v919
      %v1626 = vmul.f32 %v1572, %v919
      %v1627 = vmul.f32 %v1575, %v919
      %v1628 = vmul.f32 %v1578, %v919
      %v1629 = vmul.f32 %v1581, %v919
      %v1630 = vmul.f32 %v1584, %v919
      %v1631 = vmul.f32 %v1587, %v919
      %v1632 = vmul.f32 %v1590, %v919
      %v1633 = vmul.f32 %v1593, %v919
      %v1634 = vmul.f32 %v1596, %v919
      %v1635 = vmul.f32 %v1599, %v919
      %v1636 = vmul.f32 %v1602, %v919
      %v1637 = vmul.f32 %v1605, %v919
      %v1638 = vadd.f32 %v1606, 1e-05
      %v1639 = vadd.f32 %v1607, 1e-05
      %v1640 = vadd.f32 %v1608, 1e-05
      %v1641 = vadd.f32 %v1609, 1e-05
      %v1642 = vadd.f32 %v1610, 1e-05
      %v1643 = vadd.f32 %v1611, 1e-05
      %v1644 = vadd.f32 %v1612, 1e-05
      %v1645 = vadd.f32 %v1613, 1e-05
      %v1646 = vadd.f32 %v1614, 1e-05
      %v1647 = vadd.f32 %v1615, 1e-05
      %v1648 = vadd.f32 %v1616, 1e-05
      %v1649 = vadd.f32 %v1617, 1e-05
      %v1650 = vadd.f32 %v1618, 1e-05
      %v1651 = vadd.f32 %v1619, 1e-05
      %v1652 = vadd.f32 %v1620, 1e-05
      %v1653 = vadd.f32 %v1621, 1e-05
      %v1654 = vadd.f32 %v1622, 1e-05
      %v1655 = vadd.f32 %v1623, 1e-05
      %v1656 = vadd.f32 %v1624, 1e-05
      %v1657 = vadd.f32 %v1625, 1e-05
      %v1658 = vadd.f32 %v1626, 1e-05
      %v1659 = vadd.f32 %v1627, 1e-05
      %v1660 = vadd.f32 %v1628, 1e-05
      %v1661 = vadd.f32 %v1629, 1e-05
      %v1662 = vadd.f32 %v1630, 1e-05
      %v1663 = vadd.f32 %v1631, 1e-05
      %v1664 = vadd.f32 %v1632, 1e-05
      %v1665 = vadd.f32 %v1633, 1e-05
      %v1666 = vadd.f32 %v1634, 1e-05
      %v1667 = vadd.f32 %v1635, 1e-05
      %v1668 = vadd.f32 %v1636, 1e-05
      %v1669 = vadd.f32 %v1637, 1e-05
      %v1670 = vrsqrt.pop %v1638
      %v1671 = vrsqrt.pop %v1639
      %v1672 = vrsqrt.pop %v1640
      %v1673 = vrsqrt.pop %v1641
      %v1674 = vrsqrt.pop %v1642
      %v1675 = vrsqrt.pop %v1643
      %v1676 = vrsqrt.pop %v1644
      %v1677 = vrsqrt.pop %v1645
      %v1678 = vrsqrt.pop %v1646
      %v1679 = vrsqrt.pop %v1647
      %v1680 = vrsqrt.pop %v1648
      %v1681 = vrsqrt.pop %v1649
      %v1682 = vrsqrt.pop %v1650
      %v1683 = vrsqrt.pop %v1651
      %v1684 = vrsqrt.pop %v1652
      %v1685 = vrsqrt.pop %v1653
      %v1686 = vrsqrt.pop %v1654
      %v1687 = vrsqrt.pop %v1655
      %v1688 = vrsqrt.pop %v1656
      %v1689 = vrsqrt.pop %v1657
      %v1690 = vrsqrt.pop %v1658
      %v1691 = vrsqrt.pop %v1659
      %v1692 = vrsqrt.pop %v1660
      %v1693 = vrsqrt.pop %v1661
      %v1694 = vrsqrt.pop %v1662
      %v1695 = vrsqrt.pop %v1663
      %v1696 = vrsqrt.pop %v1664
      %v1697 = vrsqrt.pop %v1665
      %v1698 = vrsqrt.pop %v1666
      %v1699 = vrsqrt.pop %v1667
      %v1700 = vrsqrt.pop %v1668
      %v1701 = vrsqrt.pop %v1669
      %v1702 = vmul.f32 %v1446, %v1670
      %v1703 = vmul.f32 %v1447, %v1671
      %v1704 = vmul.f32 %v1448, %v1672
      %v1705 = vmul.f32 %v1449, %v1673
      %v1706 = vmul.f32 %v1450, %v1674
      %v1707 = vmul.f32 %v1451, %v1675
      %v1708 = vmul.f32 %v1452, %v1676
      %v1709 = vmul.f32 %v1453, %v1677
      %v1710 = vmul.f32 %v1454, %v1678
      %v1711 = vmul.f32 %v1455, %v1679
      %v1712 = vmul.f32 %v1456, %v1680
      %v1713 = vmul.f32 %v1457, %v1681
      %v1714 = vmul.f32 %v1458, %v1682
      %v1715 = vmul.f32 %v1459, %v1683
      %v1716 = vmul.f32 %v1460, %v1684
      %v1717 = vmul.f32 %v1461, %v1685
      %v1718 = vmul.f32 %v1462, %v1686
      %v1719 = vmul.f32 %v1463, %v1687
      %v1720 = vmul.f32 %v1464, %v1688
      %v1721 = vmul.f32 %v1465, %v1689
      %v1722 = vmul.f32 %v1466, %v1690
      %v1723 = vmul.f32 %v1467, %v1691
      %v1724 = vmul.f32 %v1468, %v1692
      %v1725 = vmul.f32 %v1469, %v1693
      %v1726 = vmul.f32 %v1470, %v1694
      %v1727 = vmul.f32 %v1471, %v1695
      %v1728 = vmul.f32 %v1472, %v1696
      %v1729 = vmul.f32 %v1473, %v1697
      %v1730 = vmul.f32 %v1474, %v1698
      %v1731 = vmul.f32 %v1475, %v1699
      %v1732 = vmul.f32 %v1476, %v1700
      %v1733 = vmul.f32 %v1477, %v1701
      %v1735 = vlaneseq
      %v1736 = vshrl.u32 %v1735, 7
      %v1737 = vsub.s32 0, %v1736
      %v1738 = vrot.slane %v1316, %v1737
      %v1740 = vmul.f32 %v1702, %v1738
      %v1741 = vmul.f32 %v1703, %v1738
      %v1742 = vmul.f32 %v1704, %v1738
      %v1743 = vmul.f32 %v1705, %v1738
      %v1744 = vmul.f32 %v1706, %v1738
      %v1745 = vmul.f32 %v1707, %v1738
      %v1746 = vmul.f32 %v1708, %v1738
      %v1747 = vmul.f32 %v1709, %v1738
      %v1748 = vmul.f32 %v1710, %v1738
      %v1749 = vmul.f32 %v1711, %v1738
      %v1750 = vmul.f32 %v1712, %v1738
      %v1751 = vmul.f32 %v1713, %v1738
      %v1752 = vmul.f32 %v1714, %v1738
      %v1753 = vmul.f32 %v1715, %v1738
      %v1754 = vmul.f32 %v1716, %v1738
      %v1755 = vmul.f32 %v1717, %v1738
      %v1756 = vmul.f32 %v1718, %v1738
      %v1757 = vmul.f32 %v1719, %v1738
      %v1758 = vmul.f32 %v1720, %v1738
      %v1759 = vmul.f32 %v1721, %v1738
      %v1760 = vmul.f32 %v1722, %v1738
      %v1761 = vmul.f32 %v1723, %v1738
      %v1762 = vmul.f32 %v1724, %v1738
      %v1763 = vmul.f32 %v1725, %v1738
      %v1764 = vmul.f32 %v1726, %v1738
      %v1765 = vmul.f32 %v1727, %v1738
      %v1766 = vmul.f32 %v1728, %v1738
      %v1767 = vmul.f32 %v1729, %v1738
      %v1768 = vmul.f32 %v1730, %v1738
      %v1769 = vmul.f32 %v1731, %v1738
      %v1770 = vmul.f32 %v1732, %v1738
      %v1771 = vmul.f32 %v1733, %v1738
      %v1773 = vlaneseq
      %v1774 = vshrl.u32 %v1773, 7
      %v1775 = vsub.s32 0, %v1774
      %v1776 = vrot.slane %v1317, %v1775
      %v1778 = vadd.f32 %v1740, %v1776
      %v1779 = vadd.f32 %v1741, %v1776
      %v1780 = vadd.f32 %v1742, %v1776
      %v1781 = vadd.f32 %v1743, %v1776
      %v1782 = vadd.f32 %v1744, %v1776
      %v1783 = vadd.f32 %v1745, %v1776
      %v1784 = vadd.f32 %v1746, %v1776
      %v1785 = vadd.f32 %v1747, %v1776
      %v1786 = vadd.f32 %v1748, %v1776
      %v1787 = vadd.f32 %v1749, %v1776
      %v1788 = vadd.f32 %v1750, %v1776
      %v1789 = vadd.f32 %v1751, %v1776
      %v1790 = vadd.f32 %v1752, %v1776
      %v1791 = vadd.f32 %v1753, %v1776
      %v1792 = vadd.f32 %v1754, %v1776
      %v1793 = vadd.f32 %v1755, %v1776
      %v1794 = vadd.f32 %v1756, %v1776
      %v1795 = vadd.f32 %v1757, %v1776
      %v1796 = vadd.f32 %v1758, %v1776
      %v1797 = vadd.f32 %v1759, %v1776
      %v1798 = vadd.f32 %v1760, %v1776
      %v1799 = vadd.f32 %v1761, %v1776
      %v1800 = vadd.f32 %v1762, %v1776
      %v1801 = vadd.f32 %v1763, %v1776
      %v1802 = vadd.f32 %v1764, %v1776
      %v1803 = vadd.f32 %v1765, %v1776
      %v1804 = vadd.f32 %v1766, %v1776
      %v1805 = vadd.f32 %v1767, %v1776
      %v1806 = vadd.f32 %v1768, %v1776
      %v1807 = vadd.f32 %v1769, %v1776
      %v1808 = vadd.f32 %v1770, %v1776
      %v1809 = vadd.f32 %v1771, %v1776
      %v1810 = vld [vmem:[%s9] sm:$0xff]
      %v1811 = vpack.c.bf16 %v574, %v573
      %v1812 = vpack.c.bf16 %v1810, %v1810
      %vm1813 = vcmask 64512
      %v1815 = vsel %vm1813, %v1811, 0
      %vm1817 = vcmask 1043456
      %v1819 = vsel %vm1817, %v1812, 0
      %1821 = vmatprep.subr.bf16.mxu0 0
      %1822 = vmatpush1.bf16.msra.mxu0 0
      %1823 = vmatprep.subr.bf16.mxu0 0
      %1824 = vmatpush1.bf16.msra.mxu0 0
      %1825 = vmatprep.subr.bf16.mxu0 0
      %1826 = vmatpush1.bf16.msra.mxu0 0
      %1827 = vmatprep.subr.bf16.mxu0 0
      %1828 = vmatpush1.bf16.msra.mxu0 0
      %1829 = vmatprep.subr.bf16.mxu0 0
      %1830 = vmatpush1.bf16.msra.mxu0 0
      %1831 = vmatprep.subr.bf16.mxu0 0
      %1832 = vmatpush1.bf16.msra.mxu0 0
      %1833 = vmatprep.subr.bf16.mxu0 0
      %1834 = vmatpush1.bf16.msra.mxu0 0
      %1835 = vmatprep.subr.bf16.mxu0 0
      %1836 = vmatpush1.bf16.msra.mxu0 %v1819
      %1837 = vmatprep.subr.bf16.mxu0 0
      %1838 = vmatpush2.bf16.msra.mxu0 0
      %1839 = vmatprep.subr.bf16.mxu0 0
      %1840 = vmatpush2.bf16.msra.mxu0 0
      %1841 = vmatprep.subr.bf16.mxu0 0
      %1842 = vmatpush2.bf16.msra.mxu0 0
      %1843 = vmatprep.subr.bf16.mxu0 0
      %1844 = vmatpush2.bf16.msra.mxu0 0
      %1845 = vmatprep.subr.bf16.mxu0 0
      %1846 = vmatpush2.bf16.msra.mxu0 0
      %1847 = vmatprep.subr.bf16.mxu0 0
      %1848 = vmatpush2.bf16.msra.mxu0 0
      %1849 = vmatprep.subr.bf16.mxu0 0
      %1850 = vmatpush2.bf16.msra.mxu0 0
      %1851 = vmatprep.subr.bf16.mxu0 0
      %1852 = vmatpush2.bf16.msra.mxu0 0
      %1853 = vmatprep.mubr.bf16.mxu0 0
      %1854 = vmatmul.mubr.bf16.gmra.mxu0 %v1815
      %v1855 = vpop.f32.mrf.mxu0
      %v1856 = vadd.f32 0.0, %v1855
      %v1857 = vpop.f32.mrf.mxu0
      %v1858 = vpop.f32.mrf.mxu0
      %v1859 = vadd.f32 0.0, %v1858
      %v1860 = vpop.f32.mrf.mxu0
      %1861 = vdwg.mxu0
      %v1862 = vld [vmem:[%s10] sm:$0xff]
      %v1863 = vpack.c.bf16 %v1862, %v1862
      %v1865 = vsel %vm1817, %v1863, 0
      %1867 = vmatprep.subr.bf16.mxu0 0
      %1868 = vmatpush1.bf16.msra.mxu0 0
      %1869 = vmatprep.subr.bf16.mxu0 0
      %1870 = vmatpush1.bf16.msra.mxu0 0
      %1871 = vmatprep.subr.bf16.mxu0 0
      %1872 = vmatpush1.bf16.msra.mxu0 0
      %1873 = vmatprep.subr.bf16.mxu0 0
      %1874 = vmatpush1.bf16.msra.mxu0 0
      %1875 = vmatprep.subr.bf16.mxu0 0
      %1876 = vmatpush1.bf16.msra.mxu0 0
      %1877 = vmatprep.subr.bf16.mxu0 0
      %1878 = vmatpush1.bf16.msra.mxu0 0
      %1879 = vmatprep.subr.bf16.mxu0 0
      %1880 = vmatpush1.bf16.msra.mxu0 0
      %1881 = vmatprep.subr.bf16.mxu0 0
      %1882 = vmatpush1.bf16.msra.mxu0 %v1865
      %1883 = vmatprep.subr.bf16.mxu0 0
      %1884 = vmatpush2.bf16.msra.mxu0 0
      %1885 = vmatprep.subr.bf16.mxu0 0
      %1886 = vmatpush2.bf16.msra.mxu0 0
      %1887 = vmatprep.subr.bf16.mxu0 0
      %1888 = vmatpush2.bf16.msra.mxu0 0
      %1889 = vmatprep.subr.bf16.mxu0 0
      %1890 = vmatpush2.bf16.msra.mxu0 0
      %1891 = vmatprep.subr.bf16.mxu0 0
      %1892 = vmatpush2.bf16.msra.mxu0 0
      %1893 = vmatprep.subr.bf16.mxu0 0
      %1894 = vmatpush2.bf16.msra.mxu0 0
      %1895 = vmatprep.subr.bf16.mxu0 0
      %1896 = vmatpush2.bf16.msra.mxu0 0
      %1897 = vmatprep.subr.bf16.mxu0 0
      %1898 = vmatpush2.bf16.msra.mxu0 0
      %1899 = vmatprep.mubr.bf16.mxu0 0
      %1900 = vmatmul.mubr.bf16.gmra.mxu0 %v1815
      %v1901 = vpop.f32.mrf.mxu0
      %v1902 = vadd.f32 0.0, %v1901
      %v1903 = vpop.f32.mrf.mxu0
      %v1904 = vpop.f32.mrf.mxu0
      %v1905 = vadd.f32 0.0, %v1904
      %v1906 = vpop.f32.mrf.mxu0
      %1907 = vdwg.mxu0
      %v1908 = vld [vmem:[%s11] sm:$0xff]
      %v1909 = vld [vmem:[%s11 + $0x8] sm:$0xff]
      %v1910 = vpack.c.bf16 %v1285, %v1284
      %v1911 = vpack.c.bf16 %v1287, %v1286
      %v1912 = vpack.c.bf16 %v1289, %v1288
      %v1913 = vpack.c.bf16 %v1291, %v1290
      %v1914 = vpack.c.bf16 %v1293, %v1292
      %v1915 = vpack.c.bf16 %v1295, %v1294
      %v1916 = vpack.c.bf16 %v1297, %v1296
      %v1917 = vpack.c.bf16 %v1299, %v1298
      %v1918 = vpack.c.bf16 %v1301, %v1300
      %v1919 = vpack.c.bf16 %v1303, %v1302
      %v1920 = vpack.c.bf16 %v1305, %v1304
      %v1921 = vpack.c.bf16 %v1307, %v1306
      %v1922 = vpack.c.bf16 %v1309, %v1308
      %v1923 = vpack.c.bf16 %v1311, %v1310
      %v1924 = vpack.c.bf16 %v1313, %v1312
      %v1925 = vpack.c.bf16 %v1315, %v1314
      %v1926 = vpack.c.bf16 %v1909, %v1908
      %v1927 = vld [vmem:[%s12] sm:$0xff]
      %v1928 = vld [vmem:[%s12 + $0x8] sm:$0xff]
      %v1929 = vpack.c.bf16 %v1779, %v1778
      %v1930 = vpack.c.bf16 %v1781, %v1780
      %v1931 = vpack.c.bf16 %v1783, %v1782
      %v1932 = vpack.c.bf16 %v1785, %v1784
      %v1933 = vpack.c.bf16 %v1787, %v1786
      %v1934 = vpack.c.bf16 %v1789, %v1788
      %v1935 = vpack.c.bf16 %v1791, %v1790
      %v1936 = vpack.c.bf16 %v1793, %v1792
      %v1937 = vpack.c.bf16 %v1795, %v1794
      %v1938 = vpack.c.bf16 %v1797, %v1796
      %v1939 = vpack.c.bf16 %v1799, %v1798
      %v1940 = vpack.c.bf16 %v1801, %v1800
      %v1941 = vpack.c.bf16 %v1803, %v1802
      %v1942 = vpack.c.bf16 %v1805, %v1804
      %v1943 = vpack.c.bf16 %v1807, %v1806
      %v1944 = vpack.c.bf16 %v1809, %v1808
      %v1945 = vpack.c.bf16 %v1928, %v1927
      %v1947 = vsel %vm822, %v1929, 0
      %v1950 = vsel %vm822, %v1930, 0
      %v1953 = vsel %vm822, %v1931, 0
      %v1956 = vsel %vm822, %v1932, 0
      %v1959 = vsel %vm822, %v1933, 0
      %v1962 = vsel %vm822, %v1934, 0
      %v1965 = vsel %vm822, %v1935, 0
      %v1968 = vsel %vm822, %v1936, 0
      %v1971 = vsel %vm822, %v1937, 0
      %v1974 = vsel %vm822, %v1938, 0
      %v1977 = vsel %vm822, %v1939, 0
      %v1980 = vsel %vm822, %v1940, 0
      %v1983 = vsel %vm822, %v1941, 0
      %v1986 = vsel %vm822, %v1942, 0
      %v1989 = vsel %vm822, %v1943, 0
      %v1992 = vsel %vm822, %v1944, 0
      %1994 = vmatprep.subr.bf16.mxu0 0
      %1995 = vmatpush1.bf16.msra.mxu0 0
      %1996 = vmatprep.subr.bf16.mxu0 0
      %1997 = vmatpush1.bf16.msra.mxu0 0
      %1998 = vmatprep.subr.bf16.mxu0 0
      %1999 = vmatpush1.bf16.msra.mxu0 0
      %2000 = vmatprep.subr.bf16.mxu0 0
      %2001 = vmatpush1.bf16.msra.mxu0 0
      %2002 = vmatprep.subr.bf16.mxu0 0
      %2003 = vmatpush1.bf16.msra.mxu0 0
      %2004 = vmatprep.subr.bf16.mxu0 0
      %2005 = vmatpush1.bf16.msra.mxu0 0
      %2006 = vmatprep.subr.bf16.mxu0 0
      %2007 = vmatpush1.bf16.msra.mxu0 0
      %2008 = vmatprep.subr.bf16.mxu0 0
      %2009 = vmatpush1.bf16.msra.mxu0 %v1945
      %2010 = vmatprep.subr.bf16.mxu0 0
      %2011 = vmatpush2.bf16.msra.mxu0 0
      %2012 = vmatprep.subr.bf16.mxu0 0
      %2013 = vmatpush2.bf16.msra.mxu0 0
      %2014 = vmatprep.subr.bf16.mxu0 0
      %2015 = vmatpush2.bf16.msra.mxu0 0
      %2016 = vmatprep.subr.bf16.mxu0 0
      %2017 = vmatpush2.bf16.msra.mxu0 0
      %2018 = vmatprep.subr.bf16.mxu0 0
      %2019 = vmatpush2.bf16.msra.mxu0 0
      %2020 = vmatprep.subr.bf16.mxu0 0
      %2021 = vmatpush2.bf16.msra.mxu0 0
      %2022 = vmatprep.subr.bf16.mxu0 0
      %2023 = vmatpush2.bf16.msra.mxu0 0
      %2024 = vmatprep.subr.bf16.mxu0 0
      %2025 = vmatpush2.bf16.msra.mxu0 0
      %2026 = vmatprep.mubr.bf16.mxu0 0
      %2027 = vmatmul.mubr.bf16.gmra.mxu0 %v1947
      %v2028 = vpop.f32.mrf.mxu0
      %v2029 = vadd.f32 0.0, %v2028
      %v2030 = vpop.f32.mrf.mxu0
      %v2031 = vpop.f32.mrf.mxu0
      %v2032 = vadd.f32 0.0, %v2031
      %v2033 = vpop.f32.mrf.mxu0
      %2034 = vmatprep.mubr.bf16.mxu0 0
      %2035 = vmatmul.mubr.bf16.gmra.mxu0 %v1950
      %v2036 = vpop.f32.mrf.mxu0
      %v2037 = vadd.f32 0.0, %v2036
      %v2038 = vpop.f32.mrf.mxu0
      %v2039 = vpop.f32.mrf.mxu0
      %v2040 = vadd.f32 0.0, %v2039
      %v2041 = vpop.f32.mrf.mxu0
      %2042 = vmatprep.mubr.bf16.mxu0 0
      %2043 = vmatmul.mubr.bf16.gmra.mxu0 %v1953
      %v2044 = vpop.f32.mrf.mxu0
      %v2045 = vadd.f32 0.0, %v2044
      %v2046 = vpop.f32.mrf.mxu0
      %v2047 = vpop.f32.mrf.mxu0
      %v2048 = vadd.f32 0.0, %v2047
      %v2049 = vpop.f32.mrf.mxu0
      %2050 = vmatprep.mubr.bf16.mxu0 0
      %2051 = vmatmul.mubr.bf16.gmra.mxu0 %v1956
      %v2052 = vpop.f32.mrf.mxu0
      %v2053 = vadd.f32 0.0, %v2052
      %v2054 = vpop.f32.mrf.mxu0
      %v2055 = vpop.f32.mrf.mxu0
      %v2056 = vadd.f32 0.0, %v2055
      %v2057 = vpop.f32.mrf.mxu0
      %2058 = vmatprep.mubr.bf16.mxu0 0
      %2059 = vmatmul.mubr.bf16.gmra.mxu0 %v1959
      %v2060 = vpop.f32.mrf.mxu0
      %v2061 = vadd.f32 0.0, %v2060
      %v2062 = vpop.f32.mrf.mxu0
      %v2063 = vpop.f32.mrf.mxu0
      %v2064 = vadd.f32 0.0, %v2063
      %v2065 = vpop.f32.mrf.mxu0
      %2066 = vmatprep.mubr.bf16.mxu0 0
      %2067 = vmatmul.mubr.bf16.gmra.mxu0 %v1962
      %v2068 = vpop.f32.mrf.mxu0
      %v2069 = vadd.f32 0.0, %v2068
      %v2070 = vpop.f32.mrf.mxu0
      %v2071 = vpop.f32.mrf.mxu0
      %v2072 = vadd.f32 0.0, %v2071
      %v2073 = vpop.f32.mrf.mxu0
      %2074 = vmatprep.mubr.bf16.mxu0 0
      %2075 = vmatmul.mubr.bf16.gmra.mxu0 %v1965
      %v2076 = vpop.f32.mrf.mxu0
      %v2077 = vadd.f32 0.0, %v2076
      %v2078 = vpop.f32.mrf.mxu0
      %v2079 = vpop.f32.mrf.mxu0
      %v2080 = vadd.f32 0.0, %v2079
      %v2081 = vpop.f32.mrf.mxu0
      %2082 = vmatprep.mubr.bf16.mxu0 0
      %2083 = vmatmul.mubr.bf16.gmra.mxu0 %v1968
      %v2084 = vpop.f32.mrf.mxu0
      %v2085 = vadd.f32 0.0, %v2084
      %v2086 = vpop.f32.mrf.mxu0
      %v2087 = vpop.f32.mrf.mxu0
      %v2088 = vadd.f32 0.0, %v2087
      %v2089 = vpop.f32.mrf.mxu0
      %2090 = vmatprep.mubr.bf16.mxu0 0
      %2091 = vmatmul.mubr.bf16.gmra.mxu0 %v1971
      %v2092 = vpop.f32.mrf.mxu0
      %v2093 = vadd.f32 0.0, %v2092
      %v2094 = vpop.f32.mrf.mxu0
      %v2095 = vpop.f32.mrf.mxu0
      %v2096 = vadd.f32 0.0, %v2095
      %v2097 = vpop.f32.mrf.mxu0
      %2098 = vmatprep.mubr.bf16.mxu0 0
      %2099 = vmatmul.mubr.bf16.gmra.mxu0 %v1974
      %v2100 = vpop.f32.mrf.mxu0
      %v2101 = vadd.f32 0.0, %v2100
      %v2102 = vpop.f32.mrf.mxu0
      %v2103 = vpop.f32.mrf.mxu0
      %v2104 = vadd.f32 0.0, %v2103
      %v2105 = vpop.f32.mrf.mxu0
      %2106 = vmatprep.mubr.bf16.mxu0 0
      %2107 = vmatmul.mubr.bf16.gmra.mxu0 %v1977
      %v2108 = vpop.f32.mrf.mxu0
      %v2109 = vadd.f32 0.0, %v2108
      %v2110 = vpop.f32.mrf.mxu0
      %v2111 = vpop.f32.mrf.mxu0
      %v2112 = vadd.f32 0.0, %v2111
      %v2113 = vpop.f32.mrf.mxu0
      %2114 = vmatprep.mubr.bf16.mxu0 0
      %2115 = vmatmul.mubr.bf16.gmra.mxu0 %v1980
      %v2116 = vpop.f32.mrf.mxu0
      %v2117 = vadd.f32 0.0, %v2116
      %v2118 = vpop.f32.mrf.mxu0
      %v2119 = vpop.f32.mrf.mxu0
      %v2120 = vadd.f32 0.0, %v2119
      %v2121 = vpop.f32.mrf.mxu0
      %2122 = vmatprep.mubr.bf16.mxu0 0
      %2123 = vmatmul.mubr.bf16.gmra.mxu0 %v1983
      %v2124 = vpop.f32.mrf.mxu0
      %v2125 = vadd.f32 0.0, %v2124
      %v2126 = vpop.f32.mrf.mxu0
      %v2127 = vpop.f32.mrf.mxu0
      %v2128 = vadd.f32 0.0, %v2127
      %v2129 = vpop.f32.mrf.mxu0
      %2130 = vmatprep.mubr.bf16.mxu0 0
      %2131 = vmatmul.mubr.bf16.gmra.mxu0 %v1986
      %v2132 = vpop.f32.mrf.mxu0
      %v2133 = vadd.f32 0.0, %v2132
      %v2134 = vpop.f32.mrf.mxu0
      %v2135 = vpop.f32.mrf.mxu0
      %v2136 = vadd.f32 0.0, %v2135
      %v2137 = vpop.f32.mrf.mxu0
      %2138 = vmatprep.mubr.bf16.mxu0 0
      %2139 = vmatmul.mubr.bf16.gmra.mxu0 %v1989
      %v2140 = vpop.f32.mrf.mxu0
      %v2141 = vadd.f32 0.0, %v2140
      %v2142 = vpop.f32.mrf.mxu0
      %v2143 = vpop.f32.mrf.mxu0
      %v2144 = vadd.f32 0.0, %v2143
      %v2145 = vpop.f32.mrf.mxu0
      %2146 = vmatprep.mubr.bf16.mxu0 0
      %2147 = vmatmul.mubr.bf16.gmra.mxu0 %v1992
      %v2148 = vpop.f32.mrf.mxu0
      %v2149 = vadd.f32 0.0, %v2148
      %v2150 = vpop.f32.mrf.mxu0
      %v2151 = vpop.f32.mrf.mxu0
      %v2152 = vadd.f32 0.0, %v2151
      %v2153 = vpop.f32.mrf.mxu0
      %2154 = vdwg.mxu0
      %v2156 = vsel %vm822, %v1910, 0
      %v2159 = vsel %vm822, %v1911, 0
      %v2162 = vsel %vm822, %v1912, 0
      %v2165 = vsel %vm822, %v1913, 0
      %v2168 = vsel %vm822, %v1914, 0
      %v2171 = vsel %vm822, %v1915, 0
      %v2174 = vsel %vm822, %v1916, 0
      %v2177 = vsel %vm822, %v1917, 0
      %v2180 = vsel %vm822, %v1918, 0
      %v2183 = vsel %vm822, %v1919, 0
      %v2186 = vsel %vm822, %v1920, 0
      %v2189 = vsel %vm822, %v1921, 0
      %v2192 = vsel %vm822, %v1922, 0
      %v2195 = vsel %vm822, %v1923, 0
      %v2198 = vsel %vm822, %v1924, 0
      %v2201 = vsel %vm822, %v1925, 0
      %2203 = vmatprep.subr.bf16.mxu0 0
      %2204 = vmatpush1.bf16.msra.mxu0 0
      %2205 = vmatprep.subr.bf16.mxu0 0
      %2206 = vmatpush1.bf16.msra.mxu0 0
      %2207 = vmatprep.subr.bf16.mxu0 0
      %2208 = vmatpush1.bf16.msra.mxu0 0
      %2209 = vmatprep.subr.bf16.mxu0 0
      %2210 = vmatpush1.bf16.msra.mxu0 0
      %2211 = vmatprep.subr.bf16.mxu0 0
      %2212 = vmatpush1.bf16.msra.mxu0 0
      %2213 = vmatprep.subr.bf16.mxu0 0
      %2214 = vmatpush1.bf16.msra.mxu0 0
      %2215 = vmatprep.subr.bf16.mxu0 0
      %2216 = vmatpush1.bf16.msra.mxu0 0
      %2217 = vmatprep.subr.bf16.mxu0 0
      %2218 = vmatpush1.bf16.msra.mxu0 %v1926
      %2219 = vmatprep.subr.bf16.mxu0 0
      %2220 = vmatpush2.bf16.msra.mxu0 0
      %2221 = vmatprep.subr.bf16.mxu0 0
      %2222 = vmatpush2.bf16.msra.mxu0 0
      %2223 = vmatprep.subr.bf16.mxu0 0
      %2224 = vmatpush2.bf16.msra.mxu0 0
      %2225 = vmatprep.subr.bf16.mxu0 0
      %2226 = vmatpush2.bf16.msra.mxu0 0
      %2227 = vmatprep.subr.bf16.mxu0 0
      %2228 = vmatpush2.bf16.msra.mxu0 0
      %2229 = vmatprep.subr.bf16.mxu0 0
      %2230 = vmatpush2.bf16.msra.mxu0 0
      %2231 = vmatprep.subr.bf16.mxu0 0
      %2232 = vmatpush2.bf16.msra.mxu0 0
      %2233 = vmatprep.subr.bf16.mxu0 0
      %2234 = vmatpush2.bf16.msra.mxu0 0
      %2235 = vmatprep.mubr.bf16.mxu0 0
      %2236 = vmatmul.mubr.bf16.gmra.mxu0 %v2156
      %v2237 = vpop.f32.mrf.mxu0
      %v2238 = vadd.f32 %v2029, %v2237
      %v2239 = vpop.f32.mrf.mxu0
      %v2240 = vpop.f32.mrf.mxu0
      %v2241 = vadd.f32 %v2032, %v2240
      %v2242 = vpop.f32.mrf.mxu0
      %2243 = vmatprep.mubr.bf16.mxu0 0
      %2244 = vmatmul.mubr.bf16.gmra.mxu0 %v2159
      %v2245 = vpop.f32.mrf.mxu0
      %v2246 = vadd.f32 %v2037, %v2245
      %v2247 = vpop.f32.mrf.mxu0
      %v2248 = vpop.f32.mrf.mxu0
      %v2249 = vadd.f32 %v2040, %v2248
      %v2250 = vpop.f32.mrf.mxu0
      %2251 = vmatprep.mubr.bf16.mxu0 0
      %2252 = vmatmul.mubr.bf16.gmra.mxu0 %v2162
      %v2253 = vpop.f32.mrf.mxu0
      %v2254 = vadd.f32 %v2045, %v2253
      %v2255 = vpop.f32.mrf.mxu0
      %v2256 = vpop.f32.mrf.mxu0
      %v2257 = vadd.f32 %v2048, %v2256
      %v2258 = vpop.f32.mrf.mxu0
      %2259 = vmatprep.mubr.bf16.mxu0 0
      %2260 = vmatmul.mubr.bf16.gmra.mxu0 %v2165
      %v2261 = vpop.f32.mrf.mxu0
      %v2262 = vadd.f32 %v2053, %v2261
      %v2263 = vpop.f32.mrf.mxu0
      %v2264 = vpop.f32.mrf.mxu0
      %v2265 = vadd.f32 %v2056, %v2264
      %v2266 = vpop.f32.mrf.mxu0
      %2267 = vmatprep.mubr.bf16.mxu0 0
      %2268 = vmatmul.mubr.bf16.gmra.mxu0 %v2168
      %v2269 = vpop.f32.mrf.mxu0
      %v2270 = vadd.f32 %v2061, %v2269
      %v2271 = vpop.f32.mrf.mxu0
      %v2272 = vpop.f32.mrf.mxu0
      %v2273 = vadd.f32 %v2064, %v2272
      %v2274 = vpop.f32.mrf.mxu0
      %2275 = vmatprep.mubr.bf16.mxu0 0
      %2276 = vmatmul.mubr.bf16.gmra.mxu0 %v2171
      %v2277 = vpop.f32.mrf.mxu0
      %v2278 = vadd.f32 %v2069, %v2277
      %v2279 = vpop.f32.mrf.mxu0
      %v2280 = vpop.f32.mrf.mxu0
      %v2281 = vadd.f32 %v2072, %v2280
      %v2282 = vpop.f32.mrf.mxu0
      %2283 = vmatprep.mubr.bf16.mxu0 0
      %2284 = vmatmul.mubr.bf16.gmra.mxu0 %v2174
      %v2285 = vpop.f32.mrf.mxu0
      %v2286 = vadd.f32 %v2077, %v2285
      %v2287 = vpop.f32.mrf.mxu0
      %v2288 = vpop.f32.mrf.mxu0
      %v2289 = vadd.f32 %v2080, %v2288
      %v2290 = vpop.f32.mrf.mxu0
      %2291 = vmatprep.mubr.bf16.mxu0 0
      %2292 = vmatmul.mubr.bf16.gmra.mxu0 %v2177
      %v2293 = vpop.f32.mrf.mxu0
      %v2294 = vadd.f32 %v2085, %v2293
      %v2295 = vpop.f32.mrf.mxu0
      %v2296 = vpop.f32.mrf.mxu0
      %v2297 = vadd.f32 %v2088, %v2296
      %v2298 = vpop.f32.mrf.mxu0
      %2299 = vmatprep.mubr.bf16.mxu0 0
      %2300 = vmatmul.mubr.bf16.gmra.mxu0 %v2180
      %v2301 = vpop.f32.mrf.mxu0
      %v2302 = vadd.f32 %v2093, %v2301
      %v2303 = vpop.f32.mrf.mxu0
      %v2304 = vpop.f32.mrf.mxu0
      %v2305 = vadd.f32 %v2096, %v2304
      %v2306 = vpop.f32.mrf.mxu0
      %2307 = vmatprep.mubr.bf16.mxu0 0
      %2308 = vmatmul.mubr.bf16.gmra.mxu0 %v2183
      %v2309 = vpop.f32.mrf.mxu0
      %v2310 = vadd.f32 %v2101, %v2309
      %v2311 = vpop.f32.mrf.mxu0
      %v2312 = vpop.f32.mrf.mxu0
      %v2313 = vadd.f32 %v2104, %v2312
      %v2314 = vpop.f32.mrf.mxu0
      %2315 = vmatprep.mubr.bf16.mxu0 0
      %2316 = vmatmul.mubr.bf16.gmra.mxu0 %v2186
      %v2317 = vpop.f32.mrf.mxu0
      %v2318 = vadd.f32 %v2109, %v2317
      %v2319 = vpop.f32.mrf.mxu0
      %v2320 = vpop.f32.mrf.mxu0
      %v2321 = vadd.f32 %v2112, %v2320
      %v2322 = vpop.f32.mrf.mxu0
      %2323 = vmatprep.mubr.bf16.mxu0 0
      %2324 = vmatmul.mubr.bf16.gmra.mxu0 %v2189
      %v2325 = vpop.f32.mrf.mxu0
      %v2326 = vadd.f32 %v2117, %v2325
      %v2327 = vpop.f32.mrf.mxu0
      %v2328 = vpop.f32.mrf.mxu0
      %v2329 = vadd.f32 %v2120, %v2328
      %v2330 = vpop.f32.mrf.mxu0
      %2331 = vmatprep.mubr.bf16.mxu0 0
      %2332 = vmatmul.mubr.bf16.gmra.mxu0 %v2192
      %v2333 = vpop.f32.mrf.mxu0
      %v2334 = vadd.f32 %v2125, %v2333
      %v2335 = vpop.f32.mrf.mxu0
      %v2336 = vpop.f32.mrf.mxu0
      %v2337 = vadd.f32 %v2128, %v2336
      %v2338 = vpop.f32.mrf.mxu0
      %2339 = vmatprep.mubr.bf16.mxu0 0
      %2340 = vmatmul.mubr.bf16.gmra.mxu0 %v2195
      %v2341 = vpop.f32.mrf.mxu0
      %v2342 = vadd.f32 %v2133, %v2341
      %v2343 = vpop.f32.mrf.mxu0
      %v2344 = vpop.f32.mrf.mxu0
      %v2345 = vadd.f32 %v2136, %v2344
      %v2346 = vpop.f32.mrf.mxu0
      %2347 = vmatprep.mubr.bf16.mxu0 0
      %2348 = vmatmul.mubr.bf16.gmra.mxu0 %v2198
      %v2349 = vpop.f32.mrf.mxu0
      %v2350 = vadd.f32 %v2141, %v2349
      %v2351 = vpop.f32.mrf.mxu0
      %v2352 = vpop.f32.mrf.mxu0
      %v2353 = vadd.f32 %v2144, %v2352
      %v2354 = vpop.f32.mrf.mxu0
      %2355 = vmatprep.mubr.bf16.mxu0 0
      %2356 = vmatmul.mubr.bf16.gmra.mxu0 %v2201
      %v2357 = vpop.f32.mrf.mxu0
      %v2358 = vadd.f32 %v2149, %v2357
      %v2359 = vpop.f32.mrf.mxu0
      %v2360 = vpop.f32.mrf.mxu0
      %v2361 = vadd.f32 %v2152, %v2360
      %v2362 = vpop.f32.mrf.mxu0
      %2363 = vdwg.mxu0
      %v2364 = vadd.f32 %v2238, %v1856
      %v2365 = vadd.f32 %v2241, %v1859
      %v2366 = vadd.f32 %v2246, %v1856
      %v2367 = vadd.f32 %v2249, %v1859
      %v2368 = vadd.f32 %v2254, %v1856
      %v2369 = vadd.f32 %v2257, %v1859
      %v2370 = vadd.f32 %v2262, %v1856
      %v2371 = vadd.f32 %v2265, %v1859
      %v2372 = vadd.f32 %v2270, %v1856
      %v2373 = vadd.f32 %v2273, %v1859
      %v2374 = vadd.f32 %v2278, %v1856
      %v2375 = vadd.f32 %v2281, %v1859
      %v2376 = vadd.f32 %v2286, %v1856
      %v2377 = vadd.f32 %v2289, %v1859
      %v2378 = vadd.f32 %v2294, %v1856
      %v2379 = vadd.f32 %v2297, %v1859
      %v2380 = vadd.f32 %v2302, %v1856
      %v2381 = vadd.f32 %v2305, %v1859
      %v2382 = vadd.f32 %v2310, %v1856
      %v2383 = vadd.f32 %v2313, %v1859
      %v2384 = vadd.f32 %v2318, %v1856
      %v2385 = vadd.f32 %v2321, %v1859
      %v2386 = vadd.f32 %v2326, %v1856
      %v2387 = vadd.f32 %v2329, %v1859
      %v2388 = vadd.f32 %v2334, %v1856
      %v2389 = vadd.f32 %v2337, %v1859
      %v2390 = vadd.f32 %v2342, %v1856
      %v2391 = vadd.f32 %v2345, %v1859
      %v2392 = vadd.f32 %v2350, %v1856
      %v2393 = vadd.f32 %v2353, %v1859
      %v2394 = vadd.f32 %v2358, %v1856
      %v2395 = vadd.f32 %v2361, %v1859
      %v2398 = vcombine.high %v1902, %v1902
      %v2400 = vunpack.c.l.s4 1966171168
      %v2401 = vunpack.c.0.s8 %v2400
      %v2402 = vlaneseq
      %v2403 = vshrl.u32 %v2402, 7
      %v2404 = vsub.s32 %v2401, %v2403
      %v2405 = vrot.slane %v1902, %v2404
      %v2407 = vunpack.c.l.s4 1966171168
      %v2408 = vunpack.c.0.s8 %v2407
      %v2409 = vlaneseq
      %v2410 = vshrl.u32 %v2409, 7
      %v2411 = vsub.s32 %v2408, %v2410
      %v2412 = vrot.slane %v2398, %v2411
      %v2413 = vcombine.high %v2405, %v2405
      %v2414 = vcombine.high %v2412, %v2412
      %v2416 = vunpack.c.l.s4 1966171168
      %v2417 = vunpack.c.0.s8 %v2416
      %v2418 = vlaneseq
      %v2419 = vshrl.u32 %v2418, 7
      %v2420 = vsub.s32 %v2417, %v2419
      %v2421 = vrot.slane %v2405, %v2420
      %v2423 = vunpack.c.l.s4 1966171168
      %v2424 = vunpack.c.0.s8 %v2423
      %v2425 = vlaneseq
      %v2426 = vshrl.u32 %v2425, 7
      %v2427 = vsub.s32 %v2424, %v2426
      %v2428 = vrot.slane %v2412, %v2427
      %v2430 = vunpack.c.l.s4 1966171168
      %v2431 = vunpack.c.0.s8 %v2430
      %v2432 = vlaneseq
      %v2433 = vshrl.u32 %v2432, 7
      %v2434 = vsub.s32 %v2431, %v2433
      %v2435 = vrot.slane %v2413, %v2434
      %v2437 = vunpack.c.l.s4 1966171168
      %v2438 = vunpack.c.0.s8 %v2437
      %v2439 = vlaneseq
      %v2440 = vshrl.u32 %v2439, 7
      %v2441 = vsub.s32 %v2438, %v2440
      %v2442 = vrot.slane %v2414, %v2441
      %v2443 = vcombine.high %v2421, %v2421
      %v2444 = vcombine.high %v2428, %v2428
      %v2445 = vcombine.high %v2435, %v2435
      %v2446 = vcombine.high %v2442, %v2442
      %v2447 = vcombine.high %v1905, %v1905
      %v2449 = vunpack.c.l.s4 1966171168
      %v2450 = vunpack.c.0.s8 %v2449
      %v2451 = vlaneseq
      %v2452 = vshrl.u32 %v2451, 7
      %v2453 = vsub.s32 %v2450, %v2452
      %v2454 = vrot.slane %v1905, %v2453
      %v2456 = vunpack.c.l.s4 1966171168
      %v2457 = vunpack.c.0.s8 %v2456
      %v2458 = vlaneseq
      %v2459 = vshrl.u32 %v2458, 7
      %v2460 = vsub.s32 %v2457, %v2459
      %v2461 = vrot.slane %v2447, %v2460
      %v2462 = vcombine.high %v2454, %v2454
      %v2463 = vcombine.high %v2461, %v2461
      %v2465 = vunpack.c.l.s4 1966171168
      %v2466 = vunpack.c.0.s8 %v2465
      %v2467 = vlaneseq
      %v2468 = vshrl.u32 %v2467, 7
      %v2469 = vsub.s32 %v2466, %v2468
      %v2470 = vrot.slane %v2454, %v2469
      %v2472 = vunpack.c.l.s4 1966171168
      %v2473 = vunpack.c.0.s8 %v2472
      %v2474 = vlaneseq
      %v2475 = vshrl.u32 %v2474, 7
      %v2476 = vsub.s32 %v2473, %v2475
      %v2477 = vrot.slane %v2461, %v2476
      %v2479 = vunpack.c.l.s4 1966171168
      %v2480 = vunpack.c.0.s8 %v2479
      %v2481 = vlaneseq
      %v2482 = vshrl.u32 %v2481, 7
      %v2483 = vsub.s32 %v2480, %v2482
      %v2484 = vrot.slane %v2462, %v2483
      %v2486 = vunpack.c.l.s4 1966171168
      %v2487 = vunpack.c.0.s8 %v2486
      %v2488 = vlaneseq
      %v2489 = vshrl.u32 %v2488, 7
      %v2490 = vsub.s32 %v2487, %v2489
      %v2491 = vrot.slane %v2463, %v2490
      %v2492 = vcombine.high %v2470, %v2470
      %v2493 = vcombine.high %v2477, %v2477
      %v2494 = vcombine.high %v2484, %v2484
      %v2495 = vcombine.high %v2491, %v2491
      %v2496 = vlaneseq
      %v2497 = vshrl.u32 %v2496, 7
      %v2498 = vsub.s32 0, %v2497
      %v2499 = vrot.slane %v2421, %v2498
      %v2500 = vlaneseq
      %v2501 = vshrl.u32 %v2500, 7
      %v2502 = vsub.s32 0, %v2501
      %v2503 = vrot.slane %v2435, %v2502
      %v2504 = vlaneseq
      %v2505 = vshrl.u32 %v2504, 7
      %v2506 = vsub.s32 0, %v2505
      %v2507 = vrot.slane %v2443, %v2506
      %v2508 = vlaneseq
      %v2509 = vshrl.u32 %v2508, 7
      %v2510 = vsub.s32 0, %v2509
      %v2511 = vrot.slane %v2445, %v2510
      %v2512 = vlaneseq
      %v2513 = vshrl.u32 %v2512, 7
      %v2514 = vsub.s32 0, %v2513
      %v2515 = vrot.slane %v2428, %v2514
      %v2516 = vlaneseq
      %v2517 = vshrl.u32 %v2516, 7
      %v2518 = vsub.s32 0, %v2517
      %v2519 = vrot.slane %v2442, %v2518
      %v2520 = vlaneseq
      %v2521 = vshrl.u32 %v2520, 7
      %v2522 = vsub.s32 0, %v2521
      %v2523 = vrot.slane %v2444, %v2522
      %v2524 = vlaneseq
      %v2525 = vshrl.u32 %v2524, 7
      %v2526 = vsub.s32 0, %v2525
      %v2527 = vrot.slane %v2446, %v2526
      %v2528 = vlaneseq
      %v2529 = vshrl.u32 %v2528, 7
      %v2530 = vsub.s32 0, %v2529
      %v2531 = vrot.slane %v2470, %v2530
      %v2532 = vlaneseq
      %v2533 = vshrl.u32 %v2532, 7
      %v2534 = vsub.s32 0, %v2533
      %v2535 = vrot.slane %v2484, %v2534
      %v2536 = vlaneseq
      %v2537 = vshrl.u32 %v2536, 7
      %v2538 = vsub.s32 0, %v2537
      %v2539 = vrot.slane %v2492, %v2538
      %v2540 = vlaneseq
      %v2541 = vshrl.u32 %v2540, 7
      %v2542 = vsub.s32 0, %v2541
      %v2543 = vrot.slane %v2494, %v2542
      %v2544 = vlaneseq
      %v2545 = vshrl.u32 %v2544, 7
      %v2546 = vsub.s32 0, %v2545
      %v2547 = vrot.slane %v2477, %v2546
      %v2548 = vlaneseq
      %v2549 = vshrl.u32 %v2548, 7
      %v2550 = vsub.s32 0, %v2549
      %v2551 = vrot.slane %v2491, %v2550
      %v2552 = vlaneseq
      %v2553 = vshrl.u32 %v2552, 7
      %v2554 = vsub.s32 0, %v2553
      %v2555 = vrot.slane %v2493, %v2554
      %v2556 = vlaneseq
      %v2557 = vshrl.u32 %v2556, 7
      %v2558 = vsub.s32 0, %v2557
      %v2559 = vrot.slane %v2495, %v2558
      %v2576 = vadd.f32 %v2364, %v2499
      %v2577 = vadd.f32 %v2365, %v2499
      %v2578 = vadd.f32 %v2366, %v2503
      %v2579 = vadd.f32 %v2367, %v2503
      %v2580 = vadd.f32 %v2368, %v2507
      %v2581 = vadd.f32 %v2369, %v2507
      %v2582 = vadd.f32 %v2370, %v2511
      %v2583 = vadd.f32 %v2371, %v2511
      %v2584 = vadd.f32 %v2372, %v2515
      %v2585 = vadd.f32 %v2373, %v2515
      %v2586 = vadd.f32 %v2374, %v2519
      %v2587 = vadd.f32 %v2375, %v2519
      %v2588 = vadd.f32 %v2376, %v2523
      %v2589 = vadd.f32 %v2377, %v2523
      %v2590 = vadd.f32 %v2378, %v2527
      %v2591 = vadd.f32 %v2379, %v2527
      %v2592 = vadd.f32 %v2380, %v2531
      %v2593 = vadd.f32 %v2381, %v2531
      %v2594 = vadd.f32 %v2382, %v2535
      %v2595 = vadd.f32 %v2383, %v2535
      %v2596 = vadd.f32 %v2384, %v2539
      %v2597 = vadd.f32 %v2385, %v2539
      %v2598 = vadd.f32 %v2386, %v2543
      %v2599 = vadd.f32 %v2387, %v2543
      %v2600 = vadd.f32 %v2388, %v2547
      %v2601 = vadd.f32 %v2389, %v2547
      %v2602 = vadd.f32 %v2390, %v2551
      %v2603 = vadd.f32 %v2391, %v2551
      %v2604 = vadd.f32 %v2392, %v2555
      %v2605 = vadd.f32 %v2393, %v2555
      %v2606 = vadd.f32 %v2394, %v2559
      %v2607 = vadd.f32 %v2395, %v2559
      %v2608 = vld [vmem:[%s13] sm:$0x1]
      %v2610 = vlaneseq
      %v2611 = vshrl.u32 %v2610, 7
      %v2612 = vsub.s32 0, %v2611
      %v2613 = vrot.slane %v2608, %v2612
      %v2615 = vadd.f32 %v2576, %v2613
      %v2616 = vadd.f32 %v2577, %v2613
      %v2617 = vadd.f32 %v2578, %v2613
      %v2618 = vadd.f32 %v2579, %v2613
      %v2619 = vadd.f32 %v2580, %v2613
      %v2620 = vadd.f32 %v2581, %v2613
      %v2621 = vadd.f32 %v2582, %v2613
      %v2622 = vadd.f32 %v2583, %v2613
      %v2623 = vadd.f32 %v2584, %v2613
      %v2624 = vadd.f32 %v2585, %v2613
      %v2625 = vadd.f32 %v2586, %v2613
      %v2626 = vadd.f32 %v2587, %v2613
      %v2627 = vadd.f32 %v2588, %v2613
      %v2628 = vadd.f32 %v2589, %v2613
      %v2629 = vadd.f32 %v2590, %v2613
      %v2630 = vadd.f32 %v2591, %v2613
      %v2631 = vadd.f32 %v2592, %v2613
      %v2632 = vadd.f32 %v2593, %v2613
      %v2633 = vadd.f32 %v2594, %v2613
      %v2634 = vadd.f32 %v2595, %v2613
      %v2635 = vadd.f32 %v2596, %v2613
      %v2636 = vadd.f32 %v2597, %v2613
      %v2637 = vadd.f32 %v2598, %v2613
      %v2638 = vadd.f32 %v2599, %v2613
      %v2639 = vadd.f32 %v2600, %v2613
      %v2640 = vadd.f32 %v2601, %v2613
      %v2641 = vadd.f32 %v2602, %v2613
      %v2642 = vadd.f32 %v2603, %v2613
      %v2643 = vadd.f32 %v2604, %v2613
      %v2644 = vadd.f32 %v2605, %v2613
      %v2645 = vadd.f32 %v2606, %v2613
      %v2646 = vadd.f32 %v2607, %v2613
      %v2647 = vsel %vm822, %v2615, 0.0
      %v2648 = vsel %vm822, %v2617, 0.0
      %v2649 = vadd.f32 %v2647, %v2648
      %v2650 = vsel %vm822, %v2619, 0.0
      %v2651 = vadd.f32 %v2649, %v2650
      %v2652 = vsel %vm822, %v2621, 0.0
      %v2653 = vadd.f32 %v2651, %v2652
      %v2654 = vsel %vm822, %v2623, 0.0
      %v2655 = vadd.f32 %v2653, %v2654
      %v2656 = vsel %vm822, %v2625, 0.0
      %v2657 = vadd.f32 %v2655, %v2656
      %v2658 = vsel %vm822, %v2627, 0.0
      %v2659 = vadd.f32 %v2657, %v2658
      %v2660 = vsel %vm822, %v2629, 0.0
      %v2661 = vadd.f32 %v2659, %v2660
      %v2662 = vsel %vm822, %v2631, 0.0
      %v2663 = vadd.f32 %v2661, %v2662
      %v2664 = vsel %vm822, %v2633, 0.0
      %v2665 = vadd.f32 %v2663, %v2664
      %v2666 = vsel %vm822, %v2635, 0.0
      %v2667 = vadd.f32 %v2665, %v2666
      %v2668 = vsel %vm822, %v2637, 0.0
      %v2669 = vadd.f32 %v2667, %v2668
      %v2670 = vsel %vm822, %v2639, 0.0
      %v2671 = vadd.f32 %v2669, %v2670
      %v2672 = vsel %vm822, %v2641, 0.0
      %v2673 = vadd.f32 %v2671, %v2672
      %v2674 = vsel %vm822, %v2643, 0.0
      %v2675 = vadd.f32 %v2673, %v2674
      %v2676 = vsel %vm822, %v2645, 0.0
      %v2677 = vadd.f32 %v2675, %v2676
      %v2678 = vsel %vm822, %v2616, 0.0
      %v2679 = vsel %vm822, %v2618, 0.0
      %v2680 = vadd.f32 %v2678, %v2679
      %v2681 = vsel %vm822, %v2620, 0.0
      %v2682 = vadd.f32 %v2680, %v2681
      %v2683 = vsel %vm822, %v2622, 0.0
      %v2684 = vadd.f32 %v2682, %v2683
      %v2685 = vsel %vm822, %v2624, 0.0
      %v2686 = vadd.f32 %v2684, %v2685
      %v2687 = vsel %vm822, %v2626, 0.0
      %v2688 = vadd.f32 %v2686, %v2687
      %v2689 = vsel %vm822, %v2628, 0.0
      %v2690 = vadd.f32 %v2688, %v2689
      %v2691 = vsel %vm822, %v2630, 0.0
      %v2692 = vadd.f32 %v2690, %v2691
      %v2693 = vsel %vm822, %v2632, 0.0
      %v2694 = vadd.f32 %v2692, %v2693
      %v2695 = vsel %vm822, %v2634, 0.0
      %v2696 = vadd.f32 %v2694, %v2695
      %v2697 = vsel %vm822, %v2636, 0.0
      %v2698 = vadd.f32 %v2696, %v2697
      %v2699 = vsel %vm822, %v2638, 0.0
      %v2700 = vadd.f32 %v2698, %v2699
      %v2701 = vsel %vm822, %v2640, 0.0
      %v2702 = vadd.f32 %v2700, %v2701
      %v2703 = vsel %vm822, %v2642, 0.0
      %v2704 = vadd.f32 %v2702, %v2703
      %v2705 = vsel %vm822, %v2644, 0.0
      %v2706 = vadd.f32 %v2704, %v2705
      %v2707 = vsel %vm822, %v2646, 0.0
      %v2708 = vadd.f32 %v2706, %v2707
      %v2709 = vmul.f32 %v2677, %v919
      %v2710 = vmul.f32 %v2708, %v919
      %v2711 = vsel %vm822, %v2709, 0.0
      %v2712 = vsel %vm822, %v2710, 0.0
      %v2713 = vadd.f32 %v2711, %v2712
      %v2714 = vrot.slane %v2713, 4
      %v2715 = vadd.f32 %v2713, %v2714
      %v2716 = vrot.slane %v2715, 2
      %v2717 = vadd.f32 %v2715, %v2716
      %v2718 = vrot.slane %v2717, 1
      %v2719 = vadd.f32 %v2717, %v2718
      %v2720 = vmul.f32 %v2719, %v919
      %v2721 = vsub.f32 %v2615, %v2720
      %v2722 = vsub.f32 %v2616, %v2720
      %v2723 = vsub.f32 %v2617, %v2720
      %v2724 = vsub.f32 %v2618, %v2720
      %v2725 = vsub.f32 %v2619, %v2720
      %v2726 = vsub.f32 %v2620, %v2720
      %v2727 = vsub.f32 %v2621, %v2720
      %v2728 = vsub.f32 %v2622, %v2720
      %v2729 = vsub.f32 %v2623, %v2720
      %v2730 = vsub.f32 %v2624, %v2720
      %v2731 = vsub.f32 %v2625, %v2720
      %v2732 = vsub.f32 %v2626, %v2720
      %v2733 = vsub.f32 %v2627, %v2720
      %v2734 = vsub.f32 %v2628, %v2720
      %v2735 = vsub.f32 %v2629, %v2720
      %v2736 = vsub.f32 %v2630, %v2720
      %v2737 = vsub.f32 %v2631, %v2720
      %v2738 = vsub.f32 %v2632, %v2720
      %v2739 = vsub.f32 %v2633, %v2720
      %v2740 = vsub.f32 %v2634, %v2720
      %v2741 = vsub.f32 %v2635, %v2720
      %v2742 = vsub.f32 %v2636, %v2720
      %v2743 = vsub.f32 %v2637, %v2720
      %v2744 = vsub.f32 %v2638, %v2720
      %v2745 = vsub.f32 %v2639, %v2720
      %v2746 = vsub.f32 %v2640, %v2720
      %v2747 = vsub.f32 %v2641, %v2720
      %v2748 = vsub.f32 %v2642, %v2720
      %v2749 = vsub.f32 %v2643, %v2720
      %v2750 = vsub.f32 %v2644, %v2720
      %v2751 = vsub.f32 %v2645, %v2720
      %v2752 = vsub.f32 %v2646, %v2720
      %v2753 = vmul.f32 %v2721, %v2721
      %v2754 = vmul.f32 %v2722, %v2722
      %v2755 = vmul.f32 %v2723, %v2723
      %v2756 = vmul.f32 %v2724, %v2724
      %v2757 = vmul.f32 %v2725, %v2725
      %v2758 = vmul.f32 %v2726, %v2726
      %v2759 = vmul.f32 %v2727, %v2727
      %v2760 = vmul.f32 %v2728, %v2728
      %v2761 = vmul.f32 %v2729, %v2729
      %v2762 = vmul.f32 %v2730, %v2730
      %v2763 = vmul.f32 %v2731, %v2731
      %v2764 = vmul.f32 %v2732, %v2732
      %v2765 = vmul.f32 %v2733, %v2733
      %v2766 = vmul.f32 %v2734, %v2734
      %v2767 = vmul.f32 %v2735, %v2735
      %v2768 = vmul.f32 %v2736, %v2736
      %v2769 = vmul.f32 %v2737, %v2737
      %v2770 = vmul.f32 %v2738, %v2738
      %v2771 = vmul.f32 %v2739, %v2739
      %v2772 = vmul.f32 %v2740, %v2740
      %v2773 = vmul.f32 %v2741, %v2741
      %v2774 = vmul.f32 %v2742, %v2742
      %v2775 = vmul.f32 %v2743, %v2743
      %v2776 = vmul.f32 %v2744, %v2744
      %v2777 = vmul.f32 %v2745, %v2745
      %v2778 = vmul.f32 %v2746, %v2746
      %v2779 = vmul.f32 %v2747, %v2747
      %v2780 = vmul.f32 %v2748, %v2748
      %v2781 = vmul.f32 %v2749, %v2749
      %v2782 = vmul.f32 %v2750, %v2750
      %v2783 = vmul.f32 %v2751, %v2751
      %v2784 = vmul.f32 %v2752, %v2752
      %v2785 = vsel %vm822, %v2753, 0.0
      %v2786 = vsel %vm822, %v2755, 0.0
      %v2787 = vadd.f32 %v2785, %v2786
      %v2788 = vsel %vm822, %v2757, 0.0
      %v2789 = vadd.f32 %v2787, %v2788
      %v2790 = vsel %vm822, %v2759, 0.0
      %v2791 = vadd.f32 %v2789, %v2790
      %v2792 = vsel %vm822, %v2761, 0.0
      %v2793 = vadd.f32 %v2791, %v2792
      %v2794 = vsel %vm822, %v2763, 0.0
      %v2795 = vadd.f32 %v2793, %v2794
      %v2796 = vsel %vm822, %v2765, 0.0
      %v2797 = vadd.f32 %v2795, %v2796
      %v2798 = vsel %vm822, %v2767, 0.0
      %v2799 = vadd.f32 %v2797, %v2798
      %v2800 = vsel %vm822, %v2769, 0.0
      %v2801 = vadd.f32 %v2799, %v2800
      %v2802 = vsel %vm822, %v2771, 0.0
      %v2803 = vadd.f32 %v2801, %v2802
      %v2804 = vsel %vm822, %v2773, 0.0
      %v2805 = vadd.f32 %v2803, %v2804
      %v2806 = vsel %vm822, %v2775, 0.0
      %v2807 = vadd.f32 %v2805, %v2806
      %v2808 = vsel %vm822, %v2777, 0.0
      %v2809 = vadd.f32 %v2807, %v2808
      %v2810 = vsel %vm822, %v2779, 0.0
      %v2811 = vadd.f32 %v2809, %v2810
      %v2812 = vsel %vm822, %v2781, 0.0
      %v2813 = vadd.f32 %v2811, %v2812
      %v2814 = vsel %vm822, %v2783, 0.0
      %v2815 = vadd.f32 %v2813, %v2814
      %v2816 = vsel %vm822, %v2754, 0.0
      %v2817 = vsel %vm822, %v2756, 0.0
      %v2818 = vadd.f32 %v2816, %v2817
      %v2819 = vsel %vm822, %v2758, 0.0
      %v2820 = vadd.f32 %v2818, %v2819
      %v2821 = vsel %vm822, %v2760, 0.0
      %v2822 = vadd.f32 %v2820, %v2821
      %v2823 = vsel %vm822, %v2762, 0.0
      %v2824 = vadd.f32 %v2822, %v2823
      %v2825 = vsel %vm822, %v2764, 0.0
      %v2826 = vadd.f32 %v2824, %v2825
      %v2827 = vsel %vm822, %v2766, 0.0
      %v2828 = vadd.f32 %v2826, %v2827
      %v2829 = vsel %vm822, %v2768, 0.0
      %v2830 = vadd.f32 %v2828, %v2829
      %v2831 = vsel %vm822, %v2770, 0.0
      %v2832 = vadd.f32 %v2830, %v2831
      %v2833 = vsel %vm822, %v2772, 0.0
      %v2834 = vadd.f32 %v2832, %v2833
      %v2835 = vsel %vm822, %v2774, 0.0
      %v2836 = vadd.f32 %v2834, %v2835
      %v2837 = vsel %vm822, %v2776, 0.0
      %v2838 = vadd.f32 %v2836, %v2837
      %v2839 = vsel %vm822, %v2778, 0.0
      %v2840 = vadd.f32 %v2838, %v2839
      %v2841 = vsel %vm822, %v2780, 0.0
      %v2842 = vadd.f32 %v2840, %v2841
      %v2843 = vsel %vm822, %v2782, 0.0
      %v2844 = vadd.f32 %v2842, %v2843
      %v2845 = vsel %vm822, %v2784, 0.0
      %v2846 = vadd.f32 %v2844, %v2845
      %v2847 = vmul.f32 %v2815, %v919
      %v2848 = vmul.f32 %v2846, %v919
      %v2849 = vsel %vm822, %v2847, 0.0
      %v2850 = vsel %vm822, %v2848, 0.0
      %v2851 = vadd.f32 %v2849, %v2850
      %v2852 = vrot.slane %v2851, 4
      %v2853 = vadd.f32 %v2851, %v2852
      %v2854 = vrot.slane %v2853, 2
      %v2855 = vadd.f32 %v2853, %v2854
      %v2856 = vrot.slane %v2855, 1
      %v2857 = vadd.f32 %v2855, %v2856
      %v2858 = vmul.f32 %v2857, %v919
      %v2859 = vadd.f32 %v2858, 1e-05
      %v2860 = vrsqrt.pop %v2859
      %v2861 = vmul.f32 %v2721, %v2860
      %v2862 = vmul.f32 %v2722, %v2860
      %v2863 = vmul.f32 %v2723, %v2860
      %v2864 = vmul.f32 %v2724, %v2860
      %v2865 = vmul.f32 %v2725, %v2860
      %v2866 = vmul.f32 %v2726, %v2860
      %v2867 = vmul.f32 %v2727, %v2860
      %v2868 = vmul.f32 %v2728, %v2860
      %v2869 = vmul.f32 %v2729, %v2860
      %v2870 = vmul.f32 %v2730, %v2860
      %v2871 = vmul.f32 %v2731, %v2860
      %v2872 = vmul.f32 %v2732, %v2860
      %v2873 = vmul.f32 %v2733, %v2860
      %v2874 = vmul.f32 %v2734, %v2860
      %v2875 = vmul.f32 %v2735, %v2860
      %v2876 = vmul.f32 %v2736, %v2860
      %v2877 = vmul.f32 %v2737, %v2860
      %v2878 = vmul.f32 %v2738, %v2860
      %v2879 = vmul.f32 %v2739, %v2860
      %v2880 = vmul.f32 %v2740, %v2860
      %v2881 = vmul.f32 %v2741, %v2860
      %v2882 = vmul.f32 %v2742, %v2860
      %v2883 = vmul.f32 %v2743, %v2860
      %v2884 = vmul.f32 %v2744, %v2860
      %v2885 = vmul.f32 %v2745, %v2860
      %v2886 = vmul.f32 %v2746, %v2860
      %v2887 = vmul.f32 %v2747, %v2860
      %v2888 = vmul.f32 %v2748, %v2860
      %v2889 = vmul.f32 %v2749, %v2860
      %v2890 = vmul.f32 %v2750, %v2860
      %v2891 = vmul.f32 %v2751, %v2860
      %v2892 = vmul.f32 %v2752, %v2860
      %2893 = vst.msk [vmem:[%s507] sm:$0xff] %vm822, %v2861
      %2894 = vst.msk [vmem:[%s507 + $0x8] sm:$0xff] %vm822, %v2862
      %2895 = vst.msk [vmem:[%s507 + $0x10] sm:$0xff] %vm822, %v2863
      %2896 = vst.msk [vmem:[%s507 + $0x18] sm:$0xff] %vm822, %v2864
      %2897 = vst.msk [vmem:[%s507 + $0x20] sm:$0xff] %vm822, %v2865
      %2898 = vst.msk [vmem:[%s507 + $0x28] sm:$0xff] %vm822, %v2866
      %2899 = vst.msk [vmem:[%s507 + $0x30] sm:$0xff] %vm822, %v2867
      %2900 = vst.msk [vmem:[%s507 + $0x38] sm:$0xff] %vm822, %v2868
      %2901 = vst.msk [vmem:[%s507 + $0x40] sm:$0xff] %vm822, %v2869
      %2902 = vst.msk [vmem:[%s507 + $0x48] sm:$0xff] %vm822, %v2870
      %2903 = vst.msk [vmem:[%s507 + $0x50] sm:$0xff] %vm822, %v2871
      %2904 = vst.msk [vmem:[%s507 + $0x58] sm:$0xff] %vm822, %v2872
      %2905 = vst.msk [vmem:[%s507 + $0x60] sm:$0xff] %vm822, %v2873
      %2906 = vst.msk [vmem:[%s507 + $0x68] sm:$0xff] %vm822, %v2874
      %2907 = vst.msk [vmem:[%s507 + $0x70] sm:$0xff] %vm822, %v2875
      %2908 = vst.msk [vmem:[%s507 + $0x78] sm:$0xff] %vm822, %v2876
      %2909 = vst.msk [vmem:[%s507 + $0x80] sm:$0xff] %vm822, %v2877
      %2910 = vst.msk [vmem:[%s507 + $0x88] sm:$0xff] %vm822, %v2878
      %2911 = vst.msk [vmem:[%s507 + $0x90] sm:$0xff] %vm822, %v2879
      %2912 = vst.msk [vmem:[%s507 + $0x98] sm:$0xff] %vm822, %v2880
      %2913 = vst.msk [vmem:[%s507 + $0xa0] sm:$0xff] %vm822, %v2881
      %2914 = vst.msk [vmem:[%s507 + $0xa8] sm:$0xff] %vm822, %v2882
      %2915 = vst.msk [vmem:[%s507 + $0xb0] sm:$0xff] %vm822, %v2883
      %2916 = vst.msk [vmem:[%s507 + $0xb8] sm:$0xff] %vm822, %v2884
      %2917 = vst.msk [vmem:[%s507 + $0xc0] sm:$0xff] %vm822, %v2885
      %2918 = vst.msk [vmem:[%s507 + $0xc8] sm:$0xff] %vm822, %v2886
      %2919 = vst.msk [vmem:[%s507 + $0xd0] sm:$0xff] %vm822, %v2887
      %2920 = vst.msk [vmem:[%s507 + $0xd8] sm:$0xff] %vm822, %v2888
      %2921 = vst.msk [vmem:[%s507 + $0xe0] sm:$0xff] %vm822, %v2889
      %2922 = vst.msk [vmem:[%s507 + $0xe8] sm:$0xff] %vm822, %v2890
      %2923 = vst.msk [vmem:[%s507 + $0xf0] sm:$0xff] %vm822, %v2891
      %2924 = vst.msk [vmem:[%s507 + $0xf8] sm:$0xff] %vm822, %v2892
      %p2925 = scmp.lt.s32.totalorder %s25, 1
      %s2926 = scalar_select %p2925, %s25, 1
      %s2927 = smul.addr %s2926, 32
      %s2928 = smul.addr %s2927, 8
      %s2929 = scalar_lea.vmem %s14, %s2928
      // Predicated region
      $region77: #{msa_pair_attention_layer.6} parent=75 // pred_check
        %p2930 = pneg %p352
      $region78: #{msa_pair_attention_layer.6} parent=75 // pred_check_branch
        %2932 = sbr.rel (%p2930) target = $region80
      $region79: #{msa_pair_attention_layer.6} parent=75 // pred_region
        _
      $region80: #{msa_pair_attention_layer.6} parent=75 // pred_fallthru
        _
    $region76: #{msa_pair_attention_layer.6} parent=5 // pred_fallthru
      _
    %p2933 = scmp.le.s32.totalorder 2, %s20
    // Predicated region
    $region81: #{msa_pair_attention_layer.6} parent=5 // pred_check
      %p2934 = pneg %p2933
    $region82: #{msa_pair_attention_layer.6} parent=5 // pred_check_branch
      %2936 = sbr.rel (%p2934) target = $region84
    $region83: #{msa_pair_attention_layer.6} parent=5 // pred_region
      %s2937 = ssub.s32 %s20, 2
      // Predicated region
      $region85: #{msa_pair_attention_layer.6} parent=83 // pred_check
        %p2938 = pneg %p358
      $region86: #{msa_pair_attention_layer.6} parent=83 // pred_check_branch
        %2940 = sbr.rel (%p2938) target = $region88
      $region87: #{msa_pair_attention_layer.6} parent=83 // pred_region
        %p2941 = scmp.lt.s32.totalorder %s26, 1
        %s2942 = scalar_select %p2941, %s26, 1
        %s2943 = smul.addr %s2942, 32
        %s2944 = smul.addr %s2943, 8
        %s2945 = scalar_lea.vmem %s14, %s2944
      $region88: #{msa_pair_attention_layer.6} parent=83 // pred_fallthru
        _
    $region84: #{msa_pair_attention_layer.6} parent=5 // pred_fallthru
      _
  $region6: #{msa_pair_attention_layer.6} parent=0 // loop_footer
    %s24 = sadd.s32 1, %s20
  $region7: #{msa_pair_attention_layer.6} parent=0 // loop_footer_branch
    %19 = sbr.rel target = $region3
  $region8: #{msa_pair_attention_layer.6} parent=0 // loop_exit
    _

// kernel: msa_pair_attention_layer.7
$region0: #{msa_pair_attention_layer.7}
  #allocation0 [shape = 'u32[]', space=smem, size = 0x4, offset = 0x4, fixed_abs, tag = 'smem constant byte address 0x4 - core index']
  #allocation1 [shape = 'u32[144,128]{1,0:T(1,128)}', space=vmem, size = 0x12000, scoped, tag = 'internal scratch']
  #allocation2 [shape = 'f32[64,32]{1,0:T(8,128)}', space=vmem, size = 0x8000, scoped, tag = 'scratch operand']
  %s0 = inlined_call_operand.vmem [shape: f32[2,64,32], index: 0, kind: input, shape index: {}]
  %s1 = inlined_call_operand.vmem [shape: f32[2,256,16], index: 1, kind: input, shape index: {}]
  %s2 = inlined_call_operand.vmem [shape: f32[2,16,16], index: 2, kind: input, shape index: {}]
  %s3 = inlined_call_operand.vmem [shape: f32[1,32], index: 3, kind: input, shape index: {}]
  %s4 = inlined_call_operand.vmem [shape: f32[1,32], index: 4, kind: input, shape index: {}]
  %s5 = inlined_call_operand.vmem [shape: f32[1,16], index: 5, kind: input, shape index: {}]
  %s6 = inlined_call_operand.vmem [shape: f32[1,16], index: 6, kind: input, shape index: {}]
  %s7 = inlined_call_operand.vmem [shape: f32[4,16], index: 7, kind: input, shape index: {}]
  %s8 = inlined_call_operand.vmem [shape: f32[32,32], index: 8, kind: input, shape index: {}]
  %s9 = inlined_call_operand.vmem [shape: f32[32,32], index: 9, kind: input, shape index: {}]
  %s10 = inlined_call_operand.vmem [shape: f32[1,32], index: 10, kind: input, shape index: {}]
  %s11 = inlined_call_operand.vmem [shape: f32[1,32], index: 11, kind: input, shape index: {}]
  %s12 = inlined_call_operand.vmem [shape: f32[32,32], index: 12, kind: input, shape index: {}]
  %s13 = inlined_call_operand.vmem [shape: f32[32,32], index: 13, kind: input, shape index: {}]
  %s14 = inlined_call_operand.hbm [shape: f32[2,64,32], index: 14, kind: output, shape index: {}]
  %s15 = sld [smem:[#allocation0]]
  $region89: #{msa_pair_attention_layer.7} parent=0
    _
  %s17 = ssub.s32 1, %s15
  %s18 = scalar_select 0, %s17, %s15
  $region1: #{msa_pair_attention_layer.7} parent=0
    #allocation3 [shape = 'u8[65536]{0}', space=vmem, size = 0x10000, scoped, tag = 'output window, operand 0']
    #allocation4 [shape = 's32[2]{0}', space=sflag, size = 0x8, scoped, tag = 'scoped memory for msa_pair_attention_layer.7']
    %19 = vsyncpa [#allocation4], 0
    %s20 = scalar_lea.sflag [#allocation4], 1
    %21 = vsyncpa %s20, 0
    loop: start=0, step=1, limit=4
    $region2: #{msa_pair_attention_layer.7} parent=1 // loop_pre_header
      _
    $region3: #{msa_pair_attention_layer.7} parent=1 // loop_header
      %s23 = sphi 0, %s27
      %p24 = scmp.ge.s32.totalorder %s23, 4
      %s33 = sphi 0, %s35
      %s36 = sphi 0, %s33
      %s37 = sphi 0, %s36
      %s53 = sphi 0, %s37
      %s59 = sphi 0, %s61
      %s62 = sphi 0, %s59
      %s63 = sphi 0, %s62
      %s79 = sphi 0, %s63
      %s85 = sphi 0, %s87
      %s88 = sphi 0, %s85
      %s89 = sphi 0, %s88
      %s105 = sphi 0, %s89
      %s109 = sphi 0, %s109
      %s111 = sphi 0, %s109
      %s112 = sphi 0, %s111
      %s126 = sphi 0, %s112
      %s130 = sphi 0, %s130
      %s132 = sphi 0, %s130
      %s133 = sphi 0, %s132
      %s147 = sphi 0, %s133
      %s151 = sphi 0, %s151
      %s153 = sphi 0, %s151
      %s154 = sphi 0, %s153
      %s168 = sphi 0, %s154
      %s172 = sphi 0, %s172
      %s174 = sphi 0, %s172
      %s175 = sphi 0, %s174
      %s189 = sphi 0, %s175
      %s193 = sphi 0, %s193
      %s195 = sphi 0, %s193
      %s196 = sphi 0, %s195
      %s210 = sphi 0, %s196
      %s214 = sphi 0, %s214
      %s216 = sphi 0, %s214
      %s217 = sphi 0, %s216
      %s231 = sphi 0, %s217
      %s235 = sphi 0, %s235
      %s237 = sphi 0, %s235
      %s238 = sphi 0, %s237
      %s252 = sphi 0, %s238
      %s256 = sphi 0, %s256
      %s258 = sphi 0, %s256
      %s259 = sphi 0, %s258
      %s273 = sphi 0, %s259
      %s277 = sphi 0, %s277
      %s279 = sphi 0, %s277
      %s280 = sphi 0, %s279
      %s294 = sphi 0, %s280
      %s298 = sphi 0, %s298
      %s300 = sphi 0, %s298
      %s301 = sphi 0, %s300
      %s315 = sphi 0, %s301
      %s319 = sphi 0, %s319
      %s321 = sphi 0, %s319
      %s322 = sphi 0, %s321
      %s336 = sphi 0, %s322
      %s342 = sphi 0, %s344
      %s345 = sphi 0, %s342
      %s346 = sphi 0, %s345
      %s362 = sphi 0, %s346
    $region4: #{msa_pair_attention_layer.7} parent=1 // loop_header_branch
      %26 = sbr.rel (%p24) target = $region8
    $region5: #{msa_pair_attention_layer.7} parent=1 // loop_body
      %s28 = ssub.s32 %s23, 1
      %s29 = ssub.s32 %s23, 2
      %s30 = sadd.s32 %s23, 1
      %s31 = ssub.s32 %s23, %s30
      %p32 = scmp.eq.s32.totalorder %s31, 0
      %s34 = sadd.s32 %s33, 1
      %s35 = scalar_select %p32, %s33, %s34
      %p38 = pneg %p32
      %p39 = scmp.eq.s32.totalorder %s23, 1
      %p40 = por %p38, %p39
      %p41 = scmp.ne.s32.totalorder %s33, %s36
      %p42 = scmp.eq.s32.totalorder %s23, 0
      %p43 = por %p41, %p42
      %p44 = scmp.ne.s32.totalorder %s33, %s36
      %p45 = scmp.eq.s32.totalorder %s28, 1
      %p46 = por %p44, %p45
      %p47 = scmp.ne.s32.totalorder %s36, %s37
      %p48 = scmp.eq.s32.totalorder %s28, 0
      %p49 = por %p47, %p48
      %p50 = scmp.ne.s32.totalorder %s36, %s37
      %p51 = scmp.eq.s32.totalorder %s29, 1
      %p52 = por %p50, %p51
      %p54 = scmp.ne.s32.totalorder %s37, %s53
      %p55 = scmp.eq.s32.totalorder %s29, 0
      %p56 = por %p54, %p55
      %s57 = ssub.s32 %s23, %s30
      %p58 = scmp.eq.s32.totalorder %s57, 0
      %s60 = sadd.s32 %s59, 1
      %s61 = scalar_select %p58, %s59, %s60
      %p64 = pneg %p58
      %p65 = scmp.eq.s32.totalorder %s23, 1
      %p66 = por %p64, %p65
      %p67 = scmp.ne.s32.totalorder %s59, %s62
      %p68 = scmp.eq.s32.totalorder %s23, 0
      %p69 = por %p67, %p68
      %p70 = scmp.ne.s32.totalorder %s59, %s62
      %p71 = scmp.eq.s32.totalorder %s28, 1
      %p72 = por %p70, %p71
      %p73 = scmp.ne.s32.totalorder %s62, %s63
      %p74 = scmp.eq.s32.totalorder %s28, 0
      %p75 = por %p73, %p74
      %p76 = scmp.ne.s32.totalorder %s62, %s63
      %p77 = scmp.eq.s32.totalorder %s29, 1
      %p78 = por %p76, %p77
      %p80 = scmp.ne.s32.totalorder %s63, %s79
      %p81 = scmp.eq.s32.totalorder %s29, 0
      %p82 = por %p80, %p81
      %s83 = ssub.s32 %s23, %s30
      %p84 = scmp.eq.s32.totalorder %s83, 0
      %s86 = sadd.s32 %s85, 1
      %s87 = scalar_select %p84, %s85, %s86
      %p90 = pneg %p84
      %p91 = scmp.eq.s32.totalorder %s23, 1
      %p92 = por %p90, %p91
      %p93 = scmp.ne.s32.totalorder %s85, %s88
      %p94 = scmp.eq.s32.totalorder %s23, 0
      %p95 = por %p93, %p94
      %p96 = scmp.ne.s32.totalorder %s85, %s88
      %p97 = scmp.eq.s32.totalorder %s28, 1
      %p98 = por %p96, %p97
      %p99 = scmp.ne.s32.totalorder %s88, %s89
      %p100 = scmp.eq.s32.totalorder %s28, 0
      %p101 = por %p99, %p100
      %p102 = scmp.ne.s32.totalorder %s88, %s89
      %p103 = scmp.eq.s32.totalorder %s29, 1
      %p104 = por %p102, %p103
      %p106 = scmp.ne.s32.totalorder %s89, %s105
      %p107 = scmp.eq.s32.totalorder %s29, 0
      %p108 = por %p106, %p107
      %s110 = sadd.s32 %s109, 1
      %p113 = scmp.eq.s32.totalorder %s23, 1
      %p114 = scmp.ne.s32.totalorder %s109, %s111
      %p115 = scmp.eq.s32.totalorder %s23, 0
      %p116 = por %p114, %p115
      %p117 = scmp.ne.s32.totalorder %s109, %s111
      %p118 = scmp.eq.s32.totalorder %s28, 1
      %p119 = por %p117, %p118
      %p120 = scmp.ne.s32.totalorder %s111, %s112
      %p121 = scmp.eq.s32.totalorder %s28, 0
      %p122 = por %p120, %p121
      %p123 = scmp.ne.s32.totalorder %s111, %s112
      %p124 = scmp.eq.s32.totalorder %s29, 1
      %p125 = por %p123, %p124
      %p127 = scmp.ne.s32.totalorder %s112, %s126
      %p128 = scmp.eq.s32.totalorder %s29, 0
      %p129 = por %p127, %p128
      %s131 = sadd.s32 %s130, 1
      %p134 = scmp.eq.s32.totalorder %s23, 1
      %p135 = scmp.ne.s32.totalorder %s130, %s132
      %p136 = scmp.eq.s32.totalorder %s23, 0
      %p137 = por %p135, %p136
      %p138 = scmp.ne.s32.totalorder %s130, %s132
      %p139 = scmp.eq.s32.totalorder %s28, 1
      %p140 = por %p138, %p139
      %p141 = scmp.ne.s32.totalorder %s132, %s133
      %p142 = scmp.eq.s32.totalorder %s28, 0
      %p143 = por %p141, %p142
      %p144 = scmp.ne.s32.totalorder %s132, %s133
      %p145 = scmp.eq.s32.totalorder %s29, 1
      %p146 = por %p144, %p145
      %p148 = scmp.ne.s32.totalorder %s133, %s147
      %p149 = scmp.eq.s32.totalorder %s29, 0
      %p150 = por %p148, %p149
      %s152 = sadd.s32 %s151, 1
      %p155 = scmp.eq.s32.totalorder %s23, 1
      %p156 = scmp.ne.s32.totalorder %s151, %s153
      %p157 = scmp.eq.s32.totalorder %s23, 0
      %p158 = por %p156, %p157
      %p159 = scmp.ne.s32.totalorder %s151, %s153
      %p160 = scmp.eq.s32.totalorder %s28, 1
      %p161 = por %p159, %p160
      %p162 = scmp.ne.s32.totalorder %s153, %s154
      %p163 = scmp.eq.s32.totalorder %s28, 0
      %p164 = por %p162, %p163
      %p165 = scmp.ne.s32.totalorder %s153, %s154
      %p166 = scmp.eq.s32.totalorder %s29, 1
      %p167 = por %p165, %p166
      %p169 = scmp.ne.s32.totalorder %s154, %s168
      %p170 = scmp.eq.s32.totalorder %s29, 0
      %p171 = por %p169, %p170
      %s173 = sadd.s32 %s172, 1
      %p176 = scmp.eq.s32.totalorder %s23, 1
      %p177 = scmp.ne.s32.totalorder %s172, %s174
      %p178 = scmp.eq.s32.totalorder %s23, 0
      %p179 = por %p177, %p178
      %p180 = scmp.ne.s32.totalorder %s172, %s174
      %p181 = scmp.eq.s32.totalorder %s28, 1
      %p182 = por %p180, %p181
      %p183 = scmp.ne.s32.totalorder %s174, %s175
      %p184 = scmp.eq.s32.totalorder %s28, 0
      %p185 = por %p183, %p184
      %p186 = scmp.ne.s32.totalorder %s174, %s175
      %p187 = scmp.eq.s32.totalorder %s29, 1
      %p188 = por %p186, %p187
      %p190 = scmp.ne.s32.totalorder %s175, %s189
      %p191 = scmp.eq.s32.totalorder %s29, 0
      %p192 = por %p190, %p191
      %s194 = sadd.s32 %s193, 1
      %p197 = scmp.eq.s32.totalorder %s23, 1
      %p198 = scmp.ne.s32.totalorder %s193, %s195
      %p199 = scmp.eq.s32.totalorder %s23, 0
      %p200 = por %p198, %p199
      %p201 = scmp.ne.s32.totalorder %s193, %s195
      %p202 = scmp.eq.s32.totalorder %s28, 1
      %p203 = por %p201, %p202
      %p204 = scmp.ne.s32.totalorder %s195, %s196
      %p205 = scmp.eq.s32.totalorder %s28, 0
      %p206 = por %p204, %p205
      %p207 = scmp.ne.s32.totalorder %s195, %s196
      %p208 = scmp.eq.s32.totalorder %s29, 1
      %p209 = por %p207, %p208
      %p211 = scmp.ne.s32.totalorder %s196, %s210
      %p212 = scmp.eq.s32.totalorder %s29, 0
      %p213 = por %p211, %p212
      %s215 = sadd.s32 %s214, 1
      %p218 = scmp.eq.s32.totalorder %s23, 1
      %p219 = scmp.ne.s32.totalorder %s214, %s216
      %p220 = scmp.eq.s32.totalorder %s23, 0
      %p221 = por %p219, %p220
      %p222 = scmp.ne.s32.totalorder %s214, %s216
      %p223 = scmp.eq.s32.totalorder %s28, 1
      %p224 = por %p222, %p223
      %p225 = scmp.ne.s32.totalorder %s216, %s217
      %p226 = scmp.eq.s32.totalorder %s28, 0
      %p227 = por %p225, %p226
      %p228 = scmp.ne.s32.totalorder %s216, %s217
      %p229 = scmp.eq.s32.totalorder %s29, 1
      %p230 = por %p228, %p229
      %p232 = scmp.ne.s32.totalorder %s217, %s231
      %p233 = scmp.eq.s32.totalorder %s29, 0
      %p234 = por %p232, %p233
      %s236 = sadd.s32 %s235, 1
      %p239 = scmp.eq.s32.totalorder %s23, 1
      %p240 = scmp.ne.s32.totalorder %s235, %s237
      %p241 = scmp.eq.s32.totalorder %s23, 0
      %p242 = por %p240, %p241
      %p243 = scmp.ne.s32.totalorder %s235, %s237
      %p244 = scmp.eq.s32.totalorder %s28, 1
      %p245 = por %p243, %p244
      %p246 = scmp.ne.s32.totalorder %s237, %s238
      %p247 = scmp.eq.s32.totalorder %s28, 0
      %p248 = por %p246, %p247
      %p249 = scmp.ne.s32.totalorder %s237, %s238
      %p250 = scmp.eq.s32.totalorder %s29, 1
      %p251 = por %p249, %p250
      %p253 = scmp.ne.s32.totalorder %s238, %s252
      %p254 = scmp.eq.s32.totalorder %s29, 0
      %p255 = por %p253, %p254
      %s257 = sadd.s32 %s256, 1
      %p260 = scmp.eq.s32.totalorder %s23, 1
      %p261 = scmp.ne.s32.totalorder %s256, %s258
      %p262 = scmp.eq.s32.totalorder %s23, 0
      %p263 = por %p261, %p262
      %p264 = scmp.ne.s32.totalorder %s256, %s258
      %p265 = scmp.eq.s32.totalorder %s28, 1
      %p266 = por %p264, %p265
      %p267 = scmp.ne.s32.totalorder %s258, %s259
      %p268 = scmp.eq.s32.totalorder %s28, 0
      %p269 = por %p267, %p268
      %p270 = scmp.ne.s32.totalorder %s258, %s259
      %p271 = scmp.eq.s32.totalorder %s29, 1
      %p272 = por %p270, %p271
      %p274 = scmp.ne.s32.totalorder %s259, %s273
      %p275 = scmp.eq.s32.totalorder %s29, 0
      %p276 = por %p274, %p275
      %s278 = sadd.s32 %s277, 1
      %p281 = scmp.eq.s32.totalorder %s23, 1
      %p282 = scmp.ne.s32.totalorder %s277, %s279
      %p283 = scmp.eq.s32.totalorder %s23, 0
      %p284 = por %p282, %p283
      %p285 = scmp.ne.s32.totalorder %s277, %s279
      %p286 = scmp.eq.s32.totalorder %s28, 1
      %p287 = por %p285, %p286
      %p288 = scmp.ne.s32.totalorder %s279, %s280
      %p289 = scmp.eq.s32.totalorder %s28, 0
      %p290 = por %p288, %p289
      %p291 = scmp.ne.s32.totalorder %s279, %s280
      %p292 = scmp.eq.s32.totalorder %s29, 1
      %p293 = por %p291, %p292
      %p295 = scmp.ne.s32.totalorder %s280, %s294
      %p296 = scmp.eq.s32.totalorder %s29, 0
      %p297 = por %p295, %p296
      %s299 = sadd.s32 %s298, 1
      %p302 = scmp.eq.s32.totalorder %s23, 1
      %p303 = scmp.ne.s32.totalorder %s298, %s300
      %p304 = scmp.eq.s32.totalorder %s23, 0
      %p305 = por %p303, %p304
      %p306 = scmp.ne.s32.totalorder %s298, %s300
      %p307 = scmp.eq.s32.totalorder %s28, 1
      %p308 = por %p306, %p307
      %p309 = scmp.ne.s32.totalorder %s300, %s301
      %p310 = scmp.eq.s32.totalorder %s28, 0
      %p311 = por %p309, %p310
      %p312 = scmp.ne.s32.totalorder %s300, %s301
      %p313 = scmp.eq.s32.totalorder %s29, 1
      %p314 = por %p312, %p313
      %p316 = scmp.ne.s32.totalorder %s301, %s315
      %p317 = scmp.eq.s32.totalorder %s29, 0
      %p318 = por %p316, %p317
      %s320 = sadd.s32 %s319, 1
      %p323 = scmp.eq.s32.totalorder %s23, 1
      %p324 = scmp.ne.s32.totalorder %s319, %s321
      %p325 = scmp.eq.s32.totalorder %s23, 0
      %p326 = por %p324, %p325
      %p327 = scmp.ne.s32.totalorder %s319, %s321
      %p328 = scmp.eq.s32.totalorder %s28, 1
      %p329 = por %p327, %p328
      %p330 = scmp.ne.s32.totalorder %s321, %s322
      %p331 = scmp.eq.s32.totalorder %s28, 0
      %p332 = por %p330, %p331
      %p333 = scmp.ne.s32.totalorder %s321, %s322
      %p334 = scmp.eq.s32.totalorder %s29, 1
      %p335 = por %p333, %p334
      %p337 = scmp.ne.s32.totalorder %s322, %s336
      %p338 = scmp.eq.s32.totalorder %s29, 0
      %p339 = por %p337, %p338
      %s340 = ssub.s32 %s23, %s30
      %p341 = scmp.eq.s32.totalorder %s340, 0
      %s343 = sadd.s32 %s342, 1
      %s344 = scalar_select %p341, %s342, %s343
      %p347 = pneg %p341
      %p348 = scmp.eq.s32.totalorder %s23, 1
      %p349 = por %p347, %p348
      %p350 = scmp.ne.s32.totalorder %s342, %s345
      %p351 = scmp.eq.s32.totalorder %s23, 0
      %p352 = por %p350, %p351
      %p353 = scmp.ne.s32.totalorder %s342, %s345
      %p354 = scmp.eq.s32.totalorder %s28, 1
      %p355 = por %p353, %p354
      %p356 = scmp.ne.s32.totalorder %s345, %s346
      %p357 = scmp.eq.s32.totalorder %s28, 0
      %p358 = por %p356, %p357
      %p359 = scmp.ne.s32.totalorder %s345, %s346
      %p360 = scmp.eq.s32.totalorder %s29, 1
      %p361 = por %p359, %p360
      %p363 = scmp.ne.s32.totalorder %s346, %s362
      %p364 = scmp.eq.s32.totalorder %s29, 0
      %p365 = por %p363, %p364
      %p366 = scmp.le.s32.totalorder 1, %s23
      %p367 = scmp.lt.s32.totalorder %s23, 3
      %p368 = pnand %p366, %p367
      %p369 = pneg %p368
      // Predicated region
      $region9: #{msa_pair_attention_layer.7} parent=5 // pred_check
        _
      $region10: #{msa_pair_attention_layer.7} parent=5 // pred_check_branch
        %371 = sbr.rel (%p368) target = $region12
      $region11: #{msa_pair_attention_layer.7} parent=5 // pred_region
        %s372 = ssub.s32 %s23, 1
        // Predicated region
        $region13: #{msa_pair_attention_layer.7} parent=11 // pred_check
          %p373 = pneg %p122
        $region14: #{msa_pair_attention_layer.7} parent=11 // pred_check_branch
          %375 = sbr.rel (%p373) target = $region16
        $region15: #{msa_pair_attention_layer.7} parent=11 // pred_region
          _
        $region16: #{msa_pair_attention_layer.7} parent=11 // pred_fallthru
          _
        // Predicated region
        $region17: #{msa_pair_attention_layer.7} parent=11 // pred_check
          %p376 = pneg %p143
        $region18: #{msa_pair_attention_layer.7} parent=11 // pred_check_branch
          %378 = sbr.rel (%p376) target = $region20
        $region19: #{msa_pair_attention_layer.7} parent=11 // pred_region
          _
        $region20: #{msa_pair_attention_layer.7} parent=11 // pred_fallthru
          _
        // Predicated region
        $region21: #{msa_pair_attention_layer.7} parent=11 // pred_check
          %p379 = pneg %p164
        $region22: #{msa_pair_attention_layer.7} parent=11 // pred_check_branch
          %381 = sbr.rel (%p379) target = $region24
        $region23: #{msa_pair_attention_layer.7} parent=11 // pred_region
          _
        $region24: #{msa_pair_attention_layer.7} parent=11 // pred_fallthru
          _
        // Predicated region
        $region25: #{msa_pair_attention_layer.7} parent=11 // pred_check
          %p382 = pneg %p185
        $region26: #{msa_pair_attention_layer.7} parent=11 // pred_check_branch
          %384 = sbr.rel (%p382) target = $region28
        $region27: #{msa_pair_attention_layer.7} parent=11 // pred_region
          _
        $region28: #{msa_pair_attention_layer.7} parent=11 // pred_fallthru
          _
        // Predicated region
        $region29: #{msa_pair_attention_layer.7} parent=11 // pred_check
          %p385 = pneg %p206
        $region30: #{msa_pair_attention_layer.7} parent=11 // pred_check_branch
          %387 = sbr.rel (%p385) target = $region32
        $region31: #{msa_pair_attention_layer.7} parent=11 // pred_region
          _
        $region32: #{msa_pair_attention_layer.7} parent=11 // pred_fallthru
          _
        // Predicated region
        $region33: #{msa_pair_attention_layer.7} parent=11 // pred_check
          %p388 = pneg %p227
        $region34: #{msa_pair_attention_layer.7} parent=11 // pred_check_branch
          %390 = sbr.rel (%p388) target = $region36
        $region35: #{msa_pair_attention_layer.7} parent=11 // pred_region
          _
        $region36: #{msa_pair_attention_layer.7} parent=11 // pred_fallthru
          _
        // Predicated region
        $region37: #{msa_pair_attention_layer.7} parent=11 // pred_check
          %p391 = pneg %p248
        $region38: #{msa_pair_attention_layer.7} parent=11 // pred_check_branch
          %393 = sbr.rel (%p391) target = $region40
        $region39: #{msa_pair_attention_layer.7} parent=11 // pred_region
          _
        $region40: #{msa_pair_attention_layer.7} parent=11 // pred_fallthru
          _
        // Predicated region
        $region41: #{msa_pair_attention_layer.7} parent=11 // pred_check
          %p394 = pneg %p269
        $region42: #{msa_pair_attention_layer.7} parent=11 // pred_check_branch
          %396 = sbr.rel (%p394) target = $region44
        $region43: #{msa_pair_attention_layer.7} parent=11 // pred_region
          _
        $region44: #{msa_pair_attention_layer.7} parent=11 // pred_fallthru
          _
        // Predicated region
        $region45: #{msa_pair_attention_layer.7} parent=11 // pred_check
          %p397 = pneg %p290
        $region46: #{msa_pair_attention_layer.7} parent=11 // pred_check_branch
          %399 = sbr.rel (%p397) target = $region48
        $region47: #{msa_pair_attention_layer.7} parent=11 // pred_region
          _
        $region48: #{msa_pair_attention_layer.7} parent=11 // pred_fallthru
          _
        // Predicated region
        $region49: #{msa_pair_attention_layer.7} parent=11 // pred_check
          %p400 = pneg %p311
        $region50: #{msa_pair_attention_layer.7} parent=11 // pred_check_branch
          %402 = sbr.rel (%p400) target = $region52
        $region51: #{msa_pair_attention_layer.7} parent=11 // pred_region
          _
        $region52: #{msa_pair_attention_layer.7} parent=11 // pred_fallthru
          _
        // Predicated region
        $region53: #{msa_pair_attention_layer.7} parent=11 // pred_check
          %p403 = pneg %p332
        $region54: #{msa_pair_attention_layer.7} parent=11 // pred_check_branch
          %405 = sbr.rel (%p403) target = $region56
        $region55: #{msa_pair_attention_layer.7} parent=11 // pred_region
          _
        $region56: #{msa_pair_attention_layer.7} parent=11 // pred_fallthru
          _
      $region12: #{msa_pair_attention_layer.7} parent=5 // pred_fallthru
        _
      %p406 = scmp.lt.s32.totalorder %s23, 2
      // Predicated region
      $region57: #{msa_pair_attention_layer.7} parent=5 // pred_check
        %p407 = pneg %p406
      $region58: #{msa_pair_attention_layer.7} parent=5 // pred_check_branch
        %409 = sbr.rel (%p407) target = $region60
      $region59: #{msa_pair_attention_layer.7} parent=5 // pred_region
        // Predicated region
        $region61: #{msa_pair_attention_layer.7} parent=59 // pred_check
          %p410 = pneg %p43
        $region62: #{msa_pair_attention_layer.7} parent=59 // pred_check_branch
          %412 = sbr.rel (%p410) target = $region64
        $region63: #{msa_pair_attention_layer.7} parent=59 // pred_region
          %p413 = scmp.lt.s32.totalorder %s23, 1
          %s414 = scalar_select %p413, %s23, 1
          %s415 = smul.addr %s414, 8
          %s416 = smul.addr %s415, 8
          %s417 = scalar_lea.vmem %s0, %s416
        $region64: #{msa_pair_attention_layer.7} parent=59 // pred_fallthru
          _
        // Predicated region
        $region65: #{msa_pair_attention_layer.7} parent=59 // pred_check
          %p418 = pneg %p69
        $region66: #{msa_pair_attention_layer.7} parent=59 // pred_check_branch
          %420 = sbr.rel (%p418) target = $region68
        $region67: #{msa_pair_attention_layer.7} parent=59 // pred_region
          %p421 = scmp.lt.s32.totalorder %s23, 1
          %s422 = scalar_select %p421, %s23, 1
          %s423 = smul.addr %s422, 32
          %s424 = smul.addr %s423, 8
          %s425 = scalar_lea.vmem %s1, %s424
        $region68: #{msa_pair_attention_layer.7} parent=59 // pred_fallthru
          _
        // Predicated region
        $region69: #{msa_pair_attention_layer.7} parent=59 // pred_check
          %p426 = pneg %p95
        $region70: #{msa_pair_attention_layer.7} parent=59 // pred_check_branch
          %428 = sbr.rel (%p426) target = $region72
        $region71: #{msa_pair_attention_layer.7} parent=59 // pred_region
          %p429 = scmp.lt.s32.totalorder %s23, 1
          %s430 = scalar_select %p429, %s23, 1
          %s431 = smul.addr %s430, 2
          %s432 = smul.addr %s431, 8
          %s433 = scalar_lea.vmem %s2, %s432
        $region72: #{msa_pair_attention_layer.7} parent=59 // pred_fallthru
          _
      $region60: #{msa_pair_attention_layer.7} parent=5 // pred_fallthru
        _
      %p434 = scmp.le.s32.totalorder 1, %s23
      %p435 = scmp.lt.s32.totalorder %s23, 3
      %p436 = pnand %p434, %p435
      %p437 = pneg %p436
      // Predicated region
      $region73: #{msa_pair_attention_layer.7} parent=5 // pred_check
        _
      $region74: #{msa_pair_attention_layer.7} parent=5 // pred_check_branch
        %439 = sbr.rel (%p436) target = $region76
      $region75: #{msa_pair_attention_layer.7} parent=5 // pred_region
        %s440 = ssub.s32 %s23, 1
        %p441 = scmp.lt.s32.totalorder %s28, 1
        %s442 = scalar_select %p441, %s28, 1
        %s443 = smul.addr %s442, 8
        %s444 = smul.addr %s443, 8
        %s445 = scalar_lea.vmem %s0, %s444
        %p446 = pneg %p49
        %p447 = pneg %p46
        %p448 = scmp.lt.s32.totalorder %s28, 1
        %s449 = scalar_select %p448, %s28, 1
        %s450 = smul.addr %s449, 32
        %s451 = smul.addr %s450, 8
        %s452 = scalar_lea.vmem %s1, %s451
        %p453 = pneg %p75
        %p454 = pneg %p72
        %p455 = scmp.lt.s32.totalorder %s28, 1
        %s456 = scalar_select %p455, %s28, 1
        %s457 = smul.addr %s456, 2
        %s458 = smul.addr %s457, 8
        %s459 = scalar_lea.vmem %s2, %s458
        %p460 = pneg %p101
        %p461 = pneg %p98
        %p462 = pneg %p122
        %p463 = pneg %p119
        %p464 = pneg %p143
        %p465 = pneg %p140
        %p466 = pneg %p164
        %p467 = pneg %p161
        %p468 = pneg %p185
        %p469 = pneg %p182
        %p470 = pneg %p206
        %p471 = pneg %p203
        %p472 = pneg %p227
        %p473 = pneg %p224
        %p474 = pneg %p248
        %p475 = pneg %p245
        %p476 = pneg %p269
        %p477 = pneg %p266
        %p478 = pneg %p290
        %p479 = pneg %p287
        %p480 = pneg %p311
        %p481 = pneg %p308
        %p482 = pneg %p332
        %p483 = pneg %p329
        %p484 = pneg %p358
        %p485 = pneg %p355
        %s486 = sand.u32 %s345, 1
        %s487 = scalar_lea.sflag [#allocation4], %s486
        %s488 = sand.u32 %s345, 1
        %s489 = smul.addr %s488, 64
        %s490 = scalar_lea.vmem [#allocation3], %s489
        %p491 = scmp.lt.s32.totalorder %s28, 1
        %s492 = scalar_select %p491, %s28, 1
        %s493 = smul.addr %s492, 8
        %s494 = smul.addr %s493, 8
        %s495 = scalar_lea.vmem %s0, %s494
        %p496 = scmp.lt.s32.totalorder %s28, 1
        %s497 = scalar_select %p496, %s28, 1
        %s498 = smul.addr %s497, 32
        %s499 = smul.addr %s498, 8
        %s500 = scalar_lea.vmem %s1, %s499
        %p501 = scmp.lt.s32.totalorder %s28, 1
        %s502 = scalar_select %p501, %s28, 1
        %s503 = smul.addr %s502, 2
        %s504 = smul.addr %s503, 8
        %s505 = scalar_lea.vmem %s2, %s504
        %v507 = vld [vmem:[%s495] sm:$0xff]
        %v508 = vld [vmem:[%s495 + $0x8] sm:$0xff]
        %v509 = vld [vmem:[%s495 + $0x10] sm:$0xff]
        %v510 = vld [vmem:[%s495 + $0x18] sm:$0xff]
        %v511 = vld [vmem:[%s495 + $0x20] sm:$0xff]
        %v512 = vld [vmem:[%s495 + $0x28] sm:$0xff]
        %v513 = vld [vmem:[%s495 + $0x30] sm:$0xff]
        %v514 = vld [vmem:[%s495 + $0x38] sm:$0xff]
        %v515 = vld [vmem:[%s500] sm:$0xff]
        %v516 = vld [vmem:[%s500 + $0x8] sm:$0xff]
        %v517 = vld [vmem:[%s500 + $0x10] sm:$0xff]
        %v518 = vld [vmem:[%s500 + $0x18] sm:$0xff]
        %v519 = vld [vmem:[%s500 + $0x20] sm:$0xff]
        %v520 = vld [vmem:[%s500 + $0x28] sm:$0xff]
        %v521 = vld [vmem:[%s500 + $0x30] sm:$0xff]
        %v522 = vld [vmem:[%s500 + $0x38] sm:$0xff]
        %v523 = vld [vmem:[%s500 + $0x40] sm:$0xff]
        %v524 = vld [vmem:[%s500 + $0x48] sm:$0xff]
        %v525 = vld [vmem:[%s500 + $0x50] sm:$0xff]
        %v526 = vld [vmem:[%s500 + $0x58] sm:$0xff]
        %v527 = vld [vmem:[%s500 + $0x60] sm:$0xff]
        %v528 = vld [vmem:[%s500 + $0x68] sm:$0xff]
        %v529 = vld [vmem:[%s500 + $0x70] sm:$0xff]
        %v530 = vld [vmem:[%s500 + $0x78] sm:$0xff]
        %v531 = vld [vmem:[%s500 + $0x80] sm:$0xff]
        %v532 = vld [vmem:[%s500 + $0x88] sm:$0xff]
        %v533 = vld [vmem:[%s500 + $0x90] sm:$0xff]
        %v534 = vld [vmem:[%s500 + $0x98] sm:$0xff]
        %v535 = vld [vmem:[%s500 + $0xa0] sm:$0xff]
        %v536 = vld [vmem:[%s500 + $0xa8] sm:$0xff]
        %v537 = vld [vmem:[%s500 + $0xb0] sm:$0xff]
        %v538 = vld [vmem:[%s500 + $0xb8] sm:$0xff]
        %v539 = vld [vmem:[%s500 + $0xc0] sm:$0xff]
        %v540 = vld [vmem:[%s500 + $0xc8] sm:$0xff]
        %v541 = vld [vmem:[%s500 + $0xd0] sm:$0xff]
        %v542 = vld [vmem:[%s500 + $0xd8] sm:$0xff]
        %v543 = vld [vmem:[%s500 + $0xe0] sm:$0xff]
        %v544 = vld [vmem:[%s500 + $0xe8] sm:$0xff]
        %v545 = vld [vmem:[%s500 + $0xf0] sm:$0xff]
        %v546 = vld [vmem:[%s500 + $0xf8] sm:$0xff]
        %v547 = vld [vmem:[%s505] sm:$0xff]
        %v548 = vld [vmem:[%s505 + $0x8] sm:$0xff]
        %v549 = vld [vmem:[%s3] sm:$0x1]
        %v550 = vld [vmem:[%s4] sm:$0x1]
        %vm551 = vcmask 261120
        %v552 = vsel %vm551, %v507, 0.0
        %553 = vadd.xlane.f32.xlu0 %v552
        %v554 = vpop.xlane.xlu0 %553
        %v555 = vsel %vm551, %v508, 0.0
        %556 = vadd.xlane.f32.xlu0 %v555
        %v557 = vpop.xlane.xlu0 %556
        %v558 = vsel %vm551, %v509, 0.0
        %559 = vadd.xlane.f32.xlu0 %v558
        %v560 = vpop.xlane.xlu0 %559
        %v561 = vsel %vm551, %v510, 0.0
        %562 = vadd.xlane.f32.xlu0 %v561
        %v563 = vpop.xlane.xlu0 %562
        %v564 = vsel %vm551, %v511, 0.0
        %565 = vadd.xlane.f32.xlu0 %v564
        %v566 = vpop.xlane.xlu0 %565
        %v567 = vsel %vm551, %v512, 0.0
        %568 = vadd.xlane.f32.xlu0 %v567
        %v569 = vpop.xlane.xlu0 %568
        %v570 = vsel %vm551, %v513, 0.0
        %571 = vadd.xlane.f32.xlu0 %v570
        %v572 = vpop.xlane.xlu0 %571
        %v573 = vsel %vm551, %v514, 0.0
        %574 = vadd.xlane.f32.xlu0 %v573
        %v575 = vpop.xlane.xlu0 %574
        %v576 = vrcp.pop 32.0
        %v577 = vmul.f32 %v554, %v576
        %v578 = vmul.f32 %v557, %v576
        %v579 = vmul.f32 %v560, %v576
        %v580 = vmul.f32 %v563, %v576
        %v581 = vmul.f32 %v566, %v576
        %v582 = vmul.f32 %v569, %v576
        %v583 = vmul.f32 %v572, %v576
        %v584 = vmul.f32 %v575, %v576
        %v585 = vsub.f32 %v507, %v577
        %v586 = vsub.f32 %v508, %v578
        %v587 = vsub.f32 %v509, %v579
        %v588 = vsub.f32 %v510, %v580
        %v589 = vsub.f32 %v511, %v581
        %v590 = vsub.f32 %v512, %v582
        %v591 = vsub.f32 %v513, %v583
        %v592 = vsub.f32 %v514, %v584
        %v593 = vmul.f32 %v585, %v585
        %v594 = vmul.f32 %v586, %v586
        %v595 = vmul.f32 %v587, %v587
        %v596 = vmul.f32 %v588, %v588
        %v597 = vmul.f32 %v589, %v589
        %v598 = vmul.f32 %v590, %v590
        %v599 = vmul.f32 %v591, %v591
        %v600 = vmul.f32 %v592, %v592
        %v601 = vsel %vm551, %v593, 0.0
        %602 = vadd.xlane.f32.xlu0 %v601
        %v603 = vpop.xlane.xlu0 %602
        %v604 = vsel %vm551, %v594, 0.0
        %605 = vadd.xlane.f32.xlu0 %v604
        %v606 = vpop.xlane.xlu0 %605
        %v607 = vsel %vm551, %v595, 0.0
        %608 = vadd.xlane.f32.xlu0 %v607
        %v609 = vpop.xlane.xlu0 %608
        %v610 = vsel %vm551, %v596, 0.0
        %611 = vadd.xlane.f32.xlu0 %v610
        %v612 = vpop.xlane.xlu0 %611
        %v613 = vsel %vm551, %v597, 0.0
        %614 = vadd.xlane.f32.xlu0 %v613
        %v615 = vpop.xlane.xlu0 %614
        %v616 = vsel %vm551, %v598, 0.0
        %617 = vadd.xlane.f32.xlu0 %v616
        %v618 = vpop.xlane.xlu0 %617
        %v619 = vsel %vm551, %v599, 0.0
        %620 = vadd.xlane.f32.xlu0 %v619
        %v621 = vpop.xlane.xlu0 %620
        %v622 = vsel %vm551, %v600, 0.0
        %623 = vadd.xlane.f32.xlu0 %v622
        %v624 = vpop.xlane.xlu0 %623
        %v625 = vmul.f32 %v603, %v576
        %v626 = vmul.f32 %v606, %v576
        %v627 = vmul.f32 %v609, %v576
        %v628 = vmul.f32 %v612, %v576
        %v629 = vmul.f32 %v615, %v576
        %v630 = vmul.f32 %v618, %v576
        %v631 = vmul.f32 %v621, %v576
        %v632 = vmul.f32 %v624, %v576
        %v633 = vadd.f32 %v625, 1e-05
        %v634 = vadd.f32 %v626, 1e-05
        %v635 = vadd.f32 %v627, 1e-05
        %v636 = vadd.f32 %v628, 1e-05
        %v637 = vadd.f32 %v629, 1e-05
        %v638 = vadd.f32 %v630, 1e-05
        %v639 = vadd.f32 %v631, 1e-05
        %v640 = vadd.f32 %v632, 1e-05
        %v641 = vrsqrt.pop %v633
        %v642 = vrsqrt.pop %v634
        %v643 = vrsqrt.pop %v635
        %v644 = vrsqrt.pop %v636
        %v645 = vrsqrt.pop %v637
        %v646 = vrsqrt.pop %v638
        %v647 = vrsqrt.pop %v639
        %v648 = vrsqrt.pop %v640
        %v649 = vmul.f32 %v585, %v641
        %v650 = vmul.f32 %v586, %v642
        %v651 = vmul.f32 %v587, %v643
        %v652 = vmul.f32 %v588, %v644
        %v653 = vmul.f32 %v589, %v645
        %v654 = vmul.f32 %v590, %v646
        %v655 = vmul.f32 %v591, %v647
        %v656 = vmul.f32 %v592, %v648
        %v658 = vlaneseq
        %v659 = vshrl.u32 %v658, 7
        %v660 = vsub.s32 0, %v659
        %v661 = vrot.slane %v549, %v660
        %v663 = vmul.f32 %v649, %v661
        %v664 = vmul.f32 %v650, %v661
        %v665 = vmul.f32 %v651, %v661
        %v666 = vmul.f32 %v652, %v661
        %v667 = vmul.f32 %v653, %v661
        %v668 = vmul.f32 %v654, %v661
        %v669 = vmul.f32 %v655, %v661
        %v670 = vmul.f32 %v656, %v661
        %v672 = vlaneseq
        %v673 = vshrl.u32 %v672, 7
        %v674 = vsub.s32 0, %v673
        %v675 = vrot.slane %v550, %v674
        %v677 = vadd.f32 %v663, %v675
        %v678 = vadd.f32 %v664, %v675
        %v679 = vadd.f32 %v665, %v675
        %v680 = vadd.f32 %v666, %v675
        %v681 = vadd.f32 %v667, %v675
        %v682 = vadd.f32 %v668, %v675
        %v683 = vadd.f32 %v669, %v675
        %v684 = vadd.f32 %v670, %v675
        %v685 = vld [vmem:[%s8] sm:$0xff]
        %v686 = vld [vmem:[%s8 + $0x8] sm:$0xff]
        %v687 = vld [vmem:[%s8 + $0x10] sm:$0xff]
        %v688 = vld [vmem:[%s8 + $0x18] sm:$0xff]
        %v689 = vpack.c.bf16 %v678, %v677
        %v690 = vpack.c.bf16 %v680, %v679
        %v691 = vpack.c.bf16 %v682, %v681
        %v692 = vpack.c.bf16 %v684, %v683
        %v693 = vpack.c.bf16 %v686, %v685
        %v694 = vpack.c.bf16 %v688, %v687
        %v696 = vsel %vm551, %v689, 0
        %v699 = vsel %vm551, %v690, 0
        %v702 = vsel %vm551, %v691, 0
        %v705 = vsel %vm551, %v692, 0
        %707 = vmatprep.subr.bf16.mxu0 0
        %708 = vmatpush1.bf16.msra.mxu0 0
        %709 = vmatprep.subr.bf16.mxu0 0
        %710 = vmatpush1.bf16.msra.mxu0 0
        %711 = vmatprep.subr.bf16.mxu0 0
        %712 = vmatpush1.bf16.msra.mxu0 0
        %713 = vmatprep.subr.bf16.mxu0 0
        %714 = vmatpush1.bf16.msra.mxu0 0
        %715 = vmatprep.subr.bf16.mxu0 0
        %716 = vmatpush1.bf16.msra.mxu0 0
        %717 = vmatprep.subr.bf16.mxu0 0
        %718 = vmatpush1.bf16.msra.mxu0 0
        %719 = vmatprep.subr.bf16.mxu0 0
        %720 = vmatpush1.bf16.msra.mxu0 %v694
        %721 = vmatprep.subr.bf16.mxu0 0
        %722 = vmatpush1.bf16.msra.mxu0 %v693
        %723 = vmatprep.subr.bf16.mxu0 0
        %724 = vmatpush2.bf16.msra.mxu0 0
        %725 = vmatprep.subr.bf16.mxu0 0
        %726 = vmatpush2.bf16.msra.mxu0 0
        %727 = vmatprep.subr.bf16.mxu0 0
        %728 = vmatpush2.bf16.msra.mxu0 0
        %729 = vmatprep.subr.bf16.mxu0 0
        %730 = vmatpush2.bf16.msra.mxu0 0
        %731 = vmatprep.subr.bf16.mxu0 0
        %732 = vmatpush2.bf16.msra.mxu0 0
        %733 = vmatprep.subr.bf16.mxu0 0
        %734 = vmatpush2.bf16.msra.mxu0 0
        %735 = vmatprep.subr.bf16.mxu0 0
        %736 = vmatpush2.bf16.msra.mxu0 0
        %737 = vmatprep.subr.bf16.mxu0 0
        %738 = vmatpush2.bf16.msra.mxu0 0
        %739 = vmatprep.mubr.bf16.mxu0 0
        %740 = vmatmul.mubr.bf16.gmra.mxu0 %v696
        %v741 = vpop.f32.mrf.mxu0
        %v742 = vadd.f32 0.0, %v741
        %v743 = vpop.f32.mrf.mxu0
        %v744 = vpop.f32.mrf.mxu0
        %v745 = vadd.f32 0.0, %v744
        %v746 = vpop.f32.mrf.mxu0
        %747 = vmatprep.mubr.bf16.mxu0 0
        %748 = vmatmul.mubr.bf16.gmra.mxu0 %v699
        %v749 = vpop.f32.mrf.mxu0
        %v750 = vadd.f32 0.0, %v749
        %v751 = vpop.f32.mrf.mxu0
        %v752 = vpop.f32.mrf.mxu0
        %v753 = vadd.f32 0.0, %v752
        %v754 = vpop.f32.mrf.mxu0
        %755 = vmatprep.mubr.bf16.mxu0 0
        %756 = vmatmul.mubr.bf16.gmra.mxu0 %v702
        %v757 = vpop.f32.mrf.mxu0
        %v758 = vadd.f32 0.0, %v757
        %v759 = vpop.f32.mrf.mxu0
        %v760 = vpop.f32.mrf.mxu0
        %v761 = vadd.f32 0.0, %v760
        %v762 = vpop.f32.mrf.mxu0
        %763 = vmatprep.mubr.bf16.mxu0 0
        %764 = vmatmul.mubr.bf16.gmra.mxu0 %v705
        %v765 = vpop.f32.mrf.mxu0
        %v766 = vadd.f32 0.0, %v765
        %v767 = vpop.f32.mrf.mxu0
        %v768 = vpop.f32.mrf.mxu0
        %v769 = vadd.f32 0.0, %v768
        %v770 = vpop.f32.mrf.mxu0
        %771 = vdwg.mxu0
        %v772 = vld [vmem:[%s5] sm:$0x1]
        %v773 = vld [vmem:[%s6] sm:$0x1]
        %vm774 = vcmask 130048
        %v775 = vsel %vm774, %v515, 0.0
        %776 = vadd.xlane.f32.xlu0 %v775
        %v777 = vpop.xlane.xlu0 %776
        %v778 = vsel %vm774, %v516, 0.0
        %779 = vadd.xlane.f32.xlu0 %v778
        %v780 = vpop.xlane.xlu0 %779
        %v781 = vsel %vm774, %v517, 0.0
        %782 = vadd.xlane.f32.xlu0 %v781
        %v783 = vpop.xlane.xlu0 %782
        %v784 = vsel %vm774, %v518, 0.0
        %785 = vadd.xlane.f32.xlu0 %v784
        %v786 = vpop.xlane.xlu0 %785
        %v787 = vsel %vm774, %v519, 0.0
        %788 = vadd.xlane.f32.xlu0 %v787
        %v789 = vpop.xlane.xlu0 %788
        %v790 = vsel %vm774, %v520, 0.0
        %791 = vadd.xlane.f32.xlu0 %v790
        %v792 = vpop.xlane.xlu0 %791
        %v793 = vsel %vm774, %v521, 0.0
        %794 = vadd.xlane.f32.xlu0 %v793
        %v795 = vpop.xlane.xlu0 %794
        %v796 = vsel %vm774, %v522, 0.0
        %797 = vadd.xlane.f32.xlu0 %v796
        %v798 = vpop.xlane.xlu0 %797
        %v799 = vsel %vm774, %v523, 0.0
        %800 = vadd.xlane.f32.xlu0 %v799
        %v801 = vpop.xlane.xlu0 %800
        %v802 = vsel %vm774, %v524, 0.0
        %803 = vadd.xlane.f32.xlu0 %v802
        %v804 = vpop.xlane.xlu0 %803
        %v805 = vsel %vm774, %v525, 0.0
        %806 = vadd.xlane.f32.xlu0 %v805
        %v807 = vpop.xlane.xlu0 %806
        %v808 = vsel %vm774, %v526, 0.0
        %809 = vadd.xlane.f32.xlu0 %v808
        %v810 = vpop.xlane.xlu0 %809
        %v811 = vsel %vm774, %v527, 0.0
        %812 = vadd.xlane.f32.xlu0 %v811
        %v813 = vpop.xlane.xlu0 %812
        %v814 = vsel %vm774, %v528, 0.0
        %815 = vadd.xlane.f32.xlu0 %v814
        %v816 = vpop.xlane.xlu0 %815
        %v817 = vsel %vm774, %v529, 0.0
        %818 = vadd.xlane.f32.xlu0 %v817
        %v819 = vpop.xlane.xlu0 %818
        %v820 = vsel %vm774, %v530, 0.0
        %821 = vadd.xlane.f32.xlu0 %v820
        %v822 = vpop.xlane.xlu0 %821
        %v823 = vsel %vm774, %v531, 0.0
        %824 = vadd.xlane.f32.xlu0 %v823
        %v825 = vpop.xlane.xlu0 %824
        %v826 = vsel %vm774, %v532, 0.0
        %827 = vadd.xlane.f32.xlu0 %v826
        %v828 = vpop.xlane.xlu0 %827
        %v829 = vsel %vm774, %v533, 0.0
        %830 = vadd.xlane.f32.xlu0 %v829
        %v831 = vpop.xlane.xlu0 %830
        %v832 = vsel %vm774, %v534, 0.0
        %833 = vadd.xlane.f32.xlu0 %v832
        %v834 = vpop.xlane.xlu0 %833
        %v835 = vsel %vm774, %v535, 0.0
        %836 = vadd.xlane.f32.xlu0 %v835
        %v837 = vpop.xlane.xlu0 %836
        %v838 = vsel %vm774, %v536, 0.0
        %839 = vadd.xlane.f32.xlu0 %v838
        %v840 = vpop.xlane.xlu0 %839
        %v841 = vsel %vm774, %v537, 0.0
        %842 = vadd.xlane.f32.xlu0 %v841
        %v843 = vpop.xlane.xlu0 %842
        %v844 = vsel %vm774, %v538, 0.0
        %845 = vadd.xlane.f32.xlu0 %v844
        %v846 = vpop.xlane.xlu0 %845
        %v847 = vsel %vm774, %v539, 0.0
        %848 = vadd.xlane.f32.xlu0 %v847
        %v849 = vpop.xlane.xlu0 %848
        %v850 = vsel %vm774, %v540, 0.0
        %851 = vadd.xlane.f32.xlu0 %v850
        %v852 = vpop.xlane.xlu0 %851
        %v853 = vsel %vm774, %v541, 0.0
        %854 = vadd.xlane.f32.xlu0 %v853
        %v855 = vpop.xlane.xlu0 %854
        %v856 = vsel %vm774, %v542, 0.0
        %857 = vadd.xlane.f32.xlu0 %v856
        %v858 = vpop.xlane.xlu0 %857
        %v859 = vsel %vm774, %v543, 0.0
        %860 = vadd.xlane.f32.xlu0 %v859
        %v861 = vpop.xlane.xlu0 %860
        %v862 = vsel %vm774, %v544, 0.0
        %863 = vadd.xlane.f32.xlu0 %v862
        %v864 = vpop.xlane.xlu0 %863
        %v865 = vsel %vm774, %v545, 0.0
        %866 = vadd.xlane.f32.xlu0 %v865
        %v867 = vpop.xlane.xlu0 %866
        %v868 = vsel %vm774, %v546, 0.0
        %869 = vadd.xlane.f32.xlu0 %v868
        %v870 = vpop.xlane.xlu0 %869
        %v871 = vrcp.pop 16.0
        %v872 = vmul.f32 %v777, %v871
        %v873 = vmul.f32 %v780, %v871
        %v874 = vmul.f32 %v783, %v871
        %v875 = vmul.f32 %v786, %v871
        %v876 = vmul.f32 %v789, %v871
        %v877 = vmul.f32 %v792, %v871
        %v878 = vmul.f32 %v795, %v871
        %v879 = vmul.f32 %v798, %v871
        %v880 = vmul.f32 %v801, %v871
        %v881 = vmul.f32 %v804, %v871
        %v882 = vmul.f32 %v807, %v871
        %v883 = vmul.f32 %v810, %v871
        %v884 = vmul.f32 %v813, %v871
        %v885 = vmul.f32 %v816, %v871
        %v886 = vmul.f32 %v819, %v871
        %v887 = vmul.f32 %v822, %v871
        %v888 = vmul.f32 %v825, %v871
        %v889 = vmul.f32 %v828, %v871
        %v890 = vmul.f32 %v831, %v871
        %v891 = vmul.f32 %v834, %v871
        %v892 = vmul.f32 %v837, %v871
        %v893 = vmul.f32 %v840, %v871
        %v894 = vmul.f32 %v843, %v871
        %v895 = vmul.f32 %v846, %v871
        %v896 = vmul.f32 %v849, %v871
        %v897 = vmul.f32 %v852, %v871
        %v898 = vmul.f32 %v855, %v871
        %v899 = vmul.f32 %v858, %v871
        %v900 = vmul.f32 %v861, %v871
        %v901 = vmul.f32 %v864, %v871
        %v902 = vmul.f32 %v867, %v871
        %v903 = vmul.f32 %v870, %v871
        %v904 = vsub.f32 %v515, %v872
        %v905 = vsub.f32 %v516, %v873
        %v906 = vsub.f32 %v517, %v874
        %v907 = vsub.f32 %v518, %v875
        %v908 = vsub.f32 %v519, %v876
        %v909 = vsub.f32 %v520, %v877
        %v910 = vsub.f32 %v521, %v878
        %v911 = vsub.f32 %v522, %v879
        %v912 = vsub.f32 %v523, %v880
        %v913 = vsub.f32 %v524, %v881
        %v914 = vsub.f32 %v525, %v882
        %v915 = vsub.f32 %v526, %v883
        %v916 = vsub.f32 %v527, %v884
        %v917 = vsub.f32 %v528, %v885
        %v918 = vsub.f32 %v529, %v886
        %v919 = vsub.f32 %v530, %v887
        %v920 = vsub.f32 %v531, %v888
        %v921 = vsub.f32 %v532, %v889
        %v922 = vsub.f32 %v533, %v890
        %v923 = vsub.f32 %v534, %v891
        %v924 = vsub.f32 %v535, %v892
        %v925 = vsub.f32 %v536, %v893
        %v926 = vsub.f32 %v537, %v894
        %v927 = vsub.f32 %v538, %v895
        %v928 = vsub.f32 %v539, %v896
        %v929 = vsub.f32 %v540, %v897
        %v930 = vsub.f32 %v541, %v898
        %v931 = vsub.f32 %v542, %v899
        %v932 = vsub.f32 %v543, %v900
        %v933 = vsub.f32 %v544, %v901
        %v934 = vsub.f32 %v545, %v902
        %v935 = vsub.f32 %v546, %v903
        %v936 = vmul.f32 %v904, %v904
        %v937 = vmul.f32 %v905, %v905
        %v938 = vmul.f32 %v906, %v906
        %v939 = vmul.f32 %v907, %v907
        %v940 = vmul.f32 %v908, %v908
        %v941 = vmul.f32 %v909, %v909
        %v942 = vmul.f32 %v910, %v910
        %v943 = vmul.f32 %v911, %v911
        %v944 = vmul.f32 %v912, %v912
        %v945 = vmul.f32 %v913, %v913
        %v946 = vmul.f32 %v914, %v914
        %v947 = vmul.f32 %v915, %v915
        %v948 = vmul.f32 %v916, %v916
        %v949 = vmul.f32 %v917, %v917
        %v950 = vmul.f32 %v918, %v918
        %v951 = vmul.f32 %v919, %v919
        %v952 = vmul.f32 %v920, %v920
        %v953 = vmul.f32 %v921, %v921
        %v954 = vmul.f32 %v922, %v922
        %v955 = vmul.f32 %v923, %v923
        %v956 = vmul.f32 %v924, %v924
        %v957 = vmul.f32 %v925, %v925
        %v958 = vmul.f32 %v926, %v926
        %v959 = vmul.f32 %v927, %v927
        %v960 = vmul.f32 %v928, %v928
        %v961 = vmul.f32 %v929, %v929
        %v962 = vmul.f32 %v930, %v930
        %v963 = vmul.f32 %v931, %v931
        %v964 = vmul.f32 %v932, %v932
        %v965 = vmul.f32 %v933, %v933
        %v966 = vmul.f32 %v934, %v934
        %v967 = vmul.f32 %v935, %v935
        %v968 = vsel %vm774, %v936, 0.0
        %969 = vadd.xlane.f32.xlu0 %v968
        %v970 = vpop.xlane.xlu0 %969
        %v971 = vsel %vm774, %v937, 0.0
        %972 = vadd.xlane.f32.xlu0 %v971
        %v973 = vpop.xlane.xlu0 %972
        %v974 = vsel %vm774, %v938, 0.0
        %975 = vadd.xlane.f32.xlu0 %v974
        %v976 = vpop.xlane.xlu0 %975
        %v977 = vsel %vm774, %v939, 0.0
        %978 = vadd.xlane.f32.xlu0 %v977
        %v979 = vpop.xlane.xlu0 %978
        %v980 = vsel %vm774, %v940, 0.0
        %981 = vadd.xlane.f32.xlu0 %v980
        %v982 = vpop.xlane.xlu0 %981
        %v983 = vsel %vm774, %v941, 0.0
        %984 = vadd.xlane.f32.xlu0 %v983
        %v985 = vpop.xlane.xlu0 %984
        %v986 = vsel %vm774, %v942, 0.0
        %987 = vadd.xlane.f32.xlu0 %v986
        %v988 = vpop.xlane.xlu0 %987
        %v989 = vsel %vm774, %v943, 0.0
        %990 = vadd.xlane.f32.xlu0 %v989
        %v991 = vpop.xlane.xlu0 %990
        %v992 = vsel %vm774, %v944, 0.0
        %993 = vadd.xlane.f32.xlu0 %v992
        %v994 = vpop.xlane.xlu0 %993
        %v995 = vsel %vm774, %v945, 0.0
        %996 = vadd.xlane.f32.xlu0 %v995
        %v997 = vpop.xlane.xlu0 %996
        %v998 = vsel %vm774, %v946, 0.0
        %999 = vadd.xlane.f32.xlu0 %v998
        %v1000 = vpop.xlane.xlu0 %999
        %v1001 = vsel %vm774, %v947, 0.0
        %1002 = vadd.xlane.f32.xlu0 %v1001
        %v1003 = vpop.xlane.xlu0 %1002
        %v1004 = vsel %vm774, %v948, 0.0
        %1005 = vadd.xlane.f32.xlu0 %v1004
        %v1006 = vpop.xlane.xlu0 %1005
        %v1007 = vsel %vm774, %v949, 0.0
        %1008 = vadd.xlane.f32.xlu0 %v1007
        %v1009 = vpop.xlane.xlu0 %1008
        %v1010 = vsel %vm774, %v950, 0.0
        %1011 = vadd.xlane.f32.xlu0 %v1010
        %v1012 = vpop.xlane.xlu0 %1011
        %v1013 = vsel %vm774, %v951, 0.0
        %1014 = vadd.xlane.f32.xlu0 %v1013
        %v1015 = vpop.xlane.xlu0 %1014
        %v1016 = vsel %vm774, %v952, 0.0
        %1017 = vadd.xlane.f32.xlu0 %v1016
        %v1018 = vpop.xlane.xlu0 %1017
        %v1019 = vsel %vm774, %v953, 0.0
        %1020 = vadd.xlane.f32.xlu0 %v1019
        %v1021 = vpop.xlane.xlu0 %1020
        %v1022 = vsel %vm774, %v954, 0.0
        %1023 = vadd.xlane.f32.xlu0 %v1022
        %v1024 = vpop.xlane.xlu0 %1023
        %v1025 = vsel %vm774, %v955, 0.0
        %1026 = vadd.xlane.f32.xlu0 %v1025
        %v1027 = vpop.xlane.xlu0 %1026
        %v1028 = vsel %vm774, %v956, 0.0
        %1029 = vadd.xlane.f32.xlu0 %v1028
        %v1030 = vpop.xlane.xlu0 %1029
        %v1031 = vsel %vm774, %v957, 0.0
        %1032 = vadd.xlane.f32.xlu0 %v1031
        %v1033 = vpop.xlane.xlu0 %1032
        %v1034 = vsel %vm774, %v958, 0.0
        %1035 = vadd.xlane.f32.xlu0 %v1034
        %v1036 = vpop.xlane.xlu0 %1035
        %v1037 = vsel %vm774, %v959, 0.0
        %1038 = vadd.xlane.f32.xlu0 %v1037
        %v1039 = vpop.xlane.xlu0 %1038
        %v1040 = vsel %vm774, %v960, 0.0
        %1041 = vadd.xlane.f32.xlu0 %v1040
        %v1042 = vpop.xlane.xlu0 %1041
        %v1043 = vsel %vm774, %v961, 0.0
        %1044 = vadd.xlane.f32.xlu0 %v1043
        %v1045 = vpop.xlane.xlu0 %1044
        %v1046 = vsel %vm774, %v962, 0.0
        %1047 = vadd.xlane.f32.xlu0 %v1046
        %v1048 = vpop.xlane.xlu0 %1047
        %v1049 = vsel %vm774, %v963, 0.0
        %1050 = vadd.xlane.f32.xlu0 %v1049
        %v1051 = vpop.xlane.xlu0 %1050
        %v1052 = vsel %vm774, %v964, 0.0
        %1053 = vadd.xlane.f32.xlu0 %v1052
        %v1054 = vpop.xlane.xlu0 %1053
        %v1055 = vsel %vm774, %v965, 0.0
        %1056 = vadd.xlane.f32.xlu0 %v1055
        %v1057 = vpop.xlane.xlu0 %1056
        %v1058 = vsel %vm774, %v966, 0.0
        %1059 = vadd.xlane.f32.xlu0 %v1058
        %v1060 = vpop.xlane.xlu0 %1059
        %v1061 = vsel %vm774, %v967, 0.0
        %1062 = vadd.xlane.f32.xlu0 %v1061
        %v1063 = vpop.xlane.xlu0 %1062
        %v1064 = vmul.f32 %v970, %v871
        %v1065 = vmul.f32 %v973, %v871
        %v1066 = vmul.f32 %v976, %v871
        %v1067 = vmul.f32 %v979, %v871
        %v1068 = vmul.f32 %v982, %v871
        %v1069 = vmul.f32 %v985, %v871
        %v1070 = vmul.f32 %v988, %v871
        %v1071 = vmul.f32 %v991, %v871
        %v1072 = vmul.f32 %v994, %v871
        %v1073 = vmul.f32 %v997, %v871
        %v1074 = vmul.f32 %v1000, %v871
        %v1075 = vmul.f32 %v1003, %v871
        %v1076 = vmul.f32 %v1006, %v871
        %v1077 = vmul.f32 %v1009, %v871
        %v1078 = vmul.f32 %v1012, %v871
        %v1079 = vmul.f32 %v1015, %v871
        %v1080 = vmul.f32 %v1018, %v871
        %v1081 = vmul.f32 %v1021, %v871
        %v1082 = vmul.f32 %v1024, %v871
        %v1083 = vmul.f32 %v1027, %v871
        %v1084 = vmul.f32 %v1030, %v871
        %v1085 = vmul.f32 %v1033, %v871
        %v1086 = vmul.f32 %v1036, %v871
        %v1087 = vmul.f32 %v1039, %v871
        %v1088 = vmul.f32 %v1042, %v871
        %v1089 = vmul.f32 %v1045, %v871
        %v1090 = vmul.f32 %v1048, %v871
        %v1091 = vmul.f32 %v1051, %v871
        %v1092 = vmul.f32 %v1054, %v871
        %v1093 = vmul.f32 %v1057, %v871
        %v1094 = vmul.f32 %v1060, %v871
        %v1095 = vmul.f32 %v1063, %v871
        %v1096 = vadd.f32 %v1064, 1e-05
        %v1097 = vadd.f32 %v1065, 1e-05
        %v1098 = vadd.f32 %v1066, 1e-05
        %v1099 = vadd.f32 %v1067, 1e-05
        %v1100 = vadd.f32 %v1068, 1e-05
        %v1101 = vadd.f32 %v1069, 1e-05
        %v1102 = vadd.f32 %v1070, 1e-05
        %v1103 = vadd.f32 %v1071, 1e-05
        %v1104 = vadd.f32 %v1072, 1e-05
        %v1105 = vadd.f32 %v1073, 1e-05
        %v1106 = vadd.f32 %v1074, 1e-05
        %v1107 = vadd.f32 %v1075, 1e-05
        %v1108 = vadd.f32 %v1076, 1e-05
        %v1109 = vadd.f32 %v1077, 1e-05
        %v1110 = vadd.f32 %v1078, 1e-05
        %v1111 = vadd.f32 %v1079, 1e-05
        %v1112 = vadd.f32 %v1080, 1e-05
        %v1113 = vadd.f32 %v1081, 1e-05
        %v1114 = vadd.f32 %v1082, 1e-05
        %v1115 = vadd.f32 %v1083, 1e-05
        %v1116 = vadd.f32 %v1084, 1e-05
        %v1117 = vadd.f32 %v1085, 1e-05
        %v1118 = vadd.f32 %v1086, 1e-05
        %v1119 = vadd.f32 %v1087, 1e-05
        %v1120 = vadd.f32 %v1088, 1e-05
        %v1121 = vadd.f32 %v1089, 1e-05
        %v1122 = vadd.f32 %v1090, 1e-05
        %v1123 = vadd.f32 %v1091, 1e-05
        %v1124 = vadd.f32 %v1092, 1e-05
        %v1125 = vadd.f32 %v1093, 1e-05
        %v1126 = vadd.f32 %v1094, 1e-05
        %v1127 = vadd.f32 %v1095, 1e-05
        %v1128 = vrsqrt.pop %v1096
        %v1129 = vrsqrt.pop %v1097
        %v1130 = vrsqrt.pop %v1098
        %v1131 = vrsqrt.pop %v1099
        %v1132 = vrsqrt.pop %v1100
        %v1133 = vrsqrt.pop %v1101
        %v1134 = vrsqrt.pop %v1102
        %v1135 = vrsqrt.pop %v1103
        %v1136 = vrsqrt.pop %v1104
        %v1137 = vrsqrt.pop %v1105
        %v1138 = vrsqrt.pop %v1106
        %v1139 = vrsqrt.pop %v1107
        %v1140 = vrsqrt.pop %v1108
        %v1141 = vrsqrt.pop %v1109
        %v1142 = vrsqrt.pop %v1110
        %v1143 = vrsqrt.pop %v1111
        %v1144 = vrsqrt.pop %v1112
        %v1145 = vrsqrt.pop %v1113
        %v1146 = vrsqrt.pop %v1114
        %v1147 = vrsqrt.pop %v1115
        %v1148 = vrsqrt.pop %v1116
        %v1149 = vrsqrt.pop %v1117
        %v1150 = vrsqrt.pop %v1118
        %v1151 = vrsqrt.pop %v1119
        %v1152 = vrsqrt.pop %v1120
        %v1153 = vrsqrt.pop %v1121
        %v1154 = vrsqrt.pop %v1122
        %v1155 = vrsqrt.pop %v1123
        %v1156 = vrsqrt.pop %v1124
        %v1157 = vrsqrt.pop %v1125
        %v1158 = vrsqrt.pop %v1126
        %v1159 = vrsqrt.pop %v1127
        %v1160 = vmul.f32 %v904, %v1128
        %v1161 = vmul.f32 %v905, %v1129
        %v1162 = vmul.f32 %v906, %v1130
        %v1163 = vmul.f32 %v907, %v1131
        %v1164 = vmul.f32 %v908, %v1132
        %v1165 = vmul.f32 %v909, %v1133
        %v1166 = vmul.f32 %v910, %v1134
        %v1167 = vmul.f32 %v911, %v1135
        %v1168 = vmul.f32 %v912, %v1136
        %v1169 = vmul.f32 %v913, %v1137
        %v1170 = vmul.f32 %v914, %v1138
        %v1171 = vmul.f32 %v915, %v1139
        %v1172 = vmul.f32 %v916, %v1140
        %v1173 = vmul.f32 %v917, %v1141
        %v1174 = vmul.f32 %v918, %v1142
        %v1175 = vmul.f32 %v919, %v1143
        %v1176 = vmul.f32 %v920, %v1144
        %v1177 = vmul.f32 %v921, %v1145
        %v1178 = vmul.f32 %v922, %v1146
        %v1179 = vmul.f32 %v923, %v1147
        %v1180 = vmul.f32 %v924, %v1148
        %v1181 = vmul.f32 %v925, %v1149
        %v1182 = vmul.f32 %v926, %v1150
        %v1183 = vmul.f32 %v927, %v1151
        %v1184 = vmul.f32 %v928, %v1152
        %v1185 = vmul.f32 %v929, %v1153
        %v1186 = vmul.f32 %v930, %v1154
        %v1187 = vmul.f32 %v931, %v1155
        %v1188 = vmul.f32 %v932, %v1156
        %v1189 = vmul.f32 %v933, %v1157
        %v1190 = vmul.f32 %v934, %v1158
        %v1191 = vmul.f32 %v935, %v1159
        %v1193 = vlaneseq
        %v1194 = vshrl.u32 %v1193, 7
        %v1195 = vsub.s32 0, %v1194
        %v1196 = vrot.slane %v772, %v1195
        %v1198 = vmul.f32 %v1160, %v1196
        %v1199 = vmul.f32 %v1161, %v1196
        %v1200 = vmul.f32 %v1162, %v1196
        %v1201 = vmul.f32 %v1163, %v1196
        %v1202 = vmul.f32 %v1164, %v1196
        %v1203 = vmul.f32 %v1165, %v1196
        %v1204 = vmul.f32 %v1166, %v1196
        %v1205 = vmul.f32 %v1167, %v1196
        %v1206 = vmul.f32 %v1168, %v1196
        %v1207 = vmul.f32 %v1169, %v1196
        %v1208 = vmul.f32 %v1170, %v1196
        %v1209 = vmul.f32 %v1171, %v1196
        %v1210 = vmul.f32 %v1172, %v1196
        %v1211 = vmul.f32 %v1173, %v1196
        %v1212 = vmul.f32 %v1174, %v1196
        %v1213 = vmul.f32 %v1175, %v1196
        %v1214 = vmul.f32 %v1176, %v1196
        %v1215 = vmul.f32 %v1177, %v1196
        %v1216 = vmul.f32 %v1178, %v1196
        %v1217 = vmul.f32 %v1179, %v1196
        %v1218 = vmul.f32 %v1180, %v1196
        %v1219 = vmul.f32 %v1181, %v1196
        %v1220 = vmul.f32 %v1182, %v1196
        %v1221 = vmul.f32 %v1183, %v1196
        %v1222 = vmul.f32 %v1184, %v1196
        %v1223 = vmul.f32 %v1185, %v1196
        %v1224 = vmul.f32 %v1186, %v1196
        %v1225 = vmul.f32 %v1187, %v1196
        %v1226 = vmul.f32 %v1188, %v1196
        %v1227 = vmul.f32 %v1189, %v1196
        %v1228 = vmul.f32 %v1190, %v1196
        %v1229 = vmul.f32 %v1191, %v1196
        %v1231 = vlaneseq
        %v1232 = vshrl.u32 %v1231, 7
        %v1233 = vsub.s32 0, %v1232
        %v1234 = vrot.slane %v773, %v1233
        %v1236 = vadd.f32 %v1198, %v1234
        %v1237 = vadd.f32 %v1199, %v1234
        %v1238 = vadd.f32 %v1200, %v1234
        %v1239 = vadd.f32 %v1201, %v1234
        %v1240 = vadd.f32 %v1202, %v1234
        %v1241 = vadd.f32 %v1203, %v1234
        %v1242 = vadd.f32 %v1204, %v1234
        %v1243 = vadd.f32 %v1205, %v1234
        %v1244 = vadd.f32 %v1206, %v1234
        %v1245 = vadd.f32 %v1207, %v1234
        %v1246 = vadd.f32 %v1208, %v1234
        %v1247 = vadd.f32 %v1209, %v1234
        %v1248 = vadd.f32 %v1210, %v1234
        %v1249 = vadd.f32 %v1211, %v1234
        %v1250 = vadd.f32 %v1212, %v1234
        %v1251 = vadd.f32 %v1213, %v1234
        %v1252 = vadd.f32 %v1214, %v1234
        %v1253 = vadd.f32 %v1215, %v1234
        %v1254 = vadd.f32 %v1216, %v1234
        %v1255 = vadd.f32 %v1217, %v1234
        %v1256 = vadd.f32 %v1218, %v1234
        %v1257 = vadd.f32 %v1219, %v1234
        %v1258 = vadd.f32 %v1220, %v1234
        %v1259 = vadd.f32 %v1221, %v1234
        %v1260 = vadd.f32 %v1222, %v1234
        %v1261 = vadd.f32 %v1223, %v1234
        %v1262 = vadd.f32 %v1224, %v1234
        %v1263 = vadd.f32 %v1225, %v1234
        %v1264 = vadd.f32 %v1226, %v1234
        %v1265 = vadd.f32 %v1227, %v1234
        %v1266 = vadd.f32 %v1228, %v1234
        %v1267 = vadd.f32 %v1229, %v1234
        %v1268 = vmul.f32 %v1236, 0.088388346
        %v1269 = vmul.f32 %v1237, 0.088388346
        %v1270 = vmul.f32 %v1238, 0.088388346
        %v1271 = vmul.f32 %v1239, 0.088388346
        %v1272 = vmul.f32 %v1240, 0.088388346
        %v1273 = vmul.f32 %v1241, 0.088388346
        %v1274 = vmul.f32 %v1242, 0.088388346
        %v1275 = vmul.f32 %v1243, 0.088388346
        %v1276 = vmul.f32 %v1244, 0.088388346
        %v1277 = vmul.f32 %v1245, 0.088388346
        %v1278 = vmul.f32 %v1246, 0.088388346
        %v1279 = vmul.f32 %v1247, 0.088388346
        %v1280 = vmul.f32 %v1248, 0.088388346
        %v1281 = vmul.f32 %v1249, 0.088388346
        %v1282 = vmul.f32 %v1250, 0.088388346
        %v1283 = vmul.f32 %v1251, 0.088388346
        %v1284 = vmul.f32 %v1252, 0.088388346
        %v1285 = vmul.f32 %v1253, 0.088388346
        %v1286 = vmul.f32 %v1254, 0.088388346
        %v1287 = vmul.f32 %v1255, 0.088388346
        %v1288 = vmul.f32 %v1256, 0.088388346
        %v1289 = vmul.f32 %v1257, 0.088388346
        %v1290 = vmul.f32 %v1258, 0.088388346
        %v1291 = vmul.f32 %v1259, 0.088388346
        %v1292 = vmul.f32 %v1260, 0.088388346
        %v1293 = vmul.f32 %v1261, 0.088388346
        %v1294 = vmul.f32 %v1262, 0.088388346
        %v1295 = vmul.f32 %v1263, 0.088388346
        %v1296 = vmul.f32 %v1264, 0.088388346
        %v1297 = vmul.f32 %v1265, 0.088388346
        %v1298 = vmul.f32 %v1266, 0.088388346
        %v1299 = vmul.f32 %v1267, 0.088388346
        %v1300 = vld [vmem:[%s7] sm:$0xf]
        %v1301 = vlaneseq
        %v1302 = vshrl.u32 %v1301, 7
        %v1303 = vsub.s32 0, %v1302
        %v1304 = vrot.slane %v1300, %v1303
        %v1305 = vmul.f32 %v1268, %v1304
        %v1306 = vmul.f32 %v1269, %v1304
        %v1307 = vmul.f32 %v1270, %v1304
        %v1308 = vmul.f32 %v1271, %v1304
        %v1309 = vmul.f32 %v1272, %v1304
        %v1310 = vmul.f32 %v1273, %v1304
        %v1311 = vmul.f32 %v1274, %v1304
        %v1312 = vmul.f32 %v1275, %v1304
        %v1313 = vmul.f32 %v1276, %v1304
        %v1314 = vmul.f32 %v1277, %v1304
        %v1315 = vmul.f32 %v1278, %v1304
        %v1316 = vmul.f32 %v1279, %v1304
        %v1317 = vmul.f32 %v1280, %v1304
        %v1318 = vmul.f32 %v1281, %v1304
        %v1319 = vmul.f32 %v1282, %v1304
        %v1320 = vmul.f32 %v1283, %v1304
        %v1321 = vmul.f32 %v1284, %v1304
        %v1322 = vmul.f32 %v1285, %v1304
        %v1323 = vmul.f32 %v1286, %v1304
        %v1324 = vmul.f32 %v1287, %v1304
        %v1325 = vmul.f32 %v1288, %v1304
        %v1326 = vmul.f32 %v1289, %v1304
        %v1327 = vmul.f32 %v1290, %v1304
        %v1328 = vmul.f32 %v1291, %v1304
        %v1329 = vmul.f32 %v1292, %v1304
        %v1330 = vmul.f32 %v1293, %v1304
        %v1331 = vmul.f32 %v1294, %v1304
        %v1332 = vmul.f32 %v1295, %v1304
        %v1333 = vmul.f32 %v1296, %v1304
        %v1334 = vmul.f32 %v1297, %v1304
        %v1335 = vmul.f32 %v1298, %v1304
        %v1336 = vmul.f32 %v1299, %v1304
        %v1337 = vsel %vm774, %v1305, 0.0
        %1338 = vadd.xlane.f32.xlu0 %v1337
        %v1339 = vpop.xlane.xlu0 %1338
        %v1340 = vsel %vm774, %v1306, 0.0
        %1341 = vadd.xlane.f32.xlu0 %v1340
        %v1342 = vpop.xlane.xlu0 %1341
        %v1343 = vsel %vm774, %v1307, 0.0
        %1344 = vadd.xlane.f32.xlu0 %v1343
        %v1345 = vpop.xlane.xlu0 %1344
        %v1346 = vsel %vm774, %v1308, 0.0
        %1347 = vadd.xlane.f32.xlu0 %v1346
        %v1348 = vpop.xlane.xlu0 %1347
        %v1349 = vsel %vm774, %v1309, 0.0
        %1350 = vadd.xlane.f32.xlu0 %v1349
        %v1351 = vpop.xlane.xlu0 %1350
        %v1352 = vsel %vm774, %v1310, 0.0
        %1353 = vadd.xlane.f32.xlu0 %v1352
        %v1354 = vpop.xlane.xlu0 %1353
        %v1355 = vsel %vm774, %v1311, 0.0
        %1356 = vadd.xlane.f32.xlu0 %v1355
        %v1357 = vpop.xlane.xlu0 %1356
        %v1358 = vsel %vm774, %v1312, 0.0
        %1359 = vadd.xlane.f32.xlu0 %v1358
        %v1360 = vpop.xlane.xlu0 %1359
        %v1361 = vsel %vm774, %v1313, 0.0
        %1362 = vadd.xlane.f32.xlu0 %v1361
        %v1363 = vpop.xlane.xlu0 %1362
        %v1364 = vsel %vm774, %v1314, 0.0
        %1365 = vadd.xlane.f32.xlu0 %v1364
        %v1366 = vpop.xlane.xlu0 %1365
        %v1367 = vsel %vm774, %v1315, 0.0
        %1368 = vadd.xlane.f32.xlu0 %v1367
        %v1369 = vpop.xlane.xlu0 %1368
        %v1370 = vsel %vm774, %v1316, 0.0
        %1371 = vadd.xlane.f32.xlu0 %v1370
        %v1372 = vpop.xlane.xlu0 %1371
        %v1373 = vsel %vm774, %v1317, 0.0
        %1374 = vadd.xlane.f32.xlu0 %v1373
        %v1375 = vpop.xlane.xlu0 %1374
        %v1376 = vsel %vm774, %v1318, 0.0
        %1377 = vadd.xlane.f32.xlu0 %v1376
        %v1378 = vpop.xlane.xlu0 %1377
        %v1379 = vsel %vm774, %v1319, 0.0
        %1380 = vadd.xlane.f32.xlu0 %v1379
        %v1381 = vpop.xlane.xlu0 %1380
        %v1382 = vsel %vm774, %v1320, 0.0
        %1383 = vadd.xlane.f32.xlu0 %v1382
        %v1384 = vpop.xlane.xlu0 %1383
        %v1385 = vsel %vm774, %v1321, 0.0
        %1386 = vadd.xlane.f32.xlu0 %v1385
        %v1387 = vpop.xlane.xlu0 %1386
        %v1388 = vsel %vm774, %v1322, 0.0
        %1389 = vadd.xlane.f32.xlu0 %v1388
        %v1390 = vpop.xlane.xlu0 %1389
        %v1391 = vsel %vm774, %v1323, 0.0
        %1392 = vadd.xlane.f32.xlu0 %v1391
        %v1393 = vpop.xlane.xlu0 %1392
        %v1394 = vsel %vm774, %v1324, 0.0
        %1395 = vadd.xlane.f32.xlu0 %v1394
        %v1396 = vpop.xlane.xlu0 %1395
        %v1397 = vsel %vm774, %v1325, 0.0
        %1398 = vadd.xlane.f32.xlu0 %v1397
        %v1399 = vpop.xlane.xlu0 %1398
        %v1400 = vsel %vm774, %v1326, 0.0
        %1401 = vadd.xlane.f32.xlu0 %v1400
        %v1402 = vpop.xlane.xlu0 %1401
        %v1403 = vsel %vm774, %v1327, 0.0
        %1404 = vadd.xlane.f32.xlu0 %v1403
        %v1405 = vpop.xlane.xlu0 %1404
        %v1406 = vsel %vm774, %v1328, 0.0
        %1407 = vadd.xlane.f32.xlu0 %v1406
        %v1408 = vpop.xlane.xlu0 %1407
        %v1409 = vsel %vm774, %v1329, 0.0
        %1410 = vadd.xlane.f32.xlu0 %v1409
        %v1411 = vpop.xlane.xlu0 %1410
        %v1412 = vsel %vm774, %v1330, 0.0
        %1413 = vadd.xlane.f32.xlu0 %v1412
        %v1414 = vpop.xlane.xlu0 %1413
        %v1415 = vsel %vm774, %v1331, 0.0
        %1416 = vadd.xlane.f32.xlu0 %v1415
        %v1417 = vpop.xlane.xlu0 %1416
        %v1418 = vsel %vm774, %v1332, 0.0
        %1419 = vadd.xlane.f32.xlu0 %v1418
        %v1420 = vpop.xlane.xlu0 %1419
        %v1421 = vsel %vm774, %v1333, 0.0
        %1422 = vadd.xlane.f32.xlu0 %v1421
        %v1423 = vpop.xlane.xlu0 %1422
        %v1424 = vsel %vm774, %v1334, 0.0
        %1425 = vadd.xlane.f32.xlu0 %v1424
        %v1426 = vpop.xlane.xlu0 %1425
        %v1427 = vsel %vm774, %v1335, 0.0
        %1428 = vadd.xlane.f32.xlu0 %v1427
        %v1429 = vpop.xlane.xlu0 %1428
        %v1430 = vsel %vm774, %v1336, 0.0
        %1431 = vadd.xlane.f32.xlu0 %v1430
        %v1432 = vpop.xlane.xlu0 %1431
        %vm1433 = vcmp.gt.f32.partialorder %v547, 0.0
        %vm1434 = vcmp.gt.f32.partialorder %v548, 0.0
        %v1467 = vlaneseq
        %v1468 = vand.u32 %v1467, 127
        %v1469 = vlaneseq
        %v1470 = vshrl.u32 %v1469, 7
        %v1471 = vsub.s32 %v1468, %v1470
        %v1472 = vrot.slane %v1339, %v1471
        %v1473 = vadd.s32 %v1468, 4294967288
        %v1474 = vlaneseq
        %v1475 = vshrl.u32 %v1474, 7
        %v1476 = vsub.s32 %v1473, %v1475
        %v1477 = vrot.slane %v1342, %v1476
        %vm1478 = vcmask 130112
        %v1479 = vsel %vm1478, %v1477, %v1472
        %v1480 = vlaneseq
        %v1481 = vshrl.u32 %v1480, 7
        %v1482 = vsub.s32 %v1468, %v1481
        %v1483 = vrot.slane %v1345, %v1482
        %v1484 = vlaneseq
        %v1485 = vshrl.u32 %v1484, 7
        %v1486 = vsub.s32 %v1473, %v1485
        %v1487 = vrot.slane %v1348, %v1486
        %v1488 = vsel %vm1478, %v1487, %v1483
        %v1489 = vlaneseq
        %v1490 = vshrl.u32 %v1489, 7
        %v1491 = vsub.s32 %v1468, %v1490
        %v1492 = vrot.slane %v1351, %v1491
        %v1493 = vlaneseq
        %v1494 = vshrl.u32 %v1493, 7
        %v1495 = vsub.s32 %v1473, %v1494
        %v1496 = vrot.slane %v1354, %v1495
        %v1497 = vsel %vm1478, %v1496, %v1492
        %v1498 = vlaneseq
        %v1499 = vshrl.u32 %v1498, 7
        %v1500 = vsub.s32 %v1468, %v1499
        %v1501 = vrot.slane %v1357, %v1500
        %v1502 = vlaneseq
        %v1503 = vshrl.u32 %v1502, 7
        %v1504 = vsub.s32 %v1473, %v1503
        %v1505 = vrot.slane %v1360, %v1504
        %v1506 = vsel %vm1478, %v1505, %v1501
        %v1507 = vlaneseq
        %v1508 = vshrl.u32 %v1507, 7
        %v1509 = vsub.s32 %v1468, %v1508
        %v1510 = vrot.slane %v1363, %v1509
        %v1511 = vlaneseq
        %v1512 = vshrl.u32 %v1511, 7
        %v1513 = vsub.s32 %v1473, %v1512
        %v1514 = vrot.slane %v1366, %v1513
        %v1515 = vsel %vm1478, %v1514, %v1510
        %v1516 = vlaneseq
        %v1517 = vshrl.u32 %v1516, 7
        %v1518 = vsub.s32 %v1468, %v1517
        %v1519 = vrot.slane %v1369, %v1518
        %v1520 = vlaneseq
        %v1521 = vshrl.u32 %v1520, 7
        %v1522 = vsub.s32 %v1473, %v1521
        %v1523 = vrot.slane %v1372, %v1522
        %v1524 = vsel %vm1478, %v1523, %v1519
        %v1525 = vlaneseq
        %v1526 = vshrl.u32 %v1525, 7
        %v1527 = vsub.s32 %v1468, %v1526
        %v1528 = vrot.slane %v1375, %v1527
        %v1529 = vlaneseq
        %v1530 = vshrl.u32 %v1529, 7
        %v1531 = vsub.s32 %v1473, %v1530
        %v1532 = vrot.slane %v1378, %v1531
        %v1533 = vsel %vm1478, %v1532, %v1528
        %v1534 = vlaneseq
        %v1535 = vshrl.u32 %v1534, 7
        %v1536 = vsub.s32 %v1468, %v1535
        %v1537 = vrot.slane %v1381, %v1536
        %v1538 = vlaneseq
        %v1539 = vshrl.u32 %v1538, 7
        %v1540 = vsub.s32 %v1473, %v1539
        %v1541 = vrot.slane %v1384, %v1540
        %v1542 = vsel %vm1478, %v1541, %v1537
        %v1543 = vlaneseq
        %v1544 = vshrl.u32 %v1543, 7
        %v1545 = vsub.s32 %v1468, %v1544
        %v1546 = vrot.slane %v1387, %v1545
        %v1547 = vlaneseq
        %v1548 = vshrl.u32 %v1547, 7
        %v1549 = vsub.s32 %v1473, %v1548
        %v1550 = vrot.slane %v1390, %v1549
        %v1551 = vsel %vm1478, %v1550, %v1546
        %v1552 = vlaneseq
        %v1553 = vshrl.u32 %v1552, 7
        %v1554 = vsub.s32 %v1468, %v1553
        %v1555 = vrot.slane %v1393, %v1554
        %v1556 = vlaneseq
        %v1557 = vshrl.u32 %v1556, 7
        %v1558 = vsub.s32 %v1473, %v1557
        %v1559 = vrot.slane %v1396, %v1558
        %v1560 = vsel %vm1478, %v1559, %v1555
        %v1561 = vlaneseq
        %v1562 = vshrl.u32 %v1561, 7
        %v1563 = vsub.s32 %v1468, %v1562
        %v1564 = vrot.slane %v1399, %v1563
        %v1565 = vlaneseq
        %v1566 = vshrl.u32 %v1565, 7
        %v1567 = vsub.s32 %v1473, %v1566
        %v1568 = vrot.slane %v1402, %v1567
        %v1569 = vsel %vm1478, %v1568, %v1564
        %v1570 = vlaneseq
        %v1571 = vshrl.u32 %v1570, 7
        %v1572 = vsub.s32 %v1468, %v1571
        %v1573 = vrot.slane %v1405, %v1572
        %v1574 = vlaneseq
        %v1575 = vshrl.u32 %v1574, 7
        %v1576 = vsub.s32 %v1473, %v1575
        %v1577 = vrot.slane %v1408, %v1576
        %v1578 = vsel %vm1478, %v1577, %v1573
        %v1579 = vlaneseq
        %v1580 = vshrl.u32 %v1579, 7
        %v1581 = vsub.s32 %v1468, %v1580
        %v1582 = vrot.slane %v1411, %v1581
        %v1583 = vlaneseq
        %v1584 = vshrl.u32 %v1583, 7
        %v1585 = vsub.s32 %v1473, %v1584
        %v1586 = vrot.slane %v1414, %v1585
        %v1587 = vsel %vm1478, %v1586, %v1582
        %v1588 = vlaneseq
        %v1589 = vshrl.u32 %v1588, 7
        %v1590 = vsub.s32 %v1468, %v1589
        %v1591 = vrot.slane %v1417, %v1590
        %v1592 = vlaneseq
        %v1593 = vshrl.u32 %v1592, 7
        %v1594 = vsub.s32 %v1473, %v1593
        %v1595 = vrot.slane %v1420, %v1594
        %v1596 = vsel %vm1478, %v1595, %v1591
        %v1597 = vlaneseq
        %v1598 = vshrl.u32 %v1597, 7
        %v1599 = vsub.s32 %v1468, %v1598
        %v1600 = vrot.slane %v1423, %v1599
        %v1601 = vlaneseq
        %v1602 = vshrl.u32 %v1601, 7
        %v1603 = vsub.s32 %v1473, %v1602
        %v1604 = vrot.slane %v1426, %v1603
        %v1605 = vsel %vm1478, %v1604, %v1600
        %v1606 = vlaneseq
        %v1607 = vshrl.u32 %v1606, 7
        %v1608 = vsub.s32 %v1468, %v1607
        %v1609 = vrot.slane %v1429, %v1608
        %v1610 = vlaneseq
        %v1611 = vshrl.u32 %v1610, 7
        %v1612 = vsub.s32 %v1473, %v1611
        %v1613 = vrot.slane %v1432, %v1612
        %v1614 = vsel %vm1478, %v1613, %v1609
        %vm1615 = vcmask 1041409
        %v1616 = vsel %vm1615, %v1488, %v1479
        %vm1617 = vcmask 1042434
        %v1618 = vsel %vm1617, %v1497, %v1616
        %vm1619 = vcmask 1043459
        %v1620 = vsel %vm1619, %v1506, %v1618
        %vm1621 = vcmask 1044484
        %v1622 = vsel %vm1621, %v1515, %v1620
        %vm1623 = vcmask 1045509
        %v1624 = vsel %vm1623, %v1524, %v1622
        %vm1625 = vcmask 1046534
        %v1626 = vsel %vm1625, %v1533, %v1624
        %vm1627 = vcmask 1047559
        %v1628 = vsel %vm1627, %v1542, %v1626
        %v1629 = vsel %vm1615, %v1560, %v1551
        %v1630 = vsel %vm1617, %v1569, %v1629
        %v1631 = vsel %vm1619, %v1578, %v1630
        %v1632 = vsel %vm1621, %v1587, %v1631
        %v1633 = vsel %vm1623, %v1596, %v1632
        %v1634 = vsel %vm1625, %v1605, %v1633
        %v1635 = vsel %vm1627, %v1614, %v1634
        %v1638 = vsel %vm1433, %v1628, -3.4028235e+38
        %v1639 = vsel %vm1434, %v1635, -3.4028235e+38
        %v1640 = vsel %vm774, %v1638, -inf
        %1641 = vmax.xlane.f32.xlu0 %v1640
        %v1642 = vpop.xlane.xlu0 %1641
        %v1643 = vsel %vm774, %v1639, -inf
        %1644 = vmax.xlane.f32.xlu0 %v1643
        %v1645 = vpop.xlane.xlu0 %1644
        %v1646 = vsub.f32 %v1638, %v1642
        %v1647 = vsub.f32 %v1639, %v1645
        %v1648 = vmul.f32 %v1646, 1.442695
        %v1649 = vpow.pop %v1648
        %v1650 = vmul.f32 %v1647, 1.442695
        %v1651 = vpow.pop %v1650
        %v1652 = vsel %vm774, %v1649, 0.0
        %1653 = vadd.xlane.f32.xlu0 %v1652
        %v1654 = vpop.xlane.xlu0 %1653
        %v1655 = vsel %vm774, %v1651, 0.0
        %1656 = vadd.xlane.f32.xlu0 %v1655
        %v1657 = vpop.xlane.xlu0 %1656
        %v1658 = vrcp.pop %v1654
        %v1659 = vrcp.pop %v1657
        %v1660 = vmul.f32 %v1649, %v1658
        %v1661 = vmul.f32 %v1651, %v1659
        %v1662 = vpack.c.bf16 %v1661, %v1660
        %v1663 = vpack.c.bf16 %v745, %v742
        %v1665 = vsel %vm774, %v1662, 0
        %1667 = vmatprep.subr.bf16.mxu0 0
        %1668 = vmatpush1.bf16.msra.mxu0 0
        %1669 = vmatprep.subr.bf16.mxu0 0
        %1670 = vmatpush1.bf16.msra.mxu0 0
        %1671 = vmatprep.subr.bf16.mxu0 0
        %1672 = vmatpush1.bf16.msra.mxu0 0
        %1673 = vmatprep.subr.bf16.mxu0 0
        %1674 = vmatpush1.bf16.msra.mxu0 0
        %1675 = vmatprep.subr.bf16.mxu0 0
        %1676 = vmatpush1.bf16.msra.mxu0 0
        %1677 = vmatprep.subr.bf16.mxu0 0
        %1678 = vmatpush1.bf16.msra.mxu0 0
        %1679 = vmatprep.subr.bf16.mxu0 0
        %1680 = vmatpush1.bf16.msra.mxu0 0
        %1681 = vmatprep.subr.bf16.mxu0 0
        %1682 = vmatpush1.bf16.msra.mxu0 %v1663
        %1683 = vmatprep.subr.bf16.mxu0 0
        %1684 = vmatpush2.bf16.msra.mxu0 0
        %1685 = vmatprep.subr.bf16.mxu0 0
        %1686 = vmatpush2.bf16.msra.mxu0 0
        %1687 = vmatprep.subr.bf16.mxu0 0
        %1688 = vmatpush2.bf16.msra.mxu0 0
        %1689 = vmatprep.subr.bf16.mxu0 0
        %1690 = vmatpush2.bf16.msra.mxu0 0
        %1691 = vmatprep.subr.bf16.mxu0 0
        %1692 = vmatpush2.bf16.msra.mxu0 0
        %1693 = vmatprep.subr.bf16.mxu0 0
        %1694 = vmatpush2.bf16.msra.mxu0 0
        %1695 = vmatprep.subr.bf16.mxu0 0
        %1696 = vmatpush2.bf16.msra.mxu0 0
        %1697 = vmatprep.subr.bf16.mxu0 0
        %1698 = vmatpush2.bf16.msra.mxu0 0
        %1699 = vmatprep.mubr.bf16.mxu0 0
        %1700 = vmatmul.mubr.bf16.gmra.mxu0 %v1665
        %v1701 = vpop.f32.mrf.mxu0
        %v1702 = vadd.f32 0.0, %v1701
        %v1703 = vpop.f32.mrf.mxu0
        %v1704 = vpop.f32.mrf.mxu0
        %v1705 = vadd.f32 0.0, %v1704
        %v1706 = vpop.f32.mrf.mxu0
        %1707 = vdwg.mxu0
        %vm1708 = vcmask 64512
        %1709 = vst.msk [vmem:[#allocation2] sm:$0xff] %vm1708, %v1702
        %1710 = vst.msk [vmem:[#allocation2 + $0x8] sm:$0xff] %vm1708, %v1705
        %v1711 = vpack.c.bf16 %v753, %v750
        %1712 = vmatprep.subr.bf16.mxu0 0
        %1713 = vmatpush1.bf16.msra.mxu0 0
        %1714 = vmatprep.subr.bf16.mxu0 0
        %1715 = vmatpush1.bf16.msra.mxu0 0
        %1716 = vmatprep.subr.bf16.mxu0 0
        %1717 = vmatpush1.bf16.msra.mxu0 0
        %1718 = vmatprep.subr.bf16.mxu0 0
        %1719 = vmatpush1.bf16.msra.mxu0 0
        %1720 = vmatprep.subr.bf16.mxu0 0
        %1721 = vmatpush1.bf16.msra.mxu0 0
        %1722 = vmatprep.subr.bf16.mxu0 0
        %1723 = vmatpush1.bf16.msra.mxu0 0
        %1724 = vmatprep.subr.bf16.mxu0 0
        %1725 = vmatpush1.bf16.msra.mxu0 0
        %1726 = vmatprep.subr.bf16.mxu0 0
        %1727 = vmatpush1.bf16.msra.mxu0 %v1711
        %1728 = vmatprep.subr.bf16.mxu0 0
        %1729 = vmatpush2.bf16.msra.mxu0 0
        %1730 = vmatprep.subr.bf16.mxu0 0
        %1731 = vmatpush2.bf16.msra.mxu0 0
        %1732 = vmatprep.subr.bf16.mxu0 0
        %1733 = vmatpush2.bf16.msra.mxu0 0
        %1734 = vmatprep.subr.bf16.mxu0 0
        %1735 = vmatpush2.bf16.msra.mxu0 0
        %1736 = vmatprep.subr.bf16.mxu0 0
        %1737 = vmatpush2.bf16.msra.mxu0 0
        %1738 = vmatprep.subr.bf16.mxu0 0
        %1739 = vmatpush2.bf16.msra.mxu0 0
        %1740 = vmatprep.subr.bf16.mxu0 0
        %1741 = vmatpush2.bf16.msra.mxu0 0
        %1742 = vmatprep.subr.bf16.mxu0 0
        %1743 = vmatpush2.bf16.msra.mxu0 0
        %1744 = vmatprep.mubr.bf16.mxu0 0
        %1745 = vmatmul.mubr.bf16.gmra.mxu0 %v1665
        %v1746 = vpop.f32.mrf.mxu0
        %v1747 = vadd.f32 0.0, %v1746
        %v1748 = vpop.f32.mrf.mxu0
        %v1749 = vpop.f32.mrf.mxu0
        %v1750 = vadd.f32 0.0, %v1749
        %v1751 = vpop.f32.mrf.mxu0
        %1752 = vdwg.mxu0
        %1753 = vst.msk [vmem:[#allocation2 + $0x10] sm:$0xff] %vm1708, %v1747
        %1754 = vst.msk [vmem:[#allocation2 + $0x18] sm:$0xff] %vm1708, %v1750
        %v1755 = vpack.c.bf16 %v761, %v758
        %1756 = vmatprep.subr.bf16.mxu0 0
        %1757 = vmatpush1.bf16.msra.mxu0 0
        %1758 = vmatprep.subr.bf16.mxu0 0
        %1759 = vmatpush1.bf16.msra.mxu0 0
        %1760 = vmatprep.subr.bf16.mxu0 0
        %1761 = vmatpush1.bf16.msra.mxu0 0
        %1762 = vmatprep.subr.bf16.mxu0 0
        %1763 = vmatpush1.bf16.msra.mxu0 0
        %1764 = vmatprep.subr.bf16.mxu0 0
        %1765 = vmatpush1.bf16.msra.mxu0 0
        %1766 = vmatprep.subr.bf16.mxu0 0
        %1767 = vmatpush1.bf16.msra.mxu0 0
        %1768 = vmatprep.subr.bf16.mxu0 0
        %1769 = vmatpush1.bf16.msra.mxu0 0
        %1770 = vmatprep.subr.bf16.mxu0 0
        %1771 = vmatpush1.bf16.msra.mxu0 %v1755
        %1772 = vmatprep.subr.bf16.mxu0 0
        %1773 = vmatpush2.bf16.msra.mxu0 0
        %1774 = vmatprep.subr.bf16.mxu0 0
        %1775 = vmatpush2.bf16.msra.mxu0 0
        %1776 = vmatprep.subr.bf16.mxu0 0
        %1777 = vmatpush2.bf16.msra.mxu0 0
        %1778 = vmatprep.subr.bf16.mxu0 0
        %1779 = vmatpush2.bf16.msra.mxu0 0
        %1780 = vmatprep.subr.bf16.mxu0 0
        %1781 = vmatpush2.bf16.msra.mxu0 0
        %1782 = vmatprep.subr.bf16.mxu0 0
        %1783 = vmatpush2.bf16.msra.mxu0 0
        %1784 = vmatprep.subr.bf16.mxu0 0
        %1785 = vmatpush2.bf16.msra.mxu0 0
        %1786 = vmatprep.subr.bf16.mxu0 0
        %1787 = vmatpush2.bf16.msra.mxu0 0
        %1788 = vmatprep.mubr.bf16.mxu0 0
        %1789 = vmatmul.mubr.bf16.gmra.mxu0 %v1665
        %v1790 = vpop.f32.mrf.mxu0
        %v1791 = vadd.f32 0.0, %v1790
        %v1792 = vpop.f32.mrf.mxu0
        %v1793 = vpop.f32.mrf.mxu0
        %v1794 = vadd.f32 0.0, %v1793
        %v1795 = vpop.f32.mrf.mxu0
        %1796 = vdwg.mxu0
        %1797 = vst.msk [vmem:[#allocation2 + $0x20] sm:$0xff] %vm1708, %v1791
        %1798 = vst.msk [vmem:[#allocation2 + $0x28] sm:$0xff] %vm1708, %v1794
        %v1799 = vpack.c.bf16 %v769, %v766
        %1800 = vmatprep.subr.bf16.mxu0 0
        %1801 = vmatpush1.bf16.msra.mxu0 0
        %1802 = vmatprep.subr.bf16.mxu0 0
        %1803 = vmatpush1.bf16.msra.mxu0 0
        %1804 = vmatprep.subr.bf16.mxu0 0
        %1805 = vmatpush1.bf16.msra.mxu0 0
        %1806 = vmatprep.subr.bf16.mxu0 0
        %1807 = vmatpush1.bf16.msra.mxu0 0
        %1808 = vmatprep.subr.bf16.mxu0 0
        %1809 = vmatpush1.bf16.msra.mxu0 0
        %1810 = vmatprep.subr.bf16.mxu0 0
        %1811 = vmatpush1.bf16.msra.mxu0 0
        %1812 = vmatprep.subr.bf16.mxu0 0
        %1813 = vmatpush1.bf16.msra.mxu0 0
        %1814 = vmatprep.subr.bf16.mxu0 0
        %1815 = vmatpush1.bf16.msra.mxu0 %v1799
        %1816 = vmatprep.subr.bf16.mxu0 0
        %1817 = vmatpush2.bf16.msra.mxu0 0
        %1818 = vmatprep.subr.bf16.mxu0 0
        %1819 = vmatpush2.bf16.msra.mxu0 0
        %1820 = vmatprep.subr.bf16.mxu0 0
        %1821 = vmatpush2.bf16.msra.mxu0 0
        %1822 = vmatprep.subr.bf16.mxu0 0
        %1823 = vmatpush2.bf16.msra.mxu0 0
        %1824 = vmatprep.subr.bf16.mxu0 0
        %1825 = vmatpush2.bf16.msra.mxu0 0
        %1826 = vmatprep.subr.bf16.mxu0 0
        %1827 = vmatpush2.bf16.msra.mxu0 0
        %1828 = vmatprep.subr.bf16.mxu0 0
        %1829 = vmatpush2.bf16.msra.mxu0 0
        %1830 = vmatprep.subr.bf16.mxu0 0
        %1831 = vmatpush2.bf16.msra.mxu0 0
        %1832 = vmatprep.mubr.bf16.mxu0 0
        %1833 = vmatmul.mubr.bf16.gmra.mxu0 %v1665
        %v1834 = vpop.f32.mrf.mxu0
        %v1835 = vadd.f32 0.0, %v1834
        %v1836 = vpop.f32.mrf.mxu0
        %v1837 = vpop.f32.mrf.mxu0
        %v1838 = vadd.f32 0.0, %v1837
        %v1839 = vpop.f32.mrf.mxu0
        %1840 = vdwg.mxu0
        %1841 = vst.msk [vmem:[#allocation2 + $0x30] sm:$0xff] %vm1708, %v1835
        %1842 = vst.msk [vmem:[#allocation2 + $0x38] sm:$0xff] %vm1708, %v1838
        %v1843 = vlaneseq
        %v1844 = vshrl.u32 %v1843, 7
        %v1845 = vsub.s32 1, %v1844
        %v1846 = vrot.slane %v1300, %v1845
        %v1847 = vmul.f32 %v1268, %v1846
        %v1848 = vmul.f32 %v1269, %v1846
        %v1849 = vmul.f32 %v1270, %v1846
        %v1850 = vmul.f32 %v1271, %v1846
        %v1851 = vmul.f32 %v1272, %v1846
        %v1852 = vmul.f32 %v1273, %v1846
        %v1853 = vmul.f32 %v1274, %v1846
        %v1854 = vmul.f32 %v1275, %v1846
        %v1855 = vmul.f32 %v1276, %v1846
        %v1856 = vmul.f32 %v1277, %v1846
        %v1857 = vmul.f32 %v1278, %v1846
        %v1858 = vmul.f32 %v1279, %v1846
        %v1859 = vmul.f32 %v1280, %v1846
        %v1860 = vmul.f32 %v1281, %v1846
        %v1861 = vmul.f32 %v1282, %v1846
        %v1862 = vmul.f32 %v1283, %v1846
        %v1863 = vmul.f32 %v1284, %v1846
        %v1864 = vmul.f32 %v1285, %v1846
        %v1865 = vmul.f32 %v1286, %v1846
        %v1866 = vmul.f32 %v1287, %v1846
        %v1867 = vmul.f32 %v1288, %v1846
        %v1868 = vmul.f32 %v1289, %v1846
        %v1869 = vmul.f32 %v1290, %v1846
        %v1870 = vmul.f32 %v1291, %v1846
        %v1871 = vmul.f32 %v1292, %v1846
        %v1872 = vmul.f32 %v1293, %v1846
        %v1873 = vmul.f32 %v1294, %v1846
        %v1874 = vmul.f32 %v1295, %v1846
        %v1875 = vmul.f32 %v1296, %v1846
        %v1876 = vmul.f32 %v1297, %v1846
        %v1877 = vmul.f32 %v1298, %v1846
        %v1878 = vmul.f32 %v1299, %v1846
        %v1879 = vsel %vm774, %v1847, 0.0
        %1880 = vadd.xlane.f32.xlu0 %v1879
        %v1881 = vpop.xlane.xlu0 %1880
        %v1882 = vsel %vm774, %v1848, 0.0
        %1883 = vadd.xlane.f32.xlu0 %v1882
        %v1884 = vpop.xlane.xlu0 %1883
        %v1885 = vsel %vm774, %v1849, 0.0
        %1886 = vadd.xlane.f32.xlu0 %v1885
        %v1887 = vpop.xlane.xlu0 %1886
        %v1888 = vsel %vm774, %v1850, 0.0
        %1889 = vadd.xlane.f32.xlu0 %v1888
        %v1890 = vpop.xlane.xlu0 %1889
        %v1891 = vsel %vm774, %v1851, 0.0
        %1892 = vadd.xlane.f32.xlu0 %v1891
        %v1893 = vpop.xlane.xlu0 %1892
        %v1894 = vsel %vm774, %v1852, 0.0
        %1895 = vadd.xlane.f32.xlu0 %v1894
        %v1896 = vpop.xlane.xlu0 %1895
        %v1897 = vsel %vm774, %v1853, 0.0
        %1898 = vadd.xlane.f32.xlu0 %v1897
        %v1899 = vpop.xlane.xlu0 %1898
        %v1900 = vsel %vm774, %v1854, 0.0
        %1901 = vadd.xlane.f32.xlu0 %v1900
        %v1902 = vpop.xlane.xlu0 %1901
        %v1903 = vsel %vm774, %v1855, 0.0
        %1904 = vadd.xlane.f32.xlu0 %v1903
        %v1905 = vpop.xlane.xlu0 %1904
        %v1906 = vsel %vm774, %v1856, 0.0
        %1907 = vadd.xlane.f32.xlu0 %v1906
        %v1908 = vpop.xlane.xlu0 %1907
        %v1909 = vsel %vm774, %v1857, 0.0
        %1910 = vadd.xlane.f32.xlu0 %v1909
        %v1911 = vpop.xlane.xlu0 %1910
        %v1912 = vsel %vm774, %v1858, 0.0
        %1913 = vadd.xlane.f32.xlu0 %v1912
        %v1914 = vpop.xlane.xlu0 %1913
        %v1915 = vsel %vm774, %v1859, 0.0
        %1916 = vadd.xlane.f32.xlu0 %v1915
        %v1917 = vpop.xlane.xlu0 %1916
        %v1918 = vsel %vm774, %v1860, 0.0
        %1919 = vadd.xlane.f32.xlu0 %v1918
        %v1920 = vpop.xlane.xlu0 %1919
        %v1921 = vsel %vm774, %v1861, 0.0
        %1922 = vadd.xlane.f32.xlu0 %v1921
        %v1923 = vpop.xlane.xlu0 %1922
        %v1924 = vsel %vm774, %v1862, 0.0
        %1925 = vadd.xlane.f32.xlu0 %v1924
        %v1926 = vpop.xlane.xlu0 %1925
        %v1927 = vsel %vm774, %v1863, 0.0
        %1928 = vadd.xlane.f32.xlu0 %v1927
        %v1929 = vpop.xlane.xlu0 %1928
        %v1930 = vsel %vm774, %v1864, 0.0
        %1931 = vadd.xlane.f32.xlu0 %v1930
        %v1932 = vpop.xlane.xlu0 %1931
        %v1933 = vsel %vm774, %v1865, 0.0
        %1934 = vadd.xlane.f32.xlu0 %v1933
        %v1935 = vpop.xlane.xlu0 %1934
        %v1936 = vsel %vm774, %v1866, 0.0
        %1937 = vadd.xlane.f32.xlu0 %v1936
        %v1938 = vpop.xlane.xlu0 %1937
        %v1939 = vsel %vm774, %v1867, 0.0
        %1940 = vadd.xlane.f32.xlu0 %v1939
        %v1941 = vpop.xlane.xlu0 %1940
        %v1942 = vsel %vm774, %v1868, 0.0
        %1943 = vadd.xlane.f32.xlu0 %v1942
        %v1944 = vpop.xlane.xlu0 %1943
        %v1945 = vsel %vm774, %v1869, 0.0
        %1946 = vadd.xlane.f32.xlu0 %v1945
        %v1947 = vpop.xlane.xlu0 %1946
        %v1948 = vsel %vm774, %v1870, 0.0
        %1949 = vadd.xlane.f32.xlu0 %v1948
        %v1950 = vpop.xlane.xlu0 %1949
        %v1951 = vsel %vm774, %v1871, 0.0
        %1952 = vadd.xlane.f32.xlu0 %v1951
        %v1953 = vpop.xlane.xlu0 %1952
        %v1954 = vsel %vm774, %v1872, 0.0
        %1955 = vadd.xlane.f32.xlu0 %v1954
        %v1956 = vpop.xlane.xlu0 %1955
        %v1957 = vsel %vm774, %v1873, 0.0
        %1958 = vadd.xlane.f32.xlu0 %v1957
        %v1959 = vpop.xlane.xlu0 %1958
        %v1960 = vsel %vm774, %v1874, 0.0
        %1961 = vadd.xlane.f32.xlu0 %v1960
        %v1962 = vpop.xlane.xlu0 %1961
        %v1963 = vsel %vm774, %v1875, 0.0
        %1964 = vadd.xlane.f32.xlu0 %v1963
        %v1965 = vpop.xlane.xlu0 %1964
        %v1966 = vsel %vm774, %v1876, 0.0
        %1967 = vadd.xlane.f32.xlu0 %v1966
        %v1968 = vpop.xlane.xlu0 %1967
        %v1969 = vsel %vm774, %v1877, 0.0
        %1970 = vadd.xlane.f32.xlu0 %v1969
        %v1971 = vpop.xlane.xlu0 %1970
        %v1972 = vsel %vm774, %v1878, 0.0
        %1973 = vadd.xlane.f32.xlu0 %v1972
        %v1974 = vpop.xlane.xlu0 %1973
        %v2007 = vlaneseq
        %v2008 = vshrl.u32 %v2007, 7
        %v2009 = vsub.s32 %v1468, %v2008
        %v2010 = vrot.slane %v1881, %v2009
        %v2011 = vlaneseq
        %v2012 = vshrl.u32 %v2011, 7
        %v2013 = vsub.s32 %v1473, %v2012
        %v2014 = vrot.slane %v1884, %v2013
        %v2015 = vsel %vm1478, %v2014, %v2010
        %v2016 = vlaneseq
        %v2017 = vshrl.u32 %v2016, 7
        %v2018 = vsub.s32 %v1468, %v2017
        %v2019 = vrot.slane %v1887, %v2018
        %v2020 = vlaneseq
        %v2021 = vshrl.u32 %v2020, 7
        %v2022 = vsub.s32 %v1473, %v2021
        %v2023 = vrot.slane %v1890, %v2022
        %v2024 = vsel %vm1478, %v2023, %v2019
        %v2025 = vlaneseq
        %v2026 = vshrl.u32 %v2025, 7
        %v2027 = vsub.s32 %v1468, %v2026
        %v2028 = vrot.slane %v1893, %v2027
        %v2029 = vlaneseq
        %v2030 = vshrl.u32 %v2029, 7
        %v2031 = vsub.s32 %v1473, %v2030
        %v2032 = vrot.slane %v1896, %v2031
        %v2033 = vsel %vm1478, %v2032, %v2028
        %v2034 = vlaneseq
        %v2035 = vshrl.u32 %v2034, 7
        %v2036 = vsub.s32 %v1468, %v2035
        %v2037 = vrot.slane %v1899, %v2036
        %v2038 = vlaneseq
        %v2039 = vshrl.u32 %v2038, 7
        %v2040 = vsub.s32 %v1473, %v2039
        %v2041 = vrot.slane %v1902, %v2040
        %v2042 = vsel %vm1478, %v2041, %v2037
        %v2043 = vlaneseq
        %v2044 = vshrl.u32 %v2043, 7
        %v2045 = vsub.s32 %v1468, %v2044
        %v2046 = vrot.slane %v1905, %v2045
        %v2047 = vlaneseq
        %v2048 = vshrl.u32 %v2047, 7
        %v2049 = vsub.s32 %v1473, %v2048
        %v2050 = vrot.slane %v1908, %v2049
        %v2051 = vsel %vm1478, %v2050, %v2046
        %v2052 = vlaneseq
        %v2053 = vshrl.u32 %v2052, 7
        %v2054 = vsub.s32 %v1468, %v2053
        %v2055 = vrot.slane %v1911, %v2054
        %v2056 = vlaneseq
        %v2057 = vshrl.u32 %v2056, 7
        %v2058 = vsub.s32 %v1473, %v2057
        %v2059 = vrot.slane %v1914, %v2058
        %v2060 = vsel %vm1478, %v2059, %v2055
        %v2061 = vlaneseq
        %v2062 = vshrl.u32 %v2061, 7
        %v2063 = vsub.s32 %v1468, %v2062
        %v2064 = vrot.slane %v1917, %v2063
        %v2065 = vlaneseq
        %v2066 = vshrl.u32 %v2065, 7
        %v2067 = vsub.s32 %v1473, %v2066
        %v2068 = vrot.slane %v1920, %v2067
        %v2069 = vsel %vm1478, %v2068, %v2064
        %v2070 = vlaneseq
        %v2071 = vshrl.u32 %v2070, 7
        %v2072 = vsub.s32 %v1468, %v2071
        %v2073 = vrot.slane %v1923, %v2072
        %v2074 = vlaneseq
        %v2075 = vshrl.u32 %v2074, 7
        %v2076 = vsub.s32 %v1473, %v2075
        %v2077 = vrot.slane %v1926, %v2076
        %v2078 = vsel %vm1478, %v2077, %v2073
        %v2079 = vlaneseq
        %v2080 = vshrl.u32 %v2079, 7
        %v2081 = vsub.s32 %v1468, %v2080
        %v2082 = vrot.slane %v1929, %v2081
        %v2083 = vlaneseq
        %v2084 = vshrl.u32 %v2083, 7
        %v2085 = vsub.s32 %v1473, %v2084
        %v2086 = vrot.slane %v1932, %v2085
        %v2087 = vsel %vm1478, %v2086, %v2082
        %v2088 = vlaneseq
        %v2089 = vshrl.u32 %v2088, 7
        %v2090 = vsub.s32 %v1468, %v2089
        %v2091 = vrot.slane %v1935, %v2090
        %v2092 = vlaneseq
        %v2093 = vshrl.u32 %v2092, 7
        %v2094 = vsub.s32 %v1473, %v2093
        %v2095 = vrot.slane %v1938, %v2094
        %v2096 = vsel %vm1478, %v2095, %v2091
        %v2097 = vlaneseq
        %v2098 = vshrl.u32 %v2097, 7
        %v2099 = vsub.s32 %v1468, %v2098
        %v2100 = vrot.slane %v1941, %v2099
        %v2101 = vlaneseq
        %v2102 = vshrl.u32 %v2101, 7
        %v2103 = vsub.s32 %v1473, %v2102
        %v2104 = vrot.slane %v1944, %v2103
        %v2105 = vsel %vm1478, %v2104, %v2100
        %v2106 = vlaneseq
        %v2107 = vshrl.u32 %v2106, 7
        %v2108 = vsub.s32 %v1468, %v2107
        %v2109 = vrot.slane %v1947, %v2108
        %v2110 = vlaneseq
        %v2111 = vshrl.u32 %v2110, 7
        %v2112 = vsub.s32 %v1473, %v2111
        %v2113 = vrot.slane %v1950, %v2112
        %v2114 = vsel %vm1478, %v2113, %v2109
        %v2115 = vlaneseq
        %v2116 = vshrl.u32 %v2115, 7
        %v2117 = vsub.s32 %v1468, %v2116
        %v2118 = vrot.slane %v1953, %v2117
        %v2119 = vlaneseq
        %v2120 = vshrl.u32 %v2119, 7
        %v2121 = vsub.s32 %v1473, %v2120
        %v2122 = vrot.slane %v1956, %v2121
        %v2123 = vsel %vm1478, %v2122, %v2118
        %v2124 = vlaneseq
        %v2125 = vshrl.u32 %v2124, 7
        %v2126 = vsub.s32 %v1468, %v2125
        %v2127 = vrot.slane %v1959, %v2126
        %v2128 = vlaneseq
        %v2129 = vshrl.u32 %v2128, 7
        %v2130 = vsub.s32 %v1473, %v2129
        %v2131 = vrot.slane %v1962, %v2130
        %v2132 = vsel %vm1478, %v2131, %v2127
        %v2133 = vlaneseq
        %v2134 = vshrl.u32 %v2133, 7
        %v2135 = vsub.s32 %v1468, %v2134
        %v2136 = vrot.slane %v1965, %v2135
        %v2137 = vlaneseq
        %v2138 = vshrl.u32 %v2137, 7
        %v2139 = vsub.s32 %v1473, %v2138
        %v2140 = vrot.slane %v1968, %v2139
        %v2141 = vsel %vm1478, %v2140, %v2136
        %v2142 = vlaneseq
        %v2143 = vshrl.u32 %v2142, 7
        %v2144 = vsub.s32 %v1468, %v2143
        %v2145 = vrot.slane %v1971, %v2144
        %v2146 = vlaneseq
        %v2147 = vshrl.u32 %v2146, 7
        %v2148 = vsub.s32 %v1473, %v2147
        %v2149 = vrot.slane %v1974, %v2148
        %v2150 = vsel %vm1478, %v2149, %v2145
        %v2151 = vsel %vm1615, %v2024, %v2015
        %v2152 = vsel %vm1617, %v2033, %v2151
        %v2153 = vsel %vm1619, %v2042, %v2152
        %v2154 = vsel %vm1621, %v2051, %v2153
        %v2155 = vsel %vm1623, %v2060, %v2154
        %v2156 = vsel %vm1625, %v2069, %v2155
        %v2157 = vsel %vm1627, %v2078, %v2156
        %v2158 = vsel %vm1615, %v2096, %v2087
        %v2159 = vsel %vm1617, %v2105, %v2158
        %v2160 = vsel %vm1619, %v2114, %v2159
        %v2161 = vsel %vm1621, %v2123, %v2160
        %v2162 = vsel %vm1623, %v2132, %v2161
        %v2163 = vsel %vm1625, %v2141, %v2162
        %v2164 = vsel %vm1627, %v2150, %v2163
        %v2167 = vsel %vm1433, %v2157, -3.4028235e+38
        %v2168 = vsel %vm1434, %v2164, -3.4028235e+38
        %v2169 = vsel %vm774, %v2167, -inf
        %2170 = vmax.xlane.f32.xlu0 %v2169
        %v2171 = vpop.xlane.xlu0 %2170
        %v2172 = vsel %vm774, %v2168, -inf
        %2173 = vmax.xlane.f32.xlu0 %v2172
        %v2174 = vpop.xlane.xlu0 %2173
        %v2175 = vsub.f32 %v2167, %v2171
        %v2176 = vsub.f32 %v2168, %v2174
        %v2177 = vmul.f32 %v2175, 1.442695
        %v2178 = vpow.pop %v2177
        %v2179 = vmul.f32 %v2176, 1.442695
        %v2180 = vpow.pop %v2179
        %v2181 = vsel %vm774, %v2178, 0.0
        %2182 = vadd.xlane.f32.xlu0 %v2181
        %v2183 = vpop.xlane.xlu0 %2182
        %v2184 = vsel %vm774, %v2180, 0.0
        %2185 = vadd.xlane.f32.xlu0 %v2184
        %v2186 = vpop.xlane.xlu0 %2185
        %v2187 = vrcp.pop %v2183
        %v2188 = vrcp.pop %v2186
        %v2189 = vmul.f32 %v2178, %v2187
        %v2190 = vmul.f32 %v2180, %v2188
        %v2191 = vpack.c.bf16 %v2190, %v2189
        %2193 = vrot.lane.b32.xlu0 %v1663, 120
        %v2194 = vpop.permute.xlu0 %2193
        %v2197 = vsel %vm774, %v2191, 0
        %2199 = vmatprep.subr.bf16.mxu0 0
        %2200 = vmatpush1.bf16.msra.mxu0 0
        %2201 = vmatprep.subr.bf16.mxu0 0
        %2202 = vmatpush1.bf16.msra.mxu0 0
        %2203 = vmatprep.subr.bf16.mxu0 0
        %2204 = vmatpush1.bf16.msra.mxu0 0
        %2205 = vmatprep.subr.bf16.mxu0 0
        %2206 = vmatpush1.bf16.msra.mxu0 0
        %2207 = vmatprep.subr.bf16.mxu0 0
        %2208 = vmatpush1.bf16.msra.mxu0 0
        %2209 = vmatprep.subr.bf16.mxu0 0
        %2210 = vmatpush1.bf16.msra.mxu0 0
        %2211 = vmatprep.subr.bf16.mxu0 0
        %2212 = vmatpush1.bf16.msra.mxu0 0
        %2213 = vmatprep.subr.bf16.mxu0 0
        %2214 = vmatpush1.bf16.msra.mxu0 %v2194
        %2215 = vmatprep.subr.bf16.mxu0 0
        %2216 = vmatpush2.bf16.msra.mxu0 0
        %2217 = vmatprep.subr.bf16.mxu0 0
        %2218 = vmatpush2.bf16.msra.mxu0 0
        %2219 = vmatprep.subr.bf16.mxu0 0
        %2220 = vmatpush2.bf16.msra.mxu0 0
        %2221 = vmatprep.subr.bf16.mxu0 0
        %2222 = vmatpush2.bf16.msra.mxu0 0
        %2223 = vmatprep.subr.bf16.mxu0 0
        %2224 = vmatpush2.bf16.msra.mxu0 0
        %2225 = vmatprep.subr.bf16.mxu0 0
        %2226 = vmatpush2.bf16.msra.mxu0 0
        %2227 = vmatprep.subr.bf16.mxu0 0
        %2228 = vmatpush2.bf16.msra.mxu0 0
        %2229 = vmatprep.subr.bf16.mxu0 0
        %2230 = vmatpush2.bf16.msra.mxu0 0
        %2231 = vmatprep.mubr.bf16.mxu0 0
        %2232 = vmatmul.mubr.bf16.gmra.mxu0 %v2197
        %v2233 = vpop.f32.mrf.mxu0
        %v2234 = vadd.f32 0.0, %v2233
        %v2235 = vpop.f32.mrf.mxu0
        %v2236 = vpop.f32.mrf.mxu0
        %v2237 = vadd.f32 0.0, %v2236
        %v2238 = vpop.f32.mrf.mxu0
        %2239 = vdwg.mxu0
        %2242 = vrot.lane.b32.xlu0 %v2234, 8
        %v2243 = vpop.permute.xlu0 %2242
        %2244 = vrot.lane.b32.xlu0 %v2237, 8
        %v2245 = vpop.permute.xlu0 %2244
        %2248 = vst.msk [vmem:[#allocation2] sm:$0xff] %vm1478, %v2243
        %2249 = vst.msk [vmem:[#allocation2 + $0x8] sm:$0xff] %vm1478, %v2245
        %2251 = vrot.lane.b32.xlu0 %v1711, 120
        %v2252 = vpop.permute.xlu0 %2251
        %2254 = vmatprep.subr.bf16.mxu0 0
        %2255 = vmatpush1.bf16.msra.mxu0 0
        %2256 = vmatprep.subr.bf16.mxu0 0
        %2257 = vmatpush1.bf16.msra.mxu0 0
        %2258 = vmatprep.subr.bf16.mxu0 0
        %2259 = vmatpush1.bf16.msra.mxu0 0
        %2260 = vmatprep.subr.bf16.mxu0 0
        %2261 = vmatpush1.bf16.msra.mxu0 0
        %2262 = vmatprep.subr.bf16.mxu0 0
        %2263 = vmatpush1.bf16.msra.mxu0 0
        %2264 = vmatprep.subr.bf16.mxu0 0
        %2265 = vmatpush1.bf16.msra.mxu0 0
        %2266 = vmatprep.subr.bf16.mxu0 0
        %2267 = vmatpush1.bf16.msra.mxu0 0
        %2268 = vmatprep.subr.bf16.mxu0 0
        %2269 = vmatpush1.bf16.msra.mxu0 %v2252
        %2270 = vmatprep.subr.bf16.mxu0 0
        %2271 = vmatpush2.bf16.msra.mxu0 0
        %2272 = vmatprep.subr.bf16.mxu0 0
        %2273 = vmatpush2.bf16.msra.mxu0 0
        %2274 = vmatprep.subr.bf16.mxu0 0
        %2275 = vmatpush2.bf16.msra.mxu0 0
        %2276 = vmatprep.subr.bf16.mxu0 0
        %2277 = vmatpush2.bf16.msra.mxu0 0
        %2278 = vmatprep.subr.bf16.mxu0 0
        %2279 = vmatpush2.bf16.msra.mxu0 0
        %2280 = vmatprep.subr.bf16.mxu0 0
        %2281 = vmatpush2.bf16.msra.mxu0 0
        %2282 = vmatprep.subr.bf16.mxu0 0
        %2283 = vmatpush2.bf16.msra.mxu0 0
        %2284 = vmatprep.subr.bf16.mxu0 0
        %2285 = vmatpush2.bf16.msra.mxu0 0
        %2286 = vmatprep.mubr.bf16.mxu0 0
        %2287 = vmatmul.mubr.bf16.gmra.mxu0 %v2197
        %v2288 = vpop.f32.mrf.mxu0
        %v2289 = vadd.f32 0.0, %v2288
        %v2290 = vpop.f32.mrf.mxu0
        %v2291 = vpop.f32.mrf.mxu0
        %v2292 = vadd.f32 0.0, %v2291
        %v2293 = vpop.f32.mrf.mxu0
        %2294 = vdwg.mxu0
        %2297 = vrot.lane.b32.xlu0 %v2289, 8
        %v2298 = vpop.permute.xlu0 %2297
        %2299 = vrot.lane.b32.xlu0 %v2292, 8
        %v2300 = vpop.permute.xlu0 %2299
        %2303 = vst.msk [vmem:[#allocation2 + $0x10] sm:$0xff] %vm1478, %v2298
        %2304 = vst.msk [vmem:[#allocation2 + $0x18] sm:$0xff] %vm1478, %v2300
        %2306 = vrot.lane.b32.xlu0 %v1755, 120
        %v2307 = vpop.permute.xlu0 %2306
        %2309 = vmatprep.subr.bf16.mxu0 0
        %2310 = vmatpush1.bf16.msra.mxu0 0
        %2311 = vmatprep.subr.bf16.mxu0 0
        %2312 = vmatpush1.bf16.msra.mxu0 0
        %2313 = vmatprep.subr.bf16.mxu0 0
        %2314 = vmatpush1.bf16.msra.mxu0 0
        %2315 = vmatprep.subr.bf16.mxu0 0
        %2316 = vmatpush1.bf16.msra.mxu0 0
        %2317 = vmatprep.subr.bf16.mxu0 0
        %2318 = vmatpush1.bf16.msra.mxu0 0
        %2319 = vmatprep.subr.bf16.mxu0 0
        %2320 = vmatpush1.bf16.msra.mxu0 0
        %2321 = vmatprep.subr.bf16.mxu0 0
        %2322 = vmatpush1.bf16.msra.mxu0 0
        %2323 = vmatprep.subr.bf16.mxu0 0
        %2324 = vmatpush1.bf16.msra.mxu0 %v2307
        %2325 = vmatprep.subr.bf16.mxu0 0
        %2326 = vmatpush2.bf16.msra.mxu0 0
        %2327 = vmatprep.subr.bf16.mxu0 0
        %2328 = vmatpush2.bf16.msra.mxu0 0
        %2329 = vmatprep.subr.bf16.mxu0 0
        %2330 = vmatpush2.bf16.msra.mxu0 0
        %2331 = vmatprep.subr.bf16.mxu0 0
        %2332 = vmatpush2.bf16.msra.mxu0 0
        %2333 = vmatprep.subr.bf16.mxu0 0
        %2334 = vmatpush2.bf16.msra.mxu0 0
        %2335 = vmatprep.subr.bf16.mxu0 0
        %2336 = vmatpush2.bf16.msra.mxu0 0
        %2337 = vmatprep.subr.bf16.mxu0 0
        %2338 = vmatpush2.bf16.msra.mxu0 0
        %2339 = vmatprep.subr.bf16.mxu0 0
        %2340 = vmatpush2.bf16.msra.mxu0 0
        %2341 = vmatprep.mubr.bf16.mxu0 0
        %2342 = vmatmul.mubr.bf16.gmra.mxu0 %v2197
        %v2343 = vpop.f32.mrf.mxu0
        %v2344 = vadd.f32 0.0, %v2343
        %v2345 = vpop.f32.mrf.mxu0
        %v2346 = vpop.f32.mrf.mxu0
        %v2347 = vadd.f32 0.0, %v2346
        %v2348 = vpop.f32.mrf.mxu0
        %2349 = vdwg.mxu0
        %2352 = vrot.lane.b32.xlu0 %v2344, 8
        %v2353 = vpop.permute.xlu0 %2352
        %2354 = vrot.lane.b32.xlu0 %v2347, 8
        %v2355 = vpop.permute.xlu0 %2354
        %2358 = vst.msk [vmem:[#allocation2 + $0x20] sm:$0xff] %vm1478, %v2353
        %2359 = vst.msk [vmem:[#allocation2 + $0x28] sm:$0xff] %vm1478, %v2355
        %2361 = vrot.lane.b32.xlu0 %v1799, 120
        %v2362 = vpop.permute.xlu0 %2361
        %2364 = vmatprep.subr.bf16.mxu0 0
        %2365 = vmatpush1.bf16.msra.mxu0 0
        %2366 = vmatprep.subr.bf16.mxu0 0
        %2367 = vmatpush1.bf16.msra.mxu0 0
        %2368 = vmatprep.subr.bf16.mxu0 0
        %2369 = vmatpush1.bf16.msra.mxu0 0
        %2370 = vmatprep.subr.bf16.mxu0 0
        %2371 = vmatpush1.bf16.msra.mxu0 0
        %2372 = vmatprep.subr.bf16.mxu0 0
        %2373 = vmatpush1.bf16.msra.mxu0 0
        %2374 = vmatprep.subr.bf16.mxu0 0
        %2375 = vmatpush1.bf16.msra.mxu0 0
        %2376 = vmatprep.subr.bf16.mxu0 0
        %2377 = vmatpush1.bf16.msra.mxu0 0
        %2378 = vmatprep.subr.bf16.mxu0 0
        %2379 = vmatpush1.bf16.msra.mxu0 %v2362
        %2380 = vmatprep.subr.bf16.mxu0 0
        %2381 = vmatpush2.bf16.msra.mxu0 0
        %2382 = vmatprep.subr.bf16.mxu0 0
        %2383 = vmatpush2.bf16.msra.mxu0 0
        %2384 = vmatprep.subr.bf16.mxu0 0
        %2385 = vmatpush2.bf16.msra.mxu0 0
        %2386 = vmatprep.subr.bf16.mxu0 0
        %2387 = vmatpush2.bf16.msra.mxu0 0
        %2388 = vmatprep.subr.bf16.mxu0 0
        %2389 = vmatpush2.bf16.msra.mxu0 0
        %2390 = vmatprep.subr.bf16.mxu0 0
        %2391 = vmatpush2.bf16.msra.mxu0 0
        %2392 = vmatprep.subr.bf16.mxu0 0
        %2393 = vmatpush2.bf16.msra.mxu0 0
        %2394 = vmatprep.subr.bf16.mxu0 0
        %2395 = vmatpush2.bf16.msra.mxu0 0
        %2396 = vmatprep.mubr.bf16.mxu0 0
        %2397 = vmatmul.mubr.bf16.gmra.mxu0 %v2197
        %v2398 = vpop.f32.mrf.mxu0
        %v2399 = vadd.f32 0.0, %v2398
        %v2400 = vpop.f32.mrf.mxu0
        %v2401 = vpop.f32.mrf.mxu0
        %v2402 = vadd.f32 0.0, %v2401
        %v2403 = vpop.f32.mrf.mxu0
        %2404 = vdwg.mxu0
        %2407 = vrot.lane.b32.xlu0 %v2399, 8
        %v2408 = vpop.permute.xlu0 %2407
        %2409 = vrot.lane.b32.xlu0 %v2402, 8
        %v2410 = vpop.permute.xlu0 %2409
        %2413 = vst.msk [vmem:[#allocation2 + $0x30] sm:$0xff] %vm1478, %v2408
        %2414 = vst.msk [vmem:[#allocation2 + $0x38] sm:$0xff] %vm1478, %v2410
        %v2415 = vlaneseq
        %v2416 = vshrl.u32 %v2415, 7
        %v2417 = vsub.s32 2, %v2416
        %v2418 = vrot.slane %v1300, %v2417
        %v2419 = vmul.f32 %v1268, %v2418
        %v2420 = vmul.f32 %v1269, %v2418
        %v2421 = vmul.f32 %v1270, %v2418
        %v2422 = vmul.f32 %v1271, %v2418
        %v2423 = vmul.f32 %v1272, %v2418
        %v2424 = vmul.f32 %v1273, %v2418
        %v2425 = vmul.f32 %v1274, %v2418
        %v2426 = vmul.f32 %v1275, %v2418
        %v2427 = vmul.f32 %v1276, %v2418
        %v2428 = vmul.f32 %v1277, %v2418
        %v2429 = vmul.f32 %v1278, %v2418
        %v2430 = vmul.f32 %v1279, %v2418
        %v2431 = vmul.f32 %v1280, %v2418
        %v2432 = vmul.f32 %v1281, %v2418
        %v2433 = vmul.f32 %v1282, %v2418
        %v2434 = vmul.f32 %v1283, %v2418
        %v2435 = vmul.f32 %v1284, %v2418
        %v2436 = vmul.f32 %v1285, %v2418
        %v2437 = vmul.f32 %v1286, %v2418
        %v2438 = vmul.f32 %v1287, %v2418
        %v2439 = vmul.f32 %v1288, %v2418
        %v2440 = vmul.f32 %v1289, %v2418
        %v2441 = vmul.f32 %v1290, %v2418
        %v2442 = vmul.f32 %v1291, %v2418
        %v2443 = vmul.f32 %v1292, %v2418
        %v2444 = vmul.f32 %v1293, %v2418
        %v2445 = vmul.f32 %v1294, %v2418
        %v2446 = vmul.f32 %v1295, %v2418
        %v2447 = vmul.f32 %v1296, %v2418
        %v2448 = vmul.f32 %v1297, %v2418
        %v2449 = vmul.f32 %v1298, %v2418
        %v2450 = vmul.f32 %v1299, %v2418
        %v2451 = vsel %vm774, %v2419, 0.0
        %2452 = vadd.xlane.f32.xlu0 %v2451
        %v2453 = vpop.xlane.xlu0 %2452
        %v2454 = vsel %vm774, %v2420, 0.0
        %2455 = vadd.xlane.f32.xlu0 %v2454
        %v2456 = vpop.xlane.xlu0 %2455
        %v2457 = vsel %vm774, %v2421, 0.0
        %2458 = vadd.xlane.f32.xlu0 %v2457
        %v2459 = vpop.xlane.xlu0 %2458
        %v2460 = vsel %vm774, %v2422, 0.0
        %2461 = vadd.xlane.f32.xlu0 %v2460
        %v2462 = vpop.xlane.xlu0 %2461
        %v2463 = vsel %vm774, %v2423, 0.0
        %2464 = vadd.xlane.f32.xlu0 %v2463
        %v2465 = vpop.xlane.xlu0 %2464
        %v2466 = vsel %vm774, %v2424, 0.0
        %2467 = vadd.xlane.f32.xlu0 %v2466
        %v2468 = vpop.xlane.xlu0 %2467
        %v2469 = vsel %vm774, %v2425, 0.0
        %2470 = vadd.xlane.f32.xlu0 %v2469
        %v2471 = vpop.xlane.xlu0 %2470
        %v2472 = vsel %vm774, %v2426, 0.0
        %2473 = vadd.xlane.f32.xlu0 %v2472
        %v2474 = vpop.xlane.xlu0 %2473
        %v2475 = vsel %vm774, %v2427, 0.0
        %2476 = vadd.xlane.f32.xlu0 %v2475
        %v2477 = vpop.xlane.xlu0 %2476
        %v2478 = vsel %vm774, %v2428, 0.0
        %2479 = vadd.xlane.f32.xlu0 %v2478
        %v2480 = vpop.xlane.xlu0 %2479
        %v2481 = vsel %vm774, %v2429, 0.0
        %2482 = vadd.xlane.f32.xlu0 %v2481
        %v2483 = vpop.xlane.xlu0 %2482
        %v2484 = vsel %vm774, %v2430, 0.0
        %2485 = vadd.xlane.f32.xlu0 %v2484
        %v2486 = vpop.xlane.xlu0 %2485
        %v2487 = vsel %vm774, %v2431, 0.0
        %2488 = vadd.xlane.f32.xlu0 %v2487
        %v2489 = vpop.xlane.xlu0 %2488
        %v2490 = vsel %vm774, %v2432, 0.0
        %2491 = vadd.xlane.f32.xlu0 %v2490
        %v2492 = vpop.xlane.xlu0 %2491
        %v2493 = vsel %vm774, %v2433, 0.0
        %2494 = vadd.xlane.f32.xlu0 %v2493
        %v2495 = vpop.xlane.xlu0 %2494
        %v2496 = vsel %vm774, %v2434, 0.0
        %2497 = vadd.xlane.f32.xlu0 %v2496
        %v2498 = vpop.xlane.xlu0 %2497
        %v2499 = vsel %vm774, %v2435, 0.0
        %2500 = vadd.xlane.f32.xlu0 %v2499
        %v2501 = vpop.xlane.xlu0 %2500
        %v2502 = vsel %vm774, %v2436, 0.0
        %2503 = vadd.xlane.f32.xlu0 %v2502
        %v2504 = vpop.xlane.xlu0 %2503
        %v2505 = vsel %vm774, %v2437, 0.0
        %2506 = vadd.xlane.f32.xlu0 %v2505
        %v2507 = vpop.xlane.xlu0 %2506
        %v2508 = vsel %vm774, %v2438, 0.0
        %2509 = vadd.xlane.f32.xlu0 %v2508
        %v2510 = vpop.xlane.xlu0 %2509
        %v2511 = vsel %vm774, %v2439, 0.0
        %2512 = vadd.xlane.f32.xlu0 %v2511
        %v2513 = vpop.xlane.xlu0 %2512
        %v2514 = vsel %vm774, %v2440, 0.0
        %2515 = vadd.xlane.f32.xlu0 %v2514
        %v2516 = vpop.xlane.xlu0 %2515
        %v2517 = vsel %vm774, %v2441, 0.0
        %2518 = vadd.xlane.f32.xlu0 %v2517
        %v2519 = vpop.xlane.xlu0 %2518
        %v2520 = vsel %vm774, %v2442, 0.0
        %2521 = vadd.xlane.f32.xlu0 %v2520
        %v2522 = vpop.xlane.xlu0 %2521
        %v2523 = vsel %vm774, %v2443, 0.0
        %2524 = vadd.xlane.f32.xlu0 %v2523
        %v2525 = vpop.xlane.xlu0 %2524
        %v2526 = vsel %vm774, %v2444, 0.0
        %2527 = vadd.xlane.f32.xlu0 %v2526
        %v2528 = vpop.xlane.xlu0 %2527
        %v2529 = vsel %vm774, %v2445, 0.0
        %2530 = vadd.xlane.f32.xlu0 %v2529
        %v2531 = vpop.xlane.xlu0 %2530
        %v2532 = vsel %vm774, %v2446, 0.0
        %2533 = vadd.xlane.f32.xlu0 %v2532
        %v2534 = vpop.xlane.xlu0 %2533
        %v2535 = vsel %vm774, %v2447, 0.0
        %2536 = vadd.xlane.f32.xlu0 %v2535
        %v2537 = vpop.xlane.xlu0 %2536
        %v2538 = vsel %vm774, %v2448, 0.0
        %2539 = vadd.xlane.f32.xlu0 %v2538
        %v2540 = vpop.xlane.xlu0 %2539
        %v2541 = vsel %vm774, %v2449, 0.0
        %2542 = vadd.xlane.f32.xlu0 %v2541
        %v2543 = vpop.xlane.xlu0 %2542
        %v2544 = vsel %vm774, %v2450, 0.0
        %2545 = vadd.xlane.f32.xlu0 %v2544
        %v2546 = vpop.xlane.xlu0 %2545
        %v2579 = vlaneseq
        %v2580 = vshrl.u32 %v2579, 7
        %v2581 = vsub.s32 %v1468, %v2580
        %v2582 = vrot.slane %v2453, %v2581
        %v2583 = vlaneseq
        %v2584 = vshrl.u32 %v2583, 7
        %v2585 = vsub.s32 %v1473, %v2584
        %v2586 = vrot.slane %v2456, %v2585
        %v2587 = vsel %vm1478, %v2586, %v2582
        %v2588 = vlaneseq
        %v2589 = vshrl.u32 %v2588, 7
        %v2590 = vsub.s32 %v1468, %v2589
        %v2591 = vrot.slane %v2459, %v2590
        %v2592 = vlaneseq
        %v2593 = vshrl.u32 %v2592, 7
        %v2594 = vsub.s32 %v1473, %v2593
        %v2595 = vrot.slane %v2462, %v2594
        %v2596 = vsel %vm1478, %v2595, %v2591
        %v2597 = vlaneseq
        %v2598 = vshrl.u32 %v2597, 7
        %v2599 = vsub.s32 %v1468, %v2598
        %v2600 = vrot.slane %v2465, %v2599
        %v2601 = vlaneseq
        %v2602 = vshrl.u32 %v2601, 7
        %v2603 = vsub.s32 %v1473, %v2602
        %v2604 = vrot.slane %v2468, %v2603
        %v2605 = vsel %vm1478, %v2604, %v2600
        %v2606 = vlaneseq
        %v2607 = vshrl.u32 %v2606, 7
        %v2608 = vsub.s32 %v1468, %v2607
        %v2609 = vrot.slane %v2471, %v2608
        %v2610 = vlaneseq
        %v2611 = vshrl.u32 %v2610, 7
        %v2612 = vsub.s32 %v1473, %v2611
        %v2613 = vrot.slane %v2474, %v2612
        %v2614 = vsel %vm1478, %v2613, %v2609
        %v2615 = vlaneseq
        %v2616 = vshrl.u32 %v2615, 7
        %v2617 = vsub.s32 %v1468, %v2616
        %v2618 = vrot.slane %v2477, %v2617
        %v2619 = vlaneseq
        %v2620 = vshrl.u32 %v2619, 7
        %v2621 = vsub.s32 %v1473, %v2620
        %v2622 = vrot.slane %v2480, %v2621
        %v2623 = vsel %vm1478, %v2622, %v2618
        %v2624 = vlaneseq
        %v2625 = vshrl.u32 %v2624, 7
        %v2626 = vsub.s32 %v1468, %v2625
        %v2627 = vrot.slane %v2483, %v2626
        %v2628 = vlaneseq
        %v2629 = vshrl.u32 %v2628, 7
        %v2630 = vsub.s32 %v1473, %v2629
        %v2631 = vrot.slane %v2486, %v2630
        %v2632 = vsel %vm1478, %v2631, %v2627
        %v2633 = vlaneseq
        %v2634 = vshrl.u32 %v2633, 7
        %v2635 = vsub.s32 %v1468, %v2634
        %v2636 = vrot.slane %v2489, %v2635
        %v2637 = vlaneseq
        %v2638 = vshrl.u32 %v2637, 7
        %v2639 = vsub.s32 %v1473, %v2638
        %v2640 = vrot.slane %v2492, %v2639
        %v2641 = vsel %vm1478, %v2640, %v2636
        %v2642 = vlaneseq
        %v2643 = vshrl.u32 %v2642, 7
        %v2644 = vsub.s32 %v1468, %v2643
        %v2645 = vrot.slane %v2495, %v2644
        %v2646 = vlaneseq
        %v2647 = vshrl.u32 %v2646, 7
        %v2648 = vsub.s32 %v1473, %v2647
        %v2649 = vrot.slane %v2498, %v2648
        %v2650 = vsel %vm1478, %v2649, %v2645
        %v2651 = vlaneseq
        %v2652 = vshrl.u32 %v2651, 7
        %v2653 = vsub.s32 %v1468, %v2652
        %v2654 = vrot.slane %v2501, %v2653
        %v2655 = vlaneseq
        %v2656 = vshrl.u32 %v2655, 7
        %v2657 = vsub.s32 %v1473, %v2656
        %v2658 = vrot.slane %v2504, %v2657
        %v2659 = vsel %vm1478, %v2658, %v2654
        %v2660 = vlaneseq
        %v2661 = vshrl.u32 %v2660, 7
        %v2662 = vsub.s32 %v1468, %v2661
        %v2663 = vrot.slane %v2507, %v2662
        %v2664 = vlaneseq
        %v2665 = vshrl.u32 %v2664, 7
        %v2666 = vsub.s32 %v1473, %v2665
        %v2667 = vrot.slane %v2510, %v2666
        %v2668 = vsel %vm1478, %v2667, %v2663
        %v2669 = vlaneseq
        %v2670 = vshrl.u32 %v2669, 7
        %v2671 = vsub.s32 %v1468, %v2670
        %v2672 = vrot.slane %v2513, %v2671
        %v2673 = vlaneseq
        %v2674 = vshrl.u32 %v2673, 7
        %v2675 = vsub.s32 %v1473, %v2674
        %v2676 = vrot.slane %v2516, %v2675
        %v2677 = vsel %vm1478, %v2676, %v2672
        %v2678 = vlaneseq
        %v2679 = vshrl.u32 %v2678, 7
        %v2680 = vsub.s32 %v1468, %v2679
        %v2681 = vrot.slane %v2519, %v2680
        %v2682 = vlaneseq
        %v2683 = vshrl.u32 %v2682, 7
        %v2684 = vsub.s32 %v1473, %v2683
        %v2685 = vrot.slane %v2522, %v2684
        %v2686 = vsel %vm1478, %v2685, %v2681
        %v2687 = vlaneseq
        %v2688 = vshrl.u32 %v2687, 7
        %v2689 = vsub.s32 %v1468, %v2688
        %v2690 = vrot.slane %v2525, %v2689
        %v2691 = vlaneseq
        %v2692 = vshrl.u32 %v2691, 7
        %v2693 = vsub.s32 %v1473, %v2692
        %v2694 = vrot.slane %v2528, %v2693
        %v2695 = vsel %vm1478, %v2694, %v2690
        %v2696 = vlaneseq
        %v2697 = vshrl.u32 %v2696, 7
        %v2698 = vsub.s32 %v1468, %v2697
        %v2699 = vrot.slane %v2531, %v2698
        %v2700 = vlaneseq
        %v2701 = vshrl.u32 %v2700, 7
        %v2702 = vsub.s32 %v1473, %v2701
        %v2703 = vrot.slane %v2534, %v2702
        %v2704 = vsel %vm1478, %v2703, %v2699
        %v2705 = vlaneseq
        %v2706 = vshrl.u32 %v2705, 7
        %v2707 = vsub.s32 %v1468, %v2706
        %v2708 = vrot.slane %v2537, %v2707
        %v2709 = vlaneseq
        %v2710 = vshrl.u32 %v2709, 7
        %v2711 = vsub.s32 %v1473, %v2710
        %v2712 = vrot.slane %v2540, %v2711
        %v2713 = vsel %vm1478, %v2712, %v2708
        %v2714 = vlaneseq
        %v2715 = vshrl.u32 %v2714, 7
        %v2716 = vsub.s32 %v1468, %v2715
        %v2717 = vrot.slane %v2543, %v2716
        %v2718 = vlaneseq
        %v2719 = vshrl.u32 %v2718, 7
        %v2720 = vsub.s32 %v1473, %v2719
        %v2721 = vrot.slane %v2546, %v2720
        %v2722 = vsel %vm1478, %v2721, %v2717
        %v2723 = vsel %vm1615, %v2596, %v2587
        %v2724 = vsel %vm1617, %v2605, %v2723
        %v2725 = vsel %vm1619, %v2614, %v2724
        %v2726 = vsel %vm1621, %v2623, %v2725
        %v2727 = vsel %vm1623, %v2632, %v2726
        %v2728 = vsel %vm1625, %v2641, %v2727
        %v2729 = vsel %vm1627, %v2650, %v2728
        %v2730 = vsel %vm1615, %v2668, %v2659
        %v2731 = vsel %vm1617, %v2677, %v2730
        %v2732 = vsel %vm1619, %v2686, %v2731
        %v2733 = vsel %vm1621, %v2695, %v2732
        %v2734 = vsel %vm1623, %v2704, %v2733
        %v2735 = vsel %vm1625, %v2713, %v2734
        %v2736 = vsel %vm1627, %v2722, %v2735
        %v2739 = vsel %vm1433, %v2729, -3.4028235e+38
        %v2740 = vsel %vm1434, %v2736, -3.4028235e+38
        %v2741 = vsel %vm774, %v2739, -inf
        %2742 = vmax.xlane.f32.xlu0 %v2741
        %v2743 = vpop.xlane.xlu0 %2742
        %v2744 = vsel %vm774, %v2740, -inf
        %2745 = vmax.xlane.f32.xlu0 %v2744
        %v2746 = vpop.xlane.xlu0 %2745
        %v2747 = vsub.f32 %v2739, %v2743
        %v2748 = vsub.f32 %v2740, %v2746
        %v2749 = vmul.f32 %v2747, 1.442695
        %v2750 = vpow.pop %v2749
        %v2751 = vmul.f32 %v2748, 1.442695
        %v2752 = vpow.pop %v2751
        %v2753 = vsel %vm774, %v2750, 0.0
        %2754 = vadd.xlane.f32.xlu0 %v2753
        %v2755 = vpop.xlane.xlu0 %2754
        %v2756 = vsel %vm774, %v2752, 0.0
        %2757 = vadd.xlane.f32.xlu0 %v2756
        %v2758 = vpop.xlane.xlu0 %2757
        %v2759 = vrcp.pop %v2755
        %v2760 = vrcp.pop %v2758
        %v2761 = vmul.f32 %v2750, %v2759
        %v2762 = vmul.f32 %v2752, %v2760
        %v2763 = vpack.c.bf16 %v2762, %v2761
        %2764 = vrot.lane.b32.xlu0 %v1663, 112
        %v2765 = vpop.permute.xlu0 %2764
        %v2768 = vsel %vm774, %v2763, 0
        %2770 = vmatprep.subr.bf16.mxu0 0
        %2771 = vmatpush1.bf16.msra.mxu0 0
        %2772 = vmatprep.subr.bf16.mxu0 0
        %2773 = vmatpush1.bf16.msra.mxu0 0
        %2774 = vmatprep.subr.bf16.mxu0 0
        %2775 = vmatpush1.bf16.msra.mxu0 0
        %2776 = vmatprep.subr.bf16.mxu0 0
        %2777 = vmatpush1.bf16.msra.mxu0 0
        %2778 = vmatprep.subr.bf16.mxu0 0
        %2779 = vmatpush1.bf16.msra.mxu0 0
        %2780 = vmatprep.subr.bf16.mxu0 0
        %2781 = vmatpush1.bf16.msra.mxu0 0
        %2782 = vmatprep.subr.bf16.mxu0 0
        %2783 = vmatpush1.bf16.msra.mxu0 0
        %2784 = vmatprep.subr.bf16.mxu0 0
        %2785 = vmatpush1.bf16.msra.mxu0 %v2765
        %2786 = vmatprep.subr.bf16.mxu0 0
        %2787 = vmatpush2.bf16.msra.mxu0 0
        %2788 = vmatprep.subr.bf16.mxu0 0
        %2789 = vmatpush2.bf16.msra.mxu0 0
        %2790 = vmatprep.subr.bf16.mxu0 0
        %2791 = vmatpush2.bf16.msra.mxu0 0
        %2792 = vmatprep.subr.bf16.mxu0 0
        %2793 = vmatpush2.bf16.msra.mxu0 0
        %2794 = vmatprep.subr.bf16.mxu0 0
        %2795 = vmatpush2.bf16.msra.mxu0 0
        %2796 = vmatprep.subr.bf16.mxu0 0
        %2797 = vmatpush2.bf16.msra.mxu0 0
        %2798 = vmatprep.subr.bf16.mxu0 0
        %2799 = vmatpush2.bf16.msra.mxu0 0
        %2800 = vmatprep.subr.bf16.mxu0 0
        %2801 = vmatpush2.bf16.msra.mxu0 0
        %2802 = vmatprep.mubr.bf16.mxu0 0
        %2803 = vmatmul.mubr.bf16.gmra.mxu0 %v2768
        %v2804 = vpop.f32.mrf.mxu0
        %v2805 = vadd.f32 0.0, %v2804
        %v2806 = vpop.f32.mrf.mxu0
        %v2807 = vpop.f32.mrf.mxu0
        %v2808 = vadd.f32 0.0, %v2807
        %v2809 = vpop.f32.mrf.mxu0
        %2810 = vdwg.mxu0
        %2813 = vrot.lane.b32.xlu0 %v2805, 16
        %v2814 = vpop.permute.xlu0 %2813
        %2815 = vrot.lane.b32.xlu0 %v2808, 16
        %v2816 = vpop.permute.xlu0 %2815
        %vm2819 = vcmask 195712
        %2820 = vst.msk [vmem:[#allocation2] sm:$0xff] %vm2819, %v2814
        %2821 = vst.msk [vmem:[#allocation2 + $0x8] sm:$0xff] %vm2819, %v2816
        %2822 = vrot.lane.b32.xlu0 %v1711, 112
        %v2823 = vpop.permute.xlu0 %2822
        %2825 = vmatprep.subr.bf16.mxu0 0
        %2826 = vmatpush1.bf16.msra.mxu0 0
        %2827 = vmatprep.subr.bf16.mxu0 0
        %2828 = vmatpush1.bf16.msra.mxu0 0
        %2829 = vmatprep.subr.bf16.mxu0 0
        %2830 = vmatpush1.bf16.msra.mxu0 0
        %2831 = vmatprep.subr.bf16.mxu0 0
        %2832 = vmatpush1.bf16.msra.mxu0 0
        %2833 = vmatprep.subr.bf16.mxu0 0
        %2834 = vmatpush1.bf16.msra.mxu0 0
        %2835 = vmatprep.subr.bf16.mxu0 0
        %2836 = vmatpush1.bf16.msra.mxu0 0
        %2837 = vmatprep.subr.bf16.mxu0 0
        %2838 = vmatpush1.bf16.msra.mxu0 0
        %2839 = vmatprep.subr.bf16.mxu0 0
        %2840 = vmatpush1.bf16.msra.mxu0 %v2823
        %2841 = vmatprep.subr.bf16.mxu0 0
        %2842 = vmatpush2.bf16.msra.mxu0 0
        %2843 = vmatprep.subr.bf16.mxu0 0
        %2844 = vmatpush2.bf16.msra.mxu0 0
        %2845 = vmatprep.subr.bf16.mxu0 0
        %2846 = vmatpush2.bf16.msra.mxu0 0
        %2847 = vmatprep.subr.bf16.mxu0 0
        %2848 = vmatpush2.bf16.msra.mxu0 0
        %2849 = vmatprep.subr.bf16.mxu0 0
        %2850 = vmatpush2.bf16.msra.mxu0 0
        %2851 = vmatprep.subr.bf16.mxu0 0
        %2852 = vmatpush2.bf16.msra.mxu0 0
        %2853 = vmatprep.subr.bf16.mxu0 0
        %2854 = vmatpush2.bf16.msra.mxu0 0
        %2855 = vmatprep.subr.bf16.mxu0 0
        %2856 = vmatpush2.bf16.msra.mxu0 0
        %2857 = vmatprep.mubr.bf16.mxu0 0
        %2858 = vmatmul.mubr.bf16.gmra.mxu0 %v2768
        %v2859 = vpop.f32.mrf.mxu0
        %v2860 = vadd.f32 0.0, %v2859
        %v2861 = vpop.f32.mrf.mxu0
        %v2862 = vpop.f32.mrf.mxu0
        %v2863 = vadd.f32 0.0, %v2862
        %v2864 = vpop.f32.mrf.mxu0
        %2865 = vdwg.mxu0
        %2868 = vrot.lane.b32.xlu0 %v2860, 16
        %v2869 = vpop.permute.xlu0 %2868
        %2870 = vrot.lane.b32.xlu0 %v2863, 16
        %v2871 = vpop.permute.xlu0 %2870
        %2874 = vst.msk [vmem:[#allocation2 + $0x10] sm:$0xff] %vm2819, %v2869
        %2875 = vst.msk [vmem:[#allocation2 + $0x18] sm:$0xff] %vm2819, %v2871
        %2876 = vrot.lane.b32.xlu0 %v1755, 112
        %v2877 = vpop.permute.xlu0 %2876
        %2879 = vmatprep.subr.bf16.mxu0 0
        %2880 = vmatpush1.bf16.msra.mxu0 0
        %2881 = vmatprep.subr.bf16.mxu0 0
        %2882 = vmatpush1.bf16.msra.mxu0 0
        %2883 = vmatprep.subr.bf16.mxu0 0
        %2884 = vmatpush1.bf16.msra.mxu0 0
        %2885 = vmatprep.subr.bf16.mxu0 0
        %2886 = vmatpush1.bf16.msra.mxu0 0
        %2887 = vmatprep.subr.bf16.mxu0 0
        %2888 = vmatpush1.bf16.msra.mxu0 0
        %2889 = vmatprep.subr.bf16.mxu0 0
        %2890 = vmatpush1.bf16.msra.mxu0 0
        %2891 = vmatprep.subr.bf16.mxu0 0
        %2892 = vmatpush1.bf16.msra.mxu0 0
        %2893 = vmatprep.subr.bf16.mxu0 0
        %2894 = vmatpush1.bf16.msra.mxu0 %v2877
        %2895 = vmatprep.subr.bf16.mxu0 0
        %2896 = vmatpush2.bf16.msra.mxu0 0
        %2897 = vmatprep.subr.bf16.mxu0 0
        %2898 = vmatpush2.bf16.msra.mxu0 0
        %2899 = vmatprep.subr.bf16.mxu0 0
        %2900 = vmatpush2.bf16.msra.mxu0 0
        %2901 = vmatprep.subr.bf16.mxu0 0
        %2902 = vmatpush2.bf16.msra.mxu0 0
        %2903 = vmatprep.subr.bf16.mxu0 0
        %2904 = vmatpush2.bf16.msra.mxu0 0
        %2905 = vmatprep.subr.bf16.mxu0 0
        %2906 = vmatpush2.bf16.msra.mxu0 0
        %2907 = vmatprep.subr.bf16.mxu0 0
        %2908 = vmatpush2.bf16.msra.mxu0 0
        %2909 = vmatprep.subr.bf16.mxu0 0
        %2910 = vmatpush2.bf16.msra.mxu0 0
        %2911 = vmatprep.mubr.bf16.mxu0 0
        %2912 = vmatmul.mubr.bf16.gmra.mxu0 %v2768
        %v2913 = vpop.f32.mrf.mxu0
        %v2914 = vadd.f32 0.0, %v2913
        %v2915 = vpop.f32.mrf.mxu0
        %v2916 = vpop.f32.mrf.mxu0
        %v2917 = vadd.f32 0.0, %v2916
        %v2918 = vpop.f32.mrf.mxu0
        %2919 = vdwg.mxu0
        %2922 = vrot.lane.b32.xlu0 %v2914, 16
        %v2923 = vpop.permute.xlu0 %2922
        %2924 = vrot.lane.b32.xlu0 %v2917, 16
        %v2925 = vpop.permute.xlu0 %2924
        %2928 = vst.msk [vmem:[#allocation2 + $0x20] sm:$0xff] %vm2819, %v2923
        %2929 = vst.msk [vmem:[#allocation2 + $0x28] sm:$0xff] %vm2819, %v2925
        %2930 = vrot.lane.b32.xlu0 %v1799, 112
        %v2931 = vpop.permute.xlu0 %2930
        %2933 = vmatprep.subr.bf16.mxu0 0
        %2934 = vmatpush1.bf16.msra.mxu0 0
        %2935 = vmatprep.subr.bf16.mxu0 0
        %2936 = vmatpush1.bf16.msra.mxu0 0
        %2937 = vmatprep.subr.bf16.mxu0 0
        %2938 = vmatpush1.bf16.msra.mxu0 0
        %2939 = vmatprep.subr.bf16.mxu0 0
        %2940 = vmatpush1.bf16.msra.mxu0 0
        %2941 = vmatprep.subr.bf16.mxu0 0
        %2942 = vmatpush1.bf16.msra.mxu0 0
        %2943 = vmatprep.subr.bf16.mxu0 0
        %2944 = vmatpush1.bf16.msra.mxu0 0
        %2945 = vmatprep.subr.bf16.mxu0 0
        %2946 = vmatpush1.bf16.msra.mxu0 0
        %2947 = vmatprep.subr.bf16.mxu0 0
        %2948 = vmatpush1.bf16.msra.mxu0 %v2931
        %2949 = vmatprep.subr.bf16.mxu0 0
        %2950 = vmatpush2.bf16.msra.mxu0 0
        %2951 = vmatprep.subr.bf16.mxu0 0
        %2952 = vmatpush2.bf16.msra.mxu0 0
        %2953 = vmatprep.subr.bf16.mxu0 0
        %2954 = vmatpush2.bf16.msra.mxu0 0
        %2955 = vmatprep.subr.bf16.mxu0 0
        %2956 = vmatpush2.bf16.msra.mxu0 0
        %2957 = vmatprep.subr.bf16.mxu0 0
        %2958 = vmatpush2.bf16.msra.mxu0 0
        %2959 = vmatprep.subr.bf16.mxu0 0
        %2960 = vmatpush2.bf16.msra.mxu0 0
        %2961 = vmatprep.subr.bf16.mxu0 0
        %2962 = vmatpush2.bf16.msra.mxu0 0
        %2963 = vmatprep.subr.bf16.mxu0 0
        %2964 = vmatpush2.bf16.msra.mxu0 0
        %2965 = vmatprep.mubr.bf16.mxu0 0
        %2966 = vmatmul.mubr.bf16.gmra.mxu0 %v2768
        %v2967 = vpop.f32.mrf.mxu0
        %v2968 = vadd.f32 0.0, %v2967
        %v2969 = vpop.f32.mrf.mxu0
        %v2970 = vpop.f32.mrf.mxu0
        %v2971 = vadd.f32 0.0, %v2970
        %v2972 = vpop.f32.mrf.mxu0
        %2973 = vdwg.mxu0
        %2976 = vrot.lane.b32.xlu0 %v2968, 16
        %v2977 = vpop.permute.xlu0 %2976
        %2978 = vrot.lane.b32.xlu0 %v2971, 16
        %v2979 = vpop.permute.xlu0 %2978
        %2982 = vst.msk [vmem:[#allocation2 + $0x30] sm:$0xff] %vm2819, %v2977
        %2983 = vst.msk [vmem:[#allocation2 + $0x38] sm:$0xff] %vm2819, %v2979
        %v2984 = vlaneseq
        %v2985 = vshrl.u32 %v2984, 7
        %v2986 = vsub.s32 3, %v2985
        %v2987 = vrot.slane %v1300, %v2986
        %v2988 = vmul.f32 %v1268, %v2987
        %v2989 = vmul.f32 %v1269, %v2987
        %v2990 = vmul.f32 %v1270, %v2987
        %v2991 = vmul.f32 %v1271, %v2987
        %v2992 = vmul.f32 %v1272, %v2987
        %v2993 = vmul.f32 %v1273, %v2987
        %v2994 = vmul.f32 %v1274, %v2987
        %v2995 = vmul.f32 %v1275, %v2987
        %v2996 = vmul.f32 %v1276, %v2987
        %v2997 = vmul.f32 %v1277, %v2987
        %v2998 = vmul.f32 %v1278, %v2987
        %v2999 = vmul.f32 %v1279, %v2987
        %v3000 = vmul.f32 %v1280, %v2987
        %v3001 = vmul.f32 %v1281, %v2987
        %v3002 = vmul.f32 %v1282, %v2987
        %v3003 = vmul.f32 %v1283, %v2987
        %v3004 = vmul.f32 %v1284, %v2987
        %v3005 = vmul.f32 %v1285, %v2987
        %v3006 = vmul.f32 %v1286, %v2987
        %v3007 = vmul.f32 %v1287, %v2987
        %v3008 = vmul.f32 %v1288, %v2987
        %v3009 = vmul.f32 %v1289, %v2987
        %v3010 = vmul.f32 %v1290, %v2987
        %v3011 = vmul.f32 %v1291, %v2987
        %v3012 = vmul.f32 %v1292, %v2987
        %v3013 = vmul.f32 %v1293, %v2987
        %v3014 = vmul.f32 %v1294, %v2987
        %v3015 = vmul.f32 %v1295, %v2987
        %v3016 = vmul.f32 %v1296, %v2987
        %v3017 = vmul.f32 %v1297, %v2987
        %v3018 = vmul.f32 %v1298, %v2987
        %v3019 = vmul.f32 %v1299, %v2987
        %v3020 = vsel %vm774, %v2988, 0.0
        %3021 = vadd.xlane.f32.xlu0 %v3020
        %v3022 = vpop.xlane.xlu0 %3021
        %v3023 = vsel %vm774, %v2989, 0.0
        %3024 = vadd.xlane.f32.xlu0 %v3023
        %v3025 = vpop.xlane.xlu0 %3024
        %v3026 = vsel %vm774, %v2990, 0.0
        %3027 = vadd.xlane.f32.xlu0 %v3026
        %v3028 = vpop.xlane.xlu0 %3027
        %v3029 = vsel %vm774, %v2991, 0.0
        %3030 = vadd.xlane.f32.xlu0 %v3029
        %v3031 = vpop.xlane.xlu0 %3030
        %v3032 = vsel %vm774, %v2992, 0.0
        %3033 = vadd.xlane.f32.xlu0 %v3032
        %v3034 = vpop.xlane.xlu0 %3033
        %v3035 = vsel %vm774, %v2993, 0.0
        %3036 = vadd.xlane.f32.xlu0 %v3035
        %v3037 = vpop.xlane.xlu0 %3036
        %v3038 = vsel %vm774, %v2994, 0.0
        %3039 = vadd.xlane.f32.xlu0 %v3038
        %v3040 = vpop.xlane.xlu0 %3039
        %v3041 = vsel %vm774, %v2995, 0.0
        %3042 = vadd.xlane.f32.xlu0 %v3041
        %v3043 = vpop.xlane.xlu0 %3042
        %v3044 = vsel %vm774, %v2996, 0.0
        %3045 = vadd.xlane.f32.xlu0 %v3044
        %v3046 = vpop.xlane.xlu0 %3045
        %v3047 = vsel %vm774, %v2997, 0.0
        %3048 = vadd.xlane.f32.xlu0 %v3047
        %v3049 = vpop.xlane.xlu0 %3048
        %v3050 = vsel %vm774, %v2998, 0.0
        %3051 = vadd.xlane.f32.xlu0 %v3050
        %v3052 = vpop.xlane.xlu0 %3051
        %v3053 = vsel %vm774, %v2999, 0.0
        %3054 = vadd.xlane.f32.xlu0 %v3053
        %v3055 = vpop.xlane.xlu0 %3054
        %v3056 = vsel %vm774, %v3000, 0.0
        %3057 = vadd.xlane.f32.xlu0 %v3056
        %v3058 = vpop.xlane.xlu0 %3057
        %v3059 = vsel %vm774, %v3001, 0.0
        %3060 = vadd.xlane.f32.xlu0 %v3059
        %v3061 = vpop.xlane.xlu0 %3060
        %v3062 = vsel %vm774, %v3002, 0.0
        %3063 = vadd.xlane.f32.xlu0 %v3062
        %v3064 = vpop.xlane.xlu0 %3063
        %v3065 = vsel %vm774, %v3003, 0.0
        %3066 = vadd.xlane.f32.xlu0 %v3065
        %v3067 = vpop.xlane.xlu0 %3066
        %v3068 = vsel %vm774, %v3004, 0.0
        %3069 = vadd.xlane.f32.xlu0 %v3068
        %v3070 = vpop.xlane.xlu0 %3069
        %v3071 = vsel %vm774, %v3005, 0.0
        %3072 = vadd.xlane.f32.xlu0 %v3071
        %v3073 = vpop.xlane.xlu0 %3072
        %v3074 = vsel %vm774, %v3006, 0.0
        %3075 = vadd.xlane.f32.xlu0 %v3074
        %v3076 = vpop.xlane.xlu0 %3075
        %v3077 = vsel %vm774, %v3007, 0.0
        %3078 = vadd.xlane.f32.xlu0 %v3077
        %v3079 = vpop.xlane.xlu0 %3078
        %v3080 = vsel %vm774, %v3008, 0.0
        %3081 = vadd.xlane.f32.xlu0 %v3080
        %v3082 = vpop.xlane.xlu0 %3081
        %v3083 = vsel %vm774, %v3009, 0.0
        %3084 = vadd.xlane.f32.xlu0 %v3083
        %v3085 = vpop.xlane.xlu0 %3084
        %v3086 = vsel %vm774, %v3010, 0.0
        %3087 = vadd.xlane.f32.xlu0 %v3086
        %v3088 = vpop.xlane.xlu0 %3087
        %v3089 = vsel %vm774, %v3011, 0.0
        %3090 = vadd.xlane.f32.xlu0 %v3089
        %v3091 = vpop.xlane.xlu0 %3090
        %v3092 = vsel %vm774, %v3012, 0.0
        %3093 = vadd.xlane.f32.xlu0 %v3092
        %v3094 = vpop.xlane.xlu0 %3093
        %v3095 = vsel %vm774, %v3013, 0.0
        %3096 = vadd.xlane.f32.xlu0 %v3095
        %v3097 = vpop.xlane.xlu0 %3096
        %v3098 = vsel %vm774, %v3014, 0.0
        %3099 = vadd.xlane.f32.xlu0 %v3098
        %v3100 = vpop.xlane.xlu0 %3099
        %v3101 = vsel %vm774, %v3015, 0.0
        %3102 = vadd.xlane.f32.xlu0 %v3101
        %v3103 = vpop.xlane.xlu0 %3102
        %v3104 = vsel %vm774, %v3016, 0.0
        %3105 = vadd.xlane.f32.xlu0 %v3104
        %v3106 = vpop.xlane.xlu0 %3105
        %v3107 = vsel %vm774, %v3017, 0.0
        %3108 = vadd.xlane.f32.xlu0 %v3107
        %v3109 = vpop.xlane.xlu0 %3108
        %v3110 = vsel %vm774, %v3018, 0.0
        %3111 = vadd.xlane.f32.xlu0 %v3110
        %v3112 = vpop.xlane.xlu0 %3111
        %v3113 = vsel %vm774, %v3019, 0.0
        %3114 = vadd.xlane.f32.xlu0 %v3113
        %v3115 = vpop.xlane.xlu0 %3114
        %v3148 = vlaneseq
        %v3149 = vshrl.u32 %v3148, 7
        %v3150 = vsub.s32 %v1468, %v3149
        %v3151 = vrot.slane %v3022, %v3150
        %v3152 = vlaneseq
        %v3153 = vshrl.u32 %v3152, 7
        %v3154 = vsub.s32 %v1473, %v3153
        %v3155 = vrot.slane %v3025, %v3154
        %v3156 = vsel %vm1478, %v3155, %v3151
        %v3157 = vlaneseq
        %v3158 = vshrl.u32 %v3157, 7
        %v3159 = vsub.s32 %v1468, %v3158
        %v3160 = vrot.slane %v3028, %v3159
        %v3161 = vlaneseq
        %v3162 = vshrl.u32 %v3161, 7
        %v3163 = vsub.s32 %v1473, %v3162
        %v3164 = vrot.slane %v3031, %v3163
        %v3165 = vsel %vm1478, %v3164, %v3160
        %v3166 = vlaneseq
        %v3167 = vshrl.u32 %v3166, 7
        %v3168 = vsub.s32 %v1468, %v3167
        %v3169 = vrot.slane %v3034, %v3168
        %v3170 = vlaneseq
        %v3171 = vshrl.u32 %v3170, 7
        %v3172 = vsub.s32 %v1473, %v3171
        %v3173 = vrot.slane %v3037, %v3172
        %v3174 = vsel %vm1478, %v3173, %v3169
        %v3175 = vlaneseq
        %v3176 = vshrl.u32 %v3175, 7
        %v3177 = vsub.s32 %v1468, %v3176
        %v3178 = vrot.slane %v3040, %v3177
        %v3179 = vlaneseq
        %v3180 = vshrl.u32 %v3179, 7
        %v3181 = vsub.s32 %v1473, %v3180
        %v3182 = vrot.slane %v3043, %v3181
        %v3183 = vsel %vm1478, %v3182, %v3178
        %v3184 = vlaneseq
        %v3185 = vshrl.u32 %v3184, 7
        %v3186 = vsub.s32 %v1468, %v3185
        %v3187 = vrot.slane %v3046, %v3186
        %v3188 = vlaneseq
        %v3189 = vshrl.u32 %v3188, 7
        %v3190 = vsub.s32 %v1473, %v3189
        %v3191 = vrot.slane %v3049, %v3190
        %v3192 = vsel %vm1478, %v3191, %v3187
        %v3193 = vlaneseq
        %v3194 = vshrl.u32 %v3193, 7
        %v3195 = vsub.s32 %v1468, %v3194
        %v3196 = vrot.slane %v3052, %v3195
        %v3197 = vlaneseq
        %v3198 = vshrl.u32 %v3197, 7
        %v3199 = vsub.s32 %v1473, %v3198
        %v3200 = vrot.slane %v3055, %v3199
        %v3201 = vsel %vm1478, %v3200, %v3196
        %v3202 = vlaneseq
        %v3203 = vshrl.u32 %v3202, 7
        %v3204 = vsub.s32 %v1468, %v3203
        %v3205 = vrot.slane %v3058, %v3204
        %v3206 = vlaneseq
        %v3207 = vshrl.u32 %v3206, 7
        %v3208 = vsub.s32 %v1473, %v3207
        %v3209 = vrot.slane %v3061, %v3208
        %v3210 = vsel %vm1478, %v3209, %v3205
        %v3211 = vlaneseq
        %v3212 = vshrl.u32 %v3211, 7
        %v3213 = vsub.s32 %v1468, %v3212
        %v3214 = vrot.slane %v3064, %v3213
        %v3215 = vlaneseq
        %v3216 = vshrl.u32 %v3215, 7
        %v3217 = vsub.s32 %v1473, %v3216
        %v3218 = vrot.slane %v3067, %v3217
        %v3219 = vsel %vm1478, %v3218, %v3214
        %v3220 = vlaneseq
        %v3221 = vshrl.u32 %v3220, 7
        %v3222 = vsub.s32 %v1468, %v3221
        %v3223 = vrot.slane %v3070, %v3222
        %v3224 = vlaneseq
        %v3225 = vshrl.u32 %v3224, 7
        %v3226 = vsub.s32 %v1473, %v3225
        %v3227 = vrot.slane %v3073, %v3226
        %v3228 = vsel %vm1478, %v3227, %v3223
        %v3229 = vlaneseq
        %v3230 = vshrl.u32 %v3229, 7
        %v3231 = vsub.s32 %v1468, %v3230
        %v3232 = vrot.slane %v3076, %v3231
        %v3233 = vlaneseq
        %v3234 = vshrl.u32 %v3233, 7
        %v3235 = vsub.s32 %v1473, %v3234
        %v3236 = vrot.slane %v3079, %v3235
        %v3237 = vsel %vm1478, %v3236, %v3232
        %v3238 = vlaneseq
        %v3239 = vshrl.u32 %v3238, 7
        %v3240 = vsub.s32 %v1468, %v3239
        %v3241 = vrot.slane %v3082, %v3240
        %v3242 = vlaneseq
        %v3243 = vshrl.u32 %v3242, 7
        %v3244 = vsub.s32 %v1473, %v3243
        %v3245 = vrot.slane %v3085, %v3244
        %v3246 = vsel %vm1478, %v3245, %v3241
        %v3247 = vlaneseq
        %v3248 = vshrl.u32 %v3247, 7
        %v3249 = vsub.s32 %v1468, %v3248
        %v3250 = vrot.slane %v3088, %v3249
        %v3251 = vlaneseq
        %v3252 = vshrl.u32 %v3251, 7
        %v3253 = vsub.s32 %v1473, %v3252
        %v3254 = vrot.slane %v3091, %v3253
        %v3255 = vsel %vm1478, %v3254, %v3250
        %v3256 = vlaneseq
        %v3257 = vshrl.u32 %v3256, 7
        %v3258 = vsub.s32 %v1468, %v3257
        %v3259 = vrot.slane %v3094, %v3258
        %v3260 = vlaneseq
        %v3261 = vshrl.u32 %v3260, 7
        %v3262 = vsub.s32 %v1473, %v3261
        %v3263 = vrot.slane %v3097, %v3262
        %v3264 = vsel %vm1478, %v3263, %v3259
        %v3265 = vlaneseq
        %v3266 = vshrl.u32 %v3265, 7
        %v3267 = vsub.s32 %v1468, %v3266
        %v3268 = vrot.slane %v3100, %v3267
        %v3269 = vlaneseq
        %v3270 = vshrl.u32 %v3269, 7
        %v3271 = vsub.s32 %v1473, %v3270
        %v3272 = vrot.slane %v3103, %v3271
        %v3273 = vsel %vm1478, %v3272, %v3268
        %v3274 = vlaneseq
        %v3275 = vshrl.u32 %v3274, 7
        %v3276 = vsub.s32 %v1468, %v3275
        %v3277 = vrot.slane %v3106, %v3276
        %v3278 = vlaneseq
        %v3279 = vshrl.u32 %v3278, 7
        %v3280 = vsub.s32 %v1473, %v3279
        %v3281 = vrot.slane %v3109, %v3280
        %v3282 = vsel %vm1478, %v3281, %v3277
        %v3283 = vlaneseq
        %v3284 = vshrl.u32 %v3283, 7
        %v3285 = vsub.s32 %v1468, %v3284
        %v3286 = vrot.slane %v3112, %v3285
        %v3287 = vlaneseq
        %v3288 = vshrl.u32 %v3287, 7
        %v3289 = vsub.s32 %v1473, %v3288
        %v3290 = vrot.slane %v3115, %v3289
        %v3291 = vsel %vm1478, %v3290, %v3286
        %v3292 = vsel %vm1615, %v3165, %v3156
        %v3293 = vsel %vm1617, %v3174, %v3292
        %v3294 = vsel %vm1619, %v3183, %v3293
        %v3295 = vsel %vm1621, %v3192, %v3294
        %v3296 = vsel %vm1623, %v3201, %v3295
        %v3297 = vsel %vm1625, %v3210, %v3296
        %v3298 = vsel %vm1627, %v3219, %v3297
        %v3299 = vsel %vm1615, %v3237, %v3228
        %v3300 = vsel %vm1617, %v3246, %v3299
        %v3301 = vsel %vm1619, %v3255, %v3300
        %v3302 = vsel %vm1621, %v3264, %v3301
        %v3303 = vsel %vm1623, %v3273, %v3302
        %v3304 = vsel %vm1625, %v3282, %v3303
        %v3305 = vsel %vm1627, %v3291, %v3304
        %v3308 = vsel %vm1433, %v3298, -3.4028235e+38
        %v3309 = vsel %vm1434, %v3305, -3.4028235e+38
        %v3310 = vsel %vm774, %v3308, -inf
        %3311 = vmax.xlane.f32.xlu0 %v3310
        %v3312 = vpop.xlane.xlu0 %3311
        %v3313 = vsel %vm774, %v3309, -inf
        %3314 = vmax.xlane.f32.xlu0 %v3313
        %v3315 = vpop.xlane.xlu0 %3314
        %v3316 = vsub.f32 %v3308, %v3312
        %v3317 = vsub.f32 %v3309, %v3315
        %v3318 = vmul.f32 %v3316, 1.442695
        %v3319 = vpow.pop %v3318
        %v3320 = vmul.f32 %v3317, 1.442695
        %v3321 = vpow.pop %v3320
        %v3322 = vsel %vm774, %v3319, 0.0
        %3323 = vadd.xlane.f32.xlu0 %v3322
        %v3324 = vpop.xlane.xlu0 %3323
        %v3325 = vsel %vm774, %v3321, 0.0
        %3326 = vadd.xlane.f32.xlu0 %v3325
        %v3327 = vpop.xlane.xlu0 %3326
        %v3328 = vrcp.pop %v3324
        %v3329 = vrcp.pop %v3327
        %v3330 = vmul.f32 %v3319, %v3328
        %v3331 = vmul.f32 %v3321, %v3329
        %v3332 = vpack.c.bf16 %v3331, %v3330
        %3333 = vrot.lane.b32.xlu0 %v1663, 104
        %v3334 = vpop.permute.xlu0 %3333
        %v3337 = vsel %vm774, %v3332, 0
        %3339 = vmatprep.subr.bf16.mxu0 0
        %3340 = vmatpush1.bf16.msra.mxu0 0
        %3341 = vmatprep.subr.bf16.mxu0 0
        %3342 = vmatpush1.bf16.msra.mxu0 0
        %3343 = vmatprep.subr.bf16.mxu0 0
        %3344 = vmatpush1.bf16.msra.mxu0 0
        %3345 = vmatprep.subr.bf16.mxu0 0
        %3346 = vmatpush1.bf16.msra.mxu0 0
        %3347 = vmatprep.subr.bf16.mxu0 0
        %3348 = vmatpush1.bf16.msra.mxu0 0
        %3349 = vmatprep.subr.bf16.mxu0 0
        %3350 = vmatpush1.bf16.msra.mxu0 0
        %3351 = vmatprep.subr.bf16.mxu0 0
        %3352 = vmatpush1.bf16.msra.mxu0 0
        %3353 = vmatprep.subr.bf16.mxu0 0
        %3354 = vmatpush1.bf16.msra.mxu0 %v3334
        %3355 = vmatprep.subr.bf16.mxu0 0
        %3356 = vmatpush2.bf16.msra.mxu0 0
        %3357 = vmatprep.subr.bf16.mxu0 0
        %3358 = vmatpush2.bf16.msra.mxu0 0
        %3359 = vmatprep.subr.bf16.mxu0 0
        %3360 = vmatpush2.bf16.msra.mxu0 0
        %3361 = vmatprep.subr.bf16.mxu0 0
        %3362 = vmatpush2.bf16.msra.mxu0 0
        %3363 = vmatprep.subr.bf16.mxu0 0
        %3364 = vmatpush2.bf16.msra.mxu0 0
        %3365 = vmatprep.subr.bf16.mxu0 0
        %3366 = vmatpush2.bf16.msra.mxu0 0
        %3367 = vmatprep.subr.bf16.mxu0 0
        %3368 = vmatpush2.bf16.msra.mxu0 0
        %3369 = vmatprep.subr.bf16.mxu0 0
        %3370 = vmatpush2.bf16.msra.mxu0 0
        %3371 = vmatprep.mubr.bf16.mxu0 0
        %3372 = vmatmul.mubr.bf16.gmra.mxu0 %v3337
        %v3373 = vpop.f32.mrf.mxu0
        %v3374 = vadd.f32 0.0, %v3373
        %v3375 = vpop.f32.mrf.mxu0
        %v3376 = vpop.f32.mrf.mxu0
        %v3377 = vadd.f32 0.0, %v3376
        %v3378 = vpop.f32.mrf.mxu0
        %3379 = vdwg.mxu0
        %3382 = vrot.lane.b32.xlu0 %v3374, 24
        %v3383 = vpop.permute.xlu0 %3382
        %3384 = vrot.lane.b32.xlu0 %v3377, 24
        %v3385 = vpop.permute.xlu0 %3384
        %vm3388 = vcmask 261312
        %3389 = vst.msk [vmem:[#allocation2] sm:$0xff] %vm3388, %v3383
        %3390 = vst.msk [vmem:[#allocation2 + $0x8] sm:$0xff] %vm3388, %v3385
        %3391 = vrot.lane.b32.xlu0 %v1711, 104
        %v3392 = vpop.permute.xlu0 %3391
        %3394 = vmatprep.subr.bf16.mxu0 0
        %3395 = vmatpush1.bf16.msra.mxu0 0
        %3396 = vmatprep.subr.bf16.mxu0 0
        %3397 = vmatpush1.bf16.msra.mxu0 0
        %3398 = vmatprep.subr.bf16.mxu0 0
        %3399 = vmatpush1.bf16.msra.mxu0 0
        %3400 = vmatprep.subr.bf16.mxu0 0
        %3401 = vmatpush1.bf16.msra.mxu0 0
        %3402 = vmatprep.subr.bf16.mxu0 0
        %3403 = vmatpush1.bf16.msra.mxu0 0
        %3404 = vmatprep.subr.bf16.mxu0 0
        %3405 = vmatpush1.bf16.msra.mxu0 0
        %3406 = vmatprep.subr.bf16.mxu0 0
        %3407 = vmatpush1.bf16.msra.mxu0 0
        %3408 = vmatprep.subr.bf16.mxu0 0
        %3409 = vmatpush1.bf16.msra.mxu0 %v3392
        %3410 = vmatprep.subr.bf16.mxu0 0
        %3411 = vmatpush2.bf16.msra.mxu0 0
        %3412 = vmatprep.subr.bf16.mxu0 0
        %3413 = vmatpush2.bf16.msra.mxu0 0
        %3414 = vmatprep.subr.bf16.mxu0 0
        %3415 = vmatpush2.bf16.msra.mxu0 0
        %3416 = vmatprep.subr.bf16.mxu0 0
        %3417 = vmatpush2.bf16.msra.mxu0 0
        %3418 = vmatprep.subr.bf16.mxu0 0
        %3419 = vmatpush2.bf16.msra.mxu0 0
        %3420 = vmatprep.subr.bf16.mxu0 0
        %3421 = vmatpush2.bf16.msra.mxu0 0
        %3422 = vmatprep.subr.bf16.mxu0 0
        %3423 = vmatpush2.bf16.msra.mxu0 0
        %3424 = vmatprep.subr.bf16.mxu0 0
        %3425 = vmatpush2.bf16.msra.mxu0 0
        %3426 = vmatprep.mubr.bf16.mxu0 0
        %3427 = vmatmul.mubr.bf16.gmra.mxu0 %v3337
        %v3428 = vpop.f32.mrf.mxu0
        %v3429 = vadd.f32 0.0, %v3428
        %v3430 = vpop.f32.mrf.mxu0
        %v3431 = vpop.f32.mrf.mxu0
        %v3432 = vadd.f32 0.0, %v3431
        %v3433 = vpop.f32.mrf.mxu0
        %3434 = vdwg.mxu0
        %3437 = vrot.lane.b32.xlu0 %v3429, 24
        %v3438 = vpop.permute.xlu0 %3437
        %3439 = vrot.lane.b32.xlu0 %v3432, 24
        %v3440 = vpop.permute.xlu0 %3439
        %3443 = vst.msk [vmem:[#allocation2 + $0x10] sm:$0xff] %vm3388, %v3438
        %3444 = vst.msk [vmem:[#allocation2 + $0x18] sm:$0xff] %vm3388, %v3440
        %3445 = vrot.lane.b32.xlu0 %v1755, 104
        %v3446 = vpop.permute.xlu0 %3445
        %3448 = vmatprep.subr.bf16.mxu0 0
        %3449 = vmatpush1.bf16.msra.mxu0 0
        %3450 = vmatprep.subr.bf16.mxu0 0
        %3451 = vmatpush1.bf16.msra.mxu0 0
        %3452 = vmatprep.subr.bf16.mxu0 0
        %3453 = vmatpush1.bf16.msra.mxu0 0
        %3454 = vmatprep.subr.bf16.mxu0 0
        %3455 = vmatpush1.bf16.msra.mxu0 0
        %3456 = vmatprep.subr.bf16.mxu0 0
        %3457 = vmatpush1.bf16.msra.mxu0 0
        %3458 = vmatprep.subr.bf16.mxu0 0
        %3459 = vmatpush1.bf16.msra.mxu0 0
        %3460 = vmatprep.subr.bf16.mxu0 0
        %3461 = vmatpush1.bf16.msra.mxu0 0
        %3462 = vmatprep.subr.bf16.mxu0 0
        %3463 = vmatpush1.bf16.msra.mxu0 %v3446
        %3464 = vmatprep.subr.bf16.mxu0 0
        %3465 = vmatpush2.bf16.msra.mxu0 0
        %3466 = vmatprep.subr.bf16.mxu0 0
        %3467 = vmatpush2.bf16.msra.mxu0 0
        %3468 = vmatprep.subr.bf16.mxu0 0
        %3469 = vmatpush2.bf16.msra.mxu0 0
        %3470 = vmatprep.subr.bf16.mxu0 0
        %3471 = vmatpush2.bf16.msra.mxu0 0
        %3472 = vmatprep.subr.bf16.mxu0 0
        %3473 = vmatpush2.bf16.msra.mxu0 0
        %3474 = vmatprep.subr.bf16.mxu0 0
        %3475 = vmatpush2.bf16.msra.mxu0 0
        %3476 = vmatprep.subr.bf16.mxu0 0
        %3477 = vmatpush2.bf16.msra.mxu0 0
        %3478 = vmatprep.subr.bf16.mxu0 0
        %3479 = vmatpush2.bf16.msra.mxu0 0
        %3480 = vmatprep.mubr.bf16.mxu0 0
        %3481 = vmatmul.mubr.bf16.gmra.mxu0 %v3337
        %v3482 = vpop.f32.mrf.mxu0
        %v3483 = vadd.f32 0.0, %v3482
        %v3484 = vpop.f32.mrf.mxu0
        %v3485 = vpop.f32.mrf.mxu0
        %v3486 = vadd.f32 0.0, %v3485
        %v3487 = vpop.f32.mrf.mxu0
        %3488 = vdwg.mxu0
        %3491 = vrot.lane.b32.xlu0 %v3483, 24
        %v3492 = vpop.permute.xlu0 %3491
        %3493 = vrot.lane.b32.xlu0 %v3486, 24
        %v3494 = vpop.permute.xlu0 %3493
        %3497 = vst.msk [vmem:[#allocation2 + $0x20] sm:$0xff] %vm3388, %v3492
        %3498 = vst.msk [vmem:[#allocation2 + $0x28] sm:$0xff] %vm3388, %v3494
        %3499 = vrot.lane.b32.xlu0 %v1799, 104
        %v3500 = vpop.permute.xlu0 %3499
        %3502 = vmatprep.subr.bf16.mxu0 0
        %3503 = vmatpush1.bf16.msra.mxu0 0
        %3504 = vmatprep.subr.bf16.mxu0 0
        %3505 = vmatpush1.bf16.msra.mxu0 0
        %3506 = vmatprep.subr.bf16.mxu0 0
        %3507 = vmatpush1.bf16.msra.mxu0 0
        %3508 = vmatprep.subr.bf16.mxu0 0
        %3509 = vmatpush1.bf16.msra.mxu0 0
        %3510 = vmatprep.subr.bf16.mxu0 0
        %3511 = vmatpush1.bf16.msra.mxu0 0
        %3512 = vmatprep.subr.bf16.mxu0 0
        %3513 = vmatpush1.bf16.msra.mxu0 0
        %3514 = vmatprep.subr.bf16.mxu0 0
        %3515 = vmatpush1.bf16.msra.mxu0 0
        %3516 = vmatprep.subr.bf16.mxu0 0
        %3517 = vmatpush1.bf16.msra.mxu0 %v3500
        %3518 = vmatprep.subr.bf16.mxu0 0
        %3519 = vmatpush2.bf16.msra.mxu0 0
        %3520 = vmatprep.subr.bf16.mxu0 0
        %3521 = vmatpush2.bf16.msra.mxu0 0
        %3522 = vmatprep.subr.bf16.mxu0 0
        %3523 = vmatpush2.bf16.msra.mxu0 0
        %3524 = vmatprep.subr.bf16.mxu0 0
        %3525 = vmatpush2.bf16.msra.mxu0 0
        %3526 = vmatprep.subr.bf16.mxu0 0
        %3527 = vmatpush2.bf16.msra.mxu0 0
        %3528 = vmatprep.subr.bf16.mxu0 0
        %3529 = vmatpush2.bf16.msra.mxu0 0
        %3530 = vmatprep.subr.bf16.mxu0 0
        %3531 = vmatpush2.bf16.msra.mxu0 0
        %3532 = vmatprep.subr.bf16.mxu0 0
        %3533 = vmatpush2.bf16.msra.mxu0 0
        %3534 = vmatprep.mubr.bf16.mxu0 0
        %3535 = vmatmul.mubr.bf16.gmra.mxu0 %v3337
        %v3536 = vpop.f32.mrf.mxu0
        %v3537 = vadd.f32 0.0, %v3536
        %v3538 = vpop.f32.mrf.mxu0
        %v3539 = vpop.f32.mrf.mxu0
        %v3540 = vadd.f32 0.0, %v3539
        %v3541 = vpop.f32.mrf.mxu0
        %3542 = vdwg.mxu0
        %3545 = vrot.lane.b32.xlu0 %v3537, 24
        %v3546 = vpop.permute.xlu0 %3545
        %3547 = vrot.lane.b32.xlu0 %v3540, 24
        %v3548 = vpop.permute.xlu0 %3547
        %3551 = vst.msk [vmem:[#allocation2 + $0x30] sm:$0xff] %vm3388, %v3546
        %3552 = vst.msk [vmem:[#allocation2 + $0x38] sm:$0xff] %vm3388, %v3548
        %v3553 = vld [vmem:[#allocation2] sm:$0xff]
        %v3554 = vld [vmem:[#allocation2 + $0x8] sm:$0xff]
        %v3555 = vld [vmem:[#allocation2 + $0x10] sm:$0xff]
        %v3556 = vld [vmem:[#allocation2 + $0x18] sm:$0xff]
        %v3557 = vld [vmem:[#allocation2 + $0x20] sm:$0xff]
        %v3558 = vld [vmem:[#allocation2 + $0x28] sm:$0xff]
        %v3559 = vld [vmem:[#allocation2 + $0x30] sm:$0xff]
        %v3560 = vld [vmem:[#allocation2 + $0x38] sm:$0xff]
        %v3561 = vld [vmem:[%s9] sm:$0xff]
        %v3562 = vld [vmem:[%s9 + $0x8] sm:$0xff]
        %v3563 = vld [vmem:[%s9 + $0x10] sm:$0xff]
        %v3564 = vld [vmem:[%s9 + $0x18] sm:$0xff]
        %v3565 = vpack.c.bf16 %v3554, %v3553
        %v3566 = vpack.c.bf16 %v3556, %v3555
        %v3567 = vpack.c.bf16 %v3558, %v3557
        %v3568 = vpack.c.bf16 %v3560, %v3559
        %v3569 = vpack.c.bf16 %v3562, %v3561
        %v3570 = vpack.c.bf16 %v3564, %v3563
        %v3572 = vsel %vm551, %v3565, 0
        %v3575 = vsel %vm551, %v3566, 0
        %v3578 = vsel %vm551, %v3567, 0
        %v3581 = vsel %vm551, %v3568, 0
        %3583 = vmatprep.subr.bf16.mxu0 0
        %3584 = vmatpush1.bf16.msra.mxu0 0
        %3585 = vmatprep.subr.bf16.mxu0 0
        %3586 = vmatpush1.bf16.msra.mxu0 0
        %3587 = vmatprep.subr.bf16.mxu0 0
        %3588 = vmatpush1.bf16.msra.mxu0 0
        %3589 = vmatprep.subr.bf16.mxu0 0
        %3590 = vmatpush1.bf16.msra.mxu0 0
        %3591 = vmatprep.subr.bf16.mxu0 0
        %3592 = vmatpush1.bf16.msra.mxu0 0
        %3593 = vmatprep.subr.bf16.mxu0 0
        %3594 = vmatpush1.bf16.msra.mxu0 0
        %3595 = vmatprep.subr.bf16.mxu0 0
        %3596 = vmatpush1.bf16.msra.mxu0 %v3570
        %3597 = vmatprep.subr.bf16.mxu0 0
        %3598 = vmatpush1.bf16.msra.mxu0 %v3569
        %3599 = vmatprep.subr.bf16.mxu0 0
        %3600 = vmatpush2.bf16.msra.mxu0 0
        %3601 = vmatprep.subr.bf16.mxu0 0
        %3602 = vmatpush2.bf16.msra.mxu0 0
        %3603 = vmatprep.subr.bf16.mxu0 0
        %3604 = vmatpush2.bf16.msra.mxu0 0
        %3605 = vmatprep.subr.bf16.mxu0 0
        %3606 = vmatpush2.bf16.msra.mxu0 0
        %3607 = vmatprep.subr.bf16.mxu0 0
        %3608 = vmatpush2.bf16.msra.mxu0 0
        %3609 = vmatprep.subr.bf16.mxu0 0
        %3610 = vmatpush2.bf16.msra.mxu0 0
        %3611 = vmatprep.subr.bf16.mxu0 0
        %3612 = vmatpush2.bf16.msra.mxu0 0
        %3613 = vmatprep.subr.bf16.mxu0 0
        %3614 = vmatpush2.bf16.msra.mxu0 0
        %3615 = vmatprep.mubr.bf16.mxu0 0
        %3616 = vmatmul.mubr.bf16.gmra.mxu0 %v3572
        %v3617 = vpop.f32.mrf.mxu0
        %v3618 = vadd.f32 0.0, %v3617
        %v3619 = vpop.f32.mrf.mxu0
        %v3620 = vpop.f32.mrf.mxu0
        %v3621 = vadd.f32 0.0, %v3620
        %v3622 = vpop.f32.mrf.mxu0
        %3623 = vmatprep.mubr.bf16.mxu0 0
        %3624 = vmatmul.mubr.bf16.gmra.mxu0 %v3575
        %v3625 = vpop.f32.mrf.mxu0
        %v3626 = vadd.f32 0.0, %v3625
        %v3627 = vpop.f32.mrf.mxu0
        %v3628 = vpop.f32.mrf.mxu0
        %v3629 = vadd.f32 0.0, %v3628
        %v3630 = vpop.f32.mrf.mxu0
        %3631 = vmatprep.mubr.bf16.mxu0 0
        %3632 = vmatmul.mubr.bf16.gmra.mxu0 %v3578
        %v3633 = vpop.f32.mrf.mxu0
        %v3634 = vadd.f32 0.0, %v3633
        %v3635 = vpop.f32.mrf.mxu0
        %v3636 = vpop.f32.mrf.mxu0
        %v3637 = vadd.f32 0.0, %v3636
        %v3638 = vpop.f32.mrf.mxu0
        %3639 = vmatprep.mubr.bf16.mxu0 0
        %3640 = vmatmul.mubr.bf16.gmra.mxu0 %v3581
        %v3641 = vpop.f32.mrf.mxu0
        %v3642 = vadd.f32 0.0, %v3641
        %v3643 = vpop.f32.mrf.mxu0
        %v3644 = vpop.f32.mrf.mxu0
        %v3645 = vadd.f32 0.0, %v3644
        %v3646 = vpop.f32.mrf.mxu0
        %3647 = vdwg.mxu0
        %v3648 = vadd.f32 %v507, %v3618
        %v3649 = vadd.f32 %v508, %v3621
        %v3650 = vadd.f32 %v509, %v3626
        %v3651 = vadd.f32 %v510, %v3629
        %v3652 = vadd.f32 %v511, %v3634
        %v3653 = vadd.f32 %v512, %v3637
        %v3654 = vadd.f32 %v513, %v3642
        %v3655 = vadd.f32 %v514, %v3645
        %v3656 = vld [vmem:[%s10] sm:$0x1]
        %v3657 = vld [vmem:[%s11] sm:$0x1]
        %v3658 = vsel %vm551, %v3648, 0.0
        %3659 = vadd.xlane.f32.xlu0 %v3658
        %v3660 = vpop.xlane.xlu0 %3659
        %v3661 = vsel %vm551, %v3649, 0.0
        %3662 = vadd.xlane.f32.xlu0 %v3661
        %v3663 = vpop.xlane.xlu0 %3662
        %v3664 = vsel %vm551, %v3650, 0.0
        %3665 = vadd.xlane.f32.xlu0 %v3664
        %v3666 = vpop.xlane.xlu0 %3665
        %v3667 = vsel %vm551, %v3651, 0.0
        %3668 = vadd.xlane.f32.xlu0 %v3667
        %v3669 = vpop.xlane.xlu0 %3668
        %v3670 = vsel %vm551, %v3652, 0.0
        %3671 = vadd.xlane.f32.xlu0 %v3670
        %v3672 = vpop.xlane.xlu0 %3671
        %v3673 = vsel %vm551, %v3653, 0.0
        %3674 = vadd.xlane.f32.xlu0 %v3673
        %v3675 = vpop.xlane.xlu0 %3674
        %v3676 = vsel %vm551, %v3654, 0.0
        %3677 = vadd.xlane.f32.xlu0 %v3676
        %v3678 = vpop.xlane.xlu0 %3677
        %v3679 = vsel %vm551, %v3655, 0.0
        %3680 = vadd.xlane.f32.xlu0 %v3679
        %v3681 = vpop.xlane.xlu0 %3680
        %v3682 = vmul.f32 %v3660, %v576
        %v3683 = vmul.f32 %v3663, %v576
        %v3684 = vmul.f32 %v3666, %v576
        %v3685 = vmul.f32 %v3669, %v576
        %v3686 = vmul.f32 %v3672, %v576
        %v3687 = vmul.f32 %v3675, %v576
        %v3688 = vmul.f32 %v3678, %v576
        %v3689 = vmul.f32 %v3681, %v576
        %v3690 = vsub.f32 %v3648, %v3682
        %v3691 = vsub.f32 %v3649, %v3683
        %v3692 = vsub.f32 %v3650, %v3684
        %v3693 = vsub.f32 %v3651, %v3685
        %v3694 = vsub.f32 %v3652, %v3686
        %v3695 = vsub.f32 %v3653, %v3687
        %v3696 = vsub.f32 %v3654, %v3688
        %v3697 = vsub.f32 %v3655, %v3689
        %v3698 = vmul.f32 %v3690, %v3690
        %v3699 = vmul.f32 %v3691, %v3691
        %v3700 = vmul.f32 %v3692, %v3692
        %v3701 = vmul.f32 %v3693, %v3693
        %v3702 = vmul.f32 %v3694, %v3694
        %v3703 = vmul.f32 %v3695, %v3695
        %v3704 = vmul.f32 %v3696, %v3696
        %v3705 = vmul.f32 %v3697, %v3697
        %v3706 = vsel %vm551, %v3698, 0.0
        %3707 = vadd.xlane.f32.xlu0 %v3706
        %v3708 = vpop.xlane.xlu0 %3707
        %v3709 = vsel %vm551, %v3699, 0.0
        %3710 = vadd.xlane.f32.xlu0 %v3709
        %v3711 = vpop.xlane.xlu0 %3710
        %v3712 = vsel %vm551, %v3700, 0.0
        %3713 = vadd.xlane.f32.xlu0 %v3712
        %v3714 = vpop.xlane.xlu0 %3713
        %v3715 = vsel %vm551, %v3701, 0.0
        %3716 = vadd.xlane.f32.xlu0 %v3715
        %v3717 = vpop.xlane.xlu0 %3716
        %v3718 = vsel %vm551, %v3702, 0.0
        %3719 = vadd.xlane.f32.xlu0 %v3718
        %v3720 = vpop.xlane.xlu0 %3719
        %v3721 = vsel %vm551, %v3703, 0.0
        %3722 = vadd.xlane.f32.xlu0 %v3721
        %v3723 = vpop.xlane.xlu0 %3722
        %v3724 = vsel %vm551, %v3704, 0.0
        %3725 = vadd.xlane.f32.xlu0 %v3724
        %v3726 = vpop.xlane.xlu0 %3725
        %v3727 = vsel %vm551, %v3705, 0.0
        %3728 = vadd.xlane.f32.xlu0 %v3727
        %v3729 = vpop.xlane.xlu0 %3728
        %v3730 = vmul.f32 %v3708, %v576
        %v3731 = vmul.f32 %v3711, %v576
        %v3732 = vmul.f32 %v3714, %v576
        %v3733 = vmul.f32 %v3717, %v576
        %v3734 = vmul.f32 %v3720, %v576
        %v3735 = vmul.f32 %v3723, %v576
        %v3736 = vmul.f32 %v3726, %v576
        %v3737 = vmul.f32 %v3729, %v576
        %v3738 = vadd.f32 %v3730, 1e-05
        %v3739 = vadd.f32 %v3731, 1e-05
        %v3740 = vadd.f32 %v3732, 1e-05
        %v3741 = vadd.f32 %v3733, 1e-05
        %v3742 = vadd.f32 %v3734, 1e-05
        %v3743 = vadd.f32 %v3735, 1e-05
        %v3744 = vadd.f32 %v3736, 1e-05
        %v3745 = vadd.f32 %v3737, 1e-05
        %v3746 = vrsqrt.pop %v3738
        %v3747 = vrsqrt.pop %v3739
        %v3748 = vrsqrt.pop %v3740
        %v3749 = vrsqrt.pop %v3741
        %v3750 = vrsqrt.pop %v3742
        %v3751 = vrsqrt.pop %v3743
        %v3752 = vrsqrt.pop %v3744
        %v3753 = vrsqrt.pop %v3745
        %v3754 = vmul.f32 %v3690, %v3746
        %v3755 = vmul.f32 %v3691, %v3747
        %v3756 = vmul.f32 %v3692, %v3748
        %v3757 = vmul.f32 %v3693, %v3749
        %v3758 = vmul.f32 %v3694, %v3750
        %v3759 = vmul.f32 %v3695, %v3751
        %v3760 = vmul.f32 %v3696, %v3752
        %v3761 = vmul.f32 %v3697, %v3753
        %v3763 = vlaneseq
        %v3764 = vshrl.u32 %v3763, 7
        %v3765 = vsub.s32 0, %v3764
        %v3766 = vrot.slane %v3656, %v3765
        %v3768 = vmul.f32 %v3754, %v3766
        %v3769 = vmul.f32 %v3755, %v3766
        %v3770 = vmul.f32 %v3756, %v3766
        %v3771 = vmul.f32 %v3757, %v3766
        %v3772 = vmul.f32 %v3758, %v3766
        %v3773 = vmul.f32 %v3759, %v3766
        %v3774 = vmul.f32 %v3760, %v3766
        %v3775 = vmul.f32 %v3761, %v3766
        %v3777 = vlaneseq
        %v3778 = vshrl.u32 %v3777, 7
        %v3779 = vsub.s32 0, %v3778
        %v3780 = vrot.slane %v3657, %v3779
        %v3782 = vadd.f32 %v3768, %v3780
        %v3783 = vadd.f32 %v3769, %v3780
        %v3784 = vadd.f32 %v3770, %v3780
        %v3785 = vadd.f32 %v3771, %v3780
        %v3786 = vadd.f32 %v3772, %v3780
        %v3787 = vadd.f32 %v3773, %v3780
        %v3788 = vadd.f32 %v3774, %v3780
        %v3789 = vadd.f32 %v3775, %v3780
        %v3790 = vld [vmem:[%s12] sm:$0xff]
        %v3791 = vld [vmem:[%s12 + $0x8] sm:$0xff]
        %v3792 = vld [vmem:[%s12 + $0x10] sm:$0xff]
        %v3793 = vld [vmem:[%s12 + $0x18] sm:$0xff]
        %v3794 = vpack.c.bf16 %v3783, %v3782
        %v3795 = vpack.c.bf16 %v3785, %v3784
        %v3796 = vpack.c.bf16 %v3787, %v3786
        %v3797 = vpack.c.bf16 %v3789, %v3788
        %v3798 = vpack.c.bf16 %v3791, %v3790
        %v3799 = vpack.c.bf16 %v3793, %v3792
        %v3801 = vsel %vm551, %v3794, 0
        %v3804 = vsel %vm551, %v3795, 0
        %v3807 = vsel %vm551, %v3796, 0
        %v3810 = vsel %vm551, %v3797, 0
        %3812 = vmatprep.subr.bf16.mxu0 0
        %3813 = vmatpush1.bf16.msra.mxu0 0
        %3814 = vmatprep.subr.bf16.mxu0 0
        %3815 = vmatpush1.bf16.msra.mxu0 0
        %3816 = vmatprep.subr.bf16.mxu0 0
        %3817 = vmatpush1.bf16.msra.mxu0 0
        %3818 = vmatprep.subr.bf16.mxu0 0
        %3819 = vmatpush1.bf16.msra.mxu0 0
        %3820 = vmatprep.subr.bf16.mxu0 0
        %3821 = vmatpush1.bf16.msra.mxu0 0
        %3822 = vmatprep.subr.bf16.mxu0 0
        %3823 = vmatpush1.bf16.msra.mxu0 0
        %3824 = vmatprep.subr.bf16.mxu0 0
        %3825 = vmatpush1.bf16.msra.mxu0 %v3799
        %3826 = vmatprep.subr.bf16.mxu0 0
        %3827 = vmatpush1.bf16.msra.mxu0 %v3798
        %3828 = vmatprep.subr.bf16.mxu0 0
        %3829 = vmatpush2.bf16.msra.mxu0 0
        %3830 = vmatprep.subr.bf16.mxu0 0
        %3831 = vmatpush2.bf16.msra.mxu0 0
        %3832 = vmatprep.subr.bf16.mxu0 0
        %3833 = vmatpush2.bf16.msra.mxu0 0
        %3834 = vmatprep.subr.bf16.mxu0 0
        %3835 = vmatpush2.bf16.msra.mxu0 0
        %3836 = vmatprep.subr.bf16.mxu0 0
        %3837 = vmatpush2.bf16.msra.mxu0 0
        %3838 = vmatprep.subr.bf16.mxu0 0
        %3839 = vmatpush2.bf16.msra.mxu0 0
        %3840 = vmatprep.subr.bf16.mxu0 0
        %3841 = vmatpush2.bf16.msra.mxu0 0
        %3842 = vmatprep.subr.bf16.mxu0 0
        %3843 = vmatpush2.bf16.msra.mxu0 0
        %3844 = vmatprep.mubr.bf16.mxu0 0
        %3845 = vmatmul.mubr.bf16.gmra.mxu0 %v3801
        %v3846 = vpop.f32.mrf.mxu0
        %v3847 = vadd.f32 0.0, %v3846
        %v3848 = vpop.f32.mrf.mxu0
        %v3849 = vpop.f32.mrf.mxu0
        %v3850 = vadd.f32 0.0, %v3849
        %v3851 = vpop.f32.mrf.mxu0
        %3852 = vmatprep.mubr.bf16.mxu0 0
        %3853 = vmatmul.mubr.bf16.gmra.mxu0 %v3804
        %v3854 = vpop.f32.mrf.mxu0
        %v3855 = vadd.f32 0.0, %v3854
        %v3856 = vpop.f32.mrf.mxu0
        %v3857 = vpop.f32.mrf.mxu0
        %v3858 = vadd.f32 0.0, %v3857
        %v3859 = vpop.f32.mrf.mxu0
        %3860 = vmatprep.mubr.bf16.mxu0 0
        %3861 = vmatmul.mubr.bf16.gmra.mxu0 %v3807
        %v3862 = vpop.f32.mrf.mxu0
        %v3863 = vadd.f32 0.0, %v3862
        %v3864 = vpop.f32.mrf.mxu0
        %v3865 = vpop.f32.mrf.mxu0
        %v3866 = vadd.f32 0.0, %v3865
        %v3867 = vpop.f32.mrf.mxu0
        %3868 = vmatprep.mubr.bf16.mxu0 0
        %3869 = vmatmul.mubr.bf16.gmra.mxu0 %v3810
        %v3870 = vpop.f32.mrf.mxu0
        %v3871 = vadd.f32 0.0, %v3870
        %v3872 = vpop.f32.mrf.mxu0
        %v3873 = vpop.f32.mrf.mxu0
        %v3874 = vadd.f32 0.0, %v3873
        %v3875 = vpop.f32.mrf.mxu0
        %3876 = vdwg.mxu0
        %vm3877 = vcmp.gt.f32.partialorder %v3847, 0.0
        %vm3878 = vcmp.gt.f32.partialorder %v3850, 0.0
        %vm3879 = vcmp.gt.f32.partialorder %v3855, 0.0
        %vm3880 = vcmp.gt.f32.partialorder %v3858, 0.0
        %vm3881 = vcmp.gt.f32.partialorder %v3863, 0.0
        %vm3882 = vcmp.gt.f32.partialorder %v3866, 0.0
        %vm3883 = vcmp.gt.f32.partialorder %v3871, 0.0
        %vm3884 = vcmp.gt.f32.partialorder %v3874, 0.0
        %v3885 = vmin.f32 %v3847, 0.0
        %v3886 = vmin.f32 %v3850, 0.0
        %v3887 = vmin.f32 %v3855, 0.0
        %v3888 = vmin.f32 %v3858, 0.0
        %v3889 = vmin.f32 %v3863, 0.0
        %v3890 = vmin.f32 %v3866, 0.0
        %v3891 = vmin.f32 %v3871, 0.0
        %v3892 = vmin.f32 %v3874, 0.0
        %v3893 = vmul.f32 %v3885, 1.442695
        %v3894 = vpow.pop %v3893
        %v3895 = vmul.f32 %v3886, 1.442695
        %v3896 = vpow.pop %v3895
        %v3897 = vmul.f32 %v3887, 1.442695
        %v3898 = vpow.pop %v3897
        %v3899 = vmul.f32 %v3888, 1.442695
        %v3900 = vpow.pop %v3899
        %v3901 = vmul.f32 %v3889, 1.442695
        %v3902 = vpow.pop %v3901
        %v3903 = vmul.f32 %v3890, 1.442695
        %v3904 = vpow.pop %v3903
        %v3905 = vmul.f32 %v3891, 1.442695
        %v3906 = vpow.pop %v3905
        %v3907 = vmul.f32 %v3892, 1.442695
        %v3908 = vpow.pop %v3907
        %v3909 = vsub.f32 %v3894, 1.0
        %v3910 = vsub.f32 %v3896, 1.0
        %v3911 = vsub.f32 %v3898, 1.0
        %v3912 = vsub.f32 %v3900, 1.0
        %v3913 = vsub.f32 %v3902, 1.0
        %v3914 = vsub.f32 %v3904, 1.0
        %v3915 = vsub.f32 %v3906, 1.0
        %v3916 = vsub.f32 %v3908, 1.0
        %v3917 = vsel %vm3877, %v3847, %v3909
        %v3918 = vsel %vm3878, %v3850, %v3910
        %v3919 = vsel %vm3879, %v3855, %v3911
        %v3920 = vsel %vm3880, %v3858, %v3912
        %v3921 = vsel %vm3881, %v3863, %v3913
        %v3922 = vsel %vm3882, %v3866, %v3914
        %v3923 = vsel %vm3883, %v3871, %v3915
        %v3924 = vsel %vm3884, %v3874, %v3916
        %v3925 = vld [vmem:[%s13] sm:$0xff]
        %v3926 = vld [vmem:[%s13 + $0x8] sm:$0xff]
        %v3927 = vld [vmem:[%s13 + $0x10] sm:$0xff]
        %v3928 = vld [vmem:[%s13 + $0x18] sm:$0xff]
        %v3929 = vpack.c.bf16 %v3918, %v3917
        %v3930 = vpack.c.bf16 %v3920, %v3919
        %v3931 = vpack.c.bf16 %v3922, %v3921
        %v3932 = vpack.c.bf16 %v3924, %v3923
        %v3933 = vpack.c.bf16 %v3926, %v3925
        %v3934 = vpack.c.bf16 %v3928, %v3927
        %v3936 = vsel %vm551, %v3929, 0
        %v3939 = vsel %vm551, %v3930, 0
        %v3942 = vsel %vm551, %v3931, 0
        %v3945 = vsel %vm551, %v3932, 0
        %3947 = vmatprep.subr.bf16.mxu0 0
        %3948 = vmatpush1.bf16.msra.mxu0 0
        %3949 = vmatprep.subr.bf16.mxu0 0
        %3950 = vmatpush1.bf16.msra.mxu0 0
        %3951 = vmatprep.subr.bf16.mxu0 0
        %3952 = vmatpush1.bf16.msra.mxu0 0
        %3953 = vmatprep.subr.bf16.mxu0 0
        %3954 = vmatpush1.bf16.msra.mxu0 0
        %3955 = vmatprep.subr.bf16.mxu0 0
        %3956 = vmatpush1.bf16.msra.mxu0 0
        %3957 = vmatprep.subr.bf16.mxu0 0
        %3958 = vmatpush1.bf16.msra.mxu0 0
        %3959 = vmatprep.subr.bf16.mxu0 0
        %3960 = vmatpush1.bf16.msra.mxu0 %v3934
        %3961 = vmatprep.subr.bf16.mxu0 0
        %3962 = vmatpush1.bf16.msra.mxu0 %v3933
        %3963 = vmatprep.subr.bf16.mxu0 0
        %3964 = vmatpush2.bf16.msra.mxu0 0
        %3965 = vmatprep.subr.bf16.mxu0 0
        %3966 = vmatpush2.bf16.msra.mxu0 0
        %3967 = vmatprep.subr.bf16.mxu0 0
        %3968 = vmatpush2.bf16.msra.mxu0 0
        %3969 = vmatprep.subr.bf16.mxu0 0
        %3970 = vmatpush2.bf16.msra.mxu0 0
        %3971 = vmatprep.subr.bf16.mxu0 0
        %3972 = vmatpush2.bf16.msra.mxu0 0
        %3973 = vmatprep.subr.bf16.mxu0 0
        %3974 = vmatpush2.bf16.msra.mxu0 0
        %3975 = vmatprep.subr.bf16.mxu0 0
        %3976 = vmatpush2.bf16.msra.mxu0 0
        %3977 = vmatprep.subr.bf16.mxu0 0
        %3978 = vmatpush2.bf16.msra.mxu0 0
        %3979 = vmatprep.mubr.bf16.mxu0 0
        %3980 = vmatmul.mubr.bf16.gmra.mxu0 %v3936
        %v3981 = vpop.f32.mrf.mxu0
        %v3982 = vadd.f32 0.0, %v3981
        %v3983 = vpop.f32.mrf.mxu0
        %v3984 = vpop.f32.mrf.mxu0
        %v3985 = vadd.f32 0.0, %v3984
        %v3986 = vpop.f32.mrf.mxu0
        %3987 = vmatprep.mubr.bf16.mxu0 0
        %3988 = vmatmul.mubr.bf16.gmra.mxu0 %v3939
        %v3989 = vpop.f32.mrf.mxu0
        %v3990 = vadd.f32 0.0, %v3989
        %v3991 = vpop.f32.mrf.mxu0
        %v3992 = vpop.f32.mrf.mxu0
        %v3993 = vadd.f32 0.0, %v3992
        %v3994 = vpop.f32.mrf.mxu0
        %3995 = vmatprep.mubr.bf16.mxu0 0
        %3996 = vmatmul.mubr.bf16.gmra.mxu0 %v3942
        %v3997 = vpop.f32.mrf.mxu0
        %v3998 = vadd.f32 0.0, %v3997
        %v3999 = vpop.f32.mrf.mxu0
        %v4000 = vpop.f32.mrf.mxu0
        %v4001 = vadd.f32 0.0, %v4000
        %v4002 = vpop.f32.mrf.mxu0
        %4003 = vmatprep.mubr.bf16.mxu0 0
        %4004 = vmatmul.mubr.bf16.gmra.mxu0 %v3945
        %v4005 = vpop.f32.mrf.mxu0
        %v4006 = vadd.f32 0.0, %v4005
        %v4007 = vpop.f32.mrf.mxu0
        %v4008 = vpop.f32.mrf.mxu0
        %v4009 = vadd.f32 0.0, %v4008
        %v4010 = vpop.f32.mrf.mxu0
        %4011 = vdwg.mxu0
        %v4012 = vadd.f32 %v3648, %v3982
        %v4013 = vadd.f32 %v3649, %v3985
        %v4014 = vadd.f32 %v3650, %v3990
        %v4015 = vadd.f32 %v3651, %v3993
        %v4016 = vadd.f32 %v3652, %v3998
        %v4017 = vadd.f32 %v3653, %v4001
        %v4018 = vadd.f32 %v3654, %v4006
        %v4019 = vadd.f32 %v3655, %v4009
        %4020 = vst.msk [vmem:[%s490] sm:$0xff] %vm551, %v4012
        %4021 = vst.msk [vmem:[%s490 + $0x8] sm:$0xff] %vm551, %v4013
        %4022 = vst.msk [vmem:[%s490 + $0x10] sm:$0xff] %vm551, %v4014
        %4023 = vst.msk [vmem:[%s490 + $0x18] sm:$0xff] %vm551, %v4015
        %4024 = vst.msk [vmem:[%s490 + $0x20] sm:$0xff] %vm551, %v4016
        %4025 = vst.msk [vmem:[%s490 + $0x28] sm:$0xff] %vm551, %v4017
        %4026 = vst.msk [vmem:[%s490 + $0x30] sm:$0xff] %vm551, %v4018
        %4027 = vst.msk [vmem:[%s490 + $0x38] sm:$0xff] %vm551, %v4019
        %s4028 = sand.u32 %s345, 1
        %s4029 = scalar_lea.sflag [#allocation4], %s4028
        %s4030 = sand.u32 %s345, 1
        %s4031 = smul.addr %s4030, 64
        %s4032 = scalar_lea.vmem [#allocation3], %s4031
        // Predicated region
        $region77: #{msa_pair_attention_layer.7} parent=75 // pred_check
          %p4033 = pneg %p355
        $region78: #{msa_pair_attention_layer.7} parent=75 // pred_check_branch
          %4035 = sbr.rel (%p4033) target = $region80
        $region79: #{msa_pair_attention_layer.7} parent=75 // pred_region
          %s4037 = ssub.s32 1024, 1024
          %4038 = vsyncadd %s4029, %s4037
          %s4039 = smul.addr %s28, 8
          %s4040 = smul.addr %s4039, 128
          %s4041 = scalar_lea.hbm %s14, %s4040
          %s4042 = sshll.u32 %s4032, 4
          %s4043 = int_to_ptr.vmem [resolvable:$true] %s4042
          %4048 = dma.vmem_to_hbm [thread:$0]  %s4043, 1024, %s4041, %s4029, 128, 128, 8
        $region80: #{msa_pair_attention_layer.7} parent=75 // pred_fallthru
          _
      $region76: #{msa_pair_attention_layer.7} parent=5 // pred_fallthru
        _
      %p4049 = scmp.le.s32.totalorder 2, %s23
      // Predicated region
      $region81: #{msa_pair_attention_layer.7} parent=5 // pred_check
        %p4050 = pneg %p4049
      $region82: #{msa_pair_attention_layer.7} parent=5 // pred_check_branch
        %4052 = sbr.rel (%p4050) target = $region84
      $region83: #{msa_pair_attention_layer.7} parent=5 // pred_region
        %s4053 = ssub.s32 %s23, 2
        // Predicated region
        $region85: #{msa_pair_attention_layer.7} parent=83 // pred_check
          %p4054 = pneg %p361
        $region86: #{msa_pair_attention_layer.7} parent=83 // pred_check_branch
          %4056 = sbr.rel (%p4054) target = $region88
        $region87: #{msa_pair_attention_layer.7} parent=83 // pred_region
          %s4057 = sand.u32 %s346, 1
          %s4058 = scalar_lea.sflag [#allocation4], %s4057
          %s4059 = sand.u32 %s346, 1
          %s4060 = smul.addr %s4059, 64
          %s4061 = scalar_lea.vmem [#allocation3], %s4060
          %4062 = dma.done %s4058, 1024
        $region88: #{msa_pair_attention_layer.7} parent=83 // pred_fallthru
          _
      $region84: #{msa_pair_attention_layer.7} parent=5 // pred_fallthru
        _
    $region6: #{msa_pair_attention_layer.7} parent=1 // loop_footer
      %s27 = sadd.s32 1, %s23
    $region7: #{msa_pair_attention_layer.7} parent=1 // loop_footer_branch
      %22 = sbr.rel target = $region3
    $region8: #{msa_pair_attention_layer.7} parent=1 // loop_exit
      _
    %4063 = vsyncpa [#allocation4], 1
    %s4064 = scalar_lea.sflag [#allocation4], 1
    %4065 = vsyncpa %s4064, 1

</llo_original>
